<compile_context>
chip_gen: v7x
topology: tpu7x:2x2x1
jax: 0.10.0
libtpu: 0.0.40
codegen_flags: <defaults>
</compile_context>

<pallas_src>
import functools
import math

import jax
import jax.numpy as jnp
from jax import lax
from jax.experimental import pallas as pl
from jax.experimental.pallas import tpu as pltpu

# bf16 MXU inputs (per performance review); accumulation stays f32.
MATMUL_INPUT_DTYPE = jnp.bfloat16
VMEM_LIMIT = 32 * 1024 * 1024


# ----------------------------------------------------------------------------
# Pallas kernel 1: matmul + bias (+ optional fused BN-stats epilogue), tiled
# over M ('parallel') and N ('parallel', tn=128 so v7x's 2 TCs both work).
# ----------------------------------------------------------------------------
def _matmul_bias_act_kernel(a_ref, b_ref, bias_ref, o_ref, *stat_refs,
                            act, n_valid, tm, with_stats):
    a = a_ref[...].astype(MATMUL_INPUT_DTYPE)
    acc = jnp.dot(a, b_ref[...], preferred_element_type=jnp.float32)
    acc = acc + bias_ref[...]

    if with_stats:
        # Per-tile partial sum / sum-of-squares while the tile is in VMEM
        # (removes the separate bn_stats pass over the activation in HBM).
        sum_ref, sq_ref = stat_refs
        i = pl.program_id(0)
        rows = lax.broadcasted_iota(jnp.int32, acc.shape, 0) + i * tm
        z = jnp.where(rows < n_valid, acc, 0.0)     # mask padded / OOB rows
        sum_ref[...] = jnp.sum(z, axis=0).reshape(1, 1, -1)
        sq_ref[...] = jnp.sum(z * z, axis=0).reshape(1, 1, -1)

    if act == "leaky_relu":
        acc = jnp.where(acc >= 0, acc, 0.01 * acc)
    elif act == "tanh":
        acc = jnp.tanh(acc)
    o_ref[...] = acc


def matmul_bias_act(a, b, bias, act="none", with_stats=False,
                    tile_m=512, tile_n=128):
    """a:[M,K] (f32, cast to bf16 in-kernel) @ b:[K,N] (bf16) + bias:[N].

    K is never blocked (block == full dim; Mosaic pads in layout).  Weights /
    bias blocks are grid-invariant along M.  If with_stats, also returns
    per-channel (1,N) sum and sum-of-squares over the valid M rows.
    """
    M, K = (int(d) for d in a.shape)
    N = int(b.shape[1])
    assert not (with_stats and act != "none")

    Mp = M
    if M < 8:                                  # tiny GEMMs: pad rows
        a = jnp.pad(a, ((0, 8 - M), (0, 0)))
        Mp = 8
    tm = min(tile_m, (Mp // 8) * 8)
    grid_m = (Mp + tm - 1) // tm
    tn = tile_n if (N % tile_n == 0 and N > tile_n) else N
    grid_n = N // tn

    bias2 = bias.reshape(1, N).astype(jnp.float32)

    out_shape = jax.ShapeDtypeStruct((Mp, N), jnp.float32)
    out_specs = pl.BlockSpec((tm, tn), lambda i, j: (i, j))
    if with_stats:
        out_shape = (out_shape,
                     jax.ShapeDtypeStruct((grid_m, 1, N), jnp.float32),
                     jax.ShapeDtypeStruct((grid_m, 1, N), jnp.float32))
        out_specs = (out_specs,
                     pl.BlockSpec((1, 1, tn), lambda i, j: (i, 0, j)),
                     pl.BlockSpec((1, 1, tn), lambda i, j: (i, 0, j)))

    cost = pl.CostEstimate(
        flops=2 * Mp * K * N,
        transcendentals=(Mp * N if act == "tanh" else 0),
        bytes_accessed=4 * Mp * K + 2 * K * N + 4 * Mp * N,
    )
    res = pl.pallas_call(
        functools.partial(_matmul_bias_act_kernel, act=act, n_valid=M,
                          tm=tm, with_stats=with_stats),
        out_shape=out_shape,
        grid=(grid_m, grid_n),
        in_specs=[
            pl.BlockSpec((tm, K), lambda i, j: (i, 0)),
            pl.BlockSpec((K, tn), lambda i, j: (0, j)),
            pl.BlockSpec((1, tn), lambda i, j: (0, j)),
        ],
        out_specs=out_specs,
        compiler_params=pltpu.CompilerParams(
            dimension_semantics=("parallel", "parallel"),
            vmem_limit_bytes=VMEM_LIMIT),
        cost_estimate=cost,
    )(a, b, bias2)

    if with_stats:
        out, psum, psq = res
        return out[:M], jnp.sum(psum, axis=0), jnp.sum(psq, axis=0)
    return res[:M]


# ----------------------------------------------------------------------------
# Pallas kernel 2: fused BatchNorm (batch stats) + LeakyReLU + 2x2 max-pool.
# Input viewed as (N, 2*OH, OW, 2*C): contiguous, lane-dense loads, no strided
# ref slices.  Pool = max over the H row pair, then max over the lane halves.
# ----------------------------------------------------------------------------
def _bn_lrelu_pool_kernel(x_ref, sum_ref, sq_ref, g_ref, b_ref, o_ref, *,
                          n_valid, eps, slope, toh, c):
    inv_n = 1.0 / float(n_valid)
    mean = sum_ref[...] * inv_n                       # (1, C)
    var = sum_ref[...] * 0.0 + sq_ref[...] * inv_n - mean * mean
    scale = g_ref[...] * lax.rsqrt(var + eps)
    shift = b_ref[...] - mean * scale
    # Duplicate per-channel affine to match the (OW, 2*C) column-pair layout.
    scale2 = jnp.concatenate([scale, scale], axis=-1)  # (1, 2C)
    shift2 = jnp.concatenate([shift, shift], axis=-1)

    def bn_act(v):                                     # (..., 2C)
        y = v * scale2 + shift2
        return jnp.where(y >= 0, y, slope * y)

    # toh <= 8: bounded unroll, bounded vreg live ranges, all-static indexing.
    for t in range(toh):
        r0 = bn_act(x_ref[0, 2 * t, :, :])             # (OW, 2C)
        r1 = bn_act(x_ref[0, 2 * t + 1, :, :])
        m = jnp.maximum(r0, r1)                        # H-pair max
        o_ref[0, t, :, :] = jnp.maximum(m[:, :c], m[:, c:])   # W-pair max


def bn_lrelu_pool(x_nhwc, ssum, ssq, gamma, beta, eps=1e-5, slope=0.01,
                  max_toh=8):
    """Training-mode BN (stats over the FULL pre-pool tensor) + LeakyReLU +
    F.max_pool2d(2, 2) (floor mode: trailing odd row/col dropped), fused."""
    N, H, W, C = (int(d) for d in x_nhwc.shape)
    OH, OW = H // 2, W // 2
    n_valid = N * H * W                                # BN denominator
    # Crop to even spatial dims (copy only when H/W odd), then a free
    # metadata reshape to the lane-dense (OW, 2*C) adjacent-column layout.
    xc = x_nhwc[:, :2 * OH, :2 * OW, :]
    xr = xc.reshape(N, 2 * OH, OW, 2 * C)

    toh = 1
    for cand in range(min(OH, max_toh), 0, -1):        # largest divisor <= 8
        if OH % cand == 0:
            toh = cand
            break
    grid = (N, OH // toh)

    g2 = gamma.reshape(1, C).astype(jnp.float32)
    b2 = beta.reshape(1, C).astype(jnp.float32)
    return pl.pallas_call(
        functools.partial(_bn_lrelu_pool_kernel, n_valid=n_valid, eps=eps,
                          slope=slope, toh=toh, c=C),
        out_shape=jax.ShapeDtypeStruct((N, OH, OW, C), jnp.float32),
        grid=grid,
        in_specs=[
            pl.BlockSpec((1, 2 * toh, OW, 2 * C), lambda n, t: (n, t, 0, 0)),
            pl.BlockSpec((1, C), lambda n, t: (0, 0)),
            pl.BlockSpec((1, C), lambda n, t: (0, 0)),
            pl.BlockSpec((1, C), lambda n, t: (0, 0)),
            pl.BlockSpec((1, C), lambda n, t: (0, 0)),
        ],
        out_specs=pl.BlockSpec((1, toh, OW, C), lambda n, t: (n, t, 0, 0)),
        compiler_params=pltpu.CompilerParams(
            dimension_semantics=("parallel", "parallel"),
            vmem_limit_bytes=VMEM_LIMIT),
    )(xr, ssum, ssq, g2, b2)


# ----------------------------------------------------------------------------
# Pallas kernel 3: fused head = conv4-as-GEMM + LeakyReLU + 3-layer MLP
# (Linear+LReLU, Linear+LReLU, Linear+Tanh).  All weights resident in VMEM.
# ----------------------------------------------------------------------------
def _head_kernel(h_ref, w4_ref, b4_ref, w1_ref, b1_ref, w2_ref, b2_ref,
                 w3_ref, b3_ref, o_ref):
    def dense(v, w_ref, b_ref):
        return (jnp.dot(v.astype(MATMUL_INPUT_DTYPE), w_ref[...],
                        preferred_element_type=jnp.float32) + b_ref[...])

    def lrelu(v):
        return jnp.where(v >= 0, v, 0.01 * v)

    h = lrelu(dense(h_ref[...], w4_ref, b4_ref))   # conv4 (1x1 spatial) + LReLU
    h = lrelu(dense(h, w1_ref, b1_ref))
    h = lrelu(dense(h, w2_ref, b2_ref))
    o_ref[...] = jnp.tanh(dense(h, w3_ref, b3_ref))


def head_fused(h, w4, b4, w1, b1, w2, b2, w3, b3, tile_b=256):
    M, K = (int(d) for d in h.shape)
    N = int(w3.shape[1])
    Mp = M
    if M < 8:
        h = jnp.pad(h, ((0, 8 - M), (0, 0)))
        Mp = 8
    tb = min(tile_b, (Mp // 8) * 8)
    grid_b = (Mp + tb - 1) // tb

    def inv(i):                                    # grid-invariant weights
        return (0, 0)

    def wspec(w):
        return pl.BlockSpec((int(w.shape[0]), int(w.shape[1])), inv)

    out = pl.pallas_call(
        _head_kernel,
        out_shape=jax.ShapeDtypeStruct((Mp, N), jnp.float32),
        grid=(grid_b,),
        in_specs=[
            pl.BlockSpec((tb, K), lambda i: (i, 0)),
            wspec(w4), pl.BlockSpec((1, int(w4.shape[1])), inv),
            wspec(w1), pl.BlockSpec((1, int(w1.shape[1])), inv),
            wspec(w2), pl.BlockSpec((1, int(w2.shape[1])), inv),
            wspec(w3), pl.BlockSpec((1, N), inv),
        ],
        out_specs=pl.BlockSpec((tb, N), lambda i: (i, 0)),
        compiler_params=pltpu.CompilerParams(
            dimension_semantics=("parallel",),
            vmem_limit_bytes=VMEM_LIMIT),
    )(h, w4, b4.reshape(1, -1), w1, b1.reshape(1, -1),
      w2, b2.reshape(1, -1), w3, b3.reshape(1, -1))
    return out[:M]


# ----------------------------------------------------------------------------
# Plain-JAX glue (layout plumbing only): im2col patch extraction.
# TODO(synk): if input sizes grow, fold im2col into the GEMM via a (kh,kw)
# 'arbitrary' grid axis instead of materializing patches in HBM.
# ----------------------------------------------------------------------------
def im2col_nhwc(x, KH, KW, stride, pad):
    """x: [N,H,W,C] -> patches [N*OH*OW, C*KH*KW] ordered (c, kh, kw) to match
    PyTorch weight.reshape(OC, C*KH*KW)."""
    N, H, W, C = (int(d) for d in x.shape)
    xp = jnp.pad(x, ((0, 0), (pad, pad), (pad, pad), (0, 0)))
    Hp, Wp = H + 2 * pad, W + 2 * pad
    OH = (Hp - KH) // stride + 1
    OW = (Wp - KW) // stride + 1
    cols = []
    for kh in range(KH):
        for kw in range(KW):
            cols.append(
                xp[:, kh:kh + stride * (OH - 1) + 1:stride,
                      kw:kw + stride * (OW - 1) + 1:stride, :]
            )  # [N, OH, OW, C]
    p = jnp.stack(cols, axis=0).reshape(KH, KW, N, OH, OW, C)
    p = p.transpose(2, 3, 4, 5, 0, 1).reshape(N * OH * OW, C * KH * KW)
    return p, OH, OW


def conv2d_block(x_nhwc, w2d, b, KH, KW, stride, pad, act="none",
                 with_stats=False):
    """PyTorch Conv2d via im2col + Pallas matmul. w2d is the pre-transposed
    bf16 [C*KH*KW, OC] weight (prepared once at init)."""
    N = int(x_nhwc.shape[0])
    OC = int(w2d.shape[1])
    patches, OH, OW = im2col_nhwc(x_nhwc, KH, KW, stride, pad)
    if with_stats:
        y, ssum, ssq = matmul_bias_act(patches, w2d, b, act="none",
                                       with_stats=True)
        return y.reshape(N, OH, OW, OC), ssum, ssq
    y = matmul_bias_act(patches, w2d, b, act=act)
    return y.reshape(N, OH, OW, OC)


# ----------------------------------------------------------------------------
# Parameters (kaiming_uniform like the PyTorch __init__), pre-transposed and
# stored in bf16 ONCE at init (no per-forward weight transposes / casts).
# ----------------------------------------------------------------------------
def _kaiming_uniform(key, shape, fan_in):
    bound = math.sqrt(6.0 / fan_in)  # gain(sqrt 2) * sqrt(3 / fan_in)
    return jax.random.uniform(key, shape, jnp.float32, -bound, bound)


def init_params(key, input_dim=1, out_dim=256):
    ks = jax.random.split(key, 7)
    p = {}

    def conv_w(k, oc, c, kh, kw):
        w = _kaiming_uniform(k, (oc, c, kh, kw), c * kh * kw)
        return w.reshape(oc, c * kh * kw).T.astype(MATMUL_INPUT_DTYPE)

    def lin_w(k, out_f, in_f):
        return _kaiming_uniform(k, (out_f, in_f), in_f).T.astype(
            MATMUL_INPUT_DTYPE)

    p["w1"] = conv_w(ks[0], 64, input_dim, 5, 5)
    p["b1"] = jnp.full((64,), 0.01, jnp.float32)
    p["w2"] = conv_w(ks[1], 128, 64, 5, 5)
    p["b2"] = jnp.full((128,), 0.01, jnp.float32)
    p["w3"] = conv_w(ks[2], 256, 128, 3, 3)
    p["b3"] = jnp.full((256,), 0.01, jnp.float32)
    p["w4"] = conv_w(ks[3], 256, 256, 3, 3)
    p["b4"] = jnp.full((256,), 0.01, jnp.float32)
    # BatchNorm affine params (PyTorch default init: gamma=1, beta=0)
    p["g1"], p["be1"] = jnp.ones((64,), jnp.float32), jnp.zeros((64,), jnp.float32)
    p["g2"], p["be2"] = jnp.ones((128,), jnp.float32), jnp.zeros((128,), jnp.float32)
    p["g3"], p["be3"] = jnp.ones((256,), jnp.float32), jnp.zeros((256,), jnp.float32)
    # MLP weights stored [in, out]
    p["mw1"] = lin_w(ks[4], 256, 256)
    p["mb1"] = jnp.full((256,), 0.01, jnp.float32)
    p["mw2"] = lin_w(ks[5], 256, 256)
    p["mb2"] = jnp.full((256,), 0.01, jnp.float32)
    p["mw3"] = lin_w(ks[6], out_dim, 256)
    p["mb3"] = jnp.full((out_dim,), 0.01, jnp.float32)
    return p


# ----------------------------------------------------------------------------
# Forward pass (mirrors CNNNorm.forward)
# ----------------------------------------------------------------------------
def cnn_norm_forward(x_nchw, p):
    x = jnp.transpose(x_nchw, (0, 2, 3, 1)).astype(jnp.float32)  # NCHW -> NHWC

    # conv1 (+ fused BN-stats epilogue) -> BN + leaky_relu + max_pool, fused
    x, s, q = conv2d_block(x, p["w1"], p["b1"], 5, 5, stride=3, pad=2,
                           with_stats=True)
    x = bn_lrelu_pool(x, s, q, p["g1"], p["be1"])

    x, s, q = conv2d_block(x, p["w2"], p["b2"], 5, 5, stride=4, pad=2,
                           with_stats=True)
    x = bn_lrelu_pool(x, s, q, p["g2"], p["be2"])

    x, s, q = conv2d_block(x, p["w3"], p["b3"], 3, 3, stride=2, pad=1,
                           with_stats=True)
    x = bn_lrelu_pool(x, s, q, p["g3"], p["be3"])

    # conv4 + LeakyReLU + 3-layer MLP, fused into one Pallas kernel
    patches, OH, OW = im2col_nhwc(x, 3, 3, 2, 1)
    assert OH == 1 and OW == 1, "input must reduce to 1x1 spatial (view(-1,256))"
    return head_fused(patches, p["w4"], p["b4"], p["mw1"], p["mb1"],
                      p["mw2"], p["mb2"], p["mw3"], p["mb3"])


if __name__ == "__main__":
    key = jax.random.PRNGKey(0)
    k_param, k_x = jax.random.split(key)
    params = init_params(k_param, input_dim=1, out_dim=256)

    # Smallest-ish input whose conv/pool chain reduces to 1x1 spatial (needed
    # for the x.view(-1, 256) semantics): batch=2, channels=1, 128x128.
    x = jax.random.normal(k_x, (2, 1, 128, 128), jnp.float32)

    fwd = jax.jit(cnn_norm_forward)
    out = jax.block_until_ready(fwd(x, params))
    assert out.shape == (2, 256)
    assert bool(jnp.all(jnp.isfinite(out)))
    print("KERNEL_OK")
</pallas_src>

<mosaic_0001>
module attributes {stable_mosaic.version = 11 : i64} {
  func.func @_matmul_bias_act_kernel(%arg0: i32, %arg1: i32, %arg2: memref<512x25xf32, #tpu.memory_space<vmem>>, %arg3: memref<25x64xbf16, #tpu.memory_space<vmem>>, %arg4: memref<1x64xf32, #tpu.memory_space<vmem>>, %arg5: memref<512x64xf32, #tpu.memory_space<vmem>>, %arg6: memref<1x1x64xf32, #tpu.memory_space<vmem>>, %arg7: memref<1x1x64xf32, #tpu.memory_space<vmem>>) attributes {dimension_semantics = [#tpu.dimension_semantics<parallel>, #tpu.dimension_semantics<parallel>], iteration_bounds = array<i64: 8, 1>, scalar_prefetch = 0 : i64, scratch_operands = 0 : i64, tpu.core_type = #tpu.core_type<tc>, window_params = [{transform_indices = @transform_0, window_bounds = array<i64: 512, 25>}, {transform_indices = @transform_1, window_bounds = array<i64: 25, 64>}, {transform_indices = @transform_2, window_bounds = array<i64: 1, 64>}, {transform_indices = @transform_3, window_bounds = array<i64: 512, 64>}, {transform_indices = @transform_4, window_bounds = array<i64: 1, 1, 64>}, {transform_indices = @transform_5, window_bounds = array<i64: 1, 1, 64>}]} {
    %c0 = arith.constant 0 : index
    %c0_0 = arith.constant 0 : index
    %0 = vector.load %arg2[%c0, %c0_0] : memref<512x25xf32, #tpu.memory_space<vmem>>, vector<512x25xf32>
    %1 = arith.truncf %0 : vector<512x25xf32> to vector<512x25xbf16>
    %c0_1 = arith.constant 0 : index
    %c0_2 = arith.constant 0 : index
    %2 = vector.load %arg3[%c0_1, %c0_2] : memref<25x64xbf16, #tpu.memory_space<vmem>>, vector<25x64xbf16>
    %cst = arith.constant dense<0.000000e+00> : vector<512x64xf32>
    %3 = tpu.matmul %1, %2, %cst {dimension_numbers = #tpu.dot_dimension_numbers<[1], [0], [0], [1], [0, 0, 1, 1], [], []>} : vector<512x25xbf16>, vector<25x64xbf16>, vector<512x64xf32> -> vector<512x64xf32>
    %c0_3 = arith.constant 0 : index
    %c0_4 = arith.constant 0 : index
    %4 = vector.load %arg4[%c0_3, %c0_4] : memref<1x64xf32, #tpu.memory_space<vmem>>, vector<1x64xf32>
    %5 = vector.broadcast %4 : vector<1x64xf32> to vector<512x64xf32>
    %6 = arith.addf %3, %5 : vector<512x64xf32>
    %7 = tpu.iota {dimensions = array<i32: 0>} : vector<512x64xi32>
    %c512_i32 = arith.constant 512 : i32
    %8 = arith.muli %arg0, %c512_i32 : i32
    %9 = vector.broadcast %8 : i32 to vector<512x64xi32>
    %10 = arith.addi %7, %9 : vector<512x64xi32>
    %c3698_i32 = arith.constant 3698 : i32
    %11 = vector.broadcast %c3698_i32 : i32 to vector<512x64xi32>
    %12 = arith.cmpi slt, %10, %11 : vector<512x64xi32>
    %cst_5 = arith.constant 0.000000e+00 : f32
    %13 = vector.broadcast %cst_5 : f32 to vector<512x64xf32>
    %14 = arith.select %12, %6, %13 : vector<512x64xi1>, vector<512x64xf32>
    %cst_6 = arith.constant dense<0.000000e+00> : vector<64xf32>
    %15 = vector.multi_reduction <add>, %14, %cst_6 [0] : vector<512x64xf32> to vector<64xf32>
    %16 = vector.shape_cast %15 : vector<64xf32> to vector<1x1x64xf32>
    %c0_7 = arith.constant 0 : index
    %c0_8 = arith.constant 0 : index
    %c0_9 = arith.constant 0 : index
    %17 = vector.load %arg6[%c0_7, %c0_8, %c0_9] : memref<1x1x64xf32, #tpu.memory_space<vmem>>, vector<1x1x64xf32>
    tpu.vector_store %arg6[%c0_7, %c0_8, %c0_9], %16 {strides = array<i32>} : memref<1x1x64xf32, #tpu.memory_space<vmem>>, vector<1x1x64xf32>,
    %18 = arith.mulf %14, %14 : vector<512x64xf32>
    %cst_10 = arith.constant dense<0.000000e+00> : vector<64xf32>
    %19 = vector.multi_reduction <add>, %18, %cst_10 [0] : vector<512x64xf32> to vector<64xf32>
    %20 = vector.shape_cast %19 : vector<64xf32> to vector<1x1x64xf32>
    %c0_11 = arith.constant 0 : index
    %c0_12 = arith.constant 0 : index
    %c0_13 = arith.constant 0 : index
    %21 = vector.load %arg7[%c0_11, %c0_12, %c0_13] : memref<1x1x64xf32, #tpu.memory_space<vmem>>, vector<1x1x64xf32>
    tpu.vector_store %arg7[%c0_11, %c0_12, %c0_13], %20 {strides = array<i32>} : memref<1x1x64xf32, #tpu.memory_space<vmem>>, vector<1x1x64xf32>,
    %c0_14 = arith.constant 0 : index
    %c0_15 = arith.constant 0 : index
    %22 = vector.load %arg5[%c0_14, %c0_15] : memref<512x64xf32, #tpu.memory_space<vmem>>, vector<512x64xf32>
    tpu.vector_store %arg5[%c0_14, %c0_15], %6 {strides = array<i32>} : memref<512x64xf32, #tpu.memory_space<vmem>>, vector<512x64xf32>,
    return
  }
  func.func @transform_0(%arg0: i32, %arg1: i32) -> (i32, i32) {
    %c0_i32 = arith.constant 0 : i32
    %c0_i32_0 = arith.constant 0 : i32
    return %arg0, %c0_i32 : i32, i32
  }
  func.func @transform_1(%arg0: i32, %arg1: i32) -> (i32, i32) {
    %c0_i32 = arith.constant 0 : i32
    %c0_i32_0 = arith.constant 0 : i32
    return %c0_i32, %arg1 : i32, i32
  }
  func.func @transform_2(%arg0: i32, %arg1: i32) -> (i32, i32) {
    %c0_i32 = arith.constant 0 : i32
    %c0_i32_0 = arith.constant 0 : i32
    return %c0_i32, %arg1 : i32, i32
  }
  func.func @transform_3(%arg0: i32, %arg1: i32) -> (i32, i32) {
    %c0_i32 = arith.constant 0 : i32
    return %arg0, %arg1 : i32, i32
  }
  func.func @transform_4(%arg0: i32, %arg1: i32) -> (i32, i32, i32) {
    %c0_i32 = arith.constant 0 : i32
    %c0_i32_0 = arith.constant 0 : i32
    return %arg0, %c0_i32, %arg1 : i32, i32, i32
  }
  func.func @transform_5(%arg0: i32, %arg1: i32) -> (i32, i32, i32) {
    %c0_i32 = arith.constant 0 : i32
    %c0_i32_0 = arith.constant 0 : i32
    return %arg0, %c0_i32, %arg1 : i32, i32, i32
  }
}

module attributes {stable_mosaic.version = 11 : i64} {
  func.func @_bn_lrelu_pool_kernel(%arg0: i32, %arg1: i32, %arg2: memref<1x14x21x128xf32, #tpu.memory_space<vmem>>, %arg3: memref<1x64xf32, #tpu.memory_space<vmem>>, %arg4: memref<1x64xf32, #tpu.memory_space<vmem>>, %arg5: memref<1x64xf32, #tpu.memory_space<vmem>>, %arg6: memref<1x64xf32, #tpu.memory_space<vmem>>, %arg7: memref<1x7x21x64xf32, #tpu.memory_space<vmem>>) attributes {dimension_semantics = [#tpu.dimension_semantics<parallel>, #tpu.dimension_semantics<parallel>], iteration_bounds = array<i64: 2, 3>, scalar_prefetch = 0 : i64, scratch_operands = 0 : i64, tpu.core_type = #tpu.core_type<tc>, window_params = [{transform_indices = @transform_0, window_bounds = array<i64: 1, 14, 21, 128>}, {pipeline_mode = #tpu.pipeline_mode<synchronous>, transform_indices = @transform_1, window_bounds = array<i64: 1, 64>}, {pipeline_mode = #tpu.pipeline_mode<synchronous>, transform_indices = @transform_2, window_bounds = array<i64: 1, 64>}, {pipeline_mode = #tpu.pipeline_mode<synchronous>, transform_indices = @transform_3, window_bounds = array<i64: 1, 64>}, {pipeline_mode = #tpu.pipeline_mode<synchronous>, transform_indices = @transform_4, window_bounds = array<i64: 1, 64>}, {transform_indices = @transform_5, window_bounds = array<i64: 1, 7, 21, 64>}]} {
    %c0 = arith.constant 0 : index
    %c0_0 = arith.constant 0 : index
    %0 = vector.load %arg3[%c0, %c0_0] : memref<1x64xf32, #tpu.memory_space<vmem>>, vector<1x64xf32>
    %cst = arith.constant 2.70416436E-4 : f32
    %1 = vector.broadcast %cst : f32 to vector<1x64xf32>
    %2 = arith.mulf %0, %1 : vector<1x64xf32>
    %c0_1 = arith.constant 0 : index
    %c0_2 = arith.constant 0 : index
    %3 = vector.load %arg3[%c0_1, %c0_2] : memref<1x64xf32, #tpu.memory_space<vmem>>, vector<1x64xf32>
    %cst_3 = arith.constant 0.000000e+00 : f32
    %4 = vector.broadcast %cst_3 : f32 to vector<1x64xf32>
    %5 = arith.mulf %3, %4 : vector<1x64xf32>
    %c0_4 = arith.constant 0 : index
    %c0_5 = arith.constant 0 : index
    %6 = vector.load %arg4[%c0_4, %c0_5] : memref<1x64xf32, #tpu.memory_space<vmem>>, vector<1x64xf32>
    %cst_6 = arith.constant 2.70416436E-4 : f32
    %7 = vector.broadcast %cst_6 : f32 to vector<1x64xf32>
    %8 = arith.mulf %6, %7 : vector<1x64xf32>
    %9 = arith.addf %5, %8 : vector<1x64xf32>
    %10 = arith.mulf %2, %2 : vector<1x64xf32>
    %11 = arith.subf %9, %10 : vector<1x64xf32>
    %c0_7 = arith.constant 0 : index
    %c0_8 = arith.constant 0 : index
    %12 = vector.load %arg5[%c0_7, %c0_8] : memref<1x64xf32, #tpu.memory_space<vmem>>, vector<1x64xf32>
    %cst_9 = arith.constant 9.99999974E-6 : f32
    %13 = vector.broadcast %cst_9 : f32 to vector<1x64xf32>
    %14 = arith.addf %11, %13 : vector<1x64xf32>
    %15 = math.rsqrt %14 : vector<1x64xf32>
    %16 = arith.mulf %12, %15 : vector<1x64xf32>
    %c0_10 = arith.constant 0 : index
    %c0_11 = arith.constant 0 : index
    %17 = vector.load %arg6[%c0_10, %c0_11] : memref<1x64xf32, #tpu.memory_space<vmem>>, vector<1x64xf32>
    %18 = arith.mulf %2, %16 : vector<1x64xf32>
    %19 = arith.subf %17, %18 : vector<1x64xf32>
    %20 = tpu.concatenate %16, %16 in 1 : vector<1x64xf32>, vector<1x64xf32> -> vector<1x128xf32>
    %21 = tpu.concatenate %19, %19 in 1 : vector<1x64xf32>, vector<1x64xf32> -> vector<1x128xf32>
    %c0_12 = arith.constant 0 : index
    %c0_13 = arith.constant 0 : index
    %c0_14 = arith.constant 0 : index
    %c0_15 = arith.constant 0 : index
    %22 = vector.load %arg2[%c0_12, %c0_13, %c0_14, %c0_15] : memref<1x14x21x128xf32, #tpu.memory_space<vmem>>, vector<1x1x21x128xf32>
    %23 = vector.shape_cast %22 : vector<1x1x21x128xf32> to vector<21x128xf32>
    %24 = vector.broadcast %20 : vector<1x128xf32> to vector<21x128xf32>
    %25 = arith.mulf %23, %24 : vector<21x128xf32>
    %26 = vector.broadcast %21 : vector<1x128xf32> to vector<21x128xf32>
    %27 = arith.addf %25, %26 : vector<21x128xf32>
    %cst_16 = arith.constant 0.000000e+00 : f32
    %28 = vector.broadcast %cst_16 : f32 to vector<21x128xf32>
    %29 = arith.cmpf oge, %27, %28 : vector<21x128xf32>
    %cst_17 = arith.constant 0.00999999977 : f32
    %30 = vector.broadcast %cst_17 : f32 to vector<21x128xf32>
    %31 = arith.mulf %30, %27 : vector<21x128xf32>
    %32 = arith.select %29, %27, %31 : vector<21x128xi1>, vector<21x128xf32>
    %c0_18 = arith.constant 0 : index
    %c1 = arith.constant 1 : index
    %c0_19 = arith.constant 0 : index
    %c0_20 = arith.constant 0 : index
    %33 = vector.load %arg2[%c0_18, %c1, %c0_19, %c0_20] : memref<1x14x21x128xf32, #tpu.memory_space<vmem>>, vector<1x1x21x128xf32>
    %34 = vector.shape_cast %33 : vector<1x1x21x128xf32> to vector<21x128xf32>
    %35 = vector.broadcast %20 : vector<1x128xf32> to vector<21x128xf32>
    %36 = arith.mulf %34, %35 : vector<21x128xf32>
    %37 = vector.broadcast %21 : vector<1x128xf32> to vector<21x128xf32>
    %38 = arith.addf %36, %37 : vector<21x128xf32>
    %cst_21 = arith.constant 0.000000e+00 : f32
    %39 = vector.broadcast %cst_21 : f32 to vector<21x128xf32>
    %40 = arith.cmpf oge, %38, %39 : vector<21x128xf32>
    %cst_22 = arith.constant 0.00999999977 : f32
    %41 = vector.broadcast %cst_22 : f32 to vector<21x128xf32>
    %42 = arith.mulf %41, %38 : vector<21x128xf32>
    %43 = arith.select %40, %38, %42 : vector<21x128xi1>, vector<21x128xf32>
    %44 = arith.maximumf %32, %43 : vector<21x128xf32>
    %45 = vector.extract_strided_slice %44 {offsets = [0, 0], sizes = [21, 64], strides = [1, 1]} : vector<21x128xf32> to vector<21x64xf32>
    %46 = vector.extract_strided_slice %44 {offsets = [0, 64], sizes = [21, 64], strides = [1, 1]} : vector<21x128xf32> to vector<21x64xf32>
    %47 = arith.maximumf %45, %46 : vector<21x64xf32>
    %c0_23 = arith.constant 0 : index
    %c0_24 = arith.constant 0 : index
    %c0_25 = arith.constant 0 : index
    %c0_26 = arith.constant 0 : index
    %48 = vector.load %arg7[%c0_23, %c0_24, %c0_25, %c0_26] : memref<1x7x21x64xf32, #tpu.memory_space<vmem>>, vector<1x1x21x64xf32>
    %49 = vector.shape_cast %48 : vector<1x1x21x64xf32> to vector<21x64xf32>
    %50 = vector.shape_cast %47 : vector<21x64xf32> to vector<1x1x21x64xf32>
    tpu.vector_store %arg7[%c0_23, %c0_24, %c0_25, %c0_26], %50 {strides = array<i32>} : memref<1x7x21x64xf32, #tpu.memory_space<vmem>>, vector<1x1x21x64xf32>,
    %c0_27 = arith.constant 0 : index
    %c2 = arith.constant 2 : index
    %c0_28 = arith.constant 0 : index
    %c0_29 = arith.constant 0 : index
    %51 = vector.load %arg2[%c0_27, %c2, %c0_28, %c0_29] : memref<1x14x21x128xf32, #tpu.memory_space<vmem>>, vector<1x1x21x128xf32>
    %52 = vector.shape_cast %51 : vector<1x1x21x128xf32> to vector<21x128xf32>
    %53 = vector.broadcast %20 : vector<1x128xf32> to vector<21x128xf32>
    %54 = arith.mulf %52, %53 : vector<21x128xf32>
    %55 = vector.broadcast %21 : vector<1x128xf32> to vector<21x128xf32>
    %56 = arith.addf %54, %55 : vector<21x128xf32>
    %cst_30 = arith.constant 0.000000e+00 : f32
    %57 = vector.broadcast %cst_30 : f32 to vector<21x128xf32>
    %58 = arith.cmpf oge, %56, %57 : vector<21x128xf32>
    %cst_31 = arith.constant 0.00999999977 : f32
    %59 = vector.broadcast %cst_31 : f32 to vector<21x128xf32>
    %60 = arith.mulf %59, %56 : vector<21x128xf32>
    %61 = arith.select %58, %56, %60 : vector<21x128xi1>, vector<21x128xf32>
    %c0_32 = arith.constant 0 : index
    %c3 = arith.constant 3 : index
    %c0_33 = arith.constant 0 : index
    %c0_34 = arith.constant 0 : index
    %62 = vector.load %arg2[%c0_32, %c3, %c0_33, %c0_34] : memref<1x14x21x128xf32, #tpu.memory_space<vmem>>, vector<1x1x21x128xf32>
    %63 = vector.shape_cast %62 : vector<1x1x21x128xf32> to vector<21x128xf32>
    %64 = vector.broadcast %20 : vector<1x128xf32> to vector<21x128xf32>
    %65 = arith.mulf %63, %64 : vector<21x128xf32>
    %66 = vector.broadcast %21 : vector<1x128xf32> to vector<21x128xf32>
    %67 = arith.addf %65, %66 : vector<21x128xf32>
    %cst_35 = arith.constant 0.000000e+00 : f32
    %68 = vector.broadcast %cst_35 : f32 to vector<21x128xf32>
    %69 = arith.cmpf oge, %67, %68 : vector<21x128xf32>
    %cst_36 = arith.constant 0.00999999977 : f32
    %70 = vector.broadcast %cst_36 : f32 to vector<21x128xf32>
    %71 = arith.mulf %70, %67 : vector<21x128xf32>
    %72 = arith.select %69, %67, %71 : vector<21x128xi1>, vector<21x128xf32>
    %73 = arith.maximumf %61, %72 : vector<21x128xf32>
    %74 = vector.extract_strided_slice %73 {offsets = [0, 0], sizes = [21, 64], strides = [1, 1]} : vector<21x128xf32> to vector<21x64xf32>
    %75 = vector.extract_strided_slice %73 {offsets = [0, 64], sizes = [21, 64], strides = [1, 1]} : vector<21x128xf32> to vector<21x64xf32>
    %76 = arith.maximumf %74, %75 : vector<21x64xf32>
    %c0_37 = arith.constant 0 : index
    %c1_38 = arith.constant 1 : index
    %c0_39 = arith.constant 0 : index
    %c0_40 = arith.constant 0 : index
    %77 = vector.load %arg7[%c0_37, %c1_38, %c0_39, %c0_40] : memref<1x7x21x64xf32, #tpu.memory_space<vmem>>, vector<1x1x21x64xf32>
    %78 = vector.shape_cast %77 : vector<1x1x21x64xf32> to vector<21x64xf32>
    %79 = vector.shape_cast %76 : vector<21x64xf32> to vector<1x1x21x64xf32>
    tpu.vector_store %arg7[%c0_37, %c1_38, %c0_39, %c0_40], %79 {strides = array<i32>} : memref<1x7x21x64xf32, #tpu.memory_space<vmem>>, vector<1x1x21x64xf32>,
    %c0_41 = arith.constant 0 : index
    %c4 = arith.constant 4 : index
    %c0_42 = arith.constant 0 : index
    %c0_43 = arith.constant 0 : index
    %80 = vector.load %arg2[%c0_41, %c4, %c0_42, %c0_43] : memref<1x14x21x128xf32, #tpu.memory_space<vmem>>, vector<1x1x21x128xf32>
    %81 = vector.shape_cast %80 : vector<1x1x21x128xf32> to vector<21x128xf32>
    %82 = vector.broadcast %20 : vector<1x128xf32> to vector<21x128xf32>
    %83 = arith.mulf %81, %82 : vector<21x128xf32>
    %84 = vector.broadcast %21 : vector<1x128xf32> to vector<21x128xf32>
    %85 = arith.addf %83, %84 : vector<21x128xf32>
    %cst_44 = arith.constant 0.000000e+00 : f32
    %86 = vector.broadcast %cst_44 : f32 to vector<21x128xf32>
    %87 = arith.cmpf oge, %85, %86 : vector<21x128xf32>
    %cst_45 = arith.constant 0.00999999977 : f32
    %88 = vector.broadcast %cst_45 : f32 to vector<21x128xf32>
    %89 = arith.mulf %88, %85 : vector<21x128xf32>
    %90 = arith.select %87, %85, %89 : vector<21x128xi1>, vector<21x128xf32>
    %c0_46 = arith.constant 0 : index
    %c5 = arith.constant 5 : index
    %c0_47 = arith.constant 0 : index
    %c0_48 = arith.constant 0 : index
    %91 = vector.load %arg2[%c0_46, %c5, %c0_47, %c0_48] : memref<1x14x21x128xf32, #tpu.memory_space<vmem>>, vector<1x1x21x128xf32>
    %92 = vector.shape_cast %91 : vector<1x1x21x128xf32> to vector<21x128xf32>
    %93 = vector.broadcast %20 : vector<1x128xf32> to vector<21x128xf32>
    %94 = arith.mulf %92, %93 : vector<21x128xf32>
    %95 = vector.broadcast %21 : vector<1x128xf32> to vector<21x128xf32>
    %96 = arith.addf %94, %95 : vector<21x128xf32>
    %cst_49 = arith.constant 0.000000e+00 : f32
    %97 = vector.broadcast %cst_49 : f32 to vector<21x128xf32>
    %98 = arith.cmpf oge, %96, %97 : vector<21x128xf32>
    %cst_50 = arith.constant 0.00999999977 : f32
    %99 = vector.broadcast %cst_50 : f32 to vector<21x128xf32>
    %100 = arith.mulf %99, %96 : vector<21x128xf32>
    %101 = arith.select %98, %96, %100 : vector<21x128xi1>, vector<21x128xf32>
    %102 = arith.maximumf %90, %101 : vector<21x128xf32>
    %103 = vector.extract_strided_slice %102 {offsets = [0, 0], sizes = [21, 64], strides = [1, 1]} : vector<21x128xf32> to vector<21x64xf32>
    %104 = vector.extract_strided_slice %102 {offsets = [0, 64], sizes = [21, 64], strides = [1, 1]} : vector<21x128xf32> to vector<21x64xf32>
    %105 = arith.maximumf %103, %104 : vector<21x64xf32>
    %c0_51 = arith.constant 0 : index
    %c2_52 = arith.constant 2 : index
    %c0_53 = arith.constant 0 : index
    %c0_54 = arith.constant 0 : index
    %106 = vector.load %arg7[%c0_51, %c2_52, %c0_53, %c0_54] : memref<1x7x21x64xf32, #tpu.memory_space<vmem>>, vector<1x1x21x64xf32>
    %107 = vector.shape_cast %106 : vector<1x1x21x64xf32> to vector<21x64xf32>
    %108 = vector.shape_cast %105 : vector<21x64xf32> to vector<1x1x21x64xf32>
    tpu.vector_store %arg7[%c0_51, %c2_52, %c0_53, %c0_54], %108 {strides = array<i32>} : memref<1x7x21x64xf32, #tpu.memory_space<vmem>>, vector<1x1x21x64xf32>,
    %c0_55 = arith.constant 0 : index
    %c6 = arith.constant 6 : index
    %c0_56 = arith.constant 0 : index
    %c0_57 = arith.constant 0 : index
    %109 = vector.load %arg2[%c0_55, %c6, %c0_56, %c0_57] : memref<1x14x21x128xf32, #tpu.memory_space<vmem>>, vector<1x1x21x128xf32>
    %110 = vector.shape_cast %109 : vector<1x1x21x128xf32> to vector<21x128xf32>
    %111 = vector.broadcast %20 : vector<1x128xf32> to vector<21x128xf32>
    %112 = arith.mulf %110, %111 : vector<21x128xf32>
    %113 = vector.broadcast %21 : vector<1x128xf32> to vector<21x128xf32>
    %114 = arith.addf %112, %113 : vector<21x128xf32>
    %cst_58 = arith.constant 0.000000e+00 : f32
    %115 = vector.broadcast %cst_58 : f32 to vector<21x128xf32>
    %116 = arith.cmpf oge, %114, %115 : vector<21x128xf32>
    %cst_59 = arith.constant 0.00999999977 : f32
    %117 = vector.broadcast %cst_59 : f32 to vector<21x128xf32>
    %118 = arith.mulf %117, %114 : vector<21x128xf32>
    %119 = arith.select %116, %114, %118 : vector<21x128xi1>, vector<21x128xf32>
    %c0_60 = arith.constant 0 : index
    %c7 = arith.constant 7 : index
    %c0_61 = arith.constant 0 : index
    %c0_62 = arith.constant 0 : index
    %120 = vector.load %arg2[%c0_60, %c7, %c0_61, %c0_62] : memref<1x14x21x128xf32, #tpu.memory_space<vmem>>, vector<1x1x21x128xf32>
    %121 = vector.shape_cast %120 : vector<1x1x21x128xf32> to vector<21x128xf32>
    %122 = vector.broadcast %20 : vector<1x128xf32> to vector<21x128xf32>
    %123 = arith.mulf %121, %122 : vector<21x128xf32>
    %124 = vector.broadcast %21 : vector<1x128xf32> to vector<21x128xf32>
    %125 = arith.addf %123, %124 : vector<21x128xf32>
    %cst_63 = arith.constant 0.000000e+00 : f32
    %126 = vector.broadcast %cst_63 : f32 to vector<21x128xf32>
    %127 = arith.cmpf oge, %125, %126 : vector<21x128xf32>
    %cst_64 = arith.constant 0.00999999977 : f32
    %128 = vector.broadcast %cst_64 : f32 to vector<21x128xf32>
    %129 = arith.mulf %128, %125 : vector<21x128xf32>
    %130 = arith.select %127, %125, %129 : vector<21x128xi1>, vector<21x128xf32>
    %131 = arith.maximumf %119, %130 : vector<21x128xf32>
    %132 = vector.extract_strided_slice %131 {offsets = [0, 0], sizes = [21, 64], strides = [1, 1]} : vector<21x128xf32> to vector<21x64xf32>
    %133 = vector.extract_strided_slice %131 {offsets = [0, 64], sizes = [21, 64], strides = [1, 1]} : vector<21x128xf32> to vector<21x64xf32>
    %134 = arith.maximumf %132, %133 : vector<21x64xf32>
    %c0_65 = arith.constant 0 : index
    %c3_66 = arith.constant 3 : index
    %c0_67 = arith.constant 0 : index
    %c0_68 = arith.constant 0 : index
    %135 = vector.load %arg7[%c0_65, %c3_66, %c0_67, %c0_68] : memref<1x7x21x64xf32, #tpu.memory_space<vmem>>, vector<1x1x21x64xf32>
    %136 = vector.shape_cast %135 : vector<1x1x21x64xf32> to vector<21x64xf32>
    %137 = vector.shape_cast %134 : vector<21x64xf32> to vector<1x1x21x64xf32>
    tpu.vector_store %arg7[%c0_65, %c3_66, %c0_67, %c0_68], %137 {strides = array<i32>} : memref<1x7x21x64xf32, #tpu.memory_space<vmem>>, vector<1x1x21x64xf32>,
    %c0_69 = arith.constant 0 : index
    %c8 = arith.constant 8 : index
    %c0_70 = arith.constant 0 : index
    %c0_71 = arith.constant 0 : index
    %138 = vector.load %arg2[%c0_69, %c8, %c0_70, %c0_71] : memref<1x14x21x128xf32, #tpu.memory_space<vmem>>, vector<1x1x21x128xf32>
    %139 = vector.shape_cast %138 : vector<1x1x21x128xf32> to vector<21x128xf32>
    %140 = vector.broadcast %20 : vector<1x128xf32> to vector<21x128xf32>
    %141 = arith.mulf %139, %140 : vector<21x128xf32>
    %142 = vector.broadcast %21 : vector<1x128xf32> to vector<21x128xf32>
    %143 = arith.addf %141, %142 : vector<21x128xf32>
    %cst_72 = arith.constant 0.000000e+00 : f32
    %144 = vector.broadcast %cst_72 : f32 to vector<21x128xf32>
    %145 = arith.cmpf oge, %143, %144 : vector<21x128xf32>
    %cst_73 = arith.constant 0.00999999977 : f32
    %146 = vector.broadcast %cst_73 : f32 to vector<21x128xf32>
    %147 = arith.mulf %146, %143 : vector<21x128xf32>
    %148 = arith.select %145, %143, %147 : vector<21x128xi1>, vector<21x128xf32>
    %c0_74 = arith.constant 0 : index
    %c9 = arith.constant 9 : index
    %c0_75 = arith.constant 0 : index
    %c0_76 = arith.constant 0 : index
    %149 = vector.load %arg2[%c0_74, %c9, %c0_75, %c0_76] : memref<1x14x21x128xf32, #tpu.memory_space<vmem>>, vector<1x1x21x128xf32>
    %150 = vector.shape_cast %149 : vector<1x1x21x128xf32> to vector<21x128xf32>
    %151 = vector.broadcast %20 : vector<1x128xf32> to vector<21x128xf32>
    %152 = arith.mulf %150, %151 : vector<21x128xf32>
    %153 = vector.broadcast %21 : vector<1x128xf32> to vector<21x128xf32>
    %154 = arith.addf %152, %153 : vector<21x128xf32>
    %cst_77 = arith.constant 0.000000e+00 : f32
    %155 = vector.broadcast %cst_77 : f32 to vector<21x128xf32>
    %156 = arith.cmpf oge, %154, %155 : vector<21x128xf32>
    %cst_78 = arith.constant 0.00999999977 : f32
    %157 = vector.broadcast %cst_78 : f32 to vector<21x128xf32>
    %158 = arith.mulf %157, %154 : vector<21x128xf32>
    %159 = arith.select %156, %154, %158 : vector<21x128xi1>, vector<21x128xf32>
    %160 = arith.maximumf %148, %159 : vector<21x128xf32>
    %161 = vector.extract_strided_slice %160 {offsets = [0, 0], sizes = [21, 64], strides = [1, 1]} : vector<21x128xf32> to vector<21x64xf32>
    %162 = vector.extract_strided_slice %160 {offsets = [0, 64], sizes = [21, 64], strides = [1, 1]} : vector<21x128xf32> to vector<21x64xf32>
    %163 = arith.maximumf %161, %162 : vector<21x64xf32>
    %c0_79 = arith.constant 0 : index
    %c4_80 = arith.constant 4 : index
    %c0_81 = arith.constant 0 : index
    %c0_82 = arith.constant 0 : index
    %164 = vector.load %arg7[%c0_79, %c4_80, %c0_81, %c0_82] : memref<1x7x21x64xf32, #tpu.memory_space<vmem>>, vector<1x1x21x64xf32>
    %165 = vector.shape_cast %164 : vector<1x1x21x64xf32> to vector<21x64xf32>
    %166 = vector.shape_cast %163 : vector<21x64xf32> to vector<1x1x21x64xf32>
    tpu.vector_store %arg7[%c0_79, %c4_80, %c0_81, %c0_82], %166 {strides = array<i32>} : memref<1x7x21x64xf32, #tpu.memory_space<vmem>>, vector<1x1x21x64xf32>,
    %c0_83 = arith.constant 0 : index
    %c10 = arith.constant 10 : index
    %c0_84 = arith.constant 0 : index
    %c0_85 = arith.constant 0 : index
    %167 = vector.load %arg2[%c0_83, %c10, %c0_84, %c0_85] : memref<1x14x21x128xf32, #tpu.memory_space<vmem>>, vector<1x1x21x128xf32>
    %168 = vector.shape_cast %167 : vector<1x1x21x128xf32> to vector<21x128xf32>
    %169 = vector.broadcast %20 : vector<1x128xf32> to vector<21x128xf32>
    %170 = arith.mulf %168, %169 : vector<21x128xf32>
    %171 = vector.broadcast %21 : vector<1x128xf32> to vector<21x128xf32>
    %172 = arith.addf %170, %171 : vector<21x128xf32>
    %cst_86 = arith.constant 0.000000e+00 : f32
    %173 = vector.broadcast %cst_86 : f32 to vector<21x128xf32>
    %174 = arith.cmpf oge, %172, %173 : vector<21x128xf32>
    %cst_87 = arith.constant 0.00999999977 : f32
    %175 = vector.broadcast %cst_87 : f32 to vector<21x128xf32>
    %176 = arith.mulf %175, %172 : vector<21x128xf32>
    %177 = arith.select %174, %172, %176 : vector<21x128xi1>, vector<21x128xf32>
    %c0_88 = arith.constant 0 : index
    %c11 = arith.constant 11 : index
    %c0_89 = arith.constant 0 : index
    %c0_90 = arith.constant 0 : index
    %178 = vector.load %arg2[%c0_88, %c11, %c0_89, %c0_90] : memref<1x14x21x128xf32, #tpu.memory_space<vmem>>, vector<1x1x21x128xf32>
    %179 = vector.shape_cast %178 : vector<1x1x21x128xf32> to vector<21x128xf32>
    %180 = vector.broadcast %20 : vector<1x128xf32> to vector<21x128xf32>
    %181 = arith.mulf %179, %180 : vector<21x128xf32>
    %182 = vector.broadcast %21 : vector<1x128xf32> to vector<21x128xf32>
    %183 = arith.addf %181, %182 : vector<21x128xf32>
    %cst_91 = arith.constant 0.000000e+00 : f32
    %184 = vector.broadcast %cst_91 : f32 to vector<21x128xf32>
    %185 = arith.cmpf oge, %183, %184 : vector<21x128xf32>
    %cst_92 = arith.constant 0.00999999977 : f32
    %186 = vector.broadcast %cst_92 : f32 to vector<21x128xf32>
    %187 = arith.mulf %186, %183 : vector<21x128xf32>
    %188 = arith.select %185, %183, %187 : vector<21x128xi1>, vector<21x128xf32>
    %189 = arith.maximumf %177, %188 : vector<21x128xf32>
    %190 = vector.extract_strided_slice %189 {offsets = [0, 0], sizes = [21, 64], strides = [1, 1]} : vector<21x128xf32> to vector<21x64xf32>
    %191 = vector.extract_strided_slice %189 {offsets = [0, 64], sizes = [21, 64], strides = [1, 1]} : vector<21x128xf32> to vector<21x64xf32>
    %192 = arith.maximumf %190, %191 : vector<21x64xf32>
    %c0_93 = arith.constant 0 : index
    %c5_94 = arith.constant 5 : index
    %c0_95 = arith.constant 0 : index
    %c0_96 = arith.constant 0 : index
    %193 = vector.load %arg7[%c0_93, %c5_94, %c0_95, %c0_96] : memref<1x7x21x64xf32, #tpu.memory_space<vmem>>, vector<1x1x21x64xf32>
    %194 = vector.shape_cast %193 : vector<1x1x21x64xf32> to vector<21x64xf32>
    %195 = vector.shape_cast %192 : vector<21x64xf32> to vector<1x1x21x64xf32>
    tpu.vector_store %arg7[%c0_93, %c5_94, %c0_95, %c0_96], %195 {strides = array<i32>} : memref<1x7x21x64xf32, #tpu.memory_space<vmem>>, vector<1x1x21x64xf32>,
    %c0_97 = arith.constant 0 : index
    %c12 = arith.constant 12 : index
    %c0_98 = arith.constant 0 : index
    %c0_99 = arith.constant 0 : index
    %196 = vector.load %arg2[%c0_97, %c12, %c0_98, %c0_99] : memref<1x14x21x128xf32, #tpu.memory_space<vmem>>, vector<1x1x21x128xf32>
    %197 = vector.shape_cast %196 : vector<1x1x21x128xf32> to vector<21x128xf32>
    %198 = vector.broadcast %20 : vector<1x128xf32> to vector<21x128xf32>
    %199 = arith.mulf %197, %198 : vector<21x128xf32>
    %200 = vector.broadcast %21 : vector<1x128xf32> to vector<21x128xf32>
    %201 = arith.addf %199, %200 : vector<21x128xf32>
    %cst_100 = arith.constant 0.000000e+00 : f32
    %202 = vector.broadcast %cst_100 : f32 to vector<21x128xf32>
    %203 = arith.cmpf oge, %201, %202 : vector<21x128xf32>
    %cst_101 = arith.constant 0.00999999977 : f32
    %204 = vector.broadcast %cst_101 : f32 to vector<21x128xf32>
    %205 = arith.mulf %204, %201 : vector<21x128xf32>
    %206 = arith.select %203, %201, %205 : vector<21x128xi1>, vector<21x128xf32>
    %c0_102 = arith.constant 0 : index
    %c13 = arith.constant 13 : index
    %c0_103 = arith.constant 0 : index
    %c0_104 = arith.constant 0 : index
    %207 = vector.load %arg2[%c0_102, %c13, %c0_103, %c0_104] : memref<1x14x21x128xf32, #tpu.memory_space<vmem>>, vector<1x1x21x128xf32>
    %208 = vector.shape_cast %207 : vector<1x1x21x128xf32> to vector<21x128xf32>
    %209 = vector.broadcast %20 : vector<1x128xf32> to vector<21x128xf32>
    %210 = arith.mulf %208, %209 : vector<21x128xf32>
    %211 = vector.broadcast %21 : vector<1x128xf32> to vector<21x128xf32>
    %212 = arith.addf %210, %211 : vector<21x128xf32>
    %cst_105 = arith.constant 0.000000e+00 : f32
    %213 = vector.broadcast %cst_105 : f32 to vector<21x128xf32>
    %214 = arith.cmpf oge, %212, %213 : vector<21x128xf32>
    %cst_106 = arith.constant 0.00999999977 : f32
    %215 = vector.broadcast %cst_106 : f32 to vector<21x128xf32>
    %216 = arith.mulf %215, %212 : vector<21x128xf32>
    %217 = arith.select %214, %212, %216 : vector<21x128xi1>, vector<21x128xf32>
    %218 = arith.maximumf %206, %217 : vector<21x128xf32>
    %219 = vector.extract_strided_slice %218 {offsets = [0, 0], sizes = [21, 64], strides = [1, 1]} : vector<21x128xf32> to vector<21x64xf32>
    %220 = vector.extract_strided_slice %218 {offsets = [0, 64], sizes = [21, 64], strides = [1, 1]} : vector<21x128xf32> to vector<21x64xf32>
    %221 = arith.maximumf %219, %220 : vector<21x64xf32>
    %c0_107 = arith.constant 0 : index
    %c6_108 = arith.constant 6 : index
    %c0_109 = arith.constant 0 : index
    %c0_110 = arith.constant 0 : index
    %222 = vector.load %arg7[%c0_107, %c6_108, %c0_109, %c0_110] : memref<1x7x21x64xf32, #tpu.memory_space<vmem>>, vector<1x1x21x64xf32>
    %223 = vector.shape_cast %222 : vector<1x1x21x64xf32> to vector<21x64xf32>
    %224 = vector.shape_cast %221 : vector<21x64xf32> to vector<1x1x21x64xf32>
    tpu.vector_store %arg7[%c0_107, %c6_108, %c0_109, %c0_110], %224 {strides = array<i32>} : memref<1x7x21x64xf32, #tpu.memory_space<vmem>>, vector<1x1x21x64xf32>,
    return
  }
  func.func @transform_0(%arg0: i32, %arg1: i32) -> (i32, i32, i32, i32) {
    %c0_i32 = arith.constant 0 : i32
    %c0_i32_0 = arith.constant 0 : i32
    %c0_i32_1 = arith.constant 0 : i32
    return %arg0, %arg1, %c0_i32, %c0_i32_0 : i32, i32, i32, i32
  }
  func.func @transform_1(%arg0: i32, %arg1: i32) -> (i32, i32) {
    %c0_i32 = arith.constant 0 : i32
    %c0_i32_0 = arith.constant 0 : i32
    %c0_i32_1 = arith.constant 0 : i32
    return %c0_i32, %c0_i32_0 : i32, i32
  }
  func.func @transform_2(%arg0: i32, %arg1: i32) -> (i32, i32) {
    %c0_i32 = arith.constant 0 : i32
    %c0_i32_0 = arith.constant 0 : i32
    %c0_i32_1 = arith.constant 0 : i32
    return %c0_i32, %c0_i32_0 : i32, i32
  }
  func.func @transform_3(%arg0: i32, %arg1: i32) -> (i32, i32) {
    %c0_i32 = arith.constant 0 : i32
    %c0_i32_0 = arith.constant 0 : i32
    %c0_i32_1 = arith.constant 0 : i32
    return %c0_i32, %c0_i32_0 : i32, i32
  }
  func.func @transform_4(%arg0: i32, %arg1: i32) -> (i32, i32) {
    %c0_i32 = arith.constant 0 : i32
    %c0_i32_0 = arith.constant 0 : i32
    %c0_i32_1 = arith.constant 0 : i32
    return %c0_i32, %c0_i32_0 : i32, i32
  }
  func.func @transform_5(%arg0: i32, %arg1: i32) -> (i32, i32, i32, i32) {
    %c0_i32 = arith.constant 0 : i32
    %c0_i32_0 = arith.constant 0 : i32
    %c0_i32_1 = arith.constant 0 : i32
    return %arg0, %arg1, %c0_i32, %c0_i32_0 : i32, i32, i32, i32
  }
}

module attributes {stable_mosaic.version = 11 : i64} {
  func.func @_matmul_bias_act_kernel(%arg0: i32, %arg1: i32, %arg2: memref<72x1600xf32, #tpu.memory_space<vmem>>, %arg3: memref<1600x128xbf16, #tpu.memory_space<vmem>>, %arg4: memref<1x128xf32, #tpu.memory_space<vmem>>, %arg5: memref<72x128xf32, #tpu.memory_space<vmem>>, %arg6: memref<1x1x128xf32, #tpu.memory_space<vmem>>, %arg7: memref<1x1x128xf32, #tpu.memory_space<vmem>>) attributes {dimension_semantics = [#tpu.dimension_semantics<parallel>, #tpu.dimension_semantics<parallel>], iteration_bounds = array<i64: 1, 1>, scalar_prefetch = 0 : i64, scratch_operands = 0 : i64, tpu.core_type = #tpu.core_type<tc>, window_params = [{transform_indices = @transform_0, window_bounds = array<i64: 72, 1600>}, {transform_indices = @transform_1, window_bounds = array<i64: 1600, 128>}, {transform_indices = @transform_2, window_bounds = array<i64: 1, 128>}, {transform_indices = @transform_3, window_bounds = array<i64: 72, 128>}, {transform_indices = @transform_4, window_bounds = array<i64: 1, 1, 128>}, {transform_indices = @transform_5, window_bounds = array<i64: 1, 1, 128>}]} {
    %c0 = arith.constant 0 : index
    %c0_0 = arith.constant 0 : index
    %0 = vector.load %arg2[%c0, %c0_0] : memref<72x1600xf32, #tpu.memory_space<vmem>>, vector<72x1600xf32>
    %1 = arith.truncf %0 : vector<72x1600xf32> to vector<72x1600xbf16>
    %c0_1 = arith.constant 0 : index
    %c0_2 = arith.constant 0 : index
    %2 = vector.load %arg3[%c0_1, %c0_2] : memref<1600x128xbf16, #tpu.memory_space<vmem>>, vector<1600x128xbf16>
    %cst = arith.constant dense<0.000000e+00> : vector<72x128xf32>
    %3 = tpu.matmul %1, %2, %cst {dimension_numbers = #tpu.dot_dimension_numbers<[1], [0], [0], [1], [0, 0, 1, 1], [], []>} : vector<72x1600xbf16>, vector<1600x128xbf16>, vector<72x128xf32> -> vector<72x128xf32>
    %c0_3 = arith.constant 0 : index
    %c0_4 = arith.constant 0 : index
    %4 = vector.load %arg4[%c0_3, %c0_4] : memref<1x128xf32, #tpu.memory_space<vmem>>, vector<1x128xf32>
    %5 = vector.broadcast %4 : vector<1x128xf32> to vector<72x128xf32>
    %6 = arith.addf %3, %5 : vector<72x128xf32>
    %7 = tpu.iota {dimensions = array<i32: 0>} : vector<72x128xi32>
    %c72_i32 = arith.constant 72 : i32
    %8 = arith.muli %arg0, %c72_i32 : i32
    %9 = vector.broadcast %8 : i32 to vector<72x128xi32>
    %10 = arith.addi %7, %9 : vector<72x128xi32>
    %c72_i32_5 = arith.constant 72 : i32
    %11 = vector.broadcast %c72_i32_5 : i32 to vector<72x128xi32>
    %12 = arith.cmpi slt, %10, %11 : vector<72x128xi32>
    %cst_6 = arith.constant 0.000000e+00 : f32
    %13 = vector.broadcast %cst_6 : f32 to vector<72x128xf32>
    %14 = arith.select %12, %6, %13 : vector<72x128xi1>, vector<72x128xf32>
    %cst_7 = arith.constant dense<0.000000e+00> : vector<128xf32>
    %15 = vector.multi_reduction <add>, %14, %cst_7 [0] : vector<72x128xf32> to vector<128xf32>
    %16 = vector.shape_cast %15 : vector<128xf32> to vector<1x1x128xf32>
    %c0_8 = arith.constant 0 : index
    %c0_9 = arith.constant 0 : index
    %c0_10 = arith.constant 0 : index
    %17 = vector.load %arg6[%c0_8, %c0_9, %c0_10] : memref<1x1x128xf32, #tpu.memory_space<vmem>>, vector<1x1x128xf32>
    tpu.vector_store %arg6[%c0_8, %c0_9, %c0_10], %16 {strides = array<i32>} : memref<1x1x128xf32, #tpu.memory_space<vmem>>, vector<1x1x128xf32>,
    %18 = arith.mulf %14, %14 : vector<72x128xf32>
    %cst_11 = arith.constant dense<0.000000e+00> : vector<128xf32>
    %19 = vector.multi_reduction <add>, %18, %cst_11 [0] : vector<72x128xf32> to vector<128xf32>
    %20 = vector.shape_cast %19 : vector<128xf32> to vector<1x1x128xf32>
    %c0_12 = arith.constant 0 : index
    %c0_13 = arith.constant 0 : index
    %c0_14 = arith.constant 0 : index
    %21 = vector.load %arg7[%c0_12, %c0_13, %c0_14] : memref<1x1x128xf32, #tpu.memory_space<vmem>>, vector<1x1x128xf32>
    tpu.vector_store %arg7[%c0_12, %c0_13, %c0_14], %20 {strides = array<i32>} : memref<1x1x128xf32, #tpu.memory_space<vmem>>, vector<1x1x128xf32>,
    %c0_15 = arith.constant 0 : index
    %c0_16 = arith.constant 0 : index
    %22 = vector.load %arg5[%c0_15, %c0_16] : memref<72x128xf32, #tpu.memory_space<vmem>>, vector<72x128xf32>
    tpu.vector_store %arg5[%c0_15, %c0_16], %6 {strides = array<i32>} : memref<72x128xf32, #tpu.memory_space<vmem>>, vector<72x128xf32>,
    return
  }
  func.func @transform_0(%arg0: i32, %arg1: i32) -> (i32, i32) {
    %c0_i32 = arith.constant 0 : i32
    %c0_i32_0 = arith.constant 0 : i32
    return %arg0, %c0_i32 : i32, i32
  }
  func.func @transform_1(%arg0: i32, %arg1: i32) -> (i32, i32) {
    %c0_i32 = arith.constant 0 : i32
    %c0_i32_0 = arith.constant 0 : i32
    return %c0_i32, %arg1 : i32, i32
  }
  func.func @transform_2(%arg0: i32, %arg1: i32) -> (i32, i32) {
    %c0_i32 = arith.constant 0 : i32
    %c0_i32_0 = arith.constant 0 : i32
    return %c0_i32, %arg1 : i32, i32
  }
  func.func @transform_3(%arg0: i32, %arg1: i32) -> (i32, i32) {
    %c0_i32 = arith.constant 0 : i32
    return %arg0, %arg1 : i32, i32
  }
  func.func @transform_4(%arg0: i32, %arg1: i32) -> (i32, i32, i32) {
    %c0_i32 = arith.constant 0 : i32
    %c0_i32_0 = arith.constant 0 : i32
    return %arg0, %c0_i32, %arg1 : i32, i32, i32
  }
  func.func @transform_5(%arg0: i32, %arg1: i32) -> (i32, i32, i32) {
    %c0_i32 = arith.constant 0 : i32
    %c0_i32_0 = arith.constant 0 : i32
    return %arg0, %c0_i32, %arg1 : i32, i32, i32
  }
}

module attributes {stable_mosaic.version = 11 : i64} {
  func.func @_bn_lrelu_pool_kernel(%arg0: i32, %arg1: i32, %arg2: memref<1x6x3x256xf32, #tpu.memory_space<vmem>>, %arg3: memref<1x128xf32, #tpu.memory_space<vmem>>, %arg4: memref<1x128xf32, #tpu.memory_space<vmem>>, %arg5: memref<1x128xf32, #tpu.memory_space<vmem>>, %arg6: memref<1x128xf32, #tpu.memory_space<vmem>>, %arg7: memref<1x3x3x128xf32, #tpu.memory_space<vmem>>) attributes {dimension_semantics = [#tpu.dimension_semantics<parallel>, #tpu.dimension_semantics<parallel>], iteration_bounds = array<i64: 2, 1>, scalar_prefetch = 0 : i64, scratch_operands = 0 : i64, tpu.core_type = #tpu.core_type<tc>, window_params = [{transform_indices = @transform_0, window_bounds = array<i64: 1, 6, 3, 256>}, {pipeline_mode = #tpu.pipeline_mode<synchronous>, transform_indices = @transform_1, window_bounds = array<i64: 1, 128>}, {pipeline_mode = #tpu.pipeline_mode<synchronous>, transform_indices = @transform_2, window_bounds = array<i64: 1, 128>}, {pipeline_mode = #tpu.pipeline_mode<synchronous>, transform_indices = @transform_3, window_bounds = array<i64: 1, 128>}, {pipeline_mode = #tpu.pipeline_mode<synchronous>, transform_indices = @transform_4, window_bounds = array<i64: 1, 128>}, {transform_indices = @transform_5, window_bounds = array<i64: 1, 3, 3, 128>}]} {
    %c0 = arith.constant 0 : index
    %c0_0 = arith.constant 0 : index
    %0 = vector.load %arg3[%c0, %c0_0] : memref<1x128xf32, #tpu.memory_space<vmem>>, vector<1x128xf32>
    %cst = arith.constant 0.013888889 : f32
    %1 = vector.broadcast %cst : f32 to vector<1x128xf32>
    %2 = arith.mulf %0, %1 : vector<1x128xf32>
    %c0_1 = arith.constant 0 : index
    %c0_2 = arith.constant 0 : index
    %3 = vector.load %arg3[%c0_1, %c0_2] : memref<1x128xf32, #tpu.memory_space<vmem>>, vector<1x128xf32>
    %cst_3 = arith.constant 0.000000e+00 : f32
    %4 = vector.broadcast %cst_3 : f32 to vector<1x128xf32>
    %5 = arith.mulf %3, %4 : vector<1x128xf32>
    %c0_4 = arith.constant 0 : index
    %c0_5 = arith.constant 0 : index
    %6 = vector.load %arg4[%c0_4, %c0_5] : memref<1x128xf32, #tpu.memory_space<vmem>>, vector<1x128xf32>
    %cst_6 = arith.constant 0.013888889 : f32
    %7 = vector.broadcast %cst_6 : f32 to vector<1x128xf32>
    %8 = arith.mulf %6, %7 : vector<1x128xf32>
    %9 = arith.addf %5, %8 : vector<1x128xf32>
    %10 = arith.mulf %2, %2 : vector<1x128xf32>
    %11 = arith.subf %9, %10 : vector<1x128xf32>
    %c0_7 = arith.constant 0 : index
    %c0_8 = arith.constant 0 : index
    %12 = vector.load %arg5[%c0_7, %c0_8] : memref<1x128xf32, #tpu.memory_space<vmem>>, vector<1x128xf32>
    %cst_9 = arith.constant 9.99999974E-6 : f32
    %13 = vector.broadcast %cst_9 : f32 to vector<1x128xf32>
    %14 = arith.addf %11, %13 : vector<1x128xf32>
    %15 = math.rsqrt %14 : vector<1x128xf32>
    %16 = arith.mulf %12, %15 : vector<1x128xf32>
    %c0_10 = arith.constant 0 : index
    %c0_11 = arith.constant 0 : index
    %17 = vector.load %arg6[%c0_10, %c0_11] : memref<1x128xf32, #tpu.memory_space<vmem>>, vector<1x128xf32>
    %18 = arith.mulf %2, %16 : vector<1x128xf32>
    %19 = arith.subf %17, %18 : vector<1x128xf32>
    %20 = tpu.concatenate %16, %16 in 1 : vector<1x128xf32>, vector<1x128xf32> -> vector<1x256xf32>
    %21 = tpu.concatenate %19, %19 in 1 : vector<1x128xf32>, vector<1x128xf32> -> vector<1x256xf32>
    %c0_12 = arith.constant 0 : index
    %c0_13 = arith.constant 0 : index
    %c0_14 = arith.constant 0 : index
    %c0_15 = arith.constant 0 : index
    %22 = vector.load %arg2[%c0_12, %c0_13, %c0_14, %c0_15] : memref<1x6x3x256xf32, #tpu.memory_space<vmem>>, vector<1x1x3x256xf32>
    %23 = vector.shape_cast %22 : vector<1x1x3x256xf32> to vector<3x256xf32>
    %24 = vector.broadcast %20 : vector<1x256xf32> to vector<3x256xf32>
    %25 = arith.mulf %23, %24 : vector<3x256xf32>
    %26 = vector.broadcast %21 : vector<1x256xf32> to vector<3x256xf32>
    %27 = arith.addf %25, %26 : vector<3x256xf32>
    %cst_16 = arith.constant 0.000000e+00 : f32
    %28 = vector.broadcast %cst_16 : f32 to vector<3x256xf32>
    %29 = arith.cmpf oge, %27, %28 : vector<3x256xf32>
    %cst_17 = arith.constant 0.00999999977 : f32
    %30 = vector.broadcast %cst_17 : f32 to vector<3x256xf32>
    %31 = arith.mulf %30, %27 : vector<3x256xf32>
    %32 = arith.select %29, %27, %31 : vector<3x256xi1>, vector<3x256xf32>
    %c0_18 = arith.constant 0 : index
    %c1 = arith.constant 1 : index
    %c0_19 = arith.constant 0 : index
    %c0_20 = arith.constant 0 : index
    %33 = vector.load %arg2[%c0_18, %c1, %c0_19, %c0_20] : memref<1x6x3x256xf32, #tpu.memory_space<vmem>>, vector<1x1x3x256xf32>
    %34 = vector.shape_cast %33 : vector<1x1x3x256xf32> to vector<3x256xf32>
    %35 = vector.broadcast %20 : vector<1x256xf32> to vector<3x256xf32>
    %36 = arith.mulf %34, %35 : vector<3x256xf32>
    %37 = vector.broadcast %21 : vector<1x256xf32> to vector<3x256xf32>
    %38 = arith.addf %36, %37 : vector<3x256xf32>
    %cst_21 = arith.constant 0.000000e+00 : f32
    %39 = vector.broadcast %cst_21 : f32 to vector<3x256xf32>
    %40 = arith.cmpf oge, %38, %39 : vector<3x256xf32>
    %cst_22 = arith.constant 0.00999999977 : f32
    %41 = vector.broadcast %cst_22 : f32 to vector<3x256xf32>
    %42 = arith.mulf %41, %38 : vector<3x256xf32>
    %43 = arith.select %40, %38, %42 : vector<3x256xi1>, vector<3x256xf32>
    %44 = arith.maximumf %32, %43 : vector<3x256xf32>
    %45 = vector.extract_strided_slice %44 {offsets = [0, 0], sizes = [3, 128], strides = [1, 1]} : vector<3x256xf32> to vector<3x128xf32>
    %46 = vector.extract_strided_slice %44 {offsets = [0, 128], sizes = [3, 128], strides = [1, 1]} : vector<3x256xf32> to vector<3x128xf32>
    %47 = arith.maximumf %45, %46 : vector<3x128xf32>
    %c0_23 = arith.constant 0 : index
    %c0_24 = arith.constant 0 : index
    %c0_25 = arith.constant 0 : index
    %c0_26 = arith.constant 0 : index
    %48 = vector.load %arg7[%c0_23, %c0_24, %c0_25, %c0_26] : memref<1x3x3x128xf32, #tpu.memory_space<vmem>>, vector<1x1x3x128xf32>
    %49 = vector.shape_cast %48 : vector<1x1x3x128xf32> to vector<3x128xf32>
    %50 = vector.shape_cast %47 : vector<3x128xf32> to vector<1x1x3x128xf32>
    tpu.vector_store %arg7[%c0_23, %c0_24, %c0_25, %c0_26], %50 {strides = array<i32>} : memref<1x3x3x128xf32, #tpu.memory_space<vmem>>, vector<1x1x3x128xf32>,
    %c0_27 = arith.constant 0 : index
    %c2 = arith.constant 2 : index
    %c0_28 = arith.constant 0 : index
    %c0_29 = arith.constant 0 : index
    %51 = vector.load %arg2[%c0_27, %c2, %c0_28, %c0_29] : memref<1x6x3x256xf32, #tpu.memory_space<vmem>>, vector<1x1x3x256xf32>
    %52 = vector.shape_cast %51 : vector<1x1x3x256xf32> to vector<3x256xf32>
    %53 = vector.broadcast %20 : vector<1x256xf32> to vector<3x256xf32>
    %54 = arith.mulf %52, %53 : vector<3x256xf32>
    %55 = vector.broadcast %21 : vector<1x256xf32> to vector<3x256xf32>
    %56 = arith.addf %54, %55 : vector<3x256xf32>
    %cst_30 = arith.constant 0.000000e+00 : f32
    %57 = vector.broadcast %cst_30 : f32 to vector<3x256xf32>
    %58 = arith.cmpf oge, %56, %57 : vector<3x256xf32>
    %cst_31 = arith.constant 0.00999999977 : f32
    %59 = vector.broadcast %cst_31 : f32 to vector<3x256xf32>
    %60 = arith.mulf %59, %56 : vector<3x256xf32>
    %61 = arith.select %58, %56, %60 : vector<3x256xi1>, vector<3x256xf32>
    %c0_32 = arith.constant 0 : index
    %c3 = arith.constant 3 : index
    %c0_33 = arith.constant 0 : index
    %c0_34 = arith.constant 0 : index
    %62 = vector.load %arg2[%c0_32, %c3, %c0_33, %c0_34] : memref<1x6x3x256xf32, #tpu.memory_space<vmem>>, vector<1x1x3x256xf32>
    %63 = vector.shape_cast %62 : vector<1x1x3x256xf32> to vector<3x256xf32>
    %64 = vector.broadcast %20 : vector<1x256xf32> to vector<3x256xf32>
    %65 = arith.mulf %63, %64 : vector<3x256xf32>
    %66 = vector.broadcast %21 : vector<1x256xf32> to vector<3x256xf32>
    %67 = arith.addf %65, %66 : vector<3x256xf32>
    %cst_35 = arith.constant 0.000000e+00 : f32
    %68 = vector.broadcast %cst_35 : f32 to vector<3x256xf32>
    %69 = arith.cmpf oge, %67, %68 : vector<3x256xf32>
    %cst_36 = arith.constant 0.00999999977 : f32
    %70 = vector.broadcast %cst_36 : f32 to vector<3x256xf32>
    %71 = arith.mulf %70, %67 : vector<3x256xf32>
    %72 = arith.select %69, %67, %71 : vector<3x256xi1>, vector<3x256xf32>
    %73 = arith.maximumf %61, %72 : vector<3x256xf32>
    %74 = vector.extract_strided_slice %73 {offsets = [0, 0], sizes = [3, 128], strides = [1, 1]} : vector<3x256xf32> to vector<3x128xf32>
    %75 = vector.extract_strided_slice %73 {offsets = [0, 128], sizes = [3, 128], strides = [1, 1]} : vector<3x256xf32> to vector<3x128xf32>
    %76 = arith.maximumf %74, %75 : vector<3x128xf32>
    %c0_37 = arith.constant 0 : index
    %c1_38 = arith.constant 1 : index
    %c0_39 = arith.constant 0 : index
    %c0_40 = arith.constant 0 : index
    %77 = vector.load %arg7[%c0_37, %c1_38, %c0_39, %c0_40] : memref<1x3x3x128xf32, #tpu.memory_space<vmem>>, vector<1x1x3x128xf32>
    %78 = vector.shape_cast %77 : vector<1x1x3x128xf32> to vector<3x128xf32>
    %79 = vector.shape_cast %76 : vector<3x128xf32> to vector<1x1x3x128xf32>
    tpu.vector_store %arg7[%c0_37, %c1_38, %c0_39, %c0_40], %79 {strides = array<i32>} : memref<1x3x3x128xf32, #tpu.memory_space<vmem>>, vector<1x1x3x128xf32>,
    %c0_41 = arith.constant 0 : index
    %c4 = arith.constant 4 : index
    %c0_42 = arith.constant 0 : index
    %c0_43 = arith.constant 0 : index
    %80 = vector.load %arg2[%c0_41, %c4, %c0_42, %c0_43] : memref<1x6x3x256xf32, #tpu.memory_space<vmem>>, vector<1x1x3x256xf32>
    %81 = vector.shape_cast %80 : vector<1x1x3x256xf32> to vector<3x256xf32>
    %82 = vector.broadcast %20 : vector<1x256xf32> to vector<3x256xf32>
    %83 = arith.mulf %81, %82 : vector<3x256xf32>
    %84 = vector.broadcast %21 : vector<1x256xf32> to vector<3x256xf32>
    %85 = arith.addf %83, %84 : vector<3x256xf32>
    %cst_44 = arith.constant 0.000000e+00 : f32
    %86 = vector.broadcast %cst_44 : f32 to vector<3x256xf32>
    %87 = arith.cmpf oge, %85, %86 : vector<3x256xf32>
    %cst_45 = arith.constant 0.00999999977 : f32
    %88 = vector.broadcast %cst_45 : f32 to vector<3x256xf32>
    %89 = arith.mulf %88, %85 : vector<3x256xf32>
    %90 = arith.select %87, %85, %89 : vector<3x256xi1>, vector<3x256xf32>
    %c0_46 = arith.constant 0 : index
    %c5 = arith.constant 5 : index
    %c0_47 = arith.constant 0 : index
    %c0_48 = arith.constant 0 : index
    %91 = vector.load %arg2[%c0_46, %c5, %c0_47, %c0_48] : memref<1x6x3x256xf32, #tpu.memory_space<vmem>>, vector<1x1x3x256xf32>
    %92 = vector.shape_cast %91 : vector<1x1x3x256xf32> to vector<3x256xf32>
    %93 = vector.broadcast %20 : vector<1x256xf32> to vector<3x256xf32>
    %94 = arith.mulf %92, %93 : vector<3x256xf32>
    %95 = vector.broadcast %21 : vector<1x256xf32> to vector<3x256xf32>
    %96 = arith.addf %94, %95 : vector<3x256xf32>
    %cst_49 = arith.constant 0.000000e+00 : f32
    %97 = vector.broadcast %cst_49 : f32 to vector<3x256xf32>
    %98 = arith.cmpf oge, %96, %97 : vector<3x256xf32>
    %cst_50 = arith.constant 0.00999999977 : f32
    %99 = vector.broadcast %cst_50 : f32 to vector<3x256xf32>
    %100 = arith.mulf %99, %96 : vector<3x256xf32>
    %101 = arith.select %98, %96, %100 : vector<3x256xi1>, vector<3x256xf32>
    %102 = arith.maximumf %90, %101 : vector<3x256xf32>
    %103 = vector.extract_strided_slice %102 {offsets = [0, 0], sizes = [3, 128], strides = [1, 1]} : vector<3x256xf32> to vector<3x128xf32>
    %104 = vector.extract_strided_slice %102 {offsets = [0, 128], sizes = [3, 128], strides = [1, 1]} : vector<3x256xf32> to vector<3x128xf32>
    %105 = arith.maximumf %103, %104 : vector<3x128xf32>
    %c0_51 = arith.constant 0 : index
    %c2_52 = arith.constant 2 : index
    %c0_53 = arith.constant 0 : index
    %c0_54 = arith.constant 0 : index
    %106 = vector.load %arg7[%c0_51, %c2_52, %c0_53, %c0_54] : memref<1x3x3x128xf32, #tpu.memory_space<vmem>>, vector<1x1x3x128xf32>
    %107 = vector.shape_cast %106 : vector<1x1x3x128xf32> to vector<3x128xf32>
    %108 = vector.shape_cast %105 : vector<3x128xf32> to vector<1x1x3x128xf32>
    tpu.vector_store %arg7[%c0_51, %c2_52, %c0_53, %c0_54], %108 {strides = array<i32>} : memref<1x3x3x128xf32, #tpu.memory_space<vmem>>, vector<1x1x3x128xf32>,
    return
  }
  func.func @transform_0(%arg0: i32, %arg1: i32) -> (i32, i32, i32, i32) {
    %c0_i32 = arith.constant 0 : i32
    %c0_i32_0 = arith.constant 0 : i32
    %c0_i32_1 = arith.constant 0 : i32
    return %arg0, %arg1, %c0_i32, %c0_i32_0 : i32, i32, i32, i32
  }
  func.func @transform_1(%arg0: i32, %arg1: i32) -> (i32, i32) {
    %c0_i32 = arith.constant 0 : i32
    %c0_i32_0 = arith.constant 0 : i32
    %c0_i32_1 = arith.constant 0 : i32
    return %c0_i32, %c0_i32_0 : i32, i32
  }
  func.func @transform_2(%arg0: i32, %arg1: i32) -> (i32, i32) {
    %c0_i32 = arith.constant 0 : i32
    %c0_i32_0 = arith.constant 0 : i32
    %c0_i32_1 = arith.constant 0 : i32
    return %c0_i32, %c0_i32_0 : i32, i32
  }
  func.func @transform_3(%arg0: i32, %arg1: i32) -> (i32, i32) {
    %c0_i32 = arith.constant 0 : i32
    %c0_i32_0 = arith.constant 0 : i32
    %c0_i32_1 = arith.constant 0 : i32
    return %c0_i32, %c0_i32_0 : i32, i32
  }
  func.func @transform_4(%arg0: i32, %arg1: i32) -> (i32, i32) {
    %c0_i32 = arith.constant 0 : i32
    %c0_i32_0 = arith.constant 0 : i32
    %c0_i32_1 = arith.constant 0 : i32
    return %c0_i32, %c0_i32_0 : i32, i32
  }
  func.func @transform_5(%arg0: i32, %arg1: i32) -> (i32, i32, i32, i32) {
    %c0_i32 = arith.constant 0 : i32
    %c0_i32_0 = arith.constant 0 : i32
    %c0_i32_1 = arith.constant 0 : i32
    return %arg0, %arg1, %c0_i32, %c0_i32_0 : i32, i32, i32, i32
  }
}

module attributes {stable_mosaic.version = 11 : i64} {
  func.func @_matmul_bias_act_kernel(%arg0: i32, %arg1: i32, %arg2: memref<8x1152xf32, #tpu.memory_space<vmem>>, %arg3: memref<1152x128xbf16, #tpu.memory_space<vmem>>, %arg4: memref<1x128xf32, #tpu.memory_space<vmem>>, %arg5: memref<8x128xf32, #tpu.memory_space<vmem>>, %arg6: memref<1x1x128xf32, #tpu.memory_space<vmem>>, %arg7: memref<1x1x128xf32, #tpu.memory_space<vmem>>) attributes {dimension_semantics = [#tpu.dimension_semantics<parallel>, #tpu.dimension_semantics<parallel>], iteration_bounds = array<i64: 1, 2>, scalar_prefetch = 0 : i64, scratch_operands = 0 : i64, tpu.core_type = #tpu.core_type<tc>, window_params = [{transform_indices = @transform_0, window_bounds = array<i64: 8, 1152>}, {transform_indices = @transform_1, window_bounds = array<i64: 1152, 128>}, {transform_indices = @transform_2, window_bounds = array<i64: 1, 128>}, {transform_indices = @transform_3, window_bounds = array<i64: 8, 128>}, {transform_indices = @transform_4, window_bounds = array<i64: 1, 1, 128>}, {transform_indices = @transform_5, window_bounds = array<i64: 1, 1, 128>}]} {
    %c0 = arith.constant 0 : index
    %c0_0 = arith.constant 0 : index
    %0 = vector.load %arg2[%c0, %c0_0] : memref<8x1152xf32, #tpu.memory_space<vmem>>, vector<8x1152xf32>
    %1 = arith.truncf %0 : vector<8x1152xf32> to vector<8x1152xbf16>
    %c0_1 = arith.constant 0 : index
    %c0_2 = arith.constant 0 : index
    %2 = vector.load %arg3[%c0_1, %c0_2] : memref<1152x128xbf16, #tpu.memory_space<vmem>>, vector<1152x128xbf16>
    %cst = arith.constant dense<0.000000e+00> : vector<8x128xf32>
    %3 = tpu.matmul %1, %2, %cst {dimension_numbers = #tpu.dot_dimension_numbers<[1], [0], [0], [1], [0, 0, 1, 1], [], []>} : vector<8x1152xbf16>, vector<1152x128xbf16>, vector<8x128xf32> -> vector<8x128xf32>
    %c0_3 = arith.constant 0 : index
    %c0_4 = arith.constant 0 : index
    %4 = vector.load %arg4[%c0_3, %c0_4] : memref<1x128xf32, #tpu.memory_space<vmem>>, vector<1x128xf32>
    %5 = vector.broadcast %4 : vector<1x128xf32> to vector<8x128xf32>
    %6 = arith.addf %3, %5 : vector<8x128xf32>
    %7 = tpu.iota {dimensions = array<i32: 0>} : vector<8x128xi32>
    %c8_i32 = arith.constant 8 : i32
    %8 = arith.muli %arg0, %c8_i32 : i32
    %9 = vector.broadcast %8 : i32 to vector<8x128xi32>
    %10 = arith.addi %7, %9 : vector<8x128xi32>
    %c8_i32_5 = arith.constant 8 : i32
    %11 = vector.broadcast %c8_i32_5 : i32 to vector<8x128xi32>
    %12 = arith.cmpi slt, %10, %11 : vector<8x128xi32>
    %cst_6 = arith.constant 0.000000e+00 : f32
    %13 = vector.broadcast %cst_6 : f32 to vector<8x128xf32>
    %14 = arith.select %12, %6, %13 : vector<8x128xi1>, vector<8x128xf32>
    %cst_7 = arith.constant dense<0.000000e+00> : vector<128xf32>
    %15 = vector.multi_reduction <add>, %14, %cst_7 [0] : vector<8x128xf32> to vector<128xf32>
    %16 = vector.shape_cast %15 : vector<128xf32> to vector<1x1x128xf32>
    %c0_8 = arith.constant 0 : index
    %c0_9 = arith.constant 0 : index
    %c0_10 = arith.constant 0 : index
    %17 = vector.load %arg6[%c0_8, %c0_9, %c0_10] : memref<1x1x128xf32, #tpu.memory_space<vmem>>, vector<1x1x128xf32>
    tpu.vector_store %arg6[%c0_8, %c0_9, %c0_10], %16 {strides = array<i32>} : memref<1x1x128xf32, #tpu.memory_space<vmem>>, vector<1x1x128xf32>,
    %18 = arith.mulf %14, %14 : vector<8x128xf32>
    %cst_11 = arith.constant dense<0.000000e+00> : vector<128xf32>
    %19 = vector.multi_reduction <add>, %18, %cst_11 [0] : vector<8x128xf32> to vector<128xf32>
    %20 = vector.shape_cast %19 : vector<128xf32> to vector<1x1x128xf32>
    %c0_12 = arith.constant 0 : index
    %c0_13 = arith.constant 0 : index
    %c0_14 = arith.constant 0 : index
    %21 = vector.load %arg7[%c0_12, %c0_13, %c0_14] : memref<1x1x128xf32, #tpu.memory_space<vmem>>, vector<1x1x128xf32>
    tpu.vector_store %arg7[%c0_12, %c0_13, %c0_14], %20 {strides = array<i32>} : memref<1x1x128xf32, #tpu.memory_space<vmem>>, vector<1x1x128xf32>,
    %c0_15 = arith.constant 0 : index
    %c0_16 = arith.constant 0 : index
    %22 = vector.load %arg5[%c0_15, %c0_16] : memref<8x128xf32, #tpu.memory_space<vmem>>, vector<8x128xf32>
    tpu.vector_store %arg5[%c0_15, %c0_16], %6 {strides = array<i32>} : memref<8x128xf32, #tpu.memory_space<vmem>>, vector<8x128xf32>,
    return
  }
  func.func @transform_0(%arg0: i32, %arg1: i32) -> (i32, i32) {
    %c0_i32 = arith.constant 0 : i32
    %c0_i32_0 = arith.constant 0 : i32
    return %arg0, %c0_i32 : i32, i32
  }
  func.func @transform_1(%arg0: i32, %arg1: i32) -> (i32, i32) {
    %c0_i32 = arith.constant 0 : i32
    %c0_i32_0 = arith.constant 0 : i32
    return %c0_i32, %arg1 : i32, i32
  }
  func.func @transform_2(%arg0: i32, %arg1: i32) -> (i32, i32) {
    %c0_i32 = arith.constant 0 : i32
    %c0_i32_0 = arith.constant 0 : i32
    return %c0_i32, %arg1 : i32, i32
  }
  func.func @transform_3(%arg0: i32, %arg1: i32) -> (i32, i32) {
    %c0_i32 = arith.constant 0 : i32
    return %arg0, %arg1 : i32, i32
  }
  func.func @transform_4(%arg0: i32, %arg1: i32) -> (i32, i32, i32) {
    %c0_i32 = arith.constant 0 : i32
    %c0_i32_0 = arith.constant 0 : i32
    return %arg0, %c0_i32, %arg1 : i32, i32, i32
  }
  func.func @transform_5(%arg0: i32, %arg1: i32) -> (i32, i32, i32) {
    %c0_i32 = arith.constant 0 : i32
    %c0_i32_0 = arith.constant 0 : i32
    return %arg0, %c0_i32, %arg1 : i32, i32, i32
  }
}

module attributes {stable_mosaic.version = 11 : i64} {
  func.func @_bn_lrelu_pool_kernel(%arg0: i32, %arg1: i32, %arg2: memref<1x2x1x512xf32, #tpu.memory_space<vmem>>, %arg3: memref<1x256xf32, #tpu.memory_space<vmem>>, %arg4: memref<1x256xf32, #tpu.memory_space<vmem>>, %arg5: memref<1x256xf32, #tpu.memory_space<vmem>>, %arg6: memref<1x256xf32, #tpu.memory_space<vmem>>, %arg7: memref<1x1x1x256xf32, #tpu.memory_space<vmem>>) attributes {dimension_semantics = [#tpu.dimension_semantics<parallel>, #tpu.dimension_semantics<parallel>], iteration_bounds = array<i64: 2, 1>, scalar_prefetch = 0 : i64, scratch_operands = 0 : i64, tpu.core_type = #tpu.core_type<tc>, window_params = [{transform_indices = @transform_0, window_bounds = array<i64: 1, 2, 1, 512>}, {pipeline_mode = #tpu.pipeline_mode<synchronous>, transform_indices = @transform_1, window_bounds = array<i64: 1, 256>}, {pipeline_mode = #tpu.pipeline_mode<synchronous>, transform_indices = @transform_2, window_bounds = array<i64: 1, 256>}, {pipeline_mode = #tpu.pipeline_mode<synchronous>, transform_indices = @transform_3, window_bounds = array<i64: 1, 256>}, {pipeline_mode = #tpu.pipeline_mode<synchronous>, transform_indices = @transform_4, window_bounds = array<i64: 1, 256>}, {transform_indices = @transform_5, window_bounds = array<i64: 1, 1, 1, 256>}]} {
    %c0 = arith.constant 0 : index
    %c0_0 = arith.constant 0 : index
    %0 = vector.load %arg3[%c0, %c0_0] : memref<1x256xf32, #tpu.memory_space<vmem>>, vector<1x256xf32>
    %cst = arith.constant 1.250000e-01 : f32
    %1 = vector.broadcast %cst : f32 to vector<1x256xf32>
    %2 = arith.mulf %0, %1 : vector<1x256xf32>
    %c0_1 = arith.constant 0 : index
    %c0_2 = arith.constant 0 : index
    %3 = vector.load %arg3[%c0_1, %c0_2] : memref<1x256xf32, #tpu.memory_space<vmem>>, vector<1x256xf32>
    %cst_3 = arith.constant 0.000000e+00 : f32
    %4 = vector.broadcast %cst_3 : f32 to vector<1x256xf32>
    %5 = arith.mulf %3, %4 : vector<1x256xf32>
    %c0_4 = arith.constant 0 : index
    %c0_5 = arith.constant 0 : index
    %6 = vector.load %arg4[%c0_4, %c0_5] : memref<1x256xf32, #tpu.memory_space<vmem>>, vector<1x256xf32>
    %cst_6 = arith.constant 1.250000e-01 : f32
    %7 = vector.broadcast %cst_6 : f32 to vector<1x256xf32>
    %8 = arith.mulf %6, %7 : vector<1x256xf32>
    %9 = arith.addf %5, %8 : vector<1x256xf32>
    %10 = arith.mulf %2, %2 : vector<1x256xf32>
    %11 = arith.subf %9, %10 : vector<1x256xf32>
    %c0_7 = arith.constant 0 : index
    %c0_8 = arith.constant 0 : index
    %12 = vector.load %arg5[%c0_7, %c0_8] : memref<1x256xf32, #tpu.memory_space<vmem>>, vector<1x256xf32>
    %cst_9 = arith.constant 9.99999974E-6 : f32
    %13 = vector.broadcast %cst_9 : f32 to vector<1x256xf32>
    %14 = arith.addf %11, %13 : vector<1x256xf32>
    %15 = math.rsqrt %14 : vector<1x256xf32>
    %16 = arith.mulf %12, %15 : vector<1x256xf32>
    %c0_10 = arith.constant 0 : index
    %c0_11 = arith.constant 0 : index
    %17 = vector.load %arg6[%c0_10, %c0_11] : memref<1x256xf32, #tpu.memory_space<vmem>>, vector<1x256xf32>
    %18 = arith.mulf %2, %16 : vector<1x256xf32>
    %19 = arith.subf %17, %18 : vector<1x256xf32>
    %20 = tpu.concatenate %16, %16 in 1 : vector<1x256xf32>, vector<1x256xf32> -> vector<1x512xf32>
    %21 = tpu.concatenate %19, %19 in 1 : vector<1x256xf32>, vector<1x256xf32> -> vector<1x512xf32>
    %c0_12 = arith.constant 0 : index
    %c0_13 = arith.constant 0 : index
    %c0_14 = arith.constant 0 : index
    %c0_15 = arith.constant 0 : index
    %22 = vector.load %arg2[%c0_12, %c0_13, %c0_14, %c0_15] : memref<1x2x1x512xf32, #tpu.memory_space<vmem>>, vector<1x1x1x512xf32>
    %23 = vector.shape_cast %22 : vector<1x1x1x512xf32> to vector<1x512xf32>
    %24 = arith.mulf %23, %20 : vector<1x512xf32>
    %25 = arith.addf %24, %21 : vector<1x512xf32>
    %cst_16 = arith.constant 0.000000e+00 : f32
    %26 = vector.broadcast %cst_16 : f32 to vector<1x512xf32>
    %27 = arith.cmpf oge, %25, %26 : vector<1x512xf32>
    %cst_17 = arith.constant 0.00999999977 : f32
    %28 = vector.broadcast %cst_17 : f32 to vector<1x512xf32>
    %29 = arith.mulf %28, %25 : vector<1x512xf32>
    %30 = arith.select %27, %25, %29 : vector<1x512xi1>, vector<1x512xf32>
    %c0_18 = arith.constant 0 : index
    %c1 = arith.constant 1 : index
    %c0_19 = arith.constant 0 : index
    %c0_20 = arith.constant 0 : index
    %31 = vector.load %arg2[%c0_18, %c1, %c0_19, %c0_20] : memref<1x2x1x512xf32, #tpu.memory_space<vmem>>, vector<1x1x1x512xf32>
    %32 = vector.shape_cast %31 : vector<1x1x1x512xf32> to vector<1x512xf32>
    %33 = arith.mulf %32, %20 : vector<1x512xf32>
    %34 = arith.addf %33, %21 : vector<1x512xf32>
    %cst_21 = arith.constant 0.000000e+00 : f32
    %35 = vector.broadcast %cst_21 : f32 to vector<1x512xf32>
    %36 = arith.cmpf oge, %34, %35 : vector<1x512xf32>
    %cst_22 = arith.constant 0.00999999977 : f32
    %37 = vector.broadcast %cst_22 : f32 to vector<1x512xf32>
    %38 = arith.mulf %37, %34 : vector<1x512xf32>
    %39 = arith.select %36, %34, %38 : vector<1x512xi1>, vector<1x512xf32>
    %40 = arith.maximumf %30, %39 : vector<1x512xf32>
    %41 = vector.extract_strided_slice %40 {offsets = [0, 0], sizes = [1, 256], strides = [1, 1]} : vector<1x512xf32> to vector<1x256xf32>
    %42 = vector.extract_strided_slice %40 {offsets = [0, 256], sizes = [1, 256], strides = [1, 1]} : vector<1x512xf32> to vector<1x256xf32>
    %43 = arith.maximumf %41, %42 : vector<1x256xf32>
    %c0_23 = arith.constant 0 : index
    %c0_24 = arith.constant 0 : index
    %c0_25 = arith.constant 0 : index
    %c0_26 = arith.constant 0 : index
    %44 = vector.load %arg7[%c0_23, %c0_24, %c0_25, %c0_26] : memref<1x1x1x256xf32, #tpu.memory_space<vmem>>, vector<1x1x1x256xf32>
    %45 = vector.shape_cast %44 : vector<1x1x1x256xf32> to vector<1x256xf32>
    %46 = vector.shape_cast %43 : vector<1x256xf32> to vector<1x1x1x256xf32>
    tpu.vector_store %arg7[%c0_23, %c0_24, %c0_25, %c0_26], %46 {strides = array<i32>} : memref<1x1x1x256xf32, #tpu.memory_space<vmem>>, vector<1x1x1x256xf32>,
    return
  }
  func.func @transform_0(%arg0: i32, %arg1: i32) -> (i32, i32, i32, i32) {
    %c0_i32 = arith.constant 0 : i32
    %c0_i32_0 = arith.constant 0 : i32
    %c0_i32_1 = arith.constant 0 : i32
    return %arg0, %arg1, %c0_i32, %c0_i32_0 : i32, i32, i32, i32
  }
  func.func @transform_1(%arg0: i32, %arg1: i32) -> (i32, i32) {
    %c0_i32 = arith.constant 0 : i32
    %c0_i32_0 = arith.constant 0 : i32
    %c0_i32_1 = arith.constant 0 : i32
    return %c0_i32, %c0_i32_0 : i32, i32
  }
  func.func @transform_2(%arg0: i32, %arg1: i32) -> (i32, i32) {
    %c0_i32 = arith.constant 0 : i32
    %c0_i32_0 = arith.constant 0 : i32
    %c0_i32_1 = arith.constant 0 : i32
    return %c0_i32, %c0_i32_0 : i32, i32
  }
  func.func @transform_3(%arg0: i32, %arg1: i32) -> (i32, i32) {
    %c0_i32 = arith.constant 0 : i32
    %c0_i32_0 = arith.constant 0 : i32
    %c0_i32_1 = arith.constant 0 : i32
    return %c0_i32, %c0_i32_0 : i32, i32
  }
  func.func @transform_4(%arg0: i32, %arg1: i32) -> (i32, i32) {
    %c0_i32 = arith.constant 0 : i32
    %c0_i32_0 = arith.constant 0 : i32
    %c0_i32_1 = arith.constant 0 : i32
    return %c0_i32, %c0_i32_0 : i32, i32
  }
  func.func @transform_5(%arg0: i32, %arg1: i32) -> (i32, i32, i32, i32) {
    %c0_i32 = arith.constant 0 : i32
    %c0_i32_0 = arith.constant 0 : i32
    %c0_i32_1 = arith.constant 0 : i32
    return %arg0, %arg1, %c0_i32, %c0_i32_0 : i32, i32, i32, i32
  }
}

module attributes {stable_mosaic.version = 11 : i64} {
  func.func @_head_kernel(%arg0: i32, %arg1: memref<8x2304xf32, #tpu.memory_space<vmem>>, %arg2: memref<2304x256xbf16, #tpu.memory_space<vmem>>, %arg3: memref<1x256xf32, #tpu.memory_space<vmem>>, %arg4: memref<256x256xbf16, #tpu.memory_space<vmem>>, %arg5: memref<1x256xf32, #tpu.memory_space<vmem>>, %arg6: memref<256x256xbf16, #tpu.memory_space<vmem>>, %arg7: memref<1x256xf32, #tpu.memory_space<vmem>>, %arg8: memref<256x256xbf16, #tpu.memory_space<vmem>>, %arg9: memref<1x256xf32, #tpu.memory_space<vmem>>, %arg10: memref<8x256xf32, #tpu.memory_space<vmem>>) attributes {dimension_semantics = [#tpu.dimension_semantics<parallel>], iteration_bounds = array<i64: 1>, scalar_prefetch = 0 : i64, scratch_operands = 0 : i64, tpu.core_type = #tpu.core_type<tc>, window_params = [{transform_indices = @transform_0, window_bounds = array<i64: 8, 2304>}, {pipeline_mode = #tpu.pipeline_mode<synchronous>, transform_indices = @transform_1, window_bounds = array<i64: 2304, 256>}, {pipeline_mode = #tpu.pipeline_mode<synchronous>, transform_indices = @transform_2, window_bounds = array<i64: 1, 256>}, {pipeline_mode = #tpu.pipeline_mode<synchronous>, transform_indices = @transform_3, window_bounds = array<i64: 256, 256>}, {pipeline_mode = #tpu.pipeline_mode<synchronous>, transform_indices = @transform_4, window_bounds = array<i64: 1, 256>}, {pipeline_mode = #tpu.pipeline_mode<synchronous>, transform_indices = @transform_5, window_bounds = array<i64: 256, 256>}, {pipeline_mode = #tpu.pipeline_mode<synchronous>, transform_indices = @transform_6, window_bounds = array<i64: 1, 256>}, {pipeline_mode = #tpu.pipeline_mode<synchronous>, transform_indices = @transform_7, window_bounds = array<i64: 256, 256>}, {pipeline_mode = #tpu.pipeline_mode<synchronous>, transform_indices = @transform_8, window_bounds = array<i64: 1, 256>}, {transform_indices = @transform_9, window_bounds = array<i64: 8, 256>}]} {
    %c0 = arith.constant 0 : index
    %c0_0 = arith.constant 0 : index
    %0 = vector.load %arg1[%c0, %c0_0] : memref<8x2304xf32, #tpu.memory_space<vmem>>, vector<8x2304xf32>
    %1 = arith.truncf %0 : vector<8x2304xf32> to vector<8x2304xbf16>
    %c0_1 = arith.constant 0 : index
    %c0_2 = arith.constant 0 : index
    %2 = vector.load %arg2[%c0_1, %c0_2] : memref<2304x256xbf16, #tpu.memory_space<vmem>>, vector<2304x256xbf16>
    %cst = arith.constant dense<0.000000e+00> : vector<8x256xf32>
    %3 = tpu.matmul %1, %2, %cst {dimension_numbers = #tpu.dot_dimension_numbers<[1], [0], [0], [1], [0, 0, 1, 1], [], []>} : vector<8x2304xbf16>, vector<2304x256xbf16>, vector<8x256xf32> -> vector<8x256xf32>
    %c0_3 = arith.constant 0 : index
    %c0_4 = arith.constant 0 : index
    %4 = vector.load %arg3[%c0_3, %c0_4] : memref<1x256xf32, #tpu.memory_space<vmem>>, vector<1x256xf32>
    %5 = vector.broadcast %4 : vector<1x256xf32> to vector<8x256xf32>
    %6 = arith.addf %3, %5 : vector<8x256xf32>
    %cst_5 = arith.constant 0.000000e+00 : f32
    %7 = vector.broadcast %cst_5 : f32 to vector<8x256xf32>
    %8 = arith.cmpf oge, %6, %7 : vector<8x256xf32>
    %cst_6 = arith.constant 0.00999999977 : f32
    %9 = vector.broadcast %cst_6 : f32 to vector<8x256xf32>
    %10 = arith.mulf %9, %6 : vector<8x256xf32>
    %11 = arith.select %8, %6, %10 : vector<8x256xi1>, vector<8x256xf32>
    %12 = arith.truncf %11 : vector<8x256xf32> to vector<8x256xbf16>
    %c0_7 = arith.constant 0 : index
    %c0_8 = arith.constant 0 : index
    %13 = vector.load %arg4[%c0_7, %c0_8] : memref<256x256xbf16, #tpu.memory_space<vmem>>, vector<256x256xbf16>
    %cst_9 = arith.constant dense<0.000000e+00> : vector<8x256xf32>
    %14 = tpu.matmul %12, %13, %cst_9 {dimension_numbers = #tpu.dot_dimension_numbers<[1], [0], [0], [1], [0, 0, 1, 1], [], []>} : vector<8x256xbf16>, vector<256x256xbf16>, vector<8x256xf32> -> vector<8x256xf32>
    %c0_10 = arith.constant 0 : index
    %c0_11 = arith.constant 0 : index
    %15 = vector.load %arg5[%c0_10, %c0_11] : memref<1x256xf32, #tpu.memory_space<vmem>>, vector<1x256xf32>
    %16 = vector.broadcast %15 : vector<1x256xf32> to vector<8x256xf32>
    %17 = arith.addf %14, %16 : vector<8x256xf32>
    %cst_12 = arith.constant 0.000000e+00 : f32
    %18 = vector.broadcast %cst_12 : f32 to vector<8x256xf32>
    %19 = arith.cmpf oge, %17, %18 : vector<8x256xf32>
    %cst_13 = arith.constant 0.00999999977 : f32
    %20 = vector.broadcast %cst_13 : f32 to vector<8x256xf32>
    %21 = arith.mulf %20, %17 : vector<8x256xf32>
    %22 = arith.select %19, %17, %21 : vector<8x256xi1>, vector<8x256xf32>
    %23 = arith.truncf %22 : vector<8x256xf32> to vector<8x256xbf16>
    %c0_14 = arith.constant 0 : index
    %c0_15 = arith.constant 0 : index
    %24 = vector.load %arg6[%c0_14, %c0_15] : memref<256x256xbf16, #tpu.memory_space<vmem>>, vector<256x256xbf16>
    %cst_16 = arith.constant dense<0.000000e+00> : vector<8x256xf32>
    %25 = tpu.matmul %23, %24, %cst_16 {dimension_numbers = #tpu.dot_dimension_numbers<[1], [0], [0], [1], [0, 0, 1, 1], [], []>} : vector<8x256xbf16>, vector<256x256xbf16>, vector<8x256xf32> -> vector<8x256xf32>
    %c0_17 = arith.constant 0 : index
    %c0_18 = arith.constant 0 : index
    %26 = vector.load %arg7[%c0_17, %c0_18] : memref<1x256xf32, #tpu.memory_space<vmem>>, vector<1x256xf32>
    %27 = vector.broadcast %26 : vector<1x256xf32> to vector<8x256xf32>
    %28 = arith.addf %25, %27 : vector<8x256xf32>
    %cst_19 = arith.constant 0.000000e+00 : f32
    %29 = vector.broadcast %cst_19 : f32 to vector<8x256xf32>
    %30 = arith.cmpf oge, %28, %29 : vector<8x256xf32>
    %cst_20 = arith.constant 0.00999999977 : f32
    %31 = vector.broadcast %cst_20 : f32 to vector<8x256xf32>
    %32 = arith.mulf %31, %28 : vector<8x256xf32>
    %33 = arith.select %30, %28, %32 : vector<8x256xi1>, vector<8x256xf32>
    %34 = arith.truncf %33 : vector<8x256xf32> to vector<8x256xbf16>
    %c0_21 = arith.constant 0 : index
    %c0_22 = arith.constant 0 : index
    %35 = vector.load %arg8[%c0_21, %c0_22] : memref<256x256xbf16, #tpu.memory_space<vmem>>, vector<256x256xbf16>
    %cst_23 = arith.constant dense<0.000000e+00> : vector<8x256xf32>
    %36 = tpu.matmul %34, %35, %cst_23 {dimension_numbers = #tpu.dot_dimension_numbers<[1], [0], [0], [1], [0, 0, 1, 1], [], []>} : vector<8x256xbf16>, vector<256x256xbf16>, vector<8x256xf32> -> vector<8x256xf32>
    %c0_24 = arith.constant 0 : index
    %c0_25 = arith.constant 0 : index
    %37 = vector.load %arg9[%c0_24, %c0_25] : memref<1x256xf32, #tpu.memory_space<vmem>>, vector<1x256xf32>
    %38 = vector.broadcast %37 : vector<1x256xf32> to vector<8x256xf32>
    %39 = arith.addf %36, %38 : vector<8x256xf32>
    %40 = math.tanh %39 : vector<8x256xf32>
    %c0_26 = arith.constant 0 : index
    %c0_27 = arith.constant 0 : index
    %41 = vector.load %arg10[%c0_26, %c0_27] : memref<8x256xf32, #tpu.memory_space<vmem>>, vector<8x256xf32>
    tpu.vector_store %arg10[%c0_26, %c0_27], %40 {strides = array<i32>} : memref<8x256xf32, #tpu.memory_space<vmem>>, vector<8x256xf32>,
    return
  }
  func.func @transform_0(%arg0: i32) -> (i32, i32) {
    %c0_i32 = arith.constant 0 : i32
    %c0_i32_0 = arith.constant 0 : i32
    return %arg0, %c0_i32 : i32, i32
  }
  func.func @transform_1(%arg0: i32) -> (i32, i32) {
    %c0_i32 = arith.constant 0 : i32
    %c0_i32_0 = arith.constant 0 : i32
    %c0_i32_1 = arith.constant 0 : i32
    return %c0_i32, %c0_i32_0 : i32, i32
  }
  func.func @transform_2(%arg0: i32) -> (i32, i32) {
    %c0_i32 = arith.constant 0 : i32
    %c0_i32_0 = arith.constant 0 : i32
    %c0_i32_1 = arith.constant 0 : i32
    return %c0_i32, %c0_i32_0 : i32, i32
  }
  func.func @transform_3(%arg0: i32) -> (i32, i32) {
    %c0_i32 = arith.constant 0 : i32
    %c0_i32_0 = arith.constant 0 : i32
    %c0_i32_1 = arith.constant 0 : i32
    return %c0_i32, %c0_i32_0 : i32, i32
  }
  func.func @transform_4(%arg0: i32) -> (i32, i32) {
    %c0_i32 = arith.constant 0 : i32
    %c0_i32_0 = arith.constant 0 : i32
    %c0_i32_1 = arith.constant 0 : i32
    return %c0_i32, %c0_i32_0 : i32, i32
  }
  func.func @transform_5(%arg0: i32) -> (i32, i32) {
    %c0_i32 = arith.constant 0 : i32
    %c0_i32_0 = arith.constant 0 : i32
    %c0_i32_1 = arith.constant 0 : i32
    return %c0_i32, %c0_i32_0 : i32, i32
  }
  func.func @transform_6(%arg0: i32) -> (i32, i32) {
    %c0_i32 = arith.constant 0 : i32
    %c0_i32_0 = arith.constant 0 : i32
    %c0_i32_1 = arith.constant 0 : i32
    return %c0_i32, %c0_i32_0 : i32, i32
  }
  func.func @transform_7(%arg0: i32) -> (i32, i32) {
    %c0_i32 = arith.constant 0 : i32
    %c0_i32_0 = arith.constant 0 : i32
    %c0_i32_1 = arith.constant 0 : i32
    return %c0_i32, %c0_i32_0 : i32, i32
  }
  func.func @transform_8(%arg0: i32) -> (i32, i32) {
    %c0_i32 = arith.constant 0 : i32
    %c0_i32_0 = arith.constant 0 : i32
    %c0_i32_1 = arith.constant 0 : i32
    return %c0_i32, %c0_i32_0 : i32, i32
  }
  func.func @transform_9(%arg0: i32) -> (i32, i32) {
    %c0_i32 = arith.constant 0 : i32
    %c0_i32_0 = arith.constant 0 : i32
    return %arg0, %c0_i32 : i32, i32
  }
}

</mosaic_0001>

<llo_original>
// kernel: cnn_norm_forward.7
$region0: #{cnn_norm_forward.7}
  #allocation0 [shape = 'u32[]', space=smem, size = 0x4, offset = 0x4, fixed_abs, tag = 'smem constant byte address 0x4 - core index']
  #allocation1 [shape = 'u32[144,128]{1,0:T(1,128)}', space=vmem, size = 0x12000, scoped, tag = 'internal scratch']
  %s0 = inlined_call_operand.vmem [shape: f32[3698,25], index: 0, kind: input, shape index: {}]
  %s1 = inlined_call_operand.vmem [shape: bf16[25,64], index: 1, kind: input, shape index: {}]
  %s2 = inlined_call_operand.vmem [shape: f32[1,64], index: 2, kind: input, shape index: {}]
  %s3 = inlined_call_operand.vmem [shape: f32[3698,64], index: 3, kind: output, shape index: {0}]
  %s4 = inlined_call_operand.vmem [shape: f32[8,1,64], index: 4, kind: output, shape index: {1}]
  %s5 = inlined_call_operand.vmem [shape: f32[8,1,64], index: 5, kind: output, shape index: {2}]
  %6 = xla_tuple %s3, %s4, %s5
  %s7 = sld [smem:[#allocation0]]
  $region109: #{cnn_norm_forward.7} parent=0
    _
  %s9 = ssub.s32 1, %s7
  %s10 = scalar_select 0, %s9, %s7
  $region1: #{cnn_norm_forward.7} parent=0
    #allocation2 [shape = 'u8[524288]{0}', space=vmem, size = 0x80000, scoped, tag = 'output window, operand 0']
    loop: start=0, step=1, limit=10
    $region2: #{cnn_norm_forward.7} parent=1 // loop_pre_header
      _
    $region3: #{cnn_norm_forward.7} parent=1 // loop_header
      %s12 = sphi 0, %s16
      %p13 = scmp.ge.s32.totalorder %s12, 10
      %s19 = sphi 0, %s31
      %s20 = sphi 0, %s27
      %s21 = sphi 0, %s19
      %s22 = sphi 0, %s20
      %s23 = sphi 0, %s21
      %s24 = sphi 0, %s22
      %s34 = sphi 0, %s36
      %s37 = sphi 0, %s34
      %s38 = sphi 0, %s37
      %s54 = sphi 0, %s38
      %s60 = sphi 0, %s62
      %s63 = sphi 0, %s60
      %s64 = sphi 0, %s63
      %s80 = sphi 0, %s64
      %s86 = sphi 0, %s88
      %s89 = sphi 0, %s86
      %s90 = sphi 0, %s89
      %s106 = sphi 0, %s90
      %s114 = sphi 0, %s116
      %s117 = sphi 0, %s114
      %s118 = sphi 0, %s117
      %s134 = sphi 0, %s118
      %s142 = sphi 0, %s144
      %s145 = sphi 0, %s142
      %s146 = sphi 0, %s145
      %s162 = sphi 0, %s146
      %s170 = sphi 0, %s172
      %s173 = sphi 0, %s170
      %s174 = sphi 0, %s173
      %s190 = sphi 0, %s174
    $region4: #{cnn_norm_forward.7} parent=1 // loop_header_branch
      %15 = sbr.rel (%p13) target = $region8
    $region5: #{cnn_norm_forward.7} parent=1 // loop_body
      %s17 = ssub.s32 %s12, 1
      %s18 = ssub.s32 %s12, 2
      %s25 = sadd.s32 1, %s20
      %p26 = scmp.ge.s32.totalorder %s25, 1
      %s27 = scalar_select %p26, 0, %s25
      %s28 = sadd.s32 1, %s19
      %s29 = scalar_select %p26, %s28, %s19
      %p30 = scmp.ge.s32.totalorder %s29, 8
      %s31 = scalar_select %p30, 0, %s29
      %s32 = ssub.s32 %s19, %s31
      %p33 = scmp.eq.s32.totalorder %s32, 0
      %s35 = sadd.s32 %s34, 1
      %s36 = scalar_select %p33, %s34, %s35
      %p39 = pneg %p33
      %p40 = scmp.eq.s32.totalorder %s12, 7
      %p41 = por %p39, %p40
      %p42 = scmp.ne.s32.totalorder %s34, %s37
      %p43 = scmp.eq.s32.totalorder %s12, 0
      %p44 = por %p42, %p43
      %p45 = scmp.ne.s32.totalorder %s34, %s37
      %p46 = scmp.eq.s32.totalorder %s17, 7
      %p47 = por %p45, %p46
      %p48 = scmp.ne.s32.totalorder %s37, %s38
      %p49 = scmp.eq.s32.totalorder %s17, 0
      %p50 = por %p48, %p49
      %p51 = scmp.ne.s32.totalorder %s37, %s38
      %p52 = scmp.eq.s32.totalorder %s18, 7
      %p53 = por %p51, %p52
      %p55 = scmp.ne.s32.totalorder %s38, %s54
      %p56 = scmp.eq.s32.totalorder %s18, 0
      %p57 = por %p55, %p56
      %s58 = ssub.s32 %s20, %s27
      %p59 = scmp.eq.s32.totalorder %s58, 0
      %s61 = sadd.s32 %s60, 1
      %s62 = scalar_select %p59, %s60, %s61
      %p65 = pneg %p59
      %p66 = scmp.eq.s32.totalorder %s12, 7
      %p67 = por %p65, %p66
      %p68 = scmp.ne.s32.totalorder %s60, %s63
      %p69 = scmp.eq.s32.totalorder %s12, 0
      %p70 = por %p68, %p69
      %p71 = scmp.ne.s32.totalorder %s60, %s63
      %p72 = scmp.eq.s32.totalorder %s17, 7
      %p73 = por %p71, %p72
      %p74 = scmp.ne.s32.totalorder %s63, %s64
      %p75 = scmp.eq.s32.totalorder %s17, 0
      %p76 = por %p74, %p75
      %p77 = scmp.ne.s32.totalorder %s63, %s64
      %p78 = scmp.eq.s32.totalorder %s18, 7
      %p79 = por %p77, %p78
      %p81 = scmp.ne.s32.totalorder %s64, %s80
      %p82 = scmp.eq.s32.totalorder %s18, 0
      %p83 = por %p81, %p82
      %s84 = ssub.s32 %s20, %s27
      %p85 = scmp.eq.s32.totalorder %s84, 0
      %s87 = sadd.s32 %s86, 1
      %s88 = scalar_select %p85, %s86, %s87
      %p91 = pneg %p85
      %p92 = scmp.eq.s32.totalorder %s12, 7
      %p93 = por %p91, %p92
      %p94 = scmp.ne.s32.totalorder %s86, %s89
      %p95 = scmp.eq.s32.totalorder %s12, 0
      %p96 = por %p94, %p95
      %p97 = scmp.ne.s32.totalorder %s86, %s89
      %p98 = scmp.eq.s32.totalorder %s17, 7
      %p99 = por %p97, %p98
      %p100 = scmp.ne.s32.totalorder %s89, %s90
      %p101 = scmp.eq.s32.totalorder %s17, 0
      %p102 = por %p100, %p101
      %p103 = scmp.ne.s32.totalorder %s89, %s90
      %p104 = scmp.eq.s32.totalorder %s18, 7
      %p105 = por %p103, %p104
      %p107 = scmp.ne.s32.totalorder %s90, %s106
      %p108 = scmp.eq.s32.totalorder %s18, 0
      %p109 = por %p107, %p108
      %s110 = ssub.s32 %s19, %s31
      %s111 = ssub.s32 %s20, %s27
      %s112 = sor.u32 %s110, %s111
      %p113 = scmp.eq.s32.totalorder %s112, 0
      %s115 = sadd.s32 %s114, 1
      %s116 = scalar_select %p113, %s114, %s115
      %p119 = pneg %p113
      %p120 = scmp.eq.s32.totalorder %s12, 7
      %p121 = por %p119, %p120
      %p122 = scmp.ne.s32.totalorder %s114, %s117
      %p123 = scmp.eq.s32.totalorder %s12, 0
      %p124 = por %p122, %p123
      %p125 = scmp.ne.s32.totalorder %s114, %s117
      %p126 = scmp.eq.s32.totalorder %s17, 7
      %p127 = por %p125, %p126
      %p128 = scmp.ne.s32.totalorder %s117, %s118
      %p129 = scmp.eq.s32.totalorder %s17, 0
      %p130 = por %p128, %p129
      %p131 = scmp.ne.s32.totalorder %s117, %s118
      %p132 = scmp.eq.s32.totalorder %s18, 7
      %p133 = por %p131, %p132
      %p135 = scmp.ne.s32.totalorder %s118, %s134
      %p136 = scmp.eq.s32.totalorder %s18, 0
      %p137 = por %p135, %p136
      %s138 = ssub.s32 %s19, %s31
      %s139 = ssub.s32 %s20, %s27
      %s140 = sor.u32 %s138, %s139
      %p141 = scmp.eq.s32.totalorder %s140, 0
      %s143 = sadd.s32 %s142, 1
      %s144 = scalar_select %p141, %s142, %s143
      %p147 = pneg %p141
      %p148 = scmp.eq.s32.totalorder %s12, 7
      %p149 = por %p147, %p148
      %p150 = scmp.ne.s32.totalorder %s142, %s145
      %p151 = scmp.eq.s32.totalorder %s12, 0
      %p152 = por %p150, %p151
      %p153 = scmp.ne.s32.totalorder %s142, %s145
      %p154 = scmp.eq.s32.totalorder %s17, 7
      %p155 = por %p153, %p154
      %p156 = scmp.ne.s32.totalorder %s145, %s146
      %p157 = scmp.eq.s32.totalorder %s17, 0
      %p158 = por %p156, %p157
      %p159 = scmp.ne.s32.totalorder %s145, %s146
      %p160 = scmp.eq.s32.totalorder %s18, 7
      %p161 = por %p159, %p160
      %p163 = scmp.ne.s32.totalorder %s146, %s162
      %p164 = scmp.eq.s32.totalorder %s18, 0
      %p165 = por %p163, %p164
      %s166 = ssub.s32 %s19, %s31
      %s167 = ssub.s32 %s20, %s27
      %s168 = sor.u32 %s166, %s167
      %p169 = scmp.eq.s32.totalorder %s168, 0
      %s171 = sadd.s32 %s170, 1
      %s172 = scalar_select %p169, %s170, %s171
      %p175 = pneg %p169
      %p176 = scmp.eq.s32.totalorder %s12, 7
      %p177 = por %p175, %p176
      %p178 = scmp.ne.s32.totalorder %s170, %s173
      %p179 = scmp.eq.s32.totalorder %s12, 0
      %p180 = por %p178, %p179
      %p181 = scmp.ne.s32.totalorder %s170, %s173
      %p182 = scmp.eq.s32.totalorder %s17, 7
      %p183 = por %p181, %p182
      %p184 = scmp.ne.s32.totalorder %s173, %s174
      %p185 = scmp.eq.s32.totalorder %s17, 0
      %p186 = por %p184, %p185
      %p187 = scmp.ne.s32.totalorder %s173, %s174
      %p188 = scmp.eq.s32.totalorder %s18, 7
      %p189 = por %p187, %p188
      %p191 = scmp.ne.s32.totalorder %s174, %s190
      %p192 = scmp.eq.s32.totalorder %s18, 0
      %p193 = por %p191, %p192
      %p194 = scmp.le.s32.totalorder 1, %s12
      %p195 = scmp.lt.s32.totalorder %s12, 9
      %p196 = pnand %p194, %p195
      %p197 = pneg %p196
      // Predicated region
      $region9: #{cnn_norm_forward.7} parent=5 // pred_check
        _
      $region10: #{cnn_norm_forward.7} parent=5 // pred_check_branch
        %199 = sbr.rel (%p196) target = $region12
      $region11: #{cnn_norm_forward.7} parent=5 // pred_region
        %s200 = ssub.s32 %s12, 1
        // Predicated region
        $region13: #{cnn_norm_forward.7} parent=11 // pred_check
          %p201 = pneg %p76
        $region14: #{cnn_norm_forward.7} parent=11 // pred_check_branch
          %203 = sbr.rel (%p201) target = $region16
        $region15: #{cnn_norm_forward.7} parent=11 // pred_region
          %p204 = scmp.lt.s32.totalorder %s22, 0
          %s205 = scalar_select %p204, %s22, 0
          %s206 = smul.addr %s205, 4
          %s207 = scalar_lea.vmem %s1, %s206
        $region16: #{cnn_norm_forward.7} parent=11 // pred_fallthru
          _
        // Predicated region
        $region17: #{cnn_norm_forward.7} parent=11 // pred_check
          %p208 = pneg %p102
        $region18: #{cnn_norm_forward.7} parent=11 // pred_check_branch
          %210 = sbr.rel (%p208) target = $region20
        $region19: #{cnn_norm_forward.7} parent=11 // pred_region
          %p211 = scmp.lt.s32.totalorder %s22, 0
          %s212 = scalar_select %p211, %s22, 0
          %s213 = scalar_lea.vmem %s2, %s212
        $region20: #{cnn_norm_forward.7} parent=11 // pred_fallthru
          _
      $region12: #{cnn_norm_forward.7} parent=5 // pred_fallthru
        _
      %p214 = scmp.lt.s32.totalorder %s12, 8
      // Predicated region
      $region21: #{cnn_norm_forward.7} parent=5 // pred_check
        %p215 = pneg %p214
      $region22: #{cnn_norm_forward.7} parent=5 // pred_check_branch
        %217 = sbr.rel (%p215) target = $region24
      $region23: #{cnn_norm_forward.7} parent=5 // pred_region
        // Predicated region
        $region25: #{cnn_norm_forward.7} parent=23 // pred_check
          %p218 = pneg %p44
        $region26: #{cnn_norm_forward.7} parent=23 // pred_check_branch
          %220 = sbr.rel (%p218) target = $region28
        $region27: #{cnn_norm_forward.7} parent=23 // pred_region
          %s221 = smul.u32 64, %s19
          %s222 = ssub.s32 463, %s221
          %p223 = scmp.lt.s32.totalorder %s222, 64
          %s224 = scalar_select %p223, %s222, 64
          %s225 = smul.u32 128, %s224
          %p226 = scmp.lt.s32.totalorder %s221, 462
          %s227 = scalar_select %p226, %s221, 462
          %s228 = smul.addr %s227, 8
          %s229 = scalar_lea.vmem %s0, %s228
          %s230 = smul.u32 64, %s19
          %s231 = ssub.s32 463, %s230
          %p232 = scmp.lt.s32.totalorder %s231, 64
          %s233 = scalar_select %p232, %s231, 64
          %s234 = smul.u32 128, %s233
        $region28: #{cnn_norm_forward.7} parent=23 // pred_fallthru
          _
      $region24: #{cnn_norm_forward.7} parent=5 // pred_fallthru
        _
      %p235 = scmp.le.s32.totalorder 1, %s12
      %p236 = scmp.lt.s32.totalorder %s12, 9
      %p237 = pnand %p235, %p236
      %p238 = pneg %p237
      // Predicated region
      $region29: #{cnn_norm_forward.7} parent=5 // pred_check
        _
      $region30: #{cnn_norm_forward.7} parent=5 // pred_check_branch
        %240 = sbr.rel (%p237) target = $region32
      $region31: #{cnn_norm_forward.7} parent=5 // pred_region
        %s241 = ssub.s32 %s12, 1
        %s242 = smul.u32 64, %s21
        %s243 = ssub.s32 463, %s242
        %p244 = scmp.lt.s32.totalorder %s243, 64
        %s245 = scalar_select %p244, %s243, 64
        %s246 = smul.u32 128, %s245
        %p247 = scmp.lt.s32.totalorder %s242, 462
        %s248 = scalar_select %p247, %s242, 462
        %s249 = smul.addr %s248, 8
        %s250 = scalar_lea.vmem %s0, %s249
        %p251 = pneg %p50
        %p252 = pneg %p47
        %p253 = scmp.lt.s32.totalorder %s22, 0
        %s254 = scalar_select %p253, %s22, 0
        %s255 = smul.addr %s254, 4
        %s256 = scalar_lea.vmem %s1, %s255
        %p257 = pneg %p76
        %p258 = pneg %p73
        %p259 = scmp.lt.s32.totalorder %s22, 0
        %s260 = scalar_select %p259, %s22, 0
        %s261 = scalar_lea.vmem %s2, %s260
        %p262 = pneg %p102
        %p263 = pneg %p99
        %p264 = pneg %p130
        %p265 = pneg %p127
        %s266 = sand.u32 %s117, 1
        %s267 = sand.u32 %s117, 1
        %s268 = smul.addr %s267, 512
        %s269 = scalar_lea.vmem [#allocation2], %s268
        %p270 = pneg %p158
        %p271 = pneg %p155
        %p272 = scmp.lt.s32.totalorder %s21, 7
        %s273 = scalar_select %p272, %s21, 7
        %p274 = scmp.lt.s32.totalorder %s22, 0
        %s275 = scalar_select %p274, %s22, 0
        %s276 = sadd.s32 %s275, %s273
        %s277 = scalar_lea.vmem %s4, %s276
        %p278 = pneg %p186
        %p279 = pneg %p183
        %p280 = scmp.lt.s32.totalorder %s21, 7
        %s281 = scalar_select %p280, %s21, 7
        %p282 = scmp.lt.s32.totalorder %s22, 0
        %s283 = scalar_select %p282, %s22, 0
        %s284 = sadd.s32 %s283, %s281
        %s285 = scalar_lea.vmem %s5, %s284
        %s286 = smul.u32 64, %s21
        %s287 = ssub.s32 463, %s286
        %p288 = scmp.lt.s32.totalorder %s287, 64
        %s289 = scalar_select %p288, %s287, 64
        %s290 = smul.u32 128, %s289
        %p291 = scmp.lt.s32.totalorder %s286, 462
        %s292 = scalar_select %p291, %s286, 462
        %s293 = smul.addr %s292, 8
        %s294 = scalar_lea.vmem %s0, %s293
        %s295 = smul.u32 64, %s21
        %s296 = ssub.s32 463, %s295
        %p297 = scmp.lt.s32.totalorder %s296, 64
        %s298 = scalar_select %p297, %s296, 64
        %s299 = smul.u32 128, %s298
        %p300 = scmp.lt.s32.totalorder %s22, 0
        %s301 = scalar_select %p300, %s22, 0
        %s302 = smul.addr %s301, 4
        %s303 = scalar_lea.vmem %s1, %s302
        %p304 = scmp.lt.s32.totalorder %s22, 0
        %s305 = scalar_select %p304, %s22, 0
        %s306 = scalar_lea.vmem %s2, %s305
        %s307 = smul.u32 64, %s21
        %s308 = ssub.s32 463, %s307
        %p309 = scmp.lt.s32.totalorder %s308, 64
        %s310 = scalar_select %p309, %s308, 64
        %s311 = smul.u32 128, %s310
        %p312 = scmp.lt.s32.totalorder %s21, 7
        %s313 = scalar_select %p312, %s21, 7
        %p314 = scmp.lt.s32.totalorder %s22, 0
        %s315 = scalar_select %p314, %s22, 0
        %s316 = sadd.s32 %s315, %s313
        %s317 = scalar_lea.vmem %s4, %s316
        %p318 = scmp.lt.s32.totalorder %s21, 7
        %s319 = scalar_select %p318, %s21, 7
        %p320 = scmp.lt.s32.totalorder %s22, 0
        %s321 = scalar_select %p320, %s22, 0
        %s322 = sadd.s32 %s321, %s319
        %s323 = scalar_lea.vmem %s5, %s322
        %v325 = vld [vmem:[%s294] sm:$0xff]
        %v326 = vld [vmem:[%s294 + $0x8] sm:$0xff]
        %v327 = vld [vmem:[%s294 + $0x10] sm:$0xff]
        %v328 = vld [vmem:[%s294 + $0x18] sm:$0xff]
        %v329 = vld [vmem:[%s294 + $0x20] sm:$0xff]
        %v330 = vld [vmem:[%s294 + $0x28] sm:$0xff]
        %v331 = vld [vmem:[%s294 + $0x30] sm:$0xff]
        %v332 = vld [vmem:[%s294 + $0x38] sm:$0xff]
        %v333 = vld [vmem:[%s294 + $0x40] sm:$0xff]
        %v334 = vld [vmem:[%s294 + $0x48] sm:$0xff]
        %v335 = vld [vmem:[%s294 + $0x50] sm:$0xff]
        %v336 = vld [vmem:[%s294 + $0x58] sm:$0xff]
        %v337 = vld [vmem:[%s294 + $0x60] sm:$0xff]
        %v338 = vld [vmem:[%s294 + $0x68] sm:$0xff]
        %v339 = vld [vmem:[%s294 + $0x70] sm:$0xff]
        %v340 = vld [vmem:[%s294 + $0x78] sm:$0xff]
        %v341 = vld [vmem:[%s294 + $0x80] sm:$0xff]
        %v342 = vld [vmem:[%s294 + $0x88] sm:$0xff]
        %v343 = vld [vmem:[%s294 + $0x90] sm:$0xff]
        %v344 = vld [vmem:[%s294 + $0x98] sm:$0xff]
        %v345 = vld [vmem:[%s294 + $0xa0] sm:$0xff]
        %v346 = vld [vmem:[%s294 + $0xa8] sm:$0xff]
        %v347 = vld [vmem:[%s294 + $0xb0] sm:$0xff]
        %v348 = vld [vmem:[%s294 + $0xb8] sm:$0xff]
        %v349 = vld [vmem:[%s294 + $0xc0] sm:$0xff]
        %v350 = vld [vmem:[%s294 + $0xc8] sm:$0xff]
        %v351 = vld [vmem:[%s294 + $0xd0] sm:$0xff]
        %v352 = vld [vmem:[%s294 + $0xd8] sm:$0xff]
        %v353 = vld [vmem:[%s294 + $0xe0] sm:$0xff]
        %v354 = vld [vmem:[%s294 + $0xe8] sm:$0xff]
        %v355 = vld [vmem:[%s294 + $0xf0] sm:$0xff]
        %v356 = vld [vmem:[%s294 + $0xf8] sm:$0xff]
        %v357 = vld [vmem:[%s294 + $0x100] sm:$0xff]
        %v358 = vld [vmem:[%s294 + $0x108] sm:$0xff]
        %v359 = vld [vmem:[%s294 + $0x110] sm:$0xff]
        %v360 = vld [vmem:[%s294 + $0x118] sm:$0xff]
        %v361 = vld [vmem:[%s294 + $0x120] sm:$0xff]
        %v362 = vld [vmem:[%s294 + $0x128] sm:$0xff]
        %v363 = vld [vmem:[%s294 + $0x130] sm:$0xff]
        %v364 = vld [vmem:[%s294 + $0x138] sm:$0xff]
        %v365 = vld [vmem:[%s294 + $0x140] sm:$0xff]
        %v366 = vld [vmem:[%s294 + $0x148] sm:$0xff]
        %v367 = vld [vmem:[%s294 + $0x150] sm:$0xff]
        %v368 = vld [vmem:[%s294 + $0x158] sm:$0xff]
        %v369 = vld [vmem:[%s294 + $0x160] sm:$0xff]
        %v370 = vld [vmem:[%s294 + $0x168] sm:$0xff]
        %v371 = vld [vmem:[%s294 + $0x170] sm:$0xff]
        %v372 = vld [vmem:[%s294 + $0x178] sm:$0xff]
        %v373 = vld [vmem:[%s294 + $0x180] sm:$0xff]
        %v374 = vld [vmem:[%s294 + $0x188] sm:$0xff]
        %v375 = vld [vmem:[%s294 + $0x190] sm:$0xff]
        %v376 = vld [vmem:[%s294 + $0x198] sm:$0xff]
        %v377 = vld [vmem:[%s294 + $0x1a0] sm:$0xff]
        %v378 = vld [vmem:[%s294 + $0x1a8] sm:$0xff]
        %v379 = vld [vmem:[%s294 + $0x1b0] sm:$0xff]
        %v380 = vld [vmem:[%s294 + $0x1b8] sm:$0xff]
        %v381 = vld [vmem:[%s294 + $0x1c0] sm:$0xff]
        %v382 = vld [vmem:[%s294 + $0x1c8] sm:$0xff]
        %v383 = vld [vmem:[%s294 + $0x1d0] sm:$0xff]
        %v384 = vld [vmem:[%s294 + $0x1d8] sm:$0xff]
        %v385 = vld [vmem:[%s294 + $0x1e0] sm:$0xff]
        %v386 = vld [vmem:[%s294 + $0x1e8] sm:$0xff]
        %v387 = vld [vmem:[%s294 + $0x1f0] sm:$0xff]
        %v388 = vld [vmem:[%s294 + $0x1f8] sm:$0xff]
        %v389 = vpack.c.bf16 %v326, %v325
        %v390 = vpack.c.bf16 %v328, %v327
        %v391 = vpack.c.bf16 %v330, %v329
        %v392 = vpack.c.bf16 %v332, %v331
        %v393 = vpack.c.bf16 %v334, %v333
        %v394 = vpack.c.bf16 %v336, %v335
        %v395 = vpack.c.bf16 %v338, %v337
        %v396 = vpack.c.bf16 %v340, %v339
        %v397 = vpack.c.bf16 %v342, %v341
        %v398 = vpack.c.bf16 %v344, %v343
        %v399 = vpack.c.bf16 %v346, %v345
        %v400 = vpack.c.bf16 %v348, %v347
        %v401 = vpack.c.bf16 %v350, %v349
        %v402 = vpack.c.bf16 %v352, %v351
        %v403 = vpack.c.bf16 %v354, %v353
        %v404 = vpack.c.bf16 %v356, %v355
        %v405 = vpack.c.bf16 %v358, %v357
        %v406 = vpack.c.bf16 %v360, %v359
        %v407 = vpack.c.bf16 %v362, %v361
        %v408 = vpack.c.bf16 %v364, %v363
        %v409 = vpack.c.bf16 %v366, %v365
        %v410 = vpack.c.bf16 %v368, %v367
        %v411 = vpack.c.bf16 %v370, %v369
        %v412 = vpack.c.bf16 %v372, %v371
        %v413 = vpack.c.bf16 %v374, %v373
        %v414 = vpack.c.bf16 %v376, %v375
        %v415 = vpack.c.bf16 %v378, %v377
        %v416 = vpack.c.bf16 %v380, %v379
        %v417 = vpack.c.bf16 %v382, %v381
        %v418 = vpack.c.bf16 %v384, %v383
        %v419 = vpack.c.bf16 %v386, %v385
        %v420 = vpack.c.bf16 %v388, %v387
        %v421 = vld [vmem:[%s303] sm:$0xf]
        %v422 = vld [vmem:[%s303 + $0x4] sm:$0xf]
        %v423 = vld [vmem:[%s303 + $0x8] sm:$0xf]
        %v424 = vld [vmem:[%s303 + $0xc] sm:$0x1]
        %v425 = vld [vmem:[%s306] sm:$0x1]
        %v427 = vlaneseq
        %v428 = vshrl.u32 %v427, 7
        %v429 = vsub.s32 0, %v428
        %v430 = vrot.slane %v425, %v429
        %v436 = vunpack.c.l.b16 %v421
        %v437 = vunpack.c.l.b16 %v422
        %v438 = vunpack.c.l.b16 %v423
        %v439 = vunpack.c.l.b16 %v424
        %v440 = vpack.c.b16 %v437, %v436
        %v441 = vpack.c.b16 %v439, %v438
        %vm443 = vcmask 203776
        %v445 = vsel %vm443, %v389, 0
        %v448 = vsel %vm443, %v390, 0
        %v451 = vsel %vm443, %v391, 0
        %v454 = vsel %vm443, %v392, 0
        %v457 = vsel %vm443, %v393, 0
        %v460 = vsel %vm443, %v394, 0
        %v463 = vsel %vm443, %v395, 0
        %v466 = vsel %vm443, %v396, 0
        %v469 = vsel %vm443, %v397, 0
        %v472 = vsel %vm443, %v398, 0
        %v475 = vsel %vm443, %v399, 0
        %v478 = vsel %vm443, %v400, 0
        %v481 = vsel %vm443, %v401, 0
        %v484 = vsel %vm443, %v402, 0
        %v487 = vsel %vm443, %v403, 0
        %v490 = vsel %vm443, %v404, 0
        %v493 = vsel %vm443, %v405, 0
        %v496 = vsel %vm443, %v406, 0
        %v499 = vsel %vm443, %v407, 0
        %v502 = vsel %vm443, %v408, 0
        %v505 = vsel %vm443, %v409, 0
        %v508 = vsel %vm443, %v410, 0
        %v511 = vsel %vm443, %v411, 0
        %v514 = vsel %vm443, %v412, 0
        %v517 = vsel %vm443, %v413, 0
        %v520 = vsel %vm443, %v414, 0
        %v523 = vsel %vm443, %v415, 0
        %v526 = vsel %vm443, %v416, 0
        %v529 = vsel %vm443, %v417, 0
        %v532 = vsel %vm443, %v418, 0
        %v535 = vsel %vm443, %v419, 0
        %v538 = vsel %vm443, %v420, 0
        %vm540 = vcmask 1043456
        %vm541 = vcmask 1044480
        %v542 = vsel %vm540, 4294967295, 65535
        %v543 = vsel %vm541, %v542, 0
        %v545 = vand.u32 %v441, %v543
        %547 = vmatprep.subr.bf16.mxu0 0
        %548 = vmatpush1.bf16.msra.mxu0 %v440
        %549 = vmatprep.subr.bf16.mxu0 0
        %550 = vmatpush1.bf16.msra.mxu0 %v545
        %551 = vmatprep.subr.bf16.mxu0 0
        %552 = vmatpush1.bf16.msra.mxu0 0
        %553 = vmatprep.subr.bf16.mxu0 0
        %554 = vmatpush1.bf16.msra.mxu0 0
        %555 = vmatprep.subr.bf16.mxu0 0
        %556 = vmatpush1.bf16.msra.mxu0 0
        %557 = vmatprep.subr.bf16.mxu0 0
        %558 = vmatpush1.bf16.msra.mxu0 0
        %559 = vmatprep.subr.bf16.mxu0 0
        %560 = vmatpush1.bf16.msra.mxu0 0
        %561 = vmatprep.subr.bf16.mxu0 0
        %562 = vmatpush1.bf16.msra.mxu0 0
        %563 = vmatprep.subr.bf16.mxu0 0
        %564 = vmatpush1.bf16.msra.mxu0 0
        %565 = vmatprep.subr.bf16.mxu0 0
        %566 = vmatpush1.bf16.msra.mxu0 0
        %567 = vmatprep.subr.bf16.mxu0 0
        %568 = vmatpush1.bf16.msra.mxu0 0
        %569 = vmatprep.subr.bf16.mxu0 0
        %570 = vmatpush1.bf16.msra.mxu0 0
        %571 = vmatprep.subr.bf16.mxu0 0
        %572 = vmatpush1.bf16.msra.mxu0 0
        %573 = vmatprep.subr.bf16.mxu0 0
        %574 = vmatpush1.bf16.msra.mxu0 0
        %575 = vmatprep.subr.bf16.mxu0 0
        %576 = vmatpush1.bf16.msra.mxu0 0
        %577 = vmatprep.subr.bf16.mxu0 0
        %578 = vmatpush1.bf16.msra.mxu0 0
        %579 = vmatprep.mubr.bf16.mxu0 0
        %580 = vmatmul.mubr.bf16.gmra.mrb[0].mxu0 %v445
        %v581 = vpop.f32.mrb[0].mxu0
        %v582 = vadd.f32 %v430, %v581
        %v583 = vpop.f32.mrb[0].mxu0
        %v584 = vpop.f32.mrb[0].mxu0
        %v585 = vadd.f32 %v430, %v584
        %v586 = vpop.f32.mrb[0].mxu0
        %587 = vmatprep.mubr.bf16.mxu0 0
        %588 = vmatmul.mubr.bf16.gmra.mrb[0].mxu0 %v448
        %v589 = vpop.f32.mrb[0].mxu0
        %v590 = vadd.f32 %v430, %v589
        %v591 = vpop.f32.mrb[0].mxu0
        %v592 = vpop.f32.mrb[0].mxu0
        %v593 = vadd.f32 %v430, %v592
        %v594 = vpop.f32.mrb[0].mxu0
        %595 = vmatprep.mubr.bf16.mxu0 0
        %596 = vmatmul.mubr.bf16.gmra.mrb[0].mxu0 %v451
        %v597 = vpop.f32.mrb[0].mxu0
        %v598 = vadd.f32 %v430, %v597
        %v599 = vpop.f32.mrb[0].mxu0
        %v600 = vpop.f32.mrb[0].mxu0
        %v601 = vadd.f32 %v430, %v600
        %v602 = vpop.f32.mrb[0].mxu0
        %603 = vmatprep.mubr.bf16.mxu0 0
        %604 = vmatmul.mubr.bf16.gmra.mrb[0].mxu0 %v454
        %v605 = vpop.f32.mrb[0].mxu0
        %v606 = vadd.f32 %v430, %v605
        %v607 = vpop.f32.mrb[0].mxu0
        %v608 = vpop.f32.mrb[0].mxu0
        %v609 = vadd.f32 %v430, %v608
        %v610 = vpop.f32.mrb[0].mxu0
        %611 = vmatprep.mubr.bf16.mxu0 0
        %612 = vmatmul.mubr.bf16.gmra.mrb[0].mxu0 %v457
        %v613 = vpop.f32.mrb[0].mxu0
        %v614 = vadd.f32 %v430, %v613
        %v615 = vpop.f32.mrb[0].mxu0
        %v616 = vpop.f32.mrb[0].mxu0
        %v617 = vadd.f32 %v430, %v616
        %v618 = vpop.f32.mrb[0].mxu0
        %619 = vmatprep.mubr.bf16.mxu0 0
        %620 = vmatmul.mubr.bf16.gmra.mrb[0].mxu0 %v460
        %v621 = vpop.f32.mrb[0].mxu0
        %v622 = vadd.f32 %v430, %v621
        %v623 = vpop.f32.mrb[0].mxu0
        %v624 = vpop.f32.mrb[0].mxu0
        %v625 = vadd.f32 %v430, %v624
        %v626 = vpop.f32.mrb[0].mxu0
        %627 = vmatprep.mubr.bf16.mxu0 0
        %628 = vmatmul.mubr.bf16.gmra.mrb[0].mxu0 %v463
        %v629 = vpop.f32.mrb[0].mxu0
        %v630 = vadd.f32 %v430, %v629
        %v631 = vpop.f32.mrb[0].mxu0
        %v632 = vpop.f32.mrb[0].mxu0
        %v633 = vadd.f32 %v430, %v632
        %v634 = vpop.f32.mrb[0].mxu0
        %635 = vmatprep.mubr.bf16.mxu0 0
        %636 = vmatmul.mubr.bf16.gmra.mrb[0].mxu0 %v466
        %v637 = vpop.f32.mrb[0].mxu0
        %v638 = vadd.f32 %v430, %v637
        %v639 = vpop.f32.mrb[0].mxu0
        %v640 = vpop.f32.mrb[0].mxu0
        %v641 = vadd.f32 %v430, %v640
        %v642 = vpop.f32.mrb[0].mxu0
        %643 = vmatprep.mubr.bf16.mxu0 0
        %644 = vmatmul.mubr.bf16.gmra.mrb[0].mxu0 %v469
        %v645 = vpop.f32.mrb[0].mxu0
        %v646 = vadd.f32 %v430, %v645
        %v647 = vpop.f32.mrb[0].mxu0
        %v648 = vpop.f32.mrb[0].mxu0
        %v649 = vadd.f32 %v430, %v648
        %v650 = vpop.f32.mrb[0].mxu0
        %651 = vmatprep.mubr.bf16.mxu0 0
        %652 = vmatmul.mubr.bf16.gmra.mrb[0].mxu0 %v472
        %v653 = vpop.f32.mrb[0].mxu0
        %v654 = vadd.f32 %v430, %v653
        %v655 = vpop.f32.mrb[0].mxu0
        %v656 = vpop.f32.mrb[0].mxu0
        %v657 = vadd.f32 %v430, %v656
        %v658 = vpop.f32.mrb[0].mxu0
        %659 = vmatprep.mubr.bf16.mxu0 0
        %660 = vmatmul.mubr.bf16.gmra.mrb[0].mxu0 %v475
        %v661 = vpop.f32.mrb[0].mxu0
        %v662 = vadd.f32 %v430, %v661
        %v663 = vpop.f32.mrb[0].mxu0
        %v664 = vpop.f32.mrb[0].mxu0
        %v665 = vadd.f32 %v430, %v664
        %v666 = vpop.f32.mrb[0].mxu0
        %667 = vmatprep.mubr.bf16.mxu0 0
        %668 = vmatmul.mubr.bf16.gmra.mrb[0].mxu0 %v478
        %v669 = vpop.f32.mrb[0].mxu0
        %v670 = vadd.f32 %v430, %v669
        %v671 = vpop.f32.mrb[0].mxu0
        %v672 = vpop.f32.mrb[0].mxu0
        %v673 = vadd.f32 %v430, %v672
        %v674 = vpop.f32.mrb[0].mxu0
        %675 = vmatprep.mubr.bf16.mxu0 0
        %676 = vmatmul.mubr.bf16.gmra.mrb[0].mxu0 %v481
        %v677 = vpop.f32.mrb[0].mxu0
        %v678 = vadd.f32 %v430, %v677
        %v679 = vpop.f32.mrb[0].mxu0
        %v680 = vpop.f32.mrb[0].mxu0
        %v681 = vadd.f32 %v430, %v680
        %v682 = vpop.f32.mrb[0].mxu0
        %683 = vmatprep.mubr.bf16.mxu0 0
        %684 = vmatmul.mubr.bf16.gmra.mrb[0].mxu0 %v484
        %v685 = vpop.f32.mrb[0].mxu0
        %v686 = vadd.f32 %v430, %v685
        %v687 = vpop.f32.mrb[0].mxu0
        %v688 = vpop.f32.mrb[0].mxu0
        %v689 = vadd.f32 %v430, %v688
        %v690 = vpop.f32.mrb[0].mxu0
        %691 = vmatprep.mubr.bf16.mxu0 0
        %692 = vmatmul.mubr.bf16.gmra.mrb[0].mxu0 %v487
        %v693 = vpop.f32.mrb[0].mxu0
        %v694 = vadd.f32 %v430, %v693
        %v695 = vpop.f32.mrb[0].mxu0
        %v696 = vpop.f32.mrb[0].mxu0
        %v697 = vadd.f32 %v430, %v696
        %v698 = vpop.f32.mrb[0].mxu0
        %699 = vmatprep.mubr.bf16.mxu0 0
        %700 = vmatmul.mubr.bf16.gmra.mrb[0].mxu0 %v490
        %v701 = vpop.f32.mrb[0].mxu0
        %v702 = vadd.f32 %v430, %v701
        %v703 = vpop.f32.mrb[0].mxu0
        %v704 = vpop.f32.mrb[0].mxu0
        %v705 = vadd.f32 %v430, %v704
        %v706 = vpop.f32.mrb[0].mxu0
        %707 = vmatprep.mubr.bf16.mxu0 0
        %708 = vmatmul.mubr.bf16.gmra.mrb[0].mxu0 %v493
        %v709 = vpop.f32.mrb[0].mxu0
        %v710 = vadd.f32 %v430, %v709
        %v711 = vpop.f32.mrb[0].mxu0
        %v712 = vpop.f32.mrb[0].mxu0
        %v713 = vadd.f32 %v430, %v712
        %v714 = vpop.f32.mrb[0].mxu0
        %715 = vmatprep.mubr.bf16.mxu0 0
        %716 = vmatmul.mubr.bf16.gmra.mrb[0].mxu0 %v496
        %v717 = vpop.f32.mrb[0].mxu0
        %v718 = vadd.f32 %v430, %v717
        %v719 = vpop.f32.mrb[0].mxu0
        %v720 = vpop.f32.mrb[0].mxu0
        %v721 = vadd.f32 %v430, %v720
        %v722 = vpop.f32.mrb[0].mxu0
        %723 = vmatprep.mubr.bf16.mxu0 0
        %724 = vmatmul.mubr.bf16.gmra.mrb[0].mxu0 %v499
        %v725 = vpop.f32.mrb[0].mxu0
        %v726 = vadd.f32 %v430, %v725
        %v727 = vpop.f32.mrb[0].mxu0
        %v728 = vpop.f32.mrb[0].mxu0
        %v729 = vadd.f32 %v430, %v728
        %v730 = vpop.f32.mrb[0].mxu0
        %731 = vmatprep.mubr.bf16.mxu0 0
        %732 = vmatmul.mubr.bf16.gmra.mrb[0].mxu0 %v502
        %v733 = vpop.f32.mrb[0].mxu0
        %v734 = vadd.f32 %v430, %v733
        %v735 = vpop.f32.mrb[0].mxu0
        %v736 = vpop.f32.mrb[0].mxu0
        %v737 = vadd.f32 %v430, %v736
        %v738 = vpop.f32.mrb[0].mxu0
        %739 = vmatprep.mubr.bf16.mxu0 0
        %740 = vmatmul.mubr.bf16.gmra.mrb[0].mxu0 %v505
        %v741 = vpop.f32.mrb[0].mxu0
        %v742 = vadd.f32 %v430, %v741
        %v743 = vpop.f32.mrb[0].mxu0
        %v744 = vpop.f32.mrb[0].mxu0
        %v745 = vadd.f32 %v430, %v744
        %v746 = vpop.f32.mrb[0].mxu0
        %747 = vmatprep.mubr.bf16.mxu0 0
        %748 = vmatmul.mubr.bf16.gmra.mrb[0].mxu0 %v508
        %v749 = vpop.f32.mrb[0].mxu0
        %v750 = vadd.f32 %v430, %v749
        %v751 = vpop.f32.mrb[0].mxu0
        %v752 = vpop.f32.mrb[0].mxu0
        %v753 = vadd.f32 %v430, %v752
        %v754 = vpop.f32.mrb[0].mxu0
        %755 = vmatprep.mubr.bf16.mxu0 0
        %756 = vmatmul.mubr.bf16.gmra.mrb[0].mxu0 %v511
        %v757 = vpop.f32.mrb[0].mxu0
        %v758 = vadd.f32 %v430, %v757
        %v759 = vpop.f32.mrb[0].mxu0
        %v760 = vpop.f32.mrb[0].mxu0
        %v761 = vadd.f32 %v430, %v760
        %v762 = vpop.f32.mrb[0].mxu0
        %763 = vmatprep.mubr.bf16.mxu0 0
        %764 = vmatmul.mubr.bf16.gmra.mrb[0].mxu0 %v514
        %v765 = vpop.f32.mrb[0].mxu0
        %v766 = vadd.f32 %v430, %v765
        %v767 = vpop.f32.mrb[0].mxu0
        %v768 = vpop.f32.mrb[0].mxu0
        %v769 = vadd.f32 %v430, %v768
        %v770 = vpop.f32.mrb[0].mxu0
        %771 = vmatprep.mubr.bf16.mxu0 0
        %772 = vmatmul.mubr.bf16.gmra.mrb[0].mxu0 %v517
        %v773 = vpop.f32.mrb[0].mxu0
        %v774 = vadd.f32 %v430, %v773
        %v775 = vpop.f32.mrb[0].mxu0
        %v776 = vpop.f32.mrb[0].mxu0
        %v777 = vadd.f32 %v430, %v776
        %v778 = vpop.f32.mrb[0].mxu0
        %779 = vmatprep.mubr.bf16.mxu0 0
        %780 = vmatmul.mubr.bf16.gmra.mrb[0].mxu0 %v520
        %v781 = vpop.f32.mrb[0].mxu0
        %v782 = vadd.f32 %v430, %v781
        %v783 = vpop.f32.mrb[0].mxu0
        %v784 = vpop.f32.mrb[0].mxu0
        %v785 = vadd.f32 %v430, %v784
        %v786 = vpop.f32.mrb[0].mxu0
        %787 = vmatprep.mubr.bf16.mxu0 0
        %788 = vmatmul.mubr.bf16.gmra.mrb[0].mxu0 %v523
        %v789 = vpop.f32.mrb[0].mxu0
        %v790 = vadd.f32 %v430, %v789
        %v791 = vpop.f32.mrb[0].mxu0
        %v792 = vpop.f32.mrb[0].mxu0
        %v793 = vadd.f32 %v430, %v792
        %v794 = vpop.f32.mrb[0].mxu0
        %795 = vmatprep.mubr.bf16.mxu0 0
        %796 = vmatmul.mubr.bf16.gmra.mrb[0].mxu0 %v526
        %v797 = vpop.f32.mrb[0].mxu0
        %v798 = vadd.f32 %v430, %v797
        %v799 = vpop.f32.mrb[0].mxu0
        %v800 = vpop.f32.mrb[0].mxu0
        %v801 = vadd.f32 %v430, %v800
        %v802 = vpop.f32.mrb[0].mxu0
        %803 = vmatprep.mubr.bf16.mxu0 0
        %804 = vmatmul.mubr.bf16.gmra.mrb[0].mxu0 %v529
        %v805 = vpop.f32.mrb[0].mxu0
        %v806 = vadd.f32 %v430, %v805
        %v807 = vpop.f32.mrb[0].mxu0
        %v808 = vpop.f32.mrb[0].mxu0
        %v809 = vadd.f32 %v430, %v808
        %v810 = vpop.f32.mrb[0].mxu0
        %811 = vmatprep.mubr.bf16.mxu0 0
        %812 = vmatmul.mubr.bf16.gmra.mrb[0].mxu0 %v532
        %v813 = vpop.f32.mrb[0].mxu0
        %v814 = vadd.f32 %v430, %v813
        %v815 = vpop.f32.mrb[0].mxu0
        %v816 = vpop.f32.mrb[0].mxu0
        %v817 = vadd.f32 %v430, %v816
        %v818 = vpop.f32.mrb[0].mxu0
        %819 = vmatprep.mubr.bf16.mxu0 0
        %820 = vmatmul.mubr.bf16.gmra.mrb[0].mxu0 %v535
        %v821 = vpop.f32.mrb[0].mxu0
        %v822 = vadd.f32 %v430, %v821
        %v823 = vpop.f32.mrb[0].mxu0
        %v824 = vpop.f32.mrb[0].mxu0
        %v825 = vadd.f32 %v430, %v824
        %v826 = vpop.f32.mrb[0].mxu0
        %827 = vmatprep.mubr.bf16.mxu0 0
        %828 = vmatmul.mubr.bf16.gmra.mrb[0].mxu0 %v538
        %v829 = vpop.f32.mrb[0].mxu0
        %v830 = vadd.f32 %v430, %v829
        %v831 = vpop.f32.mrb[0].mxu0
        %v832 = vpop.f32.mrb[0].mxu0
        %v833 = vadd.f32 %v430, %v832
        %v834 = vpop.f32.mrb[0].mxu0
        %835 = vdwg.mxu0
        %v836 = vlaneseq
        %v837 = vshrl.u32 %v836, 7
        %v838 = vadd.s32 %v837, 8
        %v839 = vadd.s32 %v837, 16
        %v840 = vadd.s32 %v837, 24
        %v841 = vadd.s32 %v837, 32
        %v842 = vadd.s32 %v837, 40
        %v843 = vadd.s32 %v837, 48
        %v844 = vadd.s32 %v837, 56
        %v845 = vadd.s32 %v837, 64
        %v846 = vadd.s32 %v837, 72
        %v847 = vadd.s32 %v837, 80
        %v848 = vadd.s32 %v837, 88
        %v849 = vadd.s32 %v837, 96
        %v850 = vadd.s32 %v837, 104
        %v851 = vadd.s32 %v837, 112
        %v852 = vadd.s32 %v837, 120
        %v853 = vadd.s32 %v837, 128
        %v854 = vadd.s32 %v837, 136
        %v855 = vadd.s32 %v837, 144
        %v856 = vadd.s32 %v837, 152
        %v857 = vadd.s32 %v837, 160
        %v858 = vadd.s32 %v837, 168
        %v859 = vadd.s32 %v837, 176
        %v860 = vadd.s32 %v837, 184
        %v861 = vadd.s32 %v837, 192
        %v862 = vadd.s32 %v837, 200
        %v863 = vadd.s32 %v837, 208
        %v864 = vadd.s32 %v837, 216
        %v865 = vadd.s32 %v837, 224
        %v866 = vadd.s32 %v837, 232
        %v867 = vadd.s32 %v837, 240
        %v868 = vadd.s32 %v837, 248
        %v869 = vadd.s32 %v837, 256
        %v870 = vadd.s32 %v837, 264
        %v871 = vadd.s32 %v837, 272
        %v872 = vadd.s32 %v837, 280
        %v873 = vadd.s32 %v837, 288
        %v874 = vadd.s32 %v837, 296
        %v875 = vadd.s32 %v837, 304
        %v876 = vadd.s32 %v837, 312
        %v877 = vadd.s32 %v837, 320
        %v878 = vadd.s32 %v837, 328
        %v879 = vadd.s32 %v837, 336
        %v880 = vadd.s32 %v837, 344
        %v881 = vadd.s32 %v837, 352
        %v882 = vadd.s32 %v837, 360
        %v883 = vadd.s32 %v837, 368
        %v884 = vadd.s32 %v837, 376
        %v885 = vadd.s32 %v837, 384
        %v886 = vadd.s32 %v837, 392
        %v887 = vadd.s32 %v837, 400
        %v888 = vadd.s32 %v837, 408
        %v889 = vadd.s32 %v837, 416
        %v890 = vadd.s32 %v837, 424
        %v891 = vadd.s32 %v837, 432
        %v892 = vadd.s32 %v837, 440
        %v893 = vadd.s32 %v837, 448
        %v894 = vadd.s32 %v837, 456
        %v895 = vadd.s32 %v837, 464
        %v896 = vadd.s32 %v837, 472
        %v897 = vadd.s32 %v837, 480
        %v898 = vadd.s32 %v837, 488
        %v899 = vadd.s32 %v837, 496
        %v900 = vadd.s32 %v837, 504
        %s901 = smul.u32 %s21, 512
        %v902 = vstv %s901
        %v903 = vadd.s32 %v837, %v902
        %v904 = vadd.s32 %v838, %v902
        %v905 = vadd.s32 %v839, %v902
        %v906 = vadd.s32 %v840, %v902
        %v907 = vadd.s32 %v841, %v902
        %v908 = vadd.s32 %v842, %v902
        %v909 = vadd.s32 %v843, %v902
        %v910 = vadd.s32 %v844, %v902
        %v911 = vadd.s32 %v845, %v902
        %v912 = vadd.s32 %v846, %v902
        %v913 = vadd.s32 %v847, %v902
        %v914 = vadd.s32 %v848, %v902
        %v915 = vadd.s32 %v849, %v902
        %v916 = vadd.s32 %v850, %v902
        %v917 = vadd.s32 %v851, %v902
        %v918 = vadd.s32 %v852, %v902
        %v919 = vadd.s32 %v853, %v902
        %v920 = vadd.s32 %v854, %v902
        %v921 = vadd.s32 %v855, %v902
        %v922 = vadd.s32 %v856, %v902
        %v923 = vadd.s32 %v857, %v902
        %v924 = vadd.s32 %v858, %v902
        %v925 = vadd.s32 %v859, %v902
        %v926 = vadd.s32 %v860, %v902
        %v927 = vadd.s32 %v861, %v902
        %v928 = vadd.s32 %v862, %v902
        %v929 = vadd.s32 %v863, %v902
        %v930 = vadd.s32 %v864, %v902
        %v931 = vadd.s32 %v865, %v902
        %v932 = vadd.s32 %v866, %v902
        %v933 = vadd.s32 %v867, %v902
        %v934 = vadd.s32 %v868, %v902
        %v935 = vadd.s32 %v869, %v902
        %v936 = vadd.s32 %v870, %v902
        %v937 = vadd.s32 %v871, %v902
        %v938 = vadd.s32 %v872, %v902
        %v939 = vadd.s32 %v873, %v902
        %v940 = vadd.s32 %v874, %v902
        %v941 = vadd.s32 %v875, %v902
        %v942 = vadd.s32 %v876, %v902
        %v943 = vadd.s32 %v877, %v902
        %v944 = vadd.s32 %v878, %v902
        %v945 = vadd.s32 %v879, %v902
        %v946 = vadd.s32 %v880, %v902
        %v947 = vadd.s32 %v881, %v902
        %v948 = vadd.s32 %v882, %v902
        %v949 = vadd.s32 %v883, %v902
        %v950 = vadd.s32 %v884, %v902
        %v951 = vadd.s32 %v885, %v902
        %v952 = vadd.s32 %v886, %v902
        %v953 = vadd.s32 %v887, %v902
        %v954 = vadd.s32 %v888, %v902
        %v955 = vadd.s32 %v889, %v902
        %v956 = vadd.s32 %v890, %v902
        %v957 = vadd.s32 %v891, %v902
        %v958 = vadd.s32 %v892, %v902
        %v959 = vadd.s32 %v893, %v902
        %v960 = vadd.s32 %v894, %v902
        %v961 = vadd.s32 %v895, %v902
        %v962 = vadd.s32 %v896, %v902
        %v963 = vadd.s32 %v897, %v902
        %v964 = vadd.s32 %v898, %v902
        %v965 = vadd.s32 %v899, %v902
        %v966 = vadd.s32 %v900, %v902
        %vm967 = vcmp.lt.s32.totalorder %v903, 3698
        %vm968 = vcmp.lt.s32.totalorder %v904, 3698
        %vm969 = vcmp.lt.s32.totalorder %v905, 3698
        %vm970 = vcmp.lt.s32.totalorder %v906, 3698
        %vm971 = vcmp.lt.s32.totalorder %v907, 3698
        %vm972 = vcmp.lt.s32.totalorder %v908, 3698
        %vm973 = vcmp.lt.s32.totalorder %v909, 3698
        %vm974 = vcmp.lt.s32.totalorder %v910, 3698
        %vm975 = vcmp.lt.s32.totalorder %v911, 3698
        %vm976 = vcmp.lt.s32.totalorder %v912, 3698
        %vm977 = vcmp.lt.s32.totalorder %v913, 3698
        %vm978 = vcmp.lt.s32.totalorder %v914, 3698
        %vm979 = vcmp.lt.s32.totalorder %v915, 3698
        %vm980 = vcmp.lt.s32.totalorder %v916, 3698
        %vm981 = vcmp.lt.s32.totalorder %v917, 3698
        %vm982 = vcmp.lt.s32.totalorder %v918, 3698
        %vm983 = vcmp.lt.s32.totalorder %v919, 3698
        %vm984 = vcmp.lt.s32.totalorder %v920, 3698
        %vm985 = vcmp.lt.s32.totalorder %v921, 3698
        %vm986 = vcmp.lt.s32.totalorder %v922, 3698
        %vm987 = vcmp.lt.s32.totalorder %v923, 3698
        %vm988 = vcmp.lt.s32.totalorder %v924, 3698
        %vm989 = vcmp.lt.s32.totalorder %v925, 3698
        %vm990 = vcmp.lt.s32.totalorder %v926, 3698
        %vm991 = vcmp.lt.s32.totalorder %v927, 3698
        %vm992 = vcmp.lt.s32.totalorder %v928, 3698
        %vm993 = vcmp.lt.s32.totalorder %v929, 3698
        %vm994 = vcmp.lt.s32.totalorder %v930, 3698
        %vm995 = vcmp.lt.s32.totalorder %v931, 3698
        %vm996 = vcmp.lt.s32.totalorder %v932, 3698
        %vm997 = vcmp.lt.s32.totalorder %v933, 3698
        %vm998 = vcmp.lt.s32.totalorder %v934, 3698
        %vm999 = vcmp.lt.s32.totalorder %v935, 3698
        %vm1000 = vcmp.lt.s32.totalorder %v936, 3698
        %vm1001 = vcmp.lt.s32.totalorder %v937, 3698
        %vm1002 = vcmp.lt.s32.totalorder %v938, 3698
        %vm1003 = vcmp.lt.s32.totalorder %v939, 3698
        %vm1004 = vcmp.lt.s32.totalorder %v940, 3698
        %vm1005 = vcmp.lt.s32.totalorder %v941, 3698
        %vm1006 = vcmp.lt.s32.totalorder %v942, 3698
        %vm1007 = vcmp.lt.s32.totalorder %v943, 3698
        %vm1008 = vcmp.lt.s32.totalorder %v944, 3698
        %vm1009 = vcmp.lt.s32.totalorder %v945, 3698
        %vm1010 = vcmp.lt.s32.totalorder %v946, 3698
        %vm1011 = vcmp.lt.s32.totalorder %v947, 3698
        %vm1012 = vcmp.lt.s32.totalorder %v948, 3698
        %vm1013 = vcmp.lt.s32.totalorder %v949, 3698
        %vm1014 = vcmp.lt.s32.totalorder %v950, 3698
        %vm1015 = vcmp.lt.s32.totalorder %v951, 3698
        %vm1016 = vcmp.lt.s32.totalorder %v952, 3698
        %vm1017 = vcmp.lt.s32.totalorder %v953, 3698
        %vm1018 = vcmp.lt.s32.totalorder %v954, 3698
        %vm1019 = vcmp.lt.s32.totalorder %v955, 3698
        %vm1020 = vcmp.lt.s32.totalorder %v956, 3698
        %vm1021 = vcmp.lt.s32.totalorder %v957, 3698
        %vm1022 = vcmp.lt.s32.totalorder %v958, 3698
        %vm1023 = vcmp.lt.s32.totalorder %v959, 3698
        %vm1024 = vcmp.lt.s32.totalorder %v960, 3698
        %vm1025 = vcmp.lt.s32.totalorder %v961, 3698
        %vm1026 = vcmp.lt.s32.totalorder %v962, 3698
        %vm1027 = vcmp.lt.s32.totalorder %v963, 3698
        %vm1028 = vcmp.lt.s32.totalorder %v964, 3698
        %vm1029 = vcmp.lt.s32.totalorder %v965, 3698
        %vm1030 = vcmp.lt.s32.totalorder %v966, 3698
        %v1031 = vsel %vm967, %v582, 0.0
        %v1032 = vsel %vm968, %v585, 0.0
        %v1033 = vsel %vm969, %v590, 0.0
        %v1034 = vsel %vm970, %v593, 0.0
        %v1035 = vsel %vm971, %v598, 0.0
        %v1036 = vsel %vm972, %v601, 0.0
        %v1037 = vsel %vm973, %v606, 0.0
        %v1038 = vsel %vm974, %v609, 0.0
        %v1039 = vsel %vm975, %v614, 0.0
        %v1040 = vsel %vm976, %v617, 0.0
        %v1041 = vsel %vm977, %v622, 0.0
        %v1042 = vsel %vm978, %v625, 0.0
        %v1043 = vsel %vm979, %v630, 0.0
        %v1044 = vsel %vm980, %v633, 0.0
        %v1045 = vsel %vm981, %v638, 0.0
        %v1046 = vsel %vm982, %v641, 0.0
        %v1047 = vsel %vm983, %v646, 0.0
        %v1048 = vsel %vm984, %v649, 0.0
        %v1049 = vsel %vm985, %v654, 0.0
        %v1050 = vsel %vm986, %v657, 0.0
        %v1051 = vsel %vm987, %v662, 0.0
        %v1052 = vsel %vm988, %v665, 0.0
        %v1053 = vsel %vm989, %v670, 0.0
        %v1054 = vsel %vm990, %v673, 0.0
        %v1055 = vsel %vm991, %v678, 0.0
        %v1056 = vsel %vm992, %v681, 0.0
        %v1057 = vsel %vm993, %v686, 0.0
        %v1058 = vsel %vm994, %v689, 0.0
        %v1059 = vsel %vm995, %v694, 0.0
        %v1060 = vsel %vm996, %v697, 0.0
        %v1061 = vsel %vm997, %v702, 0.0
        %v1062 = vsel %vm998, %v705, 0.0
        %v1063 = vsel %vm999, %v710, 0.0
        %v1064 = vsel %vm1000, %v713, 0.0
        %v1065 = vsel %vm1001, %v718, 0.0
        %v1066 = vsel %vm1002, %v721, 0.0
        %v1067 = vsel %vm1003, %v726, 0.0
        %v1068 = vsel %vm1004, %v729, 0.0
        %v1069 = vsel %vm1005, %v734, 0.0
        %v1070 = vsel %vm1006, %v737, 0.0
        %v1071 = vsel %vm1007, %v742, 0.0
        %v1072 = vsel %vm1008, %v745, 0.0
        %v1073 = vsel %vm1009, %v750, 0.0
        %v1074 = vsel %vm1010, %v753, 0.0
        %v1075 = vsel %vm1011, %v758, 0.0
        %v1076 = vsel %vm1012, %v761, 0.0
        %v1077 = vsel %vm1013, %v766, 0.0
        %v1078 = vsel %vm1014, %v769, 0.0
        %v1079 = vsel %vm1015, %v774, 0.0
        %v1080 = vsel %vm1016, %v777, 0.0
        %v1081 = vsel %vm1017, %v782, 0.0
        %v1082 = vsel %vm1018, %v785, 0.0
        %v1083 = vsel %vm1019, %v790, 0.0
        %v1084 = vsel %vm1020, %v793, 0.0
        %v1085 = vsel %vm1021, %v798, 0.0
        %v1086 = vsel %vm1022, %v801, 0.0
        %v1087 = vsel %vm1023, %v806, 0.0
        %v1088 = vsel %vm1024, %v809, 0.0
        %v1089 = vsel %vm1025, %v814, 0.0
        %v1090 = vsel %vm1026, %v817, 0.0
        %v1091 = vsel %vm1027, %v822, 0.0
        %v1092 = vsel %vm1028, %v825, 0.0
        %v1093 = vsel %vm1029, %v830, 0.0
        %v1094 = vsel %vm1030, %v833, 0.0
        %vm1095 = vcmask 523264
        %v1096 = vsel %vm1095, %v1031, 0.0
        %v1097 = vsel %vm1095, %v1032, 0.0
        %v1098 = vadd.f32 %v1096, %v1097
        %v1099 = vsel %vm1095, %v1033, 0.0
        %v1100 = vadd.f32 %v1098, %v1099
        %v1101 = vsel %vm1095, %v1034, 0.0
        %v1102 = vadd.f32 %v1100, %v1101
        %v1103 = vsel %vm1095, %v1035, 0.0
        %v1104 = vadd.f32 %v1102, %v1103
        %v1105 = vsel %vm1095, %v1036, 0.0
        %v1106 = vadd.f32 %v1104, %v1105
        %v1107 = vsel %vm1095, %v1037, 0.0
        %v1108 = vadd.f32 %v1106, %v1107
        %v1109 = vsel %vm1095, %v1038, 0.0
        %v1110 = vadd.f32 %v1108, %v1109
        %v1111 = vsel %vm1095, %v1039, 0.0
        %v1112 = vadd.f32 %v1110, %v1111
        %v1113 = vsel %vm1095, %v1040, 0.0
        %v1114 = vadd.f32 %v1112, %v1113
        %v1115 = vsel %vm1095, %v1041, 0.0
        %v1116 = vadd.f32 %v1114, %v1115
        %v1117 = vsel %vm1095, %v1042, 0.0
        %v1118 = vadd.f32 %v1116, %v1117
        %v1119 = vsel %vm1095, %v1043, 0.0
        %v1120 = vadd.f32 %v1118, %v1119
        %v1121 = vsel %vm1095, %v1044, 0.0
        %v1122 = vadd.f32 %v1120, %v1121
        %v1123 = vsel %vm1095, %v1045, 0.0
        %v1124 = vadd.f32 %v1122, %v1123
        %v1125 = vsel %vm1095, %v1046, 0.0
        %v1126 = vadd.f32 %v1124, %v1125
        %v1127 = vsel %vm1095, %v1047, 0.0
        %v1128 = vadd.f32 %v1126, %v1127
        %v1129 = vsel %vm1095, %v1048, 0.0
        %v1130 = vadd.f32 %v1128, %v1129
        %v1131 = vsel %vm1095, %v1049, 0.0
        %v1132 = vadd.f32 %v1130, %v1131
        %v1133 = vsel %vm1095, %v1050, 0.0
        %v1134 = vadd.f32 %v1132, %v1133
        %v1135 = vsel %vm1095, %v1051, 0.0
        %v1136 = vadd.f32 %v1134, %v1135
        %v1137 = vsel %vm1095, %v1052, 0.0
        %v1138 = vadd.f32 %v1136, %v1137
        %v1139 = vsel %vm1095, %v1053, 0.0
        %v1140 = vadd.f32 %v1138, %v1139
        %v1141 = vsel %vm1095, %v1054, 0.0
        %v1142 = vadd.f32 %v1140, %v1141
        %v1143 = vsel %vm1095, %v1055, 0.0
        %v1144 = vadd.f32 %v1142, %v1143
        %v1145 = vsel %vm1095, %v1056, 0.0
        %v1146 = vadd.f32 %v1144, %v1145
        %v1147 = vsel %vm1095, %v1057, 0.0
        %v1148 = vadd.f32 %v1146, %v1147
        %v1149 = vsel %vm1095, %v1058, 0.0
        %v1150 = vadd.f32 %v1148, %v1149
        %v1151 = vsel %vm1095, %v1059, 0.0
        %v1152 = vadd.f32 %v1150, %v1151
        %v1153 = vsel %vm1095, %v1060, 0.0
        %v1154 = vadd.f32 %v1152, %v1153
        %v1155 = vsel %vm1095, %v1061, 0.0
        %v1156 = vadd.f32 %v1154, %v1155
        %v1157 = vsel %vm1095, %v1062, 0.0
        %v1158 = vadd.f32 %v1156, %v1157
        %v1159 = vsel %vm1095, %v1063, 0.0
        %v1160 = vadd.f32 %v1158, %v1159
        %v1161 = vsel %vm1095, %v1064, 0.0
        %v1162 = vadd.f32 %v1160, %v1161
        %v1163 = vsel %vm1095, %v1065, 0.0
        %v1164 = vadd.f32 %v1162, %v1163
        %v1165 = vsel %vm1095, %v1066, 0.0
        %v1166 = vadd.f32 %v1164, %v1165
        %v1167 = vsel %vm1095, %v1067, 0.0
        %v1168 = vadd.f32 %v1166, %v1167
        %v1169 = vsel %vm1095, %v1068, 0.0
        %v1170 = vadd.f32 %v1168, %v1169
        %v1171 = vsel %vm1095, %v1069, 0.0
        %v1172 = vadd.f32 %v1170, %v1171
        %v1173 = vsel %vm1095, %v1070, 0.0
        %v1174 = vadd.f32 %v1172, %v1173
        %v1175 = vsel %vm1095, %v1071, 0.0
        %v1176 = vadd.f32 %v1174, %v1175
        %v1177 = vsel %vm1095, %v1072, 0.0
        %v1178 = vadd.f32 %v1176, %v1177
        %v1179 = vsel %vm1095, %v1073, 0.0
        %v1180 = vadd.f32 %v1178, %v1179
        %v1181 = vsel %vm1095, %v1074, 0.0
        %v1182 = vadd.f32 %v1180, %v1181
        %v1183 = vsel %vm1095, %v1075, 0.0
        %v1184 = vadd.f32 %v1182, %v1183
        %v1185 = vsel %vm1095, %v1076, 0.0
        %v1186 = vadd.f32 %v1184, %v1185
        %v1187 = vsel %vm1095, %v1077, 0.0
        %v1188 = vadd.f32 %v1186, %v1187
        %v1189 = vsel %vm1095, %v1078, 0.0
        %v1190 = vadd.f32 %v1188, %v1189
        %v1191 = vsel %vm1095, %v1079, 0.0
        %v1192 = vadd.f32 %v1190, %v1191
        %v1193 = vsel %vm1095, %v1080, 0.0
        %v1194 = vadd.f32 %v1192, %v1193
        %v1195 = vsel %vm1095, %v1081, 0.0
        %v1196 = vadd.f32 %v1194, %v1195
        %v1197 = vsel %vm1095, %v1082, 0.0
        %v1198 = vadd.f32 %v1196, %v1197
        %v1199 = vsel %vm1095, %v1083, 0.0
        %v1200 = vadd.f32 %v1198, %v1199
        %v1201 = vsel %vm1095, %v1084, 0.0
        %v1202 = vadd.f32 %v1200, %v1201
        %v1203 = vsel %vm1095, %v1085, 0.0
        %v1204 = vadd.f32 %v1202, %v1203
        %v1205 = vsel %vm1095, %v1086, 0.0
        %v1206 = vadd.f32 %v1204, %v1205
        %v1207 = vsel %vm1095, %v1087, 0.0
        %v1208 = vadd.f32 %v1206, %v1207
        %v1209 = vsel %vm1095, %v1088, 0.0
        %v1210 = vadd.f32 %v1208, %v1209
        %v1211 = vsel %vm1095, %v1089, 0.0
        %v1212 = vadd.f32 %v1210, %v1211
        %v1213 = vsel %vm1095, %v1090, 0.0
        %v1214 = vadd.f32 %v1212, %v1213
        %v1215 = vsel %vm1095, %v1091, 0.0
        %v1216 = vadd.f32 %v1214, %v1215
        %v1217 = vsel %vm1095, %v1092, 0.0
        %v1218 = vadd.f32 %v1216, %v1217
        %v1219 = vsel %vm1095, %v1093, 0.0
        %v1220 = vadd.f32 %v1218, %v1219
        %v1221 = vsel %vm1095, %v1094, 0.0
        %v1222 = vadd.f32 %v1220, %v1221
        %v1223 = vrot.slane %v1222, 4
        %v1224 = vadd.f32 %v1222, %v1223
        %v1225 = vrot.slane %v1224, 2
        %v1226 = vadd.f32 %v1224, %v1225
        %v1227 = vrot.slane %v1226, 1
        %v1228 = vadd.f32 %v1226, %v1227
        %vm1229 = vcmask 516096
        %1230 = vst.msk [vmem:[%s317] sm:$0x1] %vm1229, %v1228
        %v1231 = vmul.f32 %v1031, %v1031
        %v1232 = vmul.f32 %v1032, %v1032
        %v1233 = vmul.f32 %v1033, %v1033
        %v1234 = vmul.f32 %v1034, %v1034
        %v1235 = vmul.f32 %v1035, %v1035
        %v1236 = vmul.f32 %v1036, %v1036
        %v1237 = vmul.f32 %v1037, %v1037
        %v1238 = vmul.f32 %v1038, %v1038
        %v1239 = vmul.f32 %v1039, %v1039
        %v1240 = vmul.f32 %v1040, %v1040
        %v1241 = vmul.f32 %v1041, %v1041
        %v1242 = vmul.f32 %v1042, %v1042
        %v1243 = vmul.f32 %v1043, %v1043
        %v1244 = vmul.f32 %v1044, %v1044
        %v1245 = vmul.f32 %v1045, %v1045
        %v1246 = vmul.f32 %v1046, %v1046
        %v1247 = vmul.f32 %v1047, %v1047
        %v1248 = vmul.f32 %v1048, %v1048
        %v1249 = vmul.f32 %v1049, %v1049
        %v1250 = vmul.f32 %v1050, %v1050
        %v1251 = vmul.f32 %v1051, %v1051
        %v1252 = vmul.f32 %v1052, %v1052
        %v1253 = vmul.f32 %v1053, %v1053
        %v1254 = vmul.f32 %v1054, %v1054
        %v1255 = vmul.f32 %v1055, %v1055
        %v1256 = vmul.f32 %v1056, %v1056
        %v1257 = vmul.f32 %v1057, %v1057
        %v1258 = vmul.f32 %v1058, %v1058
        %v1259 = vmul.f32 %v1059, %v1059
        %v1260 = vmul.f32 %v1060, %v1060
        %v1261 = vmul.f32 %v1061, %v1061
        %v1262 = vmul.f32 %v1062, %v1062
        %v1263 = vmul.f32 %v1063, %v1063
        %v1264 = vmul.f32 %v1064, %v1064
        %v1265 = vmul.f32 %v1065, %v1065
        %v1266 = vmul.f32 %v1066, %v1066
        %v1267 = vmul.f32 %v1067, %v1067
        %v1268 = vmul.f32 %v1068, %v1068
        %v1269 = vmul.f32 %v1069, %v1069
        %v1270 = vmul.f32 %v1070, %v1070
        %v1271 = vmul.f32 %v1071, %v1071
        %v1272 = vmul.f32 %v1072, %v1072
        %v1273 = vmul.f32 %v1073, %v1073
        %v1274 = vmul.f32 %v1074, %v1074
        %v1275 = vmul.f32 %v1075, %v1075
        %v1276 = vmul.f32 %v1076, %v1076
        %v1277 = vmul.f32 %v1077, %v1077
        %v1278 = vmul.f32 %v1078, %v1078
        %v1279 = vmul.f32 %v1079, %v1079
        %v1280 = vmul.f32 %v1080, %v1080
        %v1281 = vmul.f32 %v1081, %v1081
        %v1282 = vmul.f32 %v1082, %v1082
        %v1283 = vmul.f32 %v1083, %v1083
        %v1284 = vmul.f32 %v1084, %v1084
        %v1285 = vmul.f32 %v1085, %v1085
        %v1286 = vmul.f32 %v1086, %v1086
        %v1287 = vmul.f32 %v1087, %v1087
        %v1288 = vmul.f32 %v1088, %v1088
        %v1289 = vmul.f32 %v1089, %v1089
        %v1290 = vmul.f32 %v1090, %v1090
        %v1291 = vmul.f32 %v1091, %v1091
        %v1292 = vmul.f32 %v1092, %v1092
        %v1293 = vmul.f32 %v1093, %v1093
        %v1294 = vmul.f32 %v1094, %v1094
        %v1295 = vsel %vm1095, %v1231, 0.0
        %v1296 = vsel %vm1095, %v1232, 0.0
        %v1297 = vadd.f32 %v1295, %v1296
        %v1298 = vsel %vm1095, %v1233, 0.0
        %v1299 = vadd.f32 %v1297, %v1298
        %v1300 = vsel %vm1095, %v1234, 0.0
        %v1301 = vadd.f32 %v1299, %v1300
        %v1302 = vsel %vm1095, %v1235, 0.0
        %v1303 = vadd.f32 %v1301, %v1302
        %v1304 = vsel %vm1095, %v1236, 0.0
        %v1305 = vadd.f32 %v1303, %v1304
        %v1306 = vsel %vm1095, %v1237, 0.0
        %v1307 = vadd.f32 %v1305, %v1306
        %v1308 = vsel %vm1095, %v1238, 0.0
        %v1309 = vadd.f32 %v1307, %v1308
        %v1310 = vsel %vm1095, %v1239, 0.0
        %v1311 = vadd.f32 %v1309, %v1310
        %v1312 = vsel %vm1095, %v1240, 0.0
        %v1313 = vadd.f32 %v1311, %v1312
        %v1314 = vsel %vm1095, %v1241, 0.0
        %v1315 = vadd.f32 %v1313, %v1314
        %v1316 = vsel %vm1095, %v1242, 0.0
        %v1317 = vadd.f32 %v1315, %v1316
        %v1318 = vsel %vm1095, %v1243, 0.0
        %v1319 = vadd.f32 %v1317, %v1318
        %v1320 = vsel %vm1095, %v1244, 0.0
        %v1321 = vadd.f32 %v1319, %v1320
        %v1322 = vsel %vm1095, %v1245, 0.0
        %v1323 = vadd.f32 %v1321, %v1322
        %v1324 = vsel %vm1095, %v1246, 0.0
        %v1325 = vadd.f32 %v1323, %v1324
        %v1326 = vsel %vm1095, %v1247, 0.0
        %v1327 = vadd.f32 %v1325, %v1326
        %v1328 = vsel %vm1095, %v1248, 0.0
        %v1329 = vadd.f32 %v1327, %v1328
        %v1330 = vsel %vm1095, %v1249, 0.0
        %v1331 = vadd.f32 %v1329, %v1330
        %v1332 = vsel %vm1095, %v1250, 0.0
        %v1333 = vadd.f32 %v1331, %v1332
        %v1334 = vsel %vm1095, %v1251, 0.0
        %v1335 = vadd.f32 %v1333, %v1334
        %v1336 = vsel %vm1095, %v1252, 0.0
        %v1337 = vadd.f32 %v1335, %v1336
        %v1338 = vsel %vm1095, %v1253, 0.0
        %v1339 = vadd.f32 %v1337, %v1338
        %v1340 = vsel %vm1095, %v1254, 0.0
        %v1341 = vadd.f32 %v1339, %v1340
        %v1342 = vsel %vm1095, %v1255, 0.0
        %v1343 = vadd.f32 %v1341, %v1342
        %v1344 = vsel %vm1095, %v1256, 0.0
        %v1345 = vadd.f32 %v1343, %v1344
        %v1346 = vsel %vm1095, %v1257, 0.0
        %v1347 = vadd.f32 %v1345, %v1346
        %v1348 = vsel %vm1095, %v1258, 0.0
        %v1349 = vadd.f32 %v1347, %v1348
        %v1350 = vsel %vm1095, %v1259, 0.0
        %v1351 = vadd.f32 %v1349, %v1350
        %v1352 = vsel %vm1095, %v1260, 0.0
        %v1353 = vadd.f32 %v1351, %v1352
        %v1354 = vsel %vm1095, %v1261, 0.0
        %v1355 = vadd.f32 %v1353, %v1354
        %v1356 = vsel %vm1095, %v1262, 0.0
        %v1357 = vadd.f32 %v1355, %v1356
        %v1358 = vsel %vm1095, %v1263, 0.0
        %v1359 = vadd.f32 %v1357, %v1358
        %v1360 = vsel %vm1095, %v1264, 0.0
        %v1361 = vadd.f32 %v1359, %v1360
        %v1362 = vsel %vm1095, %v1265, 0.0
        %v1363 = vadd.f32 %v1361, %v1362
        %v1364 = vsel %vm1095, %v1266, 0.0
        %v1365 = vadd.f32 %v1363, %v1364
        %v1366 = vsel %vm1095, %v1267, 0.0
        %v1367 = vadd.f32 %v1365, %v1366
        %v1368 = vsel %vm1095, %v1268, 0.0
        %v1369 = vadd.f32 %v1367, %v1368
        %v1370 = vsel %vm1095, %v1269, 0.0
        %v1371 = vadd.f32 %v1369, %v1370
        %v1372 = vsel %vm1095, %v1270, 0.0
        %v1373 = vadd.f32 %v1371, %v1372
        %v1374 = vsel %vm1095, %v1271, 0.0
        %v1375 = vadd.f32 %v1373, %v1374
        %v1376 = vsel %vm1095, %v1272, 0.0
        %v1377 = vadd.f32 %v1375, %v1376
        %v1378 = vsel %vm1095, %v1273, 0.0
        %v1379 = vadd.f32 %v1377, %v1378
        %v1380 = vsel %vm1095, %v1274, 0.0
        %v1381 = vadd.f32 %v1379, %v1380
        %v1382 = vsel %vm1095, %v1275, 0.0
        %v1383 = vadd.f32 %v1381, %v1382
        %v1384 = vsel %vm1095, %v1276, 0.0
        %v1385 = vadd.f32 %v1383, %v1384
        %v1386 = vsel %vm1095, %v1277, 0.0
        %v1387 = vadd.f32 %v1385, %v1386
        %v1388 = vsel %vm1095, %v1278, 0.0
        %v1389 = vadd.f32 %v1387, %v1388
        %v1390 = vsel %vm1095, %v1279, 0.0
        %v1391 = vadd.f32 %v1389, %v1390
        %v1392 = vsel %vm1095, %v1280, 0.0
        %v1393 = vadd.f32 %v1391, %v1392
        %v1394 = vsel %vm1095, %v1281, 0.0
        %v1395 = vadd.f32 %v1393, %v1394
        %v1396 = vsel %vm1095, %v1282, 0.0
        %v1397 = vadd.f32 %v1395, %v1396
        %v1398 = vsel %vm1095, %v1283, 0.0
        %v1399 = vadd.f32 %v1397, %v1398
        %v1400 = vsel %vm1095, %v1284, 0.0
        %v1401 = vadd.f32 %v1399, %v1400
        %v1402 = vsel %vm1095, %v1285, 0.0
        %v1403 = vadd.f32 %v1401, %v1402
        %v1404 = vsel %vm1095, %v1286, 0.0
        %v1405 = vadd.f32 %v1403, %v1404
        %v1406 = vsel %vm1095, %v1287, 0.0
        %v1407 = vadd.f32 %v1405, %v1406
        %v1408 = vsel %vm1095, %v1288, 0.0
        %v1409 = vadd.f32 %v1407, %v1408
        %v1410 = vsel %vm1095, %v1289, 0.0
        %v1411 = vadd.f32 %v1409, %v1410
        %v1412 = vsel %vm1095, %v1290, 0.0
        %v1413 = vadd.f32 %v1411, %v1412
        %v1414 = vsel %vm1095, %v1291, 0.0
        %v1415 = vadd.f32 %v1413, %v1414
        %v1416 = vsel %vm1095, %v1292, 0.0
        %v1417 = vadd.f32 %v1415, %v1416
        %v1418 = vsel %vm1095, %v1293, 0.0
        %v1419 = vadd.f32 %v1417, %v1418
        %v1420 = vsel %vm1095, %v1294, 0.0
        %v1421 = vadd.f32 %v1419, %v1420
        %v1422 = vrot.slane %v1421, 4
        %v1423 = vadd.f32 %v1421, %v1422
        %v1424 = vrot.slane %v1423, 2
        %v1425 = vadd.f32 %v1423, %v1424
        %v1426 = vrot.slane %v1425, 1
        %v1427 = vadd.f32 %v1425, %v1426
        %1428 = vst.msk [vmem:[%s323] sm:$0x1] %vm1229, %v1427
        %1429 = vst.msk [vmem:[%s269] sm:$0xff] %vm1095, %v582
        %1430 = vst.msk [vmem:[%s269 + $0x8] sm:$0xff] %vm1095, %v585
        %1431 = vst.msk [vmem:[%s269 + $0x10] sm:$0xff] %vm1095, %v590
        %1432 = vst.msk [vmem:[%s269 + $0x18] sm:$0xff] %vm1095, %v593
        %1433 = vst.msk [vmem:[%s269 + $0x20] sm:$0xff] %vm1095, %v598
        %1434 = vst.msk [vmem:[%s269 + $0x28] sm:$0xff] %vm1095, %v601
        %1435 = vst.msk [vmem:[%s269 + $0x30] sm:$0xff] %vm1095, %v606
        %1436 = vst.msk [vmem:[%s269 + $0x38] sm:$0xff] %vm1095, %v609
        %1437 = vst.msk [vmem:[%s269 + $0x40] sm:$0xff] %vm1095, %v614
        %1438 = vst.msk [vmem:[%s269 + $0x48] sm:$0xff] %vm1095, %v617
        %1439 = vst.msk [vmem:[%s269 + $0x50] sm:$0xff] %vm1095, %v622
        %1440 = vst.msk [vmem:[%s269 + $0x58] sm:$0xff] %vm1095, %v625
        %1441 = vst.msk [vmem:[%s269 + $0x60] sm:$0xff] %vm1095, %v630
        %1442 = vst.msk [vmem:[%s269 + $0x68] sm:$0xff] %vm1095, %v633
        %1443 = vst.msk [vmem:[%s269 + $0x70] sm:$0xff] %vm1095, %v638
        %1444 = vst.msk [vmem:[%s269 + $0x78] sm:$0xff] %vm1095, %v641
        %1445 = vst.msk [vmem:[%s269 + $0x80] sm:$0xff] %vm1095, %v646
        %1446 = vst.msk [vmem:[%s269 + $0x88] sm:$0xff] %vm1095, %v649
        %1447 = vst.msk [vmem:[%s269 + $0x90] sm:$0xff] %vm1095, %v654
        %1448 = vst.msk [vmem:[%s269 + $0x98] sm:$0xff] %vm1095, %v657
        %1449 = vst.msk [vmem:[%s269 + $0xa0] sm:$0xff] %vm1095, %v662
        %1450 = vst.msk [vmem:[%s269 + $0xa8] sm:$0xff] %vm1095, %v665
        %1451 = vst.msk [vmem:[%s269 + $0xb0] sm:$0xff] %vm1095, %v670
        %1452 = vst.msk [vmem:[%s269 + $0xb8] sm:$0xff] %vm1095, %v673
        %1453 = vst.msk [vmem:[%s269 + $0xc0] sm:$0xff] %vm1095, %v678
        %1454 = vst.msk [vmem:[%s269 + $0xc8] sm:$0xff] %vm1095, %v681
        %1455 = vst.msk [vmem:[%s269 + $0xd0] sm:$0xff] %vm1095, %v686
        %1456 = vst.msk [vmem:[%s269 + $0xd8] sm:$0xff] %vm1095, %v689
        %1457 = vst.msk [vmem:[%s269 + $0xe0] sm:$0xff] %vm1095, %v694
        %1458 = vst.msk [vmem:[%s269 + $0xe8] sm:$0xff] %vm1095, %v697
        %1459 = vst.msk [vmem:[%s269 + $0xf0] sm:$0xff] %vm1095, %v702
        %1460 = vst.msk [vmem:[%s269 + $0xf8] sm:$0xff] %vm1095, %v705
        %1461 = vst.msk [vmem:[%s269 + $0x100] sm:$0xff] %vm1095, %v710
        %1462 = vst.msk [vmem:[%s269 + $0x108] sm:$0xff] %vm1095, %v713
        %1463 = vst.msk [vmem:[%s269 + $0x110] sm:$0xff] %vm1095, %v718
        %1464 = vst.msk [vmem:[%s269 + $0x118] sm:$0xff] %vm1095, %v721
        %1465 = vst.msk [vmem:[%s269 + $0x120] sm:$0xff] %vm1095, %v726
        %1466 = vst.msk [vmem:[%s269 + $0x128] sm:$0xff] %vm1095, %v729
        %1467 = vst.msk [vmem:[%s269 + $0x130] sm:$0xff] %vm1095, %v734
        %1468 = vst.msk [vmem:[%s269 + $0x138] sm:$0xff] %vm1095, %v737
        %1469 = vst.msk [vmem:[%s269 + $0x140] sm:$0xff] %vm1095, %v742
        %1470 = vst.msk [vmem:[%s269 + $0x148] sm:$0xff] %vm1095, %v745
        %1471 = vst.msk [vmem:[%s269 + $0x150] sm:$0xff] %vm1095, %v750
        %1472 = vst.msk [vmem:[%s269 + $0x158] sm:$0xff] %vm1095, %v753
        %1473 = vst.msk [vmem:[%s269 + $0x160] sm:$0xff] %vm1095, %v758
        %1474 = vst.msk [vmem:[%s269 + $0x168] sm:$0xff] %vm1095, %v761
        %1475 = vst.msk [vmem:[%s269 + $0x170] sm:$0xff] %vm1095, %v766
        %1476 = vst.msk [vmem:[%s269 + $0x178] sm:$0xff] %vm1095, %v769
        %1477 = vst.msk [vmem:[%s269 + $0x180] sm:$0xff] %vm1095, %v774
        %1478 = vst.msk [vmem:[%s269 + $0x188] sm:$0xff] %vm1095, %v777
        %1479 = vst.msk [vmem:[%s269 + $0x190] sm:$0xff] %vm1095, %v782
        %1480 = vst.msk [vmem:[%s269 + $0x198] sm:$0xff] %vm1095, %v785
        %1481 = vst.msk [vmem:[%s269 + $0x1a0] sm:$0xff] %vm1095, %v790
        %1482 = vst.msk [vmem:[%s269 + $0x1a8] sm:$0xff] %vm1095, %v793
        %1483 = vst.msk [vmem:[%s269 + $0x1b0] sm:$0xff] %vm1095, %v798
        %1484 = vst.msk [vmem:[%s269 + $0x1b8] sm:$0xff] %vm1095, %v801
        %1485 = vst.msk [vmem:[%s269 + $0x1c0] sm:$0xff] %vm1095, %v806
        %1486 = vst.msk [vmem:[%s269 + $0x1c8] sm:$0xff] %vm1095, %v809
        %1487 = vst.msk [vmem:[%s269 + $0x1d0] sm:$0xff] %vm1095, %v814
        %1488 = vst.msk [vmem:[%s269 + $0x1d8] sm:$0xff] %vm1095, %v817
        %1489 = vst.msk [vmem:[%s269 + $0x1e0] sm:$0xff] %vm1095, %v822
        %1490 = vst.msk [vmem:[%s269 + $0x1e8] sm:$0xff] %vm1095, %v825
        %1491 = vst.msk [vmem:[%s269 + $0x1f0] sm:$0xff] %vm1095, %v830
        %1492 = vst.msk [vmem:[%s269 + $0x1f8] sm:$0xff] %vm1095, %v833
        %s1493 = sand.u32 %s117, 1
        %s1494 = sand.u32 %s117, 1
        %s1495 = smul.addr %s1494, 512
        %s1496 = scalar_lea.vmem [#allocation2], %s1495
        %p1497 = scmp.lt.s32.totalorder %s21, 7
        %s1498 = scalar_select %p1497, %s21, 7
        %p1499 = scmp.lt.s32.totalorder %s22, 0
        %s1500 = scalar_select %p1499, %s22, 0
        %s1501 = sadd.s32 %s1500, %s1498
        %s1502 = scalar_lea.vmem %s4, %s1501
        %p1503 = scmp.lt.s32.totalorder %s21, 7
        %s1504 = scalar_select %p1503, %s21, 7
        %p1505 = scmp.lt.s32.totalorder %s22, 0
        %s1506 = scalar_select %p1505, %s22, 0
        %s1507 = sadd.s32 %s1506, %s1504
        %s1508 = scalar_lea.vmem %s5, %s1507
        // Predicated region
        $region33: #{cnn_norm_forward.7} parent=31 // pred_check
          %p1509 = pneg %p127
        $region34: #{cnn_norm_forward.7} parent=31 // pred_check_branch
          %1511 = sbr.rel (%p1509) target = $region36
        $region35: #{cnn_norm_forward.7} parent=31 // pred_region
          %s1512 = smul.u32 64, %s21
          %s1513 = ssub.s32 463, %s1512
          %p1514 = scmp.lt.s32.totalorder %s1513, 64
          %s1515 = scalar_select %p1514, %s1513, 64
          %s1516 = smul.u32 128, %s1515
          %p1517 = scmp.ne.s32.totalorder 0, %s1516
          %s1518 = sadd.s32 %s22, %s1512
          %s1519 = smul.addr %s1518, 8
          %s1520 = scalar_lea.vmem %s3, %s1519
          // Predicated region
          $region37: #{cnn_norm_forward.7} parent=35 // pred_check
            %p1521 = pneg %p1517
          $region38: #{cnn_norm_forward.7} parent=35 // pred_check_branch
            %1523 = sbr.rel (%p1521) target = $region40
          $region39: #{cnn_norm_forward.7} parent=35 // pred_region
            // Predicated region
            $region41: #{cnn_norm_forward.7} parent=39 // pred_check
              _
            $region42: #{cnn_norm_forward.7} parent=39 // pred_check_branch
              %1525 = sbr.rel (0) target = $region44
            $region43: #{cnn_norm_forward.7} parent=39 // pred_region
              // Predicated region
              $region63: #{cnn_norm_forward.7} parent=43 // pred_check
                _
              $region64: #{cnn_norm_forward.7} parent=43 // pred_check_branch
                %1700 = sbr.rel (0) target = $region66
              $region65: #{cnn_norm_forward.7} parent=43 // pred_region
                %s1701 = sshrl.u32 %s1515, 6
                // While loop
                $region67: #{cnn_norm_forward.7} parent=65 // loop_pre_header
                  _
                $region68: #{cnn_norm_forward.7} parent=65 // loop_header
                  %s1703 = sphi 0, %s1705
                  %p1704 = scmp.ge.s32.totalorder %s1703, %s1701
                  %s1708 = sphi 0, %s1841
                  %s1709 = sphi %s1496, %s1844
                  %s1710 = sphi %s1520, %s1845
                $region69: #{cnn_norm_forward.7} parent=65 // loop_header_branch
                  %1707 = sbr.rel (%p1704) target = $region73
                $region70: #{cnn_norm_forward.7} parent=65 // loop_body
                  %v1711 = vld [vmem:[%s1709] sm:$0xff]
                  %1712 = vst [vmem:[%s1710] sm:$0xff] %v1711
                  %v1713 = vld [vmem:[%s1709 + $0x8] sm:$0xff]
                  %1714 = vst [vmem:[%s1710 + $0x8] sm:$0xff] %v1713
                  %v1715 = vld [vmem:[%s1709 + $0x10] sm:$0xff]
                  %1716 = vst [vmem:[%s1710 + $0x10] sm:$0xff] %v1715
                  %v1717 = vld [vmem:[%s1709 + $0x18] sm:$0xff]
                  %1718 = vst [vmem:[%s1710 + $0x18] sm:$0xff] %v1717
                  %v1719 = vld [vmem:[%s1709 + $0x20] sm:$0xff]
                  %1720 = vst [vmem:[%s1710 + $0x20] sm:$0xff] %v1719
                  %v1721 = vld [vmem:[%s1709 + $0x28] sm:$0xff]
                  %1722 = vst [vmem:[%s1710 + $0x28] sm:$0xff] %v1721
                  %v1723 = vld [vmem:[%s1709 + $0x30] sm:$0xff]
                  %1724 = vst [vmem:[%s1710 + $0x30] sm:$0xff] %v1723
                  %v1725 = vld [vmem:[%s1709 + $0x38] sm:$0xff]
                  %1726 = vst [vmem:[%s1710 + $0x38] sm:$0xff] %v1725
                  %v1727 = vld [vmem:[%s1709 + $0x40] sm:$0xff]
                  %1728 = vst [vmem:[%s1710 + $0x40] sm:$0xff] %v1727
                  %v1729 = vld [vmem:[%s1709 + $0x48] sm:$0xff]
                  %1730 = vst [vmem:[%s1710 + $0x48] sm:$0xff] %v1729
                  %v1731 = vld [vmem:[%s1709 + $0x50] sm:$0xff]
                  %1732 = vst [vmem:[%s1710 + $0x50] sm:$0xff] %v1731
                  %v1733 = vld [vmem:[%s1709 + $0x58] sm:$0xff]
                  %1734 = vst [vmem:[%s1710 + $0x58] sm:$0xff] %v1733
                  %v1735 = vld [vmem:[%s1709 + $0x60] sm:$0xff]
                  %1736 = vst [vmem:[%s1710 + $0x60] sm:$0xff] %v1735
                  %v1737 = vld [vmem:[%s1709 + $0x68] sm:$0xff]
                  %1738 = vst [vmem:[%s1710 + $0x68] sm:$0xff] %v1737
                  %v1739 = vld [vmem:[%s1709 + $0x70] sm:$0xff]
                  %1740 = vst [vmem:[%s1710 + $0x70] sm:$0xff] %v1739
                  %v1741 = vld [vmem:[%s1709 + $0x78] sm:$0xff]
                  %1742 = vst [vmem:[%s1710 + $0x78] sm:$0xff] %v1741
                  %v1743 = vld [vmem:[%s1709 + $0x80] sm:$0xff]
                  %1744 = vst [vmem:[%s1710 + $0x80] sm:$0xff] %v1743
                  %v1745 = vld [vmem:[%s1709 + $0x88] sm:$0xff]
                  %1746 = vst [vmem:[%s1710 + $0x88] sm:$0xff] %v1745
                  %v1747 = vld [vmem:[%s1709 + $0x90] sm:$0xff]
                  %1748 = vst [vmem:[%s1710 + $0x90] sm:$0xff] %v1747
                  %v1749 = vld [vmem:[%s1709 + $0x98] sm:$0xff]
                  %1750 = vst [vmem:[%s1710 + $0x98] sm:$0xff] %v1749
                  %v1751 = vld [vmem:[%s1709 + $0xa0] sm:$0xff]
                  %1752 = vst [vmem:[%s1710 + $0xa0] sm:$0xff] %v1751
                  %v1753 = vld [vmem:[%s1709 + $0xa8] sm:$0xff]
                  %1754 = vst [vmem:[%s1710 + $0xa8] sm:$0xff] %v1753
                  %v1755 = vld [vmem:[%s1709 + $0xb0] sm:$0xff]
                  %1756 = vst [vmem:[%s1710 + $0xb0] sm:$0xff] %v1755
                  %v1757 = vld [vmem:[%s1709 + $0xb8] sm:$0xff]
                  %1758 = vst [vmem:[%s1710 + $0xb8] sm:$0xff] %v1757
                  %v1759 = vld [vmem:[%s1709 + $0xc0] sm:$0xff]
                  %1760 = vst [vmem:[%s1710 + $0xc0] sm:$0xff] %v1759
                  %v1761 = vld [vmem:[%s1709 + $0xc8] sm:$0xff]
                  %1762 = vst [vmem:[%s1710 + $0xc8] sm:$0xff] %v1761
                  %v1763 = vld [vmem:[%s1709 + $0xd0] sm:$0xff]
                  %1764 = vst [vmem:[%s1710 + $0xd0] sm:$0xff] %v1763
                  %v1765 = vld [vmem:[%s1709 + $0xd8] sm:$0xff]
                  %1766 = vst [vmem:[%s1710 + $0xd8] sm:$0xff] %v1765
                  %v1767 = vld [vmem:[%s1709 + $0xe0] sm:$0xff]
                  %1768 = vst [vmem:[%s1710 + $0xe0] sm:$0xff] %v1767
                  %v1769 = vld [vmem:[%s1709 + $0xe8] sm:$0xff]
                  %1770 = vst [vmem:[%s1710 + $0xe8] sm:$0xff] %v1769
                  %v1771 = vld [vmem:[%s1709 + $0xf0] sm:$0xff]
                  %1772 = vst [vmem:[%s1710 + $0xf0] sm:$0xff] %v1771
                  %v1773 = vld [vmem:[%s1709 + $0xf8] sm:$0xff]
                  %1774 = vst [vmem:[%s1710 + $0xf8] sm:$0xff] %v1773
                  %v1775 = vld [vmem:[%s1709 + $0x100] sm:$0xff]
                  %1776 = vst [vmem:[%s1710 + $0x100] sm:$0xff] %v1775
                  %v1777 = vld [vmem:[%s1709 + $0x108] sm:$0xff]
                  %1778 = vst [vmem:[%s1710 + $0x108] sm:$0xff] %v1777
                  %v1779 = vld [vmem:[%s1709 + $0x110] sm:$0xff]
                  %1780 = vst [vmem:[%s1710 + $0x110] sm:$0xff] %v1779
                  %v1781 = vld [vmem:[%s1709 + $0x118] sm:$0xff]
                  %1782 = vst [vmem:[%s1710 + $0x118] sm:$0xff] %v1781
                  %v1783 = vld [vmem:[%s1709 + $0x120] sm:$0xff]
                  %1784 = vst [vmem:[%s1710 + $0x120] sm:$0xff] %v1783
                  %v1785 = vld [vmem:[%s1709 + $0x128] sm:$0xff]
                  %1786 = vst [vmem:[%s1710 + $0x128] sm:$0xff] %v1785
                  %v1787 = vld [vmem:[%s1709 + $0x130] sm:$0xff]
                  %1788 = vst [vmem:[%s1710 + $0x130] sm:$0xff] %v1787
                  %v1789 = vld [vmem:[%s1709 + $0x138] sm:$0xff]
                  %1790 = vst [vmem:[%s1710 + $0x138] sm:$0xff] %v1789
                  %v1791 = vld [vmem:[%s1709 + $0x140] sm:$0xff]
                  %1792 = vst [vmem:[%s1710 + $0x140] sm:$0xff] %v1791
                  %v1793 = vld [vmem:[%s1709 + $0x148] sm:$0xff]
                  %1794 = vst [vmem:[%s1710 + $0x148] sm:$0xff] %v1793
                  %v1795 = vld [vmem:[%s1709 + $0x150] sm:$0xff]
                  %1796 = vst [vmem:[%s1710 + $0x150] sm:$0xff] %v1795
                  %v1797 = vld [vmem:[%s1709 + $0x158] sm:$0xff]
                  %1798 = vst [vmem:[%s1710 + $0x158] sm:$0xff] %v1797
                  %v1799 = vld [vmem:[%s1709 + $0x160] sm:$0xff]
                  %1800 = vst [vmem:[%s1710 + $0x160] sm:$0xff] %v1799
                  %v1801 = vld [vmem:[%s1709 + $0x168] sm:$0xff]
                  %1802 = vst [vmem:[%s1710 + $0x168] sm:$0xff] %v1801
                  %v1803 = vld [vmem:[%s1709 + $0x170] sm:$0xff]
                  %1804 = vst [vmem:[%s1710 + $0x170] sm:$0xff] %v1803
                  %v1805 = vld [vmem:[%s1709 + $0x178] sm:$0xff]
                  %1806 = vst [vmem:[%s1710 + $0x178] sm:$0xff] %v1805
                  %v1807 = vld [vmem:[%s1709 + $0x180] sm:$0xff]
                  %1808 = vst [vmem:[%s1710 + $0x180] sm:$0xff] %v1807
                  %v1809 = vld [vmem:[%s1709 + $0x188] sm:$0xff]
                  %1810 = vst [vmem:[%s1710 + $0x188] sm:$0xff] %v1809
                  %v1811 = vld [vmem:[%s1709 + $0x190] sm:$0xff]
                  %1812 = vst [vmem:[%s1710 + $0x190] sm:$0xff] %v1811
                  %v1813 = vld [vmem:[%s1709 + $0x198] sm:$0xff]
                  %1814 = vst [vmem:[%s1710 + $0x198] sm:$0xff] %v1813
                  %v1815 = vld [vmem:[%s1709 + $0x1a0] sm:$0xff]
                  %1816 = vst [vmem:[%s1710 + $0x1a0] sm:$0xff] %v1815
                  %v1817 = vld [vmem:[%s1709 + $0x1a8] sm:$0xff]
                  %1818 = vst [vmem:[%s1710 + $0x1a8] sm:$0xff] %v1817
                  %v1819 = vld [vmem:[%s1709 + $0x1b0] sm:$0xff]
                  %1820 = vst [vmem:[%s1710 + $0x1b0] sm:$0xff] %v1819
                  %v1821 = vld [vmem:[%s1709 + $0x1b8] sm:$0xff]
                  %1822 = vst [vmem:[%s1710 + $0x1b8] sm:$0xff] %v1821
                  %v1823 = vld [vmem:[%s1709 + $0x1c0] sm:$0xff]
                  %1824 = vst [vmem:[%s1710 + $0x1c0] sm:$0xff] %v1823
                  %v1825 = vld [vmem:[%s1709 + $0x1c8] sm:$0xff]
                  %1826 = vst [vmem:[%s1710 + $0x1c8] sm:$0xff] %v1825
                  %v1827 = vld [vmem:[%s1709 + $0x1d0] sm:$0xff]
                  %1828 = vst [vmem:[%s1710 + $0x1d0] sm:$0xff] %v1827
                  %v1829 = vld [vmem:[%s1709 + $0x1d8] sm:$0xff]
                  %1830 = vst [vmem:[%s1710 + $0x1d8] sm:$0xff] %v1829
                  %v1831 = vld [vmem:[%s1709 + $0x1e0] sm:$0xff]
                  %1832 = vst [vmem:[%s1710 + $0x1e0] sm:$0xff] %v1831
                  %v1833 = vld [vmem:[%s1709 + $0x1e8] sm:$0xff]
                  %1834 = vst [vmem:[%s1710 + $0x1e8] sm:$0xff] %v1833
                  %v1835 = vld [vmem:[%s1709 + $0x1f0] sm:$0xff]
                  %1836 = vst [vmem:[%s1710 + $0x1f0] sm:$0xff] %v1835
                  %v1837 = vld [vmem:[%s1709 + $0x1f8] sm:$0xff]
                  %1838 = vst [vmem:[%s1710 + $0x1f8] sm:$0xff] %v1837
                  %s1839 = sadd.s32 1, %s1708
                  %p1840 = scmp.ge.s32.totalorder %s1839, %s1701
                  %s1841 = scalar_select %p1840, 0, %s1839
                  %s1842 = smul.u32 %s1841, 512
                  %s1843 = smul.u32 %s1841, 512
                  %s1844 = scalar_lea.vmem %s1496, %s1842 [#allocation2]
                  %s1845 = scalar_lea.vmem %s1520, %s1843
                $region71: #{cnn_norm_forward.7} parent=65 // loop_footer
                  %s1705 = sadd.s32 %s1703, 1
                $region72: #{cnn_norm_forward.7} parent=65 // loop_footer_branch
                  %1702 = sbr.rel target = $region68
                $region73: #{cnn_norm_forward.7} parent=65 // loop_exit
                  _
                %s1846 = sshrl.u32 %s1515, 6
                %s1847 = sand.u32 %s1515, 63
                %s1848 = smul.u32 %s1846, 64
                %s1849 = smul.u32 8, %s1848
                %s1850 = scalar_lea.vmem %s1496, %s1849 [#allocation2]
                %s1851 = smul.u32 8, %s1848
                %s1852 = scalar_lea.vmem %s1520, %s1851
                // While loop
                $region74: #{cnn_norm_forward.7} parent=65 // loop_pre_header
                  _
                $region75: #{cnn_norm_forward.7} parent=65 // loop_header
                  %s1854 = sphi 0, %s1856
                  %p1855 = scmp.ge.s32.totalorder %s1854, %s1847
                  %s1859 = sphi 0, %s1866
                  %s1860 = sphi %s1850, %s1869
                  %s1861 = sphi %s1852, %s1870
                $region76: #{cnn_norm_forward.7} parent=65 // loop_header_branch
                  %1858 = sbr.rel (%p1855) target = $region80
                $region77: #{cnn_norm_forward.7} parent=65 // loop_body
                  %v1862 = vld [vmem:[%s1860] sm:$0xff]
                  %1863 = vst [vmem:[%s1861] sm:$0xff] %v1862
                  %s1864 = sadd.s32 1, %s1859
                  %p1865 = scmp.ge.s32.totalorder %s1864, %s1847
                  %s1866 = scalar_select %p1865, 0, %s1864
                  %s1867 = smul.u32 %s1866, 8
                  %s1868 = smul.u32 %s1866, 8
                  %s1869 = scalar_lea.vmem %s1850, %s1867 [#allocation2]
                  %s1870 = scalar_lea.vmem %s1852, %s1868
                $region78: #{cnn_norm_forward.7} parent=65 // loop_footer
                  %s1856 = sadd.s32 %s1854, 1
                $region79: #{cnn_norm_forward.7} parent=65 // loop_footer_branch
                  %1853 = sbr.rel target = $region75
                $region80: #{cnn_norm_forward.7} parent=65 // loop_exit
                  _
              $region66: #{cnn_norm_forward.7} parent=43 // pred_fallthru
                _
              // Predicated region
              $region81: #{cnn_norm_forward.7} parent=43 // pred_check
                _
              $region82: #{cnn_norm_forward.7} parent=43 // pred_check_branch
                %1872 = sbr.rel target = $region84
              $region83: #{cnn_norm_forward.7} parent=43 // pred_region
                _
              $region84: #{cnn_norm_forward.7} parent=43 // pred_fallthru
                _
            $region44: #{cnn_norm_forward.7} parent=39 // pred_fallthru
              _
            // Predicated region
            $region45: #{cnn_norm_forward.7} parent=39 // pred_check
              _
            $region46: #{cnn_norm_forward.7} parent=39 // pred_check_branch
              %1527 = sbr.rel target = $region48
            $region47: #{cnn_norm_forward.7} parent=39 // pred_region
              %s1529 = sshrl.u32 %s1515, 6
              // While loop
              $region49: #{cnn_norm_forward.7} parent=47 // loop_pre_header
                _
              $region50: #{cnn_norm_forward.7} parent=47 // loop_header
                %s1531 = sphi 0, %s1533
                %p1532 = scmp.ge.s32.totalorder %s1531, %s1529
                %s1536 = sphi 0, %s1669
                %s1537 = sphi %s1496, %s1672
                %s1538 = sphi %s1520, %s1673
              $region51: #{cnn_norm_forward.7} parent=47 // loop_header_branch
                %1535 = sbr.rel (%p1532) target = $region55
              $region52: #{cnn_norm_forward.7} parent=47 // loop_body
                %v1539 = vld [vmem:[%s1537] sm:$0xff]
                %1540 = vst [vmem:[%s1538] sm:$0xff] %v1539
                %v1541 = vld [vmem:[%s1537 + $0x8] sm:$0xff]
                %1542 = vst [vmem:[%s1538 + $0x8] sm:$0xff] %v1541
                %v1543 = vld [vmem:[%s1537 + $0x10] sm:$0xff]
                %1544 = vst [vmem:[%s1538 + $0x10] sm:$0xff] %v1543
                %v1545 = vld [vmem:[%s1537 + $0x18] sm:$0xff]
                %1546 = vst [vmem:[%s1538 + $0x18] sm:$0xff] %v1545
                %v1547 = vld [vmem:[%s1537 + $0x20] sm:$0xff]
                %1548 = vst [vmem:[%s1538 + $0x20] sm:$0xff] %v1547
                %v1549 = vld [vmem:[%s1537 + $0x28] sm:$0xff]
                %1550 = vst [vmem:[%s1538 + $0x28] sm:$0xff] %v1549
                %v1551 = vld [vmem:[%s1537 + $0x30] sm:$0xff]
                %1552 = vst [vmem:[%s1538 + $0x30] sm:$0xff] %v1551
                %v1553 = vld [vmem:[%s1537 + $0x38] sm:$0xff]
                %1554 = vst [vmem:[%s1538 + $0x38] sm:$0xff] %v1553
                %v1555 = vld [vmem:[%s1537 + $0x40] sm:$0xff]
                %1556 = vst [vmem:[%s1538 + $0x40] sm:$0xff] %v1555
                %v1557 = vld [vmem:[%s1537 + $0x48] sm:$0xff]
                %1558 = vst [vmem:[%s1538 + $0x48] sm:$0xff] %v1557
                %v1559 = vld [vmem:[%s1537 + $0x50] sm:$0xff]
                %1560 = vst [vmem:[%s1538 + $0x50] sm:$0xff] %v1559
                %v1561 = vld [vmem:[%s1537 + $0x58] sm:$0xff]
                %1562 = vst [vmem:[%s1538 + $0x58] sm:$0xff] %v1561
                %v1563 = vld [vmem:[%s1537 + $0x60] sm:$0xff]
                %1564 = vst [vmem:[%s1538 + $0x60] sm:$0xff] %v1563
                %v1565 = vld [vmem:[%s1537 + $0x68] sm:$0xff]
                %1566 = vst [vmem:[%s1538 + $0x68] sm:$0xff] %v1565
                %v1567 = vld [vmem:[%s1537 + $0x70] sm:$0xff]
                %1568 = vst [vmem:[%s1538 + $0x70] sm:$0xff] %v1567
                %v1569 = vld [vmem:[%s1537 + $0x78] sm:$0xff]
                %1570 = vst [vmem:[%s1538 + $0x78] sm:$0xff] %v1569
                %v1571 = vld [vmem:[%s1537 + $0x80] sm:$0xff]
                %1572 = vst [vmem:[%s1538 + $0x80] sm:$0xff] %v1571
                %v1573 = vld [vmem:[%s1537 + $0x88] sm:$0xff]
                %1574 = vst [vmem:[%s1538 + $0x88] sm:$0xff] %v1573
                %v1575 = vld [vmem:[%s1537 + $0x90] sm:$0xff]
                %1576 = vst [vmem:[%s1538 + $0x90] sm:$0xff] %v1575
                %v1577 = vld [vmem:[%s1537 + $0x98] sm:$0xff]
                %1578 = vst [vmem:[%s1538 + $0x98] sm:$0xff] %v1577
                %v1579 = vld [vmem:[%s1537 + $0xa0] sm:$0xff]
                %1580 = vst [vmem:[%s1538 + $0xa0] sm:$0xff] %v1579
                %v1581 = vld [vmem:[%s1537 + $0xa8] sm:$0xff]
                %1582 = vst [vmem:[%s1538 + $0xa8] sm:$0xff] %v1581
                %v1583 = vld [vmem:[%s1537 + $0xb0] sm:$0xff]
                %1584 = vst [vmem:[%s1538 + $0xb0] sm:$0xff] %v1583
                %v1585 = vld [vmem:[%s1537 + $0xb8] sm:$0xff]
                %1586 = vst [vmem:[%s1538 + $0xb8] sm:$0xff] %v1585
                %v1587 = vld [vmem:[%s1537 + $0xc0] sm:$0xff]
                %1588 = vst [vmem:[%s1538 + $0xc0] sm:$0xff] %v1587
                %v1589 = vld [vmem:[%s1537 + $0xc8] sm:$0xff]
                %1590 = vst [vmem:[%s1538 + $0xc8] sm:$0xff] %v1589
                %v1591 = vld [vmem:[%s1537 + $0xd0] sm:$0xff]
                %1592 = vst [vmem:[%s1538 + $0xd0] sm:$0xff] %v1591
                %v1593 = vld [vmem:[%s1537 + $0xd8] sm:$0xff]
                %1594 = vst [vmem:[%s1538 + $0xd8] sm:$0xff] %v1593
                %v1595 = vld [vmem:[%s1537 + $0xe0] sm:$0xff]
                %1596 = vst [vmem:[%s1538 + $0xe0] sm:$0xff] %v1595
                %v1597 = vld [vmem:[%s1537 + $0xe8] sm:$0xff]
                %1598 = vst [vmem:[%s1538 + $0xe8] sm:$0xff] %v1597
                %v1599 = vld [vmem:[%s1537 + $0xf0] sm:$0xff]
                %1600 = vst [vmem:[%s1538 + $0xf0] sm:$0xff] %v1599
                %v1601 = vld [vmem:[%s1537 + $0xf8] sm:$0xff]
                %1602 = vst [vmem:[%s1538 + $0xf8] sm:$0xff] %v1601
                %v1603 = vld [vmem:[%s1537 + $0x100] sm:$0xff]
                %1604 = vst [vmem:[%s1538 + $0x100] sm:$0xff] %v1603
                %v1605 = vld [vmem:[%s1537 + $0x108] sm:$0xff]
                %1606 = vst [vmem:[%s1538 + $0x108] sm:$0xff] %v1605
                %v1607 = vld [vmem:[%s1537 + $0x110] sm:$0xff]
                %1608 = vst [vmem:[%s1538 + $0x110] sm:$0xff] %v1607
                %v1609 = vld [vmem:[%s1537 + $0x118] sm:$0xff]
                %1610 = vst [vmem:[%s1538 + $0x118] sm:$0xff] %v1609
                %v1611 = vld [vmem:[%s1537 + $0x120] sm:$0xff]
                %1612 = vst [vmem:[%s1538 + $0x120] sm:$0xff] %v1611
                %v1613 = vld [vmem:[%s1537 + $0x128] sm:$0xff]
                %1614 = vst [vmem:[%s1538 + $0x128] sm:$0xff] %v1613
                %v1615 = vld [vmem:[%s1537 + $0x130] sm:$0xff]
                %1616 = vst [vmem:[%s1538 + $0x130] sm:$0xff] %v1615
                %v1617 = vld [vmem:[%s1537 + $0x138] sm:$0xff]
                %1618 = vst [vmem:[%s1538 + $0x138] sm:$0xff] %v1617
                %v1619 = vld [vmem:[%s1537 + $0x140] sm:$0xff]
                %1620 = vst [vmem:[%s1538 + $0x140] sm:$0xff] %v1619
                %v1621 = vld [vmem:[%s1537 + $0x148] sm:$0xff]
                %1622 = vst [vmem:[%s1538 + $0x148] sm:$0xff] %v1621
                %v1623 = vld [vmem:[%s1537 + $0x150] sm:$0xff]
                %1624 = vst [vmem:[%s1538 + $0x150] sm:$0xff] %v1623
                %v1625 = vld [vmem:[%s1537 + $0x158] sm:$0xff]
                %1626 = vst [vmem:[%s1538 + $0x158] sm:$0xff] %v1625
                %v1627 = vld [vmem:[%s1537 + $0x160] sm:$0xff]
                %1628 = vst [vmem:[%s1538 + $0x160] sm:$0xff] %v1627
                %v1629 = vld [vmem:[%s1537 + $0x168] sm:$0xff]
                %1630 = vst [vmem:[%s1538 + $0x168] sm:$0xff] %v1629
                %v1631 = vld [vmem:[%s1537 + $0x170] sm:$0xff]
                %1632 = vst [vmem:[%s1538 + $0x170] sm:$0xff] %v1631
                %v1633 = vld [vmem:[%s1537 + $0x178] sm:$0xff]
                %1634 = vst [vmem:[%s1538 + $0x178] sm:$0xff] %v1633
                %v1635 = vld [vmem:[%s1537 + $0x180] sm:$0xff]
                %1636 = vst [vmem:[%s1538 + $0x180] sm:$0xff] %v1635
                %v1637 = vld [vmem:[%s1537 + $0x188] sm:$0xff]
                %1638 = vst [vmem:[%s1538 + $0x188] sm:$0xff] %v1637
                %v1639 = vld [vmem:[%s1537 + $0x190] sm:$0xff]
                %1640 = vst [vmem:[%s1538 + $0x190] sm:$0xff] %v1639
                %v1641 = vld [vmem:[%s1537 + $0x198] sm:$0xff]
                %1642 = vst [vmem:[%s1538 + $0x198] sm:$0xff] %v1641
                %v1643 = vld [vmem:[%s1537 + $0x1a0] sm:$0xff]
                %1644 = vst [vmem:[%s1538 + $0x1a0] sm:$0xff] %v1643
                %v1645 = vld [vmem:[%s1537 + $0x1a8] sm:$0xff]
                %1646 = vst [vmem:[%s1538 + $0x1a8] sm:$0xff] %v1645
                %v1647 = vld [vmem:[%s1537 + $0x1b0] sm:$0xff]
                %1648 = vst [vmem:[%s1538 + $0x1b0] sm:$0xff] %v1647
                %v1649 = vld [vmem:[%s1537 + $0x1b8] sm:$0xff]
                %1650 = vst [vmem:[%s1538 + $0x1b8] sm:$0xff] %v1649
                %v1651 = vld [vmem:[%s1537 + $0x1c0] sm:$0xff]
                %1652 = vst [vmem:[%s1538 + $0x1c0] sm:$0xff] %v1651
                %v1653 = vld [vmem:[%s1537 + $0x1c8] sm:$0xff]
                %1654 = vst [vmem:[%s1538 + $0x1c8] sm:$0xff] %v1653
                %v1655 = vld [vmem:[%s1537 + $0x1d0] sm:$0xff]
                %1656 = vst [vmem:[%s1538 + $0x1d0] sm:$0xff] %v1655
                %v1657 = vld [vmem:[%s1537 + $0x1d8] sm:$0xff]
                %1658 = vst [vmem:[%s1538 + $0x1d8] sm:$0xff] %v1657
                %v1659 = vld [vmem:[%s1537 + $0x1e0] sm:$0xff]
                %1660 = vst [vmem:[%s1538 + $0x1e0] sm:$0xff] %v1659
                %v1661 = vld [vmem:[%s1537 + $0x1e8] sm:$0xff]
                %1662 = vst [vmem:[%s1538 + $0x1e8] sm:$0xff] %v1661
                %v1663 = vld [vmem:[%s1537 + $0x1f0] sm:$0xff]
                %1664 = vst [vmem:[%s1538 + $0x1f0] sm:$0xff] %v1663
                %v1665 = vld [vmem:[%s1537 + $0x1f8] sm:$0xff]
                %1666 = vst [vmem:[%s1538 + $0x1f8] sm:$0xff] %v1665
                %s1667 = sadd.s32 1, %s1536
                %p1668 = scmp.ge.s32.totalorder %s1667, %s1529
                %s1669 = scalar_select %p1668, 0, %s1667
                %s1670 = smul.u32 %s1669, 512
                %s1671 = smul.u32 %s1669, 512
                %s1672 = scalar_lea.vmem %s1496, %s1670 [#allocation2]
                %s1673 = scalar_lea.vmem %s1520, %s1671
              $region53: #{cnn_norm_forward.7} parent=47 // loop_footer
                %s1533 = sadd.s32 %s1531, 1
              $region54: #{cnn_norm_forward.7} parent=47 // loop_footer_branch
                %1530 = sbr.rel target = $region50
              $region55: #{cnn_norm_forward.7} parent=47 // loop_exit
                _
              %s1674 = sshrl.u32 %s1515, 6
              %s1675 = sand.u32 %s1515, 63
              %s1676 = smul.u32 %s1674, 64
              %s1677 = smul.u32 8, %s1676
              %s1678 = scalar_lea.vmem %s1496, %s1677 [#allocation2]
              %s1679 = smul.u32 8, %s1676
              %s1680 = scalar_lea.vmem %s1520, %s1679
              // While loop
              $region56: #{cnn_norm_forward.7} parent=47 // loop_pre_header
                _
              $region57: #{cnn_norm_forward.7} parent=47 // loop_header
                %s1682 = sphi 0, %s1684
                %p1683 = scmp.ge.s32.totalorder %s1682, %s1675
                %s1687 = sphi 0, %s1694
                %s1688 = sphi %s1678, %s1697
                %s1689 = sphi %s1680, %s1698
              $region58: #{cnn_norm_forward.7} parent=47 // loop_header_branch
                %1686 = sbr.rel (%p1683) target = $region62
              $region59: #{cnn_norm_forward.7} parent=47 // loop_body
                %v1690 = vld [vmem:[%s1688] sm:$0xff]
                %1691 = vst [vmem:[%s1689] sm:$0xff] %v1690
                %s1692 = sadd.s32 1, %s1687
                %p1693 = scmp.ge.s32.totalorder %s1692, %s1675
                %s1694 = scalar_select %p1693, 0, %s1692
                %s1695 = smul.u32 %s1694, 8
                %s1696 = smul.u32 %s1694, 8
                %s1697 = scalar_lea.vmem %s1678, %s1695 [#allocation2]
                %s1698 = scalar_lea.vmem %s1680, %s1696
              $region60: #{cnn_norm_forward.7} parent=47 // loop_footer
                %s1684 = sadd.s32 %s1682, 1
              $region61: #{cnn_norm_forward.7} parent=47 // loop_footer_branch
                %1681 = sbr.rel target = $region57
              $region62: #{cnn_norm_forward.7} parent=47 // loop_exit
                _
            $region48: #{cnn_norm_forward.7} parent=39 // pred_fallthru
              _
          $region40: #{cnn_norm_forward.7} parent=35 // pred_fallthru
            _
          %1873 = vnop
        $region36: #{cnn_norm_forward.7} parent=31 // pred_fallthru
          _
        // Predicated region
        $region85: #{cnn_norm_forward.7} parent=31 // pred_check
          %p1874 = pneg %p155
        $region86: #{cnn_norm_forward.7} parent=31 // pred_check_branch
          %1876 = sbr.rel (%p1874) target = $region88
        $region87: #{cnn_norm_forward.7} parent=31 // pred_region
          _
        $region88: #{cnn_norm_forward.7} parent=31 // pred_fallthru
          _
        // Predicated region
        $region89: #{cnn_norm_forward.7} parent=31 // pred_check
          %p1877 = pneg %p183
        $region90: #{cnn_norm_forward.7} parent=31 // pred_check_branch
          %1879 = sbr.rel (%p1877) target = $region92
        $region91: #{cnn_norm_forward.7} parent=31 // pred_region
          _
        $region92: #{cnn_norm_forward.7} parent=31 // pred_fallthru
          _
      $region32: #{cnn_norm_forward.7} parent=5 // pred_fallthru
        _
      %p1880 = scmp.le.s32.totalorder 2, %s12
      // Predicated region
      $region93: #{cnn_norm_forward.7} parent=5 // pred_check
        %p1881 = pneg %p1880
      $region94: #{cnn_norm_forward.7} parent=5 // pred_check_branch
        %1883 = sbr.rel (%p1881) target = $region96
      $region95: #{cnn_norm_forward.7} parent=5 // pred_region
        %s1884 = ssub.s32 %s12, 2
        // Predicated region
        $region97: #{cnn_norm_forward.7} parent=95 // pred_check
          %p1885 = pneg %p133
        $region98: #{cnn_norm_forward.7} parent=95 // pred_check_branch
          %1887 = sbr.rel (%p1885) target = $region100
        $region99: #{cnn_norm_forward.7} parent=95 // pred_region
          %s1888 = sand.u32 %s118, 1
          %s1889 = sand.u32 %s118, 1
          %s1890 = smul.addr %s1889, 512
          %s1891 = scalar_lea.vmem [#allocation2], %s1890
        $region100: #{cnn_norm_forward.7} parent=95 // pred_fallthru
          _
        // Predicated region
        $region101: #{cnn_norm_forward.7} parent=95 // pred_check
          %p1892 = pneg %p161
        $region102: #{cnn_norm_forward.7} parent=95 // pred_check_branch
          %1894 = sbr.rel (%p1892) target = $region104
        $region103: #{cnn_norm_forward.7} parent=95 // pred_region
          %p1895 = scmp.lt.s32.totalorder %s23, 7
          %s1896 = scalar_select %p1895, %s23, 7
          %p1897 = scmp.lt.s32.totalorder %s24, 0
          %s1898 = scalar_select %p1897, %s24, 0
          %s1899 = sadd.s32 %s1898, %s1896
          %s1900 = scalar_lea.vmem %s4, %s1899
        $region104: #{cnn_norm_forward.7} parent=95 // pred_fallthru
          _
        // Predicated region
        $region105: #{cnn_norm_forward.7} parent=95 // pred_check
          %p1901 = pneg %p189
        $region106: #{cnn_norm_forward.7} parent=95 // pred_check_branch
          %1903 = sbr.rel (%p1901) target = $region108
        $region107: #{cnn_norm_forward.7} parent=95 // pred_region
          %p1904 = scmp.lt.s32.totalorder %s23, 7
          %s1905 = scalar_select %p1904, %s23, 7
          %p1906 = scmp.lt.s32.totalorder %s24, 0
          %s1907 = scalar_select %p1906, %s24, 0
          %s1908 = sadd.s32 %s1907, %s1905
          %s1909 = scalar_lea.vmem %s5, %s1908
        $region108: #{cnn_norm_forward.7} parent=95 // pred_fallthru
          _
      $region96: #{cnn_norm_forward.7} parent=5 // pred_fallthru
        _
    $region6: #{cnn_norm_forward.7} parent=1 // loop_footer
      %s16 = sadd.s32 1, %s12
    $region7: #{cnn_norm_forward.7} parent=1 // loop_footer_branch
      %11 = sbr.rel target = $region3
    $region8: #{cnn_norm_forward.7} parent=1 // loop_exit
      _

// kernel: cnn_norm_forward.8
$region0: #{cnn_norm_forward.8}
  #allocation0 [shape = 'u32[]', space=smem, size = 0x4, offset = 0x4, fixed_abs, tag = 'smem constant byte address 0x4 - core index']
  #allocation1 [shape = 'u32[144,128]{1,0:T(1,128)}', space=vmem, size = 0x12000, scoped, tag = 'internal scratch']
  %s0 = inlined_call_operand.vmem [shape: f32[2,42,21,128], index: 0, kind: input, shape index: {}]
  %s1 = inlined_call_operand.vmem [shape: f32[1,64], index: 1, kind: input, shape index: {}]
  %s2 = inlined_call_operand.vmem [shape: f32[1,64], index: 2, kind: input, shape index: {}]
  %s3 = inlined_call_operand.vmem [shape: f32[1,64], index: 3, kind: input, shape index: {}]
  %s4 = inlined_call_operand.vmem [shape: f32[1,64], index: 4, kind: input, shape index: {}]
  %s5 = inlined_call_operand.vmem [shape: f32[2,21,21,64], index: 5, kind: output, shape index: {}]
  %s6 = sld [smem:[#allocation0]]
  $region53: #{cnn_norm_forward.8} parent=0
    _
  %s8 = ssub.s32 1, %s6
  %s9 = scalar_select 0, %s8, %s6
  loop: start=0, step=1, limit=8
  $region2: #{cnn_norm_forward.8} parent=0 // loop_pre_header
    _
  $region3: #{cnn_norm_forward.8} parent=0 // loop_header
    %s11 = sphi 0, %s15
    %p12 = scmp.ge.s32.totalorder %s11, 8
    %s18 = sphi 0, %s30
    %s19 = sphi 0, %s26
    %s20 = sphi 0, %s18
    %s21 = sphi 0, %s19
    %s22 = sphi 0, %s20
    %s23 = sphi 0, %s21
    %s35 = sphi 0, %s37
    %s38 = sphi 0, %s35
    %s39 = sphi 0, %s38
    %s55 = sphi 0, %s39
    %s59 = sphi 0, %s59
    %s61 = sphi 0, %s59
    %s62 = sphi 0, %s61
    %s76 = sphi 0, %s62
    %s80 = sphi 0, %s80
    %s82 = sphi 0, %s80
    %s83 = sphi 0, %s82
    %s97 = sphi 0, %s83
    %s101 = sphi 0, %s101
    %s103 = sphi 0, %s101
    %s104 = sphi 0, %s103
    %s118 = sphi 0, %s104
    %s122 = sphi 0, %s122
    %s124 = sphi 0, %s122
    %s125 = sphi 0, %s124
    %s139 = sphi 0, %s125
    %s147 = sphi 0, %s149
    %s150 = sphi 0, %s147
    %s151 = sphi 0, %s150
    %s167 = sphi 0, %s151
  $region4: #{cnn_norm_forward.8} parent=0 // loop_header_branch
    %14 = sbr.rel (%p12) target = $region8
  $region5: #{cnn_norm_forward.8} parent=0 // loop_body
    %s16 = ssub.s32 %s11, 1
    %s17 = ssub.s32 %s11, 2
    %s24 = sadd.s32 1, %s19
    %p25 = scmp.ge.s32.totalorder %s24, 3
    %s26 = scalar_select %p25, 0, %s24
    %s27 = sadd.s32 1, %s18
    %s28 = scalar_select %p25, %s27, %s18
    %p29 = scmp.ge.s32.totalorder %s28, 2
    %s30 = scalar_select %p29, 0, %s28
    %s31 = ssub.s32 %s18, %s30
    %s32 = ssub.s32 %s19, %s26
    %s33 = sor.u32 %s31, %s32
    %p34 = scmp.eq.s32.totalorder %s33, 0
    %s36 = sadd.s32 %s35, 1
    %s37 = scalar_select %p34, %s35, %s36
    %p40 = pneg %p34
    %p41 = scmp.eq.s32.totalorder %s11, 5
    %p42 = por %p40, %p41
    %p43 = scmp.ne.s32.totalorder %s35, %s38
    %p44 = scmp.eq.s32.totalorder %s11, 0
    %p45 = por %p43, %p44
    %p46 = scmp.ne.s32.totalorder %s35, %s38
    %p47 = scmp.eq.s32.totalorder %s16, 5
    %p48 = por %p46, %p47
    %p49 = scmp.ne.s32.totalorder %s38, %s39
    %p50 = scmp.eq.s32.totalorder %s16, 0
    %p51 = por %p49, %p50
    %p52 = scmp.ne.s32.totalorder %s38, %s39
    %p53 = scmp.eq.s32.totalorder %s17, 5
    %p54 = por %p52, %p53
    %p56 = scmp.ne.s32.totalorder %s39, %s55
    %p57 = scmp.eq.s32.totalorder %s17, 0
    %p58 = por %p56, %p57
    %s60 = sadd.s32 %s59, 1
    %p63 = scmp.eq.s32.totalorder %s11, 5
    %p64 = scmp.ne.s32.totalorder %s59, %s61
    %p65 = scmp.eq.s32.totalorder %s11, 0
    %p66 = por %p64, %p65
    %p67 = scmp.ne.s32.totalorder %s59, %s61
    %p68 = scmp.eq.s32.totalorder %s16, 5
    %p69 = por %p67, %p68
    %p70 = scmp.ne.s32.totalorder %s61, %s62
    %p71 = scmp.eq.s32.totalorder %s16, 0
    %p72 = por %p70, %p71
    %p73 = scmp.ne.s32.totalorder %s61, %s62
    %p74 = scmp.eq.s32.totalorder %s17, 5
    %p75 = por %p73, %p74
    %p77 = scmp.ne.s32.totalorder %s62, %s76
    %p78 = scmp.eq.s32.totalorder %s17, 0
    %p79 = por %p77, %p78
    %s81 = sadd.s32 %s80, 1
    %p84 = scmp.eq.s32.totalorder %s11, 5
    %p85 = scmp.ne.s32.totalorder %s80, %s82
    %p86 = scmp.eq.s32.totalorder %s11, 0
    %p87 = por %p85, %p86
    %p88 = scmp.ne.s32.totalorder %s80, %s82
    %p89 = scmp.eq.s32.totalorder %s16, 5
    %p90 = por %p88, %p89
    %p91 = scmp.ne.s32.totalorder %s82, %s83
    %p92 = scmp.eq.s32.totalorder %s16, 0
    %p93 = por %p91, %p92
    %p94 = scmp.ne.s32.totalorder %s82, %s83
    %p95 = scmp.eq.s32.totalorder %s17, 5
    %p96 = por %p94, %p95
    %p98 = scmp.ne.s32.totalorder %s83, %s97
    %p99 = scmp.eq.s32.totalorder %s17, 0
    %p100 = por %p98, %p99
    %s102 = sadd.s32 %s101, 1
    %p105 = scmp.eq.s32.totalorder %s11, 5
    %p106 = scmp.ne.s32.totalorder %s101, %s103
    %p107 = scmp.eq.s32.totalorder %s11, 0
    %p108 = por %p106, %p107
    %p109 = scmp.ne.s32.totalorder %s101, %s103
    %p110 = scmp.eq.s32.totalorder %s16, 5
    %p111 = por %p109, %p110
    %p112 = scmp.ne.s32.totalorder %s103, %s104
    %p113 = scmp.eq.s32.totalorder %s16, 0
    %p114 = por %p112, %p113
    %p115 = scmp.ne.s32.totalorder %s103, %s104
    %p116 = scmp.eq.s32.totalorder %s17, 5
    %p117 = por %p115, %p116
    %p119 = scmp.ne.s32.totalorder %s104, %s118
    %p120 = scmp.eq.s32.totalorder %s17, 0
    %p121 = por %p119, %p120
    %s123 = sadd.s32 %s122, 1
    %p126 = scmp.eq.s32.totalorder %s11, 5
    %p127 = scmp.ne.s32.totalorder %s122, %s124
    %p128 = scmp.eq.s32.totalorder %s11, 0
    %p129 = por %p127, %p128
    %p130 = scmp.ne.s32.totalorder %s122, %s124
    %p131 = scmp.eq.s32.totalorder %s16, 5
    %p132 = por %p130, %p131
    %p133 = scmp.ne.s32.totalorder %s124, %s125
    %p134 = scmp.eq.s32.totalorder %s16, 0
    %p135 = por %p133, %p134
    %p136 = scmp.ne.s32.totalorder %s124, %s125
    %p137 = scmp.eq.s32.totalorder %s17, 5
    %p138 = por %p136, %p137
    %p140 = scmp.ne.s32.totalorder %s125, %s139
    %p141 = scmp.eq.s32.totalorder %s17, 0
    %p142 = por %p140, %p141
    %s143 = ssub.s32 %s18, %s30
    %s144 = ssub.s32 %s19, %s26
    %s145 = sor.u32 %s143, %s144
    %p146 = scmp.eq.s32.totalorder %s145, 0
    %s148 = sadd.s32 %s147, 1
    %s149 = scalar_select %p146, %s147, %s148
    %p152 = pneg %p146
    %p153 = scmp.eq.s32.totalorder %s11, 5
    %p154 = por %p152, %p153
    %p155 = scmp.ne.s32.totalorder %s147, %s150
    %p156 = scmp.eq.s32.totalorder %s11, 0
    %p157 = por %p155, %p156
    %p158 = scmp.ne.s32.totalorder %s147, %s150
    %p159 = scmp.eq.s32.totalorder %s16, 5
    %p160 = por %p158, %p159
    %p161 = scmp.ne.s32.totalorder %s150, %s151
    %p162 = scmp.eq.s32.totalorder %s16, 0
    %p163 = por %p161, %p162
    %p164 = scmp.ne.s32.totalorder %s150, %s151
    %p165 = scmp.eq.s32.totalorder %s17, 5
    %p166 = por %p164, %p165
    %p168 = scmp.ne.s32.totalorder %s151, %s167
    %p169 = scmp.eq.s32.totalorder %s17, 0
    %p170 = por %p168, %p169
    %p171 = scmp.le.s32.totalorder 1, %s11
    %p172 = scmp.lt.s32.totalorder %s11, 7
    %p173 = pnand %p171, %p172
    %p174 = pneg %p173
    // Predicated region
    $region9: #{cnn_norm_forward.8} parent=5 // pred_check
      _
    $region10: #{cnn_norm_forward.8} parent=5 // pred_check_branch
      %176 = sbr.rel (%p173) target = $region12
    $region11: #{cnn_norm_forward.8} parent=5 // pred_region
      %s177 = ssub.s32 %s11, 1
      // Predicated region
      $region13: #{cnn_norm_forward.8} parent=11 // pred_check
        %p178 = pneg %p72
      $region14: #{cnn_norm_forward.8} parent=11 // pred_check_branch
        %180 = sbr.rel (%p178) target = $region16
      $region15: #{cnn_norm_forward.8} parent=11 // pred_region
        _
      $region16: #{cnn_norm_forward.8} parent=11 // pred_fallthru
        _
      // Predicated region
      $region17: #{cnn_norm_forward.8} parent=11 // pred_check
        %p181 = pneg %p93
      $region18: #{cnn_norm_forward.8} parent=11 // pred_check_branch
        %183 = sbr.rel (%p181) target = $region20
      $region19: #{cnn_norm_forward.8} parent=11 // pred_region
        _
      $region20: #{cnn_norm_forward.8} parent=11 // pred_fallthru
        _
      // Predicated region
      $region21: #{cnn_norm_forward.8} parent=11 // pred_check
        %p184 = pneg %p114
      $region22: #{cnn_norm_forward.8} parent=11 // pred_check_branch
        %186 = sbr.rel (%p184) target = $region24
      $region23: #{cnn_norm_forward.8} parent=11 // pred_region
        _
      $region24: #{cnn_norm_forward.8} parent=11 // pred_fallthru
        _
      // Predicated region
      $region25: #{cnn_norm_forward.8} parent=11 // pred_check
        %p187 = pneg %p135
      $region26: #{cnn_norm_forward.8} parent=11 // pred_check_branch
        %189 = sbr.rel (%p187) target = $region28
      $region27: #{cnn_norm_forward.8} parent=11 // pred_region
        _
      $region28: #{cnn_norm_forward.8} parent=11 // pred_fallthru
        _
    $region12: #{cnn_norm_forward.8} parent=5 // pred_fallthru
      _
    %p190 = scmp.lt.s32.totalorder %s11, 6
    // Predicated region
    $region29: #{cnn_norm_forward.8} parent=5 // pred_check
      %p191 = pneg %p190
    $region30: #{cnn_norm_forward.8} parent=5 // pred_check_branch
      %193 = sbr.rel (%p191) target = $region32
    $region31: #{cnn_norm_forward.8} parent=5 // pred_region
      // Predicated region
      $region33: #{cnn_norm_forward.8} parent=31 // pred_check
        %p194 = pneg %p45
      $region34: #{cnn_norm_forward.8} parent=31 // pred_check_branch
        %196 = sbr.rel (%p194) target = $region36
      $region35: #{cnn_norm_forward.8} parent=31 // pred_region
        %s197 = smul.u32 14, %s19
        %p198 = scmp.lt.s32.totalorder %s18, 1
        %s199 = scalar_select %p198, %s18, 1
        %p200 = scmp.lt.s32.totalorder %s197, 41
        %s201 = scalar_select %p200, %s197, 41
        %s202 = smul.addr %s201, 3
        %s203 = smul.addr %s199, 126
        %s204 = sadd.s32 %s202, %s203
        %s205 = smul.addr %s204, 8
        %s206 = scalar_lea.vmem %s0, %s205
        %s207 = smul.u32 14, %s19
      $region36: #{cnn_norm_forward.8} parent=31 // pred_fallthru
        _
    $region32: #{cnn_norm_forward.8} parent=5 // pred_fallthru
      _
    %p208 = scmp.le.s32.totalorder 1, %s11
    %p209 = scmp.lt.s32.totalorder %s11, 7
    %p210 = pnand %p208, %p209
    %p211 = pneg %p210
    // Predicated region
    $region37: #{cnn_norm_forward.8} parent=5 // pred_check
      _
    $region38: #{cnn_norm_forward.8} parent=5 // pred_check_branch
      %213 = sbr.rel (%p210) target = $region40
    $region39: #{cnn_norm_forward.8} parent=5 // pred_region
      %s214 = ssub.s32 %s11, 1
      %s215 = smul.u32 14, %s21
      %p216 = scmp.lt.s32.totalorder %s20, 1
      %s217 = scalar_select %p216, %s20, 1
      %p218 = scmp.lt.s32.totalorder %s215, 41
      %s219 = scalar_select %p218, %s215, 41
      %s220 = smul.addr %s219, 3
      %s221 = smul.addr %s217, 126
      %s222 = sadd.s32 %s220, %s221
      %s223 = smul.addr %s222, 8
      %s224 = scalar_lea.vmem %s0, %s223
      %p225 = pneg %p51
      %p226 = pneg %p48
      %p227 = pneg %p72
      %p228 = pneg %p69
      %p229 = pneg %p93
      %p230 = pneg %p90
      %p231 = pneg %p114
      %p232 = pneg %p111
      %p233 = pneg %p135
      %p234 = pneg %p132
      %p235 = pneg %p163
      %p236 = pneg %p160
      %s237 = smul.u32 7, %s21
      %p238 = scmp.lt.s32.totalorder %s20, 1
      %s239 = scalar_select %p238, %s20, 1
      %p240 = scmp.lt.s32.totalorder %s237, 20
      %s241 = scalar_select %p240, %s237, 20
      %s242 = smul.addr %s241, 3
      %s243 = smul.addr %s239, 63
      %s244 = sadd.s32 %s242, %s243
      %s245 = smul.addr %s244, 8
      %s246 = scalar_lea.vmem %s5, %s245
      %s247 = smul.u32 14, %s21
      %p248 = scmp.lt.s32.totalorder %s20, 1
      %s249 = scalar_select %p248, %s20, 1
      %p250 = scmp.lt.s32.totalorder %s247, 41
      %s251 = scalar_select %p250, %s247, 41
      %s252 = smul.addr %s251, 3
      %s253 = smul.addr %s249, 126
      %s254 = sadd.s32 %s252, %s253
      %s255 = smul.addr %s254, 8
      %s256 = scalar_lea.vmem %s0, %s255
      %s257 = smul.u32 14, %s21
      %s258 = smul.u32 7, %s21
      %p259 = scmp.lt.s32.totalorder %s20, 1
      %s260 = scalar_select %p259, %s20, 1
      %p261 = scmp.lt.s32.totalorder %s258, 20
      %s262 = scalar_select %p261, %s258, 20
      %s263 = smul.addr %s262, 3
      %s264 = smul.addr %s260, 63
      %s265 = sadd.s32 %s263, %s264
      %s266 = smul.addr %s265, 8
      %s267 = scalar_lea.vmem %s5, %s266
      %s268 = smul.u32 7, %s21
      %v269 = vld [vmem:[%s1] sm:$0x1]
      %v270 = vmul.f32 %v269, 0.00027041644
      %v271 = vmul.f32 %v269, 0.0
      %v272 = vld [vmem:[%s2] sm:$0x1]
      %v273 = vmul.f32 %v272, 0.00027041644
      %v274 = vadd.f32 %v271, %v273
      %v275 = vmul.f32 %v270, %v270
      %v276 = vsub.f32 %v274, %v275
      %v277 = vld [vmem:[%s3] sm:$0x1]
      %v278 = vadd.f32 %v276, 1e-05
      %v279 = vrsqrt.pop %v278
      %v280 = vmul.f32 %v277, %v279
      %v281 = vld [vmem:[%s4] sm:$0x1]
      %v282 = vmul.f32 %v270, %v280
      %v283 = vsub.f32 %v281, %v282
      %v285 = vlaneseq
      %v286 = vshrl.u32 %v285, 7
      %v287 = vsub.s32 0, %v286
      %v288 = vrot.slane %v280, %v287
      %289 = vrot.lane.b32.xlu0 %v288, 64
      %v290 = vpop.permute.xlu0 %289
      %vm292 = vcmask 523264
      %v293 = vsel %vm292, %v280, %v290
      %v295 = vlaneseq
      %v296 = vshrl.u32 %v295, 7
      %v297 = vsub.s32 0, %v296
      %v298 = vrot.slane %v283, %v297
      %299 = vrot.lane.b32.xlu0 %v298, 64
      %v300 = vpop.permute.xlu0 %299
      %v302 = vsel %vm292, %v283, %v300
      %v303 = vld [vmem:[%s256] sm:$0xff]
      %v304 = vld [vmem:[%s256 + $0x8] sm:$0xff]
      %v305 = vld [vmem:[%s256 + $0x10] sm:$0x1f]
      %v306 = vlaneseq
      %v307 = vshrl.u32 %v306, 7
      %v308 = vsub.s32 0, %v307
      %v309 = vrot.slane %v293, %v308
      %v310 = vmul.f32 %v303, %v309
      %v311 = vmul.f32 %v304, %v309
      %v312 = vmul.f32 %v305, %v309
      %v313 = vlaneseq
      %v314 = vshrl.u32 %v313, 7
      %v315 = vsub.s32 0, %v314
      %v316 = vrot.slane %v302, %v315
      %v317 = vadd.f32 %v310, %v316
      %v318 = vadd.f32 %v311, %v316
      %v319 = vadd.f32 %v312, %v316
      %vm320 = vcmp.ge.f32.partialorder %v317, 0.0
      %vm321 = vcmp.ge.f32.partialorder %v318, 0.0
      %vm322 = vcmp.ge.f32.partialorder %v319, 0.0
      %v323 = vmul.f32 %v317, 0.01
      %v324 = vmul.f32 %v318, 0.01
      %v325 = vmul.f32 %v319, 0.01
      %v326 = vsel %vm320, %v317, %v323
      %v327 = vsel %vm321, %v318, %v324
      %v328 = vsel %vm322, %v319, %v325
      %s329 = scalar_lea.vmem %s256, 24
      %v330 = vld [vmem:[%s329] sm:$0xff]
      %v331 = vld [vmem:[%s329 + $0x8] sm:$0xff]
      %v332 = vld [vmem:[%s329 + $0x10] sm:$0x1f]
      %v333 = vmul.f32 %v330, %v309
      %v334 = vmul.f32 %v331, %v309
      %v335 = vmul.f32 %v332, %v309
      %v336 = vadd.f32 %v333, %v316
      %v337 = vadd.f32 %v334, %v316
      %v338 = vadd.f32 %v335, %v316
      %vm339 = vcmp.ge.f32.partialorder %v336, 0.0
      %vm340 = vcmp.ge.f32.partialorder %v337, 0.0
      %vm341 = vcmp.ge.f32.partialorder %v338, 0.0
      %v342 = vmul.f32 %v336, 0.01
      %v343 = vmul.f32 %v337, 0.01
      %v344 = vmul.f32 %v338, 0.01
      %v345 = vsel %vm339, %v336, %v342
      %v346 = vsel %vm340, %v337, %v343
      %v347 = vsel %vm341, %v338, %v344
      %v348 = vmax.f32 %v326, %v345
      %v349 = vmax.f32 %v327, %v346
      %v350 = vmax.f32 %v328, %v347
      %354 = vrot.lane.b32.xlu0 %v348, 64
      %v355 = vpop.permute.xlu0 %354
      %356 = vrot.lane.b32.xlu0 %v349, 64
      %v357 = vpop.permute.xlu0 %356
      %358 = vrot.lane.b32.xlu0 %v350, 64
      %v359 = vpop.permute.xlu0 %358
      %v363 = vmax.f32 %v348, %v355
      %v364 = vmax.f32 %v349, %v357
      %v365 = vmax.f32 %v350, %v359
      %366 = vst.msk [vmem:[%s267] sm:$0xff] %vm292, %v363
      %367 = vst.msk [vmem:[%s267 + $0x8] sm:$0xff] %vm292, %v364
      %vm368 = vcmask 520192
      %369 = vst.msk [vmem:[%s267 + $0x10] sm:$0x1f] %vm368, %v365
      %s370 = scalar_lea.vmem %s256, 48
      %v371 = vld [vmem:[%s370] sm:$0xff]
      %v372 = vld [vmem:[%s370 + $0x8] sm:$0xff]
      %v373 = vld [vmem:[%s370 + $0x10] sm:$0x1f]
      %v374 = vmul.f32 %v371, %v309
      %v375 = vmul.f32 %v372, %v309
      %v376 = vmul.f32 %v373, %v309
      %v377 = vadd.f32 %v374, %v316
      %v378 = vadd.f32 %v375, %v316
      %v379 = vadd.f32 %v376, %v316
      %vm380 = vcmp.ge.f32.partialorder %v377, 0.0
      %vm381 = vcmp.ge.f32.partialorder %v378, 0.0
      %vm382 = vcmp.ge.f32.partialorder %v379, 0.0
      %v383 = vmul.f32 %v377, 0.01
      %v384 = vmul.f32 %v378, 0.01
      %v385 = vmul.f32 %v379, 0.01
      %v386 = vsel %vm380, %v377, %v383
      %v387 = vsel %vm381, %v378, %v384
      %v388 = vsel %vm382, %v379, %v385
      %s389 = scalar_lea.vmem %s256, 72
      %v390 = vld [vmem:[%s389] sm:$0xff]
      %v391 = vld [vmem:[%s389 + $0x8] sm:$0xff]
      %v392 = vld [vmem:[%s389 + $0x10] sm:$0x1f]
      %v393 = vmul.f32 %v390, %v309
      %v394 = vmul.f32 %v391, %v309
      %v395 = vmul.f32 %v392, %v309
      %v396 = vadd.f32 %v393, %v316
      %v397 = vadd.f32 %v394, %v316
      %v398 = vadd.f32 %v395, %v316
      %vm399 = vcmp.ge.f32.partialorder %v396, 0.0
      %vm400 = vcmp.ge.f32.partialorder %v397, 0.0
      %vm401 = vcmp.ge.f32.partialorder %v398, 0.0
      %v402 = vmul.f32 %v396, 0.01
      %v403 = vmul.f32 %v397, 0.01
      %v404 = vmul.f32 %v398, 0.01
      %v405 = vsel %vm399, %v396, %v402
      %v406 = vsel %vm400, %v397, %v403
      %v407 = vsel %vm401, %v398, %v404
      %v408 = vmax.f32 %v386, %v405
      %v409 = vmax.f32 %v387, %v406
      %v410 = vmax.f32 %v388, %v407
      %414 = vrot.lane.b32.xlu0 %v408, 64
      %v415 = vpop.permute.xlu0 %414
      %416 = vrot.lane.b32.xlu0 %v409, 64
      %v417 = vpop.permute.xlu0 %416
      %418 = vrot.lane.b32.xlu0 %v410, 64
      %v419 = vpop.permute.xlu0 %418
      %v423 = vmax.f32 %v408, %v415
      %v424 = vmax.f32 %v409, %v417
      %v425 = vmax.f32 %v410, %v419
      %s426 = scalar_lea.vmem %s267, 24
      %427 = vst.msk [vmem:[%s426] sm:$0xff] %vm292, %v423
      %428 = vst.msk [vmem:[%s426 + $0x8] sm:$0xff] %vm292, %v424
      %429 = vst.msk [vmem:[%s426 + $0x10] sm:$0x1f] %vm368, %v425
      %s430 = scalar_lea.vmem %s256, 96
      %v431 = vld [vmem:[%s430] sm:$0xff]
      %v432 = vld [vmem:[%s430 + $0x8] sm:$0xff]
      %v433 = vld [vmem:[%s430 + $0x10] sm:$0x1f]
      %v434 = vmul.f32 %v431, %v309
      %v435 = vmul.f32 %v432, %v309
      %v436 = vmul.f32 %v433, %v309
      %v437 = vadd.f32 %v434, %v316
      %v438 = vadd.f32 %v435, %v316
      %v439 = vadd.f32 %v436, %v316
      %vm440 = vcmp.ge.f32.partialorder %v437, 0.0
      %vm441 = vcmp.ge.f32.partialorder %v438, 0.0
      %vm442 = vcmp.ge.f32.partialorder %v439, 0.0
      %v443 = vmul.f32 %v437, 0.01
      %v444 = vmul.f32 %v438, 0.01
      %v445 = vmul.f32 %v439, 0.01
      %v446 = vsel %vm440, %v437, %v443
      %v447 = vsel %vm441, %v438, %v444
      %v448 = vsel %vm442, %v439, %v445
      %s449 = scalar_lea.vmem %s256, 120
      %v450 = vld [vmem:[%s449] sm:$0xff]
      %v451 = vld [vmem:[%s449 + $0x8] sm:$0xff]
      %v452 = vld [vmem:[%s449 + $0x10] sm:$0x1f]
      %v453 = vmul.f32 %v450, %v309
      %v454 = vmul.f32 %v451, %v309
      %v455 = vmul.f32 %v452, %v309
      %v456 = vadd.f32 %v453, %v316
      %v457 = vadd.f32 %v454, %v316
      %v458 = vadd.f32 %v455, %v316
      %vm459 = vcmp.ge.f32.partialorder %v456, 0.0
      %vm460 = vcmp.ge.f32.partialorder %v457, 0.0
      %vm461 = vcmp.ge.f32.partialorder %v458, 0.0
      %v462 = vmul.f32 %v456, 0.01
      %v463 = vmul.f32 %v457, 0.01
      %v464 = vmul.f32 %v458, 0.01
      %v465 = vsel %vm459, %v456, %v462
      %v466 = vsel %vm460, %v457, %v463
      %v467 = vsel %vm461, %v458, %v464
      %v468 = vmax.f32 %v446, %v465
      %v469 = vmax.f32 %v447, %v466
      %v470 = vmax.f32 %v448, %v467
      %474 = vrot.lane.b32.xlu0 %v468, 64
      %v475 = vpop.permute.xlu0 %474
      %476 = vrot.lane.b32.xlu0 %v469, 64
      %v477 = vpop.permute.xlu0 %476
      %478 = vrot.lane.b32.xlu0 %v470, 64
      %v479 = vpop.permute.xlu0 %478
      %v483 = vmax.f32 %v468, %v475
      %v484 = vmax.f32 %v469, %v477
      %v485 = vmax.f32 %v470, %v479
      %s486 = scalar_lea.vmem %s267, 48
      %487 = vst.msk [vmem:[%s486] sm:$0xff] %vm292, %v483
      %488 = vst.msk [vmem:[%s486 + $0x8] sm:$0xff] %vm292, %v484
      %489 = vst.msk [vmem:[%s486 + $0x10] sm:$0x1f] %vm368, %v485
      %s490 = scalar_lea.vmem %s256, 144
      %v491 = vld [vmem:[%s490] sm:$0xff]
      %v492 = vld [vmem:[%s490 + $0x8] sm:$0xff]
      %v493 = vld [vmem:[%s490 + $0x10] sm:$0x1f]
      %v494 = vmul.f32 %v491, %v309
      %v495 = vmul.f32 %v492, %v309
      %v496 = vmul.f32 %v493, %v309
      %v497 = vadd.f32 %v494, %v316
      %v498 = vadd.f32 %v495, %v316
      %v499 = vadd.f32 %v496, %v316
      %vm500 = vcmp.ge.f32.partialorder %v497, 0.0
      %vm501 = vcmp.ge.f32.partialorder %v498, 0.0
      %vm502 = vcmp.ge.f32.partialorder %v499, 0.0
      %v503 = vmul.f32 %v497, 0.01
      %v504 = vmul.f32 %v498, 0.01
      %v505 = vmul.f32 %v499, 0.01
      %v506 = vsel %vm500, %v497, %v503
      %v507 = vsel %vm501, %v498, %v504
      %v508 = vsel %vm502, %v499, %v505
      %s509 = scalar_lea.vmem %s256, 168
      %v510 = vld [vmem:[%s509] sm:$0xff]
      %v511 = vld [vmem:[%s509 + $0x8] sm:$0xff]
      %v512 = vld [vmem:[%s509 + $0x10] sm:$0x1f]
      %v513 = vmul.f32 %v510, %v309
      %v514 = vmul.f32 %v511, %v309
      %v515 = vmul.f32 %v512, %v309
      %v516 = vadd.f32 %v513, %v316
      %v517 = vadd.f32 %v514, %v316
      %v518 = vadd.f32 %v515, %v316
      %vm519 = vcmp.ge.f32.partialorder %v516, 0.0
      %vm520 = vcmp.ge.f32.partialorder %v517, 0.0
      %vm521 = vcmp.ge.f32.partialorder %v518, 0.0
      %v522 = vmul.f32 %v516, 0.01
      %v523 = vmul.f32 %v517, 0.01
      %v524 = vmul.f32 %v518, 0.01
      %v525 = vsel %vm519, %v516, %v522
      %v526 = vsel %vm520, %v517, %v523
      %v527 = vsel %vm521, %v518, %v524
      %v528 = vmax.f32 %v506, %v525
      %v529 = vmax.f32 %v507, %v526
      %v530 = vmax.f32 %v508, %v527
      %534 = vrot.lane.b32.xlu0 %v528, 64
      %v535 = vpop.permute.xlu0 %534
      %536 = vrot.lane.b32.xlu0 %v529, 64
      %v537 = vpop.permute.xlu0 %536
      %538 = vrot.lane.b32.xlu0 %v530, 64
      %v539 = vpop.permute.xlu0 %538
      %v543 = vmax.f32 %v528, %v535
      %v544 = vmax.f32 %v529, %v537
      %v545 = vmax.f32 %v530, %v539
      %s546 = scalar_lea.vmem %s267, 72
      %547 = vst.msk [vmem:[%s546] sm:$0xff] %vm292, %v543
      %548 = vst.msk [vmem:[%s546 + $0x8] sm:$0xff] %vm292, %v544
      %549 = vst.msk [vmem:[%s546 + $0x10] sm:$0x1f] %vm368, %v545
      %s550 = scalar_lea.vmem %s256, 192
      %v551 = vld [vmem:[%s550] sm:$0xff]
      %v552 = vld [vmem:[%s550 + $0x8] sm:$0xff]
      %v553 = vld [vmem:[%s550 + $0x10] sm:$0x1f]
      %v554 = vmul.f32 %v551, %v309
      %v555 = vmul.f32 %v552, %v309
      %v556 = vmul.f32 %v553, %v309
      %v557 = vadd.f32 %v554, %v316
      %v558 = vadd.f32 %v555, %v316
      %v559 = vadd.f32 %v556, %v316
      %vm560 = vcmp.ge.f32.partialorder %v557, 0.0
      %vm561 = vcmp.ge.f32.partialorder %v558, 0.0
      %vm562 = vcmp.ge.f32.partialorder %v559, 0.0
      %v563 = vmul.f32 %v557, 0.01
      %v564 = vmul.f32 %v558, 0.01
      %v565 = vmul.f32 %v559, 0.01
      %v566 = vsel %vm560, %v557, %v563
      %v567 = vsel %vm561, %v558, %v564
      %v568 = vsel %vm562, %v559, %v565
      %s569 = scalar_lea.vmem %s256, 216
      %v570 = vld [vmem:[%s569] sm:$0xff]
      %v571 = vld [vmem:[%s569 + $0x8] sm:$0xff]
      %v572 = vld [vmem:[%s569 + $0x10] sm:$0x1f]
      %v573 = vmul.f32 %v570, %v309
      %v574 = vmul.f32 %v571, %v309
      %v575 = vmul.f32 %v572, %v309
      %v576 = vadd.f32 %v573, %v316
      %v577 = vadd.f32 %v574, %v316
      %v578 = vadd.f32 %v575, %v316
      %vm579 = vcmp.ge.f32.partialorder %v576, 0.0
      %vm580 = vcmp.ge.f32.partialorder %v577, 0.0
      %vm581 = vcmp.ge.f32.partialorder %v578, 0.0
      %v582 = vmul.f32 %v576, 0.01
      %v583 = vmul.f32 %v577, 0.01
      %v584 = vmul.f32 %v578, 0.01
      %v585 = vsel %vm579, %v576, %v582
      %v586 = vsel %vm580, %v577, %v583
      %v587 = vsel %vm581, %v578, %v584
      %v588 = vmax.f32 %v566, %v585
      %v589 = vmax.f32 %v567, %v586
      %v590 = vmax.f32 %v568, %v587
      %594 = vrot.lane.b32.xlu0 %v588, 64
      %v595 = vpop.permute.xlu0 %594
      %596 = vrot.lane.b32.xlu0 %v589, 64
      %v597 = vpop.permute.xlu0 %596
      %598 = vrot.lane.b32.xlu0 %v590, 64
      %v599 = vpop.permute.xlu0 %598
      %v603 = vmax.f32 %v588, %v595
      %v604 = vmax.f32 %v589, %v597
      %v605 = vmax.f32 %v590, %v599
      %s606 = scalar_lea.vmem %s267, 96
      %607 = vst.msk [vmem:[%s606] sm:$0xff] %vm292, %v603
      %608 = vst.msk [vmem:[%s606 + $0x8] sm:$0xff] %vm292, %v604
      %609 = vst.msk [vmem:[%s606 + $0x10] sm:$0x1f] %vm368, %v605
      %s610 = scalar_lea.vmem %s256, 240
      %v611 = vld [vmem:[%s610] sm:$0xff]
      %v612 = vld [vmem:[%s610 + $0x8] sm:$0xff]
      %v613 = vld [vmem:[%s610 + $0x10] sm:$0x1f]
      %v614 = vmul.f32 %v611, %v309
      %v615 = vmul.f32 %v612, %v309
      %v616 = vmul.f32 %v613, %v309
      %v617 = vadd.f32 %v614, %v316
      %v618 = vadd.f32 %v615, %v316
      %v619 = vadd.f32 %v616, %v316
      %vm620 = vcmp.ge.f32.partialorder %v617, 0.0
      %vm621 = vcmp.ge.f32.partialorder %v618, 0.0
      %vm622 = vcmp.ge.f32.partialorder %v619, 0.0
      %v623 = vmul.f32 %v617, 0.01
      %v624 = vmul.f32 %v618, 0.01
      %v625 = vmul.f32 %v619, 0.01
      %v626 = vsel %vm620, %v617, %v623
      %v627 = vsel %vm621, %v618, %v624
      %v628 = vsel %vm622, %v619, %v625
      %s629 = scalar_lea.vmem %s256, 264
      %v630 = vld [vmem:[%s629] sm:$0xff]
      %v631 = vld [vmem:[%s629 + $0x8] sm:$0xff]
      %v632 = vld [vmem:[%s629 + $0x10] sm:$0x1f]
      %v633 = vmul.f32 %v630, %v309
      %v634 = vmul.f32 %v631, %v309
      %v635 = vmul.f32 %v632, %v309
      %v636 = vadd.f32 %v633, %v316
      %v637 = vadd.f32 %v634, %v316
      %v638 = vadd.f32 %v635, %v316
      %vm639 = vcmp.ge.f32.partialorder %v636, 0.0
      %vm640 = vcmp.ge.f32.partialorder %v637, 0.0
      %vm641 = vcmp.ge.f32.partialorder %v638, 0.0
      %v642 = vmul.f32 %v636, 0.01
      %v643 = vmul.f32 %v637, 0.01
      %v644 = vmul.f32 %v638, 0.01
      %v645 = vsel %vm639, %v636, %v642
      %v646 = vsel %vm640, %v637, %v643
      %v647 = vsel %vm641, %v638, %v644
      %v648 = vmax.f32 %v626, %v645
      %v649 = vmax.f32 %v627, %v646
      %v650 = vmax.f32 %v628, %v647
      %654 = vrot.lane.b32.xlu0 %v648, 64
      %v655 = vpop.permute.xlu0 %654
      %656 = vrot.lane.b32.xlu0 %v649, 64
      %v657 = vpop.permute.xlu0 %656
      %658 = vrot.lane.b32.xlu0 %v650, 64
      %v659 = vpop.permute.xlu0 %658
      %v663 = vmax.f32 %v648, %v655
      %v664 = vmax.f32 %v649, %v657
      %v665 = vmax.f32 %v650, %v659
      %s666 = scalar_lea.vmem %s267, 120
      %667 = vst.msk [vmem:[%s666] sm:$0xff] %vm292, %v663
      %668 = vst.msk [vmem:[%s666 + $0x8] sm:$0xff] %vm292, %v664
      %669 = vst.msk [vmem:[%s666 + $0x10] sm:$0x1f] %vm368, %v665
      %s670 = scalar_lea.vmem %s256, 288
      %v671 = vld [vmem:[%s670] sm:$0xff]
      %v672 = vld [vmem:[%s670 + $0x8] sm:$0xff]
      %v673 = vld [vmem:[%s670 + $0x10] sm:$0x1f]
      %v674 = vmul.f32 %v671, %v309
      %v675 = vmul.f32 %v672, %v309
      %v676 = vmul.f32 %v673, %v309
      %v677 = vadd.f32 %v674, %v316
      %v678 = vadd.f32 %v675, %v316
      %v679 = vadd.f32 %v676, %v316
      %vm680 = vcmp.ge.f32.partialorder %v677, 0.0
      %vm681 = vcmp.ge.f32.partialorder %v678, 0.0
      %vm682 = vcmp.ge.f32.partialorder %v679, 0.0
      %v683 = vmul.f32 %v677, 0.01
      %v684 = vmul.f32 %v678, 0.01
      %v685 = vmul.f32 %v679, 0.01
      %v686 = vsel %vm680, %v677, %v683
      %v687 = vsel %vm681, %v678, %v684
      %v688 = vsel %vm682, %v679, %v685
      %s689 = scalar_lea.vmem %s256, 312
      %v690 = vld [vmem:[%s689] sm:$0xff]
      %v691 = vld [vmem:[%s689 + $0x8] sm:$0xff]
      %v692 = vld [vmem:[%s689 + $0x10] sm:$0x1f]
      %v693 = vmul.f32 %v690, %v309
      %v694 = vmul.f32 %v691, %v309
      %v695 = vmul.f32 %v692, %v309
      %v696 = vadd.f32 %v693, %v316
      %v697 = vadd.f32 %v694, %v316
      %v698 = vadd.f32 %v695, %v316
      %vm699 = vcmp.ge.f32.partialorder %v696, 0.0
      %vm700 = vcmp.ge.f32.partialorder %v697, 0.0
      %vm701 = vcmp.ge.f32.partialorder %v698, 0.0
      %v702 = vmul.f32 %v696, 0.01
      %v703 = vmul.f32 %v697, 0.01
      %v704 = vmul.f32 %v698, 0.01
      %v705 = vsel %vm699, %v696, %v702
      %v706 = vsel %vm700, %v697, %v703
      %v707 = vsel %vm701, %v698, %v704
      %v708 = vmax.f32 %v686, %v705
      %v709 = vmax.f32 %v687, %v706
      %v710 = vmax.f32 %v688, %v707
      %714 = vrot.lane.b32.xlu0 %v708, 64
      %v715 = vpop.permute.xlu0 %714
      %716 = vrot.lane.b32.xlu0 %v709, 64
      %v717 = vpop.permute.xlu0 %716
      %718 = vrot.lane.b32.xlu0 %v710, 64
      %v719 = vpop.permute.xlu0 %718
      %v723 = vmax.f32 %v708, %v715
      %v724 = vmax.f32 %v709, %v717
      %v725 = vmax.f32 %v710, %v719
      %s726 = scalar_lea.vmem %s267, 144
      %727 = vst.msk [vmem:[%s726] sm:$0xff] %vm292, %v723
      %728 = vst.msk [vmem:[%s726 + $0x8] sm:$0xff] %vm292, %v724
      %729 = vst.msk [vmem:[%s726 + $0x10] sm:$0x1f] %vm368, %v725
      %s730 = smul.u32 7, %s21
      %p731 = scmp.lt.s32.totalorder %s20, 1
      %s732 = scalar_select %p731, %s20, 1
      %p733 = scmp.lt.s32.totalorder %s730, 20
      %s734 = scalar_select %p733, %s730, 20
      %s735 = smul.addr %s734, 3
      %s736 = smul.addr %s732, 63
      %s737 = sadd.s32 %s735, %s736
      %s738 = smul.addr %s737, 8
      %s739 = scalar_lea.vmem %s5, %s738
      // Predicated region
      $region41: #{cnn_norm_forward.8} parent=39 // pred_check
        %p740 = pneg %p160
      $region42: #{cnn_norm_forward.8} parent=39 // pred_check_branch
        %742 = sbr.rel (%p740) target = $region44
      $region43: #{cnn_norm_forward.8} parent=39 // pred_region
        %s743 = smul.u32 7, %s21
      $region44: #{cnn_norm_forward.8} parent=39 // pred_fallthru
        _
    $region40: #{cnn_norm_forward.8} parent=5 // pred_fallthru
      _
    %p744 = scmp.le.s32.totalorder 2, %s11
    // Predicated region
    $region45: #{cnn_norm_forward.8} parent=5 // pred_check
      %p745 = pneg %p744
    $region46: #{cnn_norm_forward.8} parent=5 // pred_check_branch
      %747 = sbr.rel (%p745) target = $region48
    $region47: #{cnn_norm_forward.8} parent=5 // pred_region
      %s748 = ssub.s32 %s11, 2
      // Predicated region
      $region49: #{cnn_norm_forward.8} parent=47 // pred_check
        %p749 = pneg %p166
      $region50: #{cnn_norm_forward.8} parent=47 // pred_check_branch
        %751 = sbr.rel (%p749) target = $region52
      $region51: #{cnn_norm_forward.8} parent=47 // pred_region
        %s752 = smul.u32 7, %s23
        %p753 = scmp.lt.s32.totalorder %s22, 1
        %s754 = scalar_select %p753, %s22, 1
        %p755 = scmp.lt.s32.totalorder %s752, 20
        %s756 = scalar_select %p755, %s752, 20
        %s757 = smul.addr %s756, 3
        %s758 = smul.addr %s754, 63
        %s759 = sadd.s32 %s757, %s758
        %s760 = smul.addr %s759, 8
        %s761 = scalar_lea.vmem %s5, %s760
      $region52: #{cnn_norm_forward.8} parent=47 // pred_fallthru
        _
    $region48: #{cnn_norm_forward.8} parent=5 // pred_fallthru
      _
  $region6: #{cnn_norm_forward.8} parent=0 // loop_footer
    %s15 = sadd.s32 1, %s11
  $region7: #{cnn_norm_forward.8} parent=0 // loop_footer_branch
    %10 = sbr.rel target = $region3
  $region8: #{cnn_norm_forward.8} parent=0 // loop_exit
    _

// kernel: cnn_norm_forward.9
$region0: #{cnn_norm_forward.9}
  #allocation0 [shape = 'u32[]', space=smem, size = 0x4, offset = 0x4, fixed_abs, tag = 'smem constant byte address 0x4 - core index']
  #allocation1 [shape = 'u32[144,128]{1,0:T(1,128)}', space=vmem, size = 0x12000, scoped, tag = 'internal scratch']
  %s0 = inlined_call_operand.vmem [shape: f32[72,1600], index: 0, kind: input, shape index: {}]
  %s1 = inlined_call_operand.vmem [shape: bf16[1600,128], index: 1, kind: input, shape index: {}]
  %s2 = inlined_call_operand.vmem [shape: f32[1,128], index: 2, kind: input, shape index: {}]
  %s3 = inlined_call_operand.vmem [shape: f32[72,128], index: 3, kind: output, shape index: {0}]
  %s4 = inlined_call_operand.vmem [shape: f32[1,1,128], index: 4, kind: output, shape index: {1}]
  %s5 = inlined_call_operand.vmem [shape: f32[1,1,128], index: 5, kind: output, shape index: {2}]
  %6 = xla_tuple %s3, %s4, %s5
  %s7 = sld [smem:[#allocation0]]
  $region38: #{cnn_norm_forward.9} parent=0
    _
  %s9 = ssub.s32 1, %s7
  %s10 = scalar_select 0, %s9, %s7
  // Predicated region
  $region2: #{cnn_norm_forward.9} parent=0 // pred_check
    _
  $region3: #{cnn_norm_forward.9} parent=0 // pred_check_branch
    %12 = sbr.rel (0) target = $region5
  $region4: #{cnn_norm_forward.9} parent=0 // pred_region
    _
  $region5: #{cnn_norm_forward.9} parent=0 // pred_fallthru
    _
  // Predicated region
  $region6: #{cnn_norm_forward.9} parent=0 // pred_check
    _
  $region7: #{cnn_norm_forward.9} parent=0 // pred_check_branch
    %14 = sbr.rel (0) target = $region9
  $region8: #{cnn_norm_forward.9} parent=0 // pred_region
    _
  $region9: #{cnn_norm_forward.9} parent=0 // pred_fallthru
    _
  // Predicated region
  $region10: #{cnn_norm_forward.9} parent=0 // pred_check
    _
  $region11: #{cnn_norm_forward.9} parent=0 // pred_check_branch
    %16 = sbr.rel (0) target = $region13
  $region12: #{cnn_norm_forward.9} parent=0 // pred_region
    _
  $region13: #{cnn_norm_forward.9} parent=0 // pred_fallthru
    _
  %v18 = vld [vmem:[%s0] sm:$0xff]
  %v19 = vld [vmem:[%s0 + $0x8] sm:$0xff]
  %v20 = vld [vmem:[%s0 + $0x10] sm:$0xff]
  %v21 = vld [vmem:[%s0 + $0x18] sm:$0xff]
  %v22 = vld [vmem:[%s0 + $0x20] sm:$0xff]
  %v23 = vld [vmem:[%s0 + $0x28] sm:$0xff]
  %v24 = vld [vmem:[%s0 + $0x30] sm:$0xff]
  %v25 = vld [vmem:[%s0 + $0x38] sm:$0xff]
  %v26 = vld [vmem:[%s0 + $0x40] sm:$0xff]
  %v27 = vld [vmem:[%s0 + $0x48] sm:$0xff]
  %v28 = vld [vmem:[%s0 + $0x50] sm:$0xff]
  %v29 = vld [vmem:[%s0 + $0x58] sm:$0xff]
  %v30 = vld [vmem:[%s0 + $0x60] sm:$0xff]
  %v31 = vld [vmem:[%s0 + $0x68] sm:$0xff]
  %v32 = vld [vmem:[%s0 + $0x70] sm:$0xff]
  %v33 = vld [vmem:[%s0 + $0x78] sm:$0xff]
  %v34 = vld [vmem:[%s0 + $0x80] sm:$0xff]
  %v35 = vld [vmem:[%s0 + $0x88] sm:$0xff]
  %v36 = vld [vmem:[%s0 + $0x90] sm:$0xff]
  %v37 = vld [vmem:[%s0 + $0x98] sm:$0xff]
  %v38 = vld [vmem:[%s0 + $0xa0] sm:$0xff]
  %v39 = vld [vmem:[%s0 + $0xa8] sm:$0xff]
  %v40 = vld [vmem:[%s0 + $0xb0] sm:$0xff]
  %v41 = vld [vmem:[%s0 + $0xb8] sm:$0xff]
  %v42 = vld [vmem:[%s0 + $0xc0] sm:$0xff]
  %v43 = vld [vmem:[%s0 + $0xc8] sm:$0xff]
  %v44 = vld [vmem:[%s0 + $0xd0] sm:$0xff]
  %v45 = vld [vmem:[%s0 + $0xd8] sm:$0xff]
  %v46 = vld [vmem:[%s0 + $0xe0] sm:$0xff]
  %v47 = vld [vmem:[%s0 + $0xe8] sm:$0xff]
  %v48 = vld [vmem:[%s0 + $0xf0] sm:$0xff]
  %v49 = vld [vmem:[%s0 + $0xf8] sm:$0xff]
  %v50 = vld [vmem:[%s0 + $0x100] sm:$0xff]
  %v51 = vld [vmem:[%s0 + $0x108] sm:$0xff]
  %v52 = vld [vmem:[%s0 + $0x110] sm:$0xff]
  %v53 = vld [vmem:[%s0 + $0x118] sm:$0xff]
  %v54 = vld [vmem:[%s0 + $0x120] sm:$0xff]
  %v55 = vld [vmem:[%s0 + $0x128] sm:$0xff]
  %v56 = vld [vmem:[%s0 + $0x130] sm:$0xff]
  %v57 = vld [vmem:[%s0 + $0x138] sm:$0xff]
  %v58 = vld [vmem:[%s0 + $0x140] sm:$0xff]
  %v59 = vld [vmem:[%s0 + $0x148] sm:$0xff]
  %v60 = vld [vmem:[%s0 + $0x150] sm:$0xff]
  %v61 = vld [vmem:[%s0 + $0x158] sm:$0xff]
  %v62 = vld [vmem:[%s0 + $0x160] sm:$0xff]
  %v63 = vld [vmem:[%s0 + $0x168] sm:$0xff]
  %v64 = vld [vmem:[%s0 + $0x170] sm:$0xff]
  %v65 = vld [vmem:[%s0 + $0x178] sm:$0xff]
  %v66 = vld [vmem:[%s0 + $0x180] sm:$0xff]
  %v67 = vld [vmem:[%s0 + $0x188] sm:$0xff]
  %v68 = vld [vmem:[%s0 + $0x190] sm:$0xff]
  %v69 = vld [vmem:[%s0 + $0x198] sm:$0xff]
  %v70 = vld [vmem:[%s0 + $0x1a0] sm:$0xff]
  %v71 = vld [vmem:[%s0 + $0x1a8] sm:$0xff]
  %v72 = vld [vmem:[%s0 + $0x1b0] sm:$0xff]
  %v73 = vld [vmem:[%s0 + $0x1b8] sm:$0xff]
  %v74 = vld [vmem:[%s0 + $0x1c0] sm:$0xff]
  %v75 = vld [vmem:[%s0 + $0x1c8] sm:$0xff]
  %v76 = vld [vmem:[%s0 + $0x1d0] sm:$0xff]
  %v77 = vld [vmem:[%s0 + $0x1d8] sm:$0xff]
  %v78 = vld [vmem:[%s0 + $0x1e0] sm:$0xff]
  %v79 = vld [vmem:[%s0 + $0x1e8] sm:$0xff]
  %v80 = vld [vmem:[%s0 + $0x1f0] sm:$0xff]
  %v81 = vld [vmem:[%s0 + $0x1f8] sm:$0xff]
  %v82 = vld [vmem:[%s0 + $0x200] sm:$0xff]
  %v83 = vld [vmem:[%s0 + $0x208] sm:$0xff]
  %v84 = vld [vmem:[%s0 + $0x210] sm:$0xff]
  %v85 = vld [vmem:[%s0 + $0x218] sm:$0xff]
  %v86 = vld [vmem:[%s0 + $0x220] sm:$0xff]
  %v87 = vld [vmem:[%s0 + $0x228] sm:$0xff]
  %v88 = vld [vmem:[%s0 + $0x230] sm:$0xff]
  %v89 = vld [vmem:[%s0 + $0x238] sm:$0xff]
  %v90 = vld [vmem:[%s0 + $0x240] sm:$0xff]
  %v91 = vld [vmem:[%s0 + $0x248] sm:$0xff]
  %v92 = vld [vmem:[%s0 + $0x250] sm:$0xff]
  %v93 = vld [vmem:[%s0 + $0x258] sm:$0xff]
  %v94 = vld [vmem:[%s0 + $0x260] sm:$0xff]
  %v95 = vld [vmem:[%s0 + $0x268] sm:$0xff]
  %v96 = vld [vmem:[%s0 + $0x270] sm:$0xff]
  %v97 = vld [vmem:[%s0 + $0x278] sm:$0xff]
  %v98 = vld [vmem:[%s0 + $0x280] sm:$0xff]
  %v99 = vld [vmem:[%s0 + $0x288] sm:$0xff]
  %v100 = vld [vmem:[%s0 + $0x290] sm:$0xff]
  %v101 = vld [vmem:[%s0 + $0x298] sm:$0xff]
  %v102 = vld [vmem:[%s0 + $0x2a0] sm:$0xff]
  %v103 = vld [vmem:[%s0 + $0x2a8] sm:$0xff]
  %v104 = vld [vmem:[%s0 + $0x2b0] sm:$0xff]
  %v105 = vld [vmem:[%s0 + $0x2b8] sm:$0xff]
  %v106 = vld [vmem:[%s0 + $0x2c0] sm:$0xff]
  %v107 = vld [vmem:[%s0 + $0x2c8] sm:$0xff]
  %v108 = vld [vmem:[%s0 + $0x2d0] sm:$0xff]
  %v109 = vld [vmem:[%s0 + $0x2d8] sm:$0xff]
  %v110 = vld [vmem:[%s0 + $0x2e0] sm:$0xff]
  %v111 = vld [vmem:[%s0 + $0x2e8] sm:$0xff]
  %v112 = vld [vmem:[%s0 + $0x2f0] sm:$0xff]
  %v113 = vld [vmem:[%s0 + $0x2f8] sm:$0xff]
  %v114 = vld [vmem:[%s0 + $0x300] sm:$0xff]
  %v115 = vld [vmem:[%s0 + $0x308] sm:$0xff]
  %v116 = vld [vmem:[%s0 + $0x310] sm:$0xff]
  %v117 = vld [vmem:[%s0 + $0x318] sm:$0xff]
  %v118 = vld [vmem:[%s0 + $0x320] sm:$0xff]
  %v119 = vld [vmem:[%s0 + $0x328] sm:$0xff]
  %v120 = vld [vmem:[%s0 + $0x330] sm:$0xff]
  %v121 = vld [vmem:[%s0 + $0x338] sm:$0xff]
  %v122 = vld [vmem:[%s0 + $0x340] sm:$0xff]
  %v123 = vld [vmem:[%s0 + $0x348] sm:$0xff]
  %v124 = vld [vmem:[%s0 + $0x350] sm:$0xff]
  %v125 = vld [vmem:[%s0 + $0x358] sm:$0xff]
  %v126 = vld [vmem:[%s0 + $0x360] sm:$0xff]
  %v127 = vld [vmem:[%s0 + $0x368] sm:$0xff]
  %v128 = vld [vmem:[%s0 + $0x370] sm:$0xff]
  %v129 = vld [vmem:[%s0 + $0x378] sm:$0xff]
  %v130 = vld [vmem:[%s0 + $0x380] sm:$0xff]
  %v131 = vld [vmem:[%s0 + $0x388] sm:$0xff]
  %v132 = vld [vmem:[%s0 + $0x390] sm:$0xff]
  %v133 = vld [vmem:[%s0 + $0x398] sm:$0xff]
  %v134 = vld [vmem:[%s0 + $0x3a0] sm:$0xff]
  %v135 = vpack.c.bf16 %v31, %v18
  %v136 = vpack.c.bf16 %v32, %v19
  %v137 = vpack.c.bf16 %v33, %v20
  %v138 = vpack.c.bf16 %v34, %v21
  %v139 = vpack.c.bf16 %v35, %v22
  %v140 = vpack.c.bf16 %v36, %v23
  %v141 = vpack.c.bf16 %v37, %v24
  %v142 = vpack.c.bf16 %v38, %v25
  %v143 = vpack.c.bf16 %v39, %v26
  %v144 = vpack.c.bf16 %v40, %v27
  %v145 = vpack.c.bf16 %v41, %v28
  %v146 = vpack.c.bf16 %v42, %v29
  %v147 = vpack.c.bf16 %v43, %v30
  %v148 = vpack.c.bf16 %v57, %v44
  %v149 = vpack.c.bf16 %v58, %v45
  %v150 = vpack.c.bf16 %v59, %v46
  %v151 = vpack.c.bf16 %v60, %v47
  %v152 = vpack.c.bf16 %v61, %v48
  %v153 = vpack.c.bf16 %v62, %v49
  %v154 = vpack.c.bf16 %v63, %v50
  %v155 = vpack.c.bf16 %v64, %v51
  %v156 = vpack.c.bf16 %v65, %v52
  %v157 = vpack.c.bf16 %v66, %v53
  %v158 = vpack.c.bf16 %v67, %v54
  %v159 = vpack.c.bf16 %v68, %v55
  %v160 = vpack.c.bf16 %v69, %v56
  %v161 = vpack.c.bf16 %v83, %v70
  %v162 = vpack.c.bf16 %v84, %v71
  %v163 = vpack.c.bf16 %v85, %v72
  %v164 = vpack.c.bf16 %v86, %v73
  %v165 = vpack.c.bf16 %v87, %v74
  %v166 = vpack.c.bf16 %v88, %v75
  %v167 = vpack.c.bf16 %v89, %v76
  %v168 = vpack.c.bf16 %v90, %v77
  %v169 = vpack.c.bf16 %v91, %v78
  %v170 = vpack.c.bf16 %v92, %v79
  %v171 = vpack.c.bf16 %v93, %v80
  %v172 = vpack.c.bf16 %v94, %v81
  %v173 = vpack.c.bf16 %v95, %v82
  %v174 = vpack.c.bf16 %v109, %v96
  %v175 = vpack.c.bf16 %v110, %v97
  %v176 = vpack.c.bf16 %v111, %v98
  %v177 = vpack.c.bf16 %v112, %v99
  %v178 = vpack.c.bf16 %v113, %v100
  %v179 = vpack.c.bf16 %v114, %v101
  %v180 = vpack.c.bf16 %v115, %v102
  %v181 = vpack.c.bf16 %v116, %v103
  %v182 = vpack.c.bf16 %v117, %v104
  %v183 = vpack.c.bf16 %v118, %v105
  %v184 = vpack.c.bf16 %v119, %v106
  %v185 = vpack.c.bf16 %v120, %v107
  %v186 = vpack.c.bf16 %v121, %v108
  %v187 = vpack.c.bf16 %v122, %v122
  %v188 = vpack.c.bf16 %v123, %v123
  %v189 = vpack.c.bf16 %v124, %v124
  %v190 = vpack.c.bf16 %v125, %v125
  %v191 = vpack.c.bf16 %v126, %v126
  %v192 = vpack.c.bf16 %v127, %v127
  %v193 = vpack.c.bf16 %v128, %v128
  %v194 = vpack.c.bf16 %v129, %v129
  %v195 = vpack.c.bf16 %v130, %v130
  %v196 = vpack.c.bf16 %v131, %v131
  %v197 = vpack.c.bf16 %v132, %v132
  %v198 = vpack.c.bf16 %v133, %v133
  %v199 = vpack.c.bf16 %v134, %v134
  %v200 = vld [vmem:[%s1] sm:$0xf]
  %v201 = vld [vmem:[%s1 + $0x4] sm:$0xf]
  %v202 = vld [vmem:[%s1 + $0x8] sm:$0xf]
  %v203 = vld [vmem:[%s1 + $0xc] sm:$0xf]
  %v204 = vld [vmem:[%s1 + $0x10] sm:$0xf]
  %v205 = vld [vmem:[%s1 + $0x14] sm:$0xf]
  %v206 = vld [vmem:[%s1 + $0x18] sm:$0xf]
  %v207 = vld [vmem:[%s1 + $0x1c] sm:$0xf]
  %v208 = vld [vmem:[%s1 + $0x20] sm:$0xf]
  %v209 = vld [vmem:[%s1 + $0x24] sm:$0xf]
  %v210 = vld [vmem:[%s1 + $0x28] sm:$0xf]
  %v211 = vld [vmem:[%s1 + $0x2c] sm:$0xf]
  %v212 = vld [vmem:[%s1 + $0x30] sm:$0xf]
  %v213 = vld [vmem:[%s1 + $0x34] sm:$0xf]
  %v214 = vld [vmem:[%s1 + $0x38] sm:$0xf]
  %v215 = vld [vmem:[%s1 + $0x3c] sm:$0xf]
  %v216 = vld [vmem:[%s1 + $0x40] sm:$0xf]
  %v217 = vld [vmem:[%s1 + $0x44] sm:$0xf]
  %v218 = vld [vmem:[%s1 + $0x48] sm:$0xf]
  %v219 = vld [vmem:[%s1 + $0x4c] sm:$0xf]
  %v220 = vld [vmem:[%s1 + $0x50] sm:$0xf]
  %v221 = vld [vmem:[%s1 + $0x54] sm:$0xf]
  %v222 = vld [vmem:[%s1 + $0x58] sm:$0xf]
  %v223 = vld [vmem:[%s1 + $0x5c] sm:$0xf]
  %v224 = vld [vmem:[%s1 + $0x60] sm:$0xf]
  %v225 = vld [vmem:[%s1 + $0x64] sm:$0xf]
  %v226 = vld [vmem:[%s1 + $0x68] sm:$0xf]
  %v227 = vld [vmem:[%s1 + $0x6c] sm:$0xf]
  %v228 = vld [vmem:[%s1 + $0x70] sm:$0xf]
  %v229 = vld [vmem:[%s1 + $0x74] sm:$0xf]
  %v230 = vld [vmem:[%s1 + $0x78] sm:$0xf]
  %v231 = vld [vmem:[%s1 + $0x7c] sm:$0xf]
  %v232 = vld [vmem:[%s1 + $0x80] sm:$0xf]
  %v233 = vld [vmem:[%s1 + $0x84] sm:$0xf]
  %v234 = vld [vmem:[%s1 + $0x88] sm:$0xf]
  %v235 = vld [vmem:[%s1 + $0x8c] sm:$0xf]
  %v236 = vld [vmem:[%s1 + $0x90] sm:$0xf]
  %v237 = vld [vmem:[%s1 + $0x94] sm:$0xf]
  %v238 = vld [vmem:[%s1 + $0x98] sm:$0xf]
  %v239 = vld [vmem:[%s1 + $0x9c] sm:$0xf]
  %v240 = vld [vmem:[%s1 + $0xa0] sm:$0xf]
  %v241 = vld [vmem:[%s1 + $0xa4] sm:$0xf]
  %v242 = vld [vmem:[%s1 + $0xa8] sm:$0xf]
  %v243 = vld [vmem:[%s1 + $0xac] sm:$0xf]
  %v244 = vld [vmem:[%s1 + $0xb0] sm:$0xf]
  %v245 = vld [vmem:[%s1 + $0xb4] sm:$0xf]
  %v246 = vld [vmem:[%s1 + $0xb8] sm:$0xf]
  %v247 = vld [vmem:[%s1 + $0xbc] sm:$0xf]
  %v248 = vld [vmem:[%s1 + $0xc0] sm:$0xf]
  %v249 = vld [vmem:[%s1 + $0xc4] sm:$0xf]
  %v250 = vld [vmem:[%s1 + $0xc8] sm:$0xf]
  %v251 = vld [vmem:[%s1 + $0xcc] sm:$0xf]
  %v252 = vld [vmem:[%s1 + $0xd0] sm:$0xf]
  %v253 = vld [vmem:[%s1 + $0xd4] sm:$0xf]
  %v254 = vld [vmem:[%s1 + $0xd8] sm:$0xf]
  %v255 = vld [vmem:[%s1 + $0xdc] sm:$0xf]
  %v256 = vld [vmem:[%s1 + $0xe0] sm:$0xf]
  %v257 = vld [vmem:[%s1 + $0xe4] sm:$0xf]
  %v258 = vld [vmem:[%s1 + $0xe8] sm:$0xf]
  %v259 = vld [vmem:[%s1 + $0xec] sm:$0xf]
  %v260 = vld [vmem:[%s1 + $0xf0] sm:$0xf]
  %v261 = vld [vmem:[%s1 + $0xf4] sm:$0xf]
  %v262 = vld [vmem:[%s1 + $0xf8] sm:$0xf]
  %v263 = vld [vmem:[%s1 + $0xfc] sm:$0xf]
  %v264 = vld [vmem:[%s1 + $0x100] sm:$0xf]
  %v265 = vld [vmem:[%s1 + $0x104] sm:$0xf]
  %v266 = vld [vmem:[%s1 + $0x108] sm:$0xf]
  %v267 = vld [vmem:[%s1 + $0x10c] sm:$0xf]
  %v268 = vld [vmem:[%s1 + $0x110] sm:$0xf]
  %v269 = vld [vmem:[%s1 + $0x114] sm:$0xf]
  %v270 = vld [vmem:[%s1 + $0x118] sm:$0xf]
  %v271 = vld [vmem:[%s1 + $0x11c] sm:$0xf]
  %v272 = vld [vmem:[%s1 + $0x120] sm:$0xf]
  %v273 = vld [vmem:[%s1 + $0x124] sm:$0xf]
  %v274 = vld [vmem:[%s1 + $0x128] sm:$0xf]
  %v275 = vld [vmem:[%s1 + $0x12c] sm:$0xf]
  %v276 = vld [vmem:[%s1 + $0x130] sm:$0xf]
  %v277 = vld [vmem:[%s1 + $0x134] sm:$0xf]
  %v278 = vld [vmem:[%s1 + $0x138] sm:$0xf]
  %v279 = vld [vmem:[%s1 + $0x13c] sm:$0xf]
  %v280 = vld [vmem:[%s1 + $0x140] sm:$0xf]
  %v281 = vld [vmem:[%s1 + $0x144] sm:$0xf]
  %v282 = vld [vmem:[%s1 + $0x148] sm:$0xf]
  %v283 = vld [vmem:[%s1 + $0x14c] sm:$0xf]
  %v284 = vld [vmem:[%s1 + $0x150] sm:$0xf]
  %v285 = vld [vmem:[%s1 + $0x154] sm:$0xf]
  %v286 = vld [vmem:[%s1 + $0x158] sm:$0xf]
  %v287 = vld [vmem:[%s1 + $0x15c] sm:$0xf]
  %v288 = vld [vmem:[%s1 + $0x160] sm:$0xf]
  %v289 = vld [vmem:[%s1 + $0x164] sm:$0xf]
  %v290 = vld [vmem:[%s1 + $0x168] sm:$0xf]
  %v291 = vld [vmem:[%s1 + $0x16c] sm:$0xf]
  %v292 = vld [vmem:[%s1 + $0x170] sm:$0xf]
  %v293 = vld [vmem:[%s1 + $0x174] sm:$0xf]
  %v294 = vld [vmem:[%s1 + $0x178] sm:$0xf]
  %v295 = vld [vmem:[%s1 + $0x17c] sm:$0xf]
  %v296 = vld [vmem:[%s1 + $0x180] sm:$0xf]
  %v297 = vld [vmem:[%s1 + $0x184] sm:$0xf]
  %v298 = vld [vmem:[%s1 + $0x188] sm:$0xf]
  %v299 = vld [vmem:[%s1 + $0x18c] sm:$0xf]
  %v300 = vld [vmem:[%s1 + $0x190] sm:$0xf]
  %v301 = vld [vmem:[%s1 + $0x194] sm:$0xf]
  %v302 = vld [vmem:[%s1 + $0x198] sm:$0xf]
  %v303 = vld [vmem:[%s1 + $0x19c] sm:$0xf]
  %v304 = vld [vmem:[%s1 + $0x1a0] sm:$0xf]
  %v305 = vld [vmem:[%s1 + $0x1a4] sm:$0xf]
  %v306 = vld [vmem:[%s1 + $0x1a8] sm:$0xf]
  %v307 = vld [vmem:[%s1 + $0x1ac] sm:$0xf]
  %v308 = vld [vmem:[%s1 + $0x1b0] sm:$0xf]
  %v309 = vld [vmem:[%s1 + $0x1b4] sm:$0xf]
  %v310 = vld [vmem:[%s1 + $0x1b8] sm:$0xf]
  %v311 = vld [vmem:[%s1 + $0x1bc] sm:$0xf]
  %v312 = vld [vmem:[%s1 + $0x1c0] sm:$0xf]
  %v313 = vld [vmem:[%s1 + $0x1c4] sm:$0xf]
  %v314 = vld [vmem:[%s1 + $0x1c8] sm:$0xf]
  %v315 = vld [vmem:[%s1 + $0x1cc] sm:$0xf]
  %v316 = vld [vmem:[%s1 + $0x1d0] sm:$0xf]
  %v317 = vld [vmem:[%s1 + $0x1d4] sm:$0xf]
  %v318 = vld [vmem:[%s1 + $0x1d8] sm:$0xf]
  %v319 = vld [vmem:[%s1 + $0x1dc] sm:$0xf]
  %v320 = vld [vmem:[%s1 + $0x1e0] sm:$0xf]
  %v321 = vld [vmem:[%s1 + $0x1e4] sm:$0xf]
  %v322 = vld [vmem:[%s1 + $0x1e8] sm:$0xf]
  %v323 = vld [vmem:[%s1 + $0x1ec] sm:$0xf]
  %v324 = vld [vmem:[%s1 + $0x1f0] sm:$0xf]
  %v325 = vld [vmem:[%s1 + $0x1f4] sm:$0xf]
  %v326 = vld [vmem:[%s1 + $0x1f8] sm:$0xf]
  %v327 = vld [vmem:[%s1 + $0x1fc] sm:$0xf]
  %v328 = vld [vmem:[%s1 + $0x200] sm:$0xf]
  %v329 = vld [vmem:[%s1 + $0x204] sm:$0xf]
  %v330 = vld [vmem:[%s1 + $0x208] sm:$0xf]
  %v331 = vld [vmem:[%s1 + $0x20c] sm:$0xf]
  %v332 = vld [vmem:[%s1 + $0x210] sm:$0xf]
  %v333 = vld [vmem:[%s1 + $0x214] sm:$0xf]
  %v334 = vld [vmem:[%s1 + $0x218] sm:$0xf]
  %v335 = vld [vmem:[%s1 + $0x21c] sm:$0xf]
  %v336 = vld [vmem:[%s1 + $0x220] sm:$0xf]
  %v337 = vld [vmem:[%s1 + $0x224] sm:$0xf]
  %v338 = vld [vmem:[%s1 + $0x228] sm:$0xf]
  %v339 = vld [vmem:[%s1 + $0x22c] sm:$0xf]
  %v340 = vld [vmem:[%s1 + $0x230] sm:$0xf]
  %v341 = vld [vmem:[%s1 + $0x234] sm:$0xf]
  %v342 = vld [vmem:[%s1 + $0x238] sm:$0xf]
  %v343 = vld [vmem:[%s1 + $0x23c] sm:$0xf]
  %v344 = vld [vmem:[%s1 + $0x240] sm:$0xf]
  %v345 = vld [vmem:[%s1 + $0x244] sm:$0xf]
  %v346 = vld [vmem:[%s1 + $0x248] sm:$0xf]
  %v347 = vld [vmem:[%s1 + $0x24c] sm:$0xf]
  %v348 = vld [vmem:[%s1 + $0x250] sm:$0xf]
  %v349 = vld [vmem:[%s1 + $0x254] sm:$0xf]
  %v350 = vld [vmem:[%s1 + $0x258] sm:$0xf]
  %v351 = vld [vmem:[%s1 + $0x25c] sm:$0xf]
  %v352 = vld [vmem:[%s1 + $0x260] sm:$0xf]
  %v353 = vld [vmem:[%s1 + $0x264] sm:$0xf]
  %v354 = vld [vmem:[%s1 + $0x268] sm:$0xf]
  %v355 = vld [vmem:[%s1 + $0x26c] sm:$0xf]
  %v356 = vld [vmem:[%s1 + $0x270] sm:$0xf]
  %v357 = vld [vmem:[%s1 + $0x274] sm:$0xf]
  %v358 = vld [vmem:[%s1 + $0x278] sm:$0xf]
  %v359 = vld [vmem:[%s1 + $0x27c] sm:$0xf]
  %v360 = vld [vmem:[%s1 + $0x280] sm:$0xf]
  %v361 = vld [vmem:[%s1 + $0x284] sm:$0xf]
  %v362 = vld [vmem:[%s1 + $0x288] sm:$0xf]
  %v363 = vld [vmem:[%s1 + $0x28c] sm:$0xf]
  %v364 = vld [vmem:[%s1 + $0x290] sm:$0xf]
  %v365 = vld [vmem:[%s1 + $0x294] sm:$0xf]
  %v366 = vld [vmem:[%s1 + $0x298] sm:$0xf]
  %v367 = vld [vmem:[%s1 + $0x29c] sm:$0xf]
  %v368 = vld [vmem:[%s1 + $0x2a0] sm:$0xf]
  %v369 = vld [vmem:[%s1 + $0x2a4] sm:$0xf]
  %v370 = vld [vmem:[%s1 + $0x2a8] sm:$0xf]
  %v371 = vld [vmem:[%s1 + $0x2ac] sm:$0xf]
  %v372 = vld [vmem:[%s1 + $0x2b0] sm:$0xf]
  %v373 = vld [vmem:[%s1 + $0x2b4] sm:$0xf]
  %v374 = vld [vmem:[%s1 + $0x2b8] sm:$0xf]
  %v375 = vld [vmem:[%s1 + $0x2bc] sm:$0xf]
  %v376 = vld [vmem:[%s1 + $0x2c0] sm:$0xf]
  %v377 = vld [vmem:[%s1 + $0x2c4] sm:$0xf]
  %v378 = vld [vmem:[%s1 + $0x2c8] sm:$0xf]
  %v379 = vld [vmem:[%s1 + $0x2cc] sm:$0xf]
  %v380 = vld [vmem:[%s1 + $0x2d0] sm:$0xf]
  %v381 = vld [vmem:[%s1 + $0x2d4] sm:$0xf]
  %v382 = vld [vmem:[%s1 + $0x2d8] sm:$0xf]
  %v383 = vld [vmem:[%s1 + $0x2dc] sm:$0xf]
  %v384 = vld [vmem:[%s1 + $0x2e0] sm:$0xf]
  %v385 = vld [vmem:[%s1 + $0x2e4] sm:$0xf]
  %v386 = vld [vmem:[%s1 + $0x2e8] sm:$0xf]
  %v387 = vld [vmem:[%s1 + $0x2ec] sm:$0xf]
  %v388 = vld [vmem:[%s1 + $0x2f0] sm:$0xf]
  %v389 = vld [vmem:[%s1 + $0x2f4] sm:$0xf]
  %v390 = vld [vmem:[%s1 + $0x2f8] sm:$0xf]
  %v391 = vld [vmem:[%s1 + $0x2fc] sm:$0xf]
  %v392 = vld [vmem:[%s1 + $0x300] sm:$0xf]
  %v393 = vld [vmem:[%s1 + $0x304] sm:$0xf]
  %v394 = vld [vmem:[%s1 + $0x308] sm:$0xf]
  %v395 = vld [vmem:[%s1 + $0x30c] sm:$0xf]
  %v396 = vld [vmem:[%s1 + $0x310] sm:$0xf]
  %v397 = vld [vmem:[%s1 + $0x314] sm:$0xf]
  %v398 = vld [vmem:[%s1 + $0x318] sm:$0xf]
  %v399 = vld [vmem:[%s1 + $0x31c] sm:$0xf]
  %v400 = vld [vmem:[%s2] sm:$0x1]
  %v402 = vlaneseq
  %v403 = vshrl.u32 %v402, 7
  %v404 = vsub.s32 0, %v403
  %v405 = vrot.slane %v400, %v404
  %v607 = vunpack.c.l.b16 %v200
  %v608 = vunpack.c.l.b16 %v201
  %v609 = vunpack.c.l.b16 %v202
  %v610 = vunpack.c.l.b16 %v203
  %v611 = vunpack.c.l.b16 %v204
  %v612 = vunpack.c.l.b16 %v205
  %v613 = vunpack.c.l.b16 %v206
  %v614 = vunpack.c.l.b16 %v207
  %v615 = vunpack.c.l.b16 %v208
  %v616 = vunpack.c.l.b16 %v209
  %v617 = vunpack.c.l.b16 %v210
  %v618 = vunpack.c.l.b16 %v211
  %v619 = vunpack.c.l.b16 %v212
  %v620 = vunpack.c.l.b16 %v213
  %v621 = vunpack.c.l.b16 %v214
  %v622 = vunpack.c.l.b16 %v215
  %v623 = vunpack.c.l.b16 %v216
  %v624 = vunpack.c.l.b16 %v217
  %v625 = vunpack.c.l.b16 %v218
  %v626 = vunpack.c.l.b16 %v219
  %v627 = vunpack.c.l.b16 %v220
  %v628 = vunpack.c.l.b16 %v221
  %v629 = vunpack.c.l.b16 %v222
  %v630 = vunpack.c.l.b16 %v223
  %v631 = vunpack.c.l.b16 %v224
  %v632 = vunpack.c.l.b16 %v225
  %v633 = vunpack.c.l.b16 %v226
  %v634 = vunpack.c.l.b16 %v227
  %v635 = vunpack.c.l.b16 %v228
  %v636 = vunpack.c.l.b16 %v229
  %v637 = vunpack.c.l.b16 %v230
  %v638 = vunpack.c.l.b16 %v231
  %v639 = vunpack.c.l.b16 %v232
  %v640 = vunpack.c.l.b16 %v233
  %v641 = vunpack.c.l.b16 %v234
  %v642 = vunpack.c.l.b16 %v235
  %v643 = vunpack.c.l.b16 %v236
  %v644 = vunpack.c.l.b16 %v237
  %v645 = vunpack.c.l.b16 %v238
  %v646 = vunpack.c.l.b16 %v239
  %v647 = vunpack.c.l.b16 %v240
  %v648 = vunpack.c.l.b16 %v241
  %v649 = vunpack.c.l.b16 %v242
  %v650 = vunpack.c.l.b16 %v243
  %v651 = vunpack.c.l.b16 %v244
  %v652 = vunpack.c.l.b16 %v245
  %v653 = vunpack.c.l.b16 %v246
  %v654 = vunpack.c.l.b16 %v247
  %v655 = vunpack.c.l.b16 %v248
  %v656 = vunpack.c.l.b16 %v249
  %v657 = vunpack.c.l.b16 %v250
  %v658 = vunpack.c.l.b16 %v251
  %v659 = vunpack.c.l.b16 %v252
  %v660 = vunpack.c.l.b16 %v253
  %v661 = vunpack.c.l.b16 %v254
  %v662 = vunpack.c.l.b16 %v255
  %v663 = vunpack.c.l.b16 %v256
  %v664 = vunpack.c.l.b16 %v257
  %v665 = vunpack.c.l.b16 %v258
  %v666 = vunpack.c.l.b16 %v259
  %v667 = vunpack.c.l.b16 %v260
  %v668 = vunpack.c.l.b16 %v261
  %v669 = vunpack.c.l.b16 %v262
  %v670 = vunpack.c.l.b16 %v263
  %v671 = vunpack.c.l.b16 %v264
  %v672 = vunpack.c.l.b16 %v265
  %v673 = vunpack.c.l.b16 %v266
  %v674 = vunpack.c.l.b16 %v267
  %v675 = vunpack.c.l.b16 %v268
  %v676 = vunpack.c.l.b16 %v269
  %v677 = vunpack.c.l.b16 %v270
  %v678 = vunpack.c.l.b16 %v271
  %v679 = vunpack.c.l.b16 %v272
  %v680 = vunpack.c.l.b16 %v273
  %v681 = vunpack.c.l.b16 %v274
  %v682 = vunpack.c.l.b16 %v275
  %v683 = vunpack.c.l.b16 %v276
  %v684 = vunpack.c.l.b16 %v277
  %v685 = vunpack.c.l.b16 %v278
  %v686 = vunpack.c.l.b16 %v279
  %v687 = vunpack.c.l.b16 %v280
  %v688 = vunpack.c.l.b16 %v281
  %v689 = vunpack.c.l.b16 %v282
  %v690 = vunpack.c.l.b16 %v283
  %v691 = vunpack.c.l.b16 %v284
  %v692 = vunpack.c.l.b16 %v285
  %v693 = vunpack.c.l.b16 %v286
  %v694 = vunpack.c.l.b16 %v287
  %v695 = vunpack.c.l.b16 %v288
  %v696 = vunpack.c.l.b16 %v289
  %v697 = vunpack.c.l.b16 %v290
  %v698 = vunpack.c.l.b16 %v291
  %v699 = vunpack.c.l.b16 %v292
  %v700 = vunpack.c.l.b16 %v293
  %v701 = vunpack.c.l.b16 %v294
  %v702 = vunpack.c.l.b16 %v295
  %v703 = vunpack.c.l.b16 %v296
  %v704 = vunpack.c.l.b16 %v297
  %v705 = vunpack.c.l.b16 %v298
  %v706 = vunpack.c.l.b16 %v299
  %v707 = vunpack.c.l.b16 %v300
  %v708 = vunpack.c.l.b16 %v301
  %v709 = vunpack.c.l.b16 %v302
  %v710 = vunpack.c.l.b16 %v303
  %v711 = vunpack.c.l.b16 %v304
  %v712 = vunpack.c.l.b16 %v305
  %v713 = vunpack.c.l.b16 %v306
  %v714 = vunpack.c.l.b16 %v307
  %v715 = vunpack.c.l.b16 %v308
  %v716 = vunpack.c.l.b16 %v309
  %v717 = vunpack.c.l.b16 %v310
  %v718 = vunpack.c.l.b16 %v311
  %v719 = vunpack.c.l.b16 %v312
  %v720 = vunpack.c.l.b16 %v313
  %v721 = vunpack.c.l.b16 %v314
  %v722 = vunpack.c.l.b16 %v315
  %v723 = vunpack.c.l.b16 %v316
  %v724 = vunpack.c.l.b16 %v317
  %v725 = vunpack.c.l.b16 %v318
  %v726 = vunpack.c.l.b16 %v319
  %v727 = vunpack.c.l.b16 %v320
  %v728 = vunpack.c.l.b16 %v321
  %v729 = vunpack.c.l.b16 %v322
  %v730 = vunpack.c.l.b16 %v323
  %v731 = vunpack.c.l.b16 %v324
  %v732 = vunpack.c.l.b16 %v325
  %v733 = vunpack.c.l.b16 %v326
  %v734 = vunpack.c.l.b16 %v327
  %v735 = vunpack.c.l.b16 %v328
  %v736 = vunpack.c.l.b16 %v329
  %v737 = vunpack.c.l.b16 %v330
  %v738 = vunpack.c.l.b16 %v331
  %v739 = vunpack.c.l.b16 %v332
  %v740 = vunpack.c.l.b16 %v333
  %v741 = vunpack.c.l.b16 %v334
  %v742 = vunpack.c.l.b16 %v335
  %v743 = vunpack.c.l.b16 %v336
  %v744 = vunpack.c.l.b16 %v337
  %v745 = vunpack.c.l.b16 %v338
  %v746 = vunpack.c.l.b16 %v339
  %v747 = vunpack.c.l.b16 %v340
  %v748 = vunpack.c.l.b16 %v341
  %v749 = vunpack.c.l.b16 %v342
  %v750 = vunpack.c.l.b16 %v343
  %v751 = vunpack.c.l.b16 %v344
  %v752 = vunpack.c.l.b16 %v345
  %v753 = vunpack.c.l.b16 %v346
  %v754 = vunpack.c.l.b16 %v347
  %v755 = vunpack.c.l.b16 %v348
  %v756 = vunpack.c.l.b16 %v349
  %v757 = vunpack.c.l.b16 %v350
  %v758 = vunpack.c.l.b16 %v351
  %v759 = vunpack.c.l.b16 %v352
  %v760 = vunpack.c.l.b16 %v353
  %v761 = vunpack.c.l.b16 %v354
  %v762 = vunpack.c.l.b16 %v355
  %v763 = vunpack.c.l.b16 %v356
  %v764 = vunpack.c.l.b16 %v357
  %v765 = vunpack.c.l.b16 %v358
  %v766 = vunpack.c.l.b16 %v359
  %v767 = vunpack.c.l.b16 %v360
  %v768 = vunpack.c.l.b16 %v361
  %v769 = vunpack.c.l.b16 %v362
  %v770 = vunpack.c.l.b16 %v363
  %v771 = vunpack.c.l.b16 %v364
  %v772 = vunpack.c.l.b16 %v365
  %v773 = vunpack.c.l.b16 %v366
  %v774 = vunpack.c.l.b16 %v367
  %v775 = vunpack.c.l.b16 %v368
  %v776 = vunpack.c.l.b16 %v369
  %v777 = vunpack.c.l.b16 %v370
  %v778 = vunpack.c.l.b16 %v371
  %v779 = vunpack.c.l.b16 %v372
  %v780 = vunpack.c.l.b16 %v373
  %v781 = vunpack.c.l.b16 %v374
  %v782 = vunpack.c.l.b16 %v375
  %v783 = vunpack.c.l.b16 %v376
  %v784 = vunpack.c.l.b16 %v377
  %v785 = vunpack.c.l.b16 %v378
  %v786 = vunpack.c.l.b16 %v379
  %v787 = vunpack.c.l.b16 %v380
  %v788 = vunpack.c.l.b16 %v381
  %v789 = vunpack.c.l.b16 %v382
  %v790 = vunpack.c.l.b16 %v383
  %v791 = vunpack.c.l.b16 %v384
  %v792 = vunpack.c.l.b16 %v385
  %v793 = vunpack.c.l.b16 %v386
  %v794 = vunpack.c.l.b16 %v387
  %v795 = vunpack.c.l.b16 %v388
  %v796 = vunpack.c.l.b16 %v389
  %v797 = vunpack.c.l.b16 %v390
  %v798 = vunpack.c.l.b16 %v391
  %v799 = vunpack.c.l.b16 %v392
  %v800 = vunpack.c.l.b16 %v393
  %v801 = vunpack.c.l.b16 %v394
  %v802 = vunpack.c.l.b16 %v395
  %v803 = vunpack.c.l.b16 %v396
  %v804 = vunpack.c.l.b16 %v397
  %v805 = vunpack.c.l.b16 %v398
  %v806 = vunpack.c.l.b16 %v399
  %v807 = vpack.c.b16 %v608, %v607
  %v808 = vpack.c.b16 %v610, %v609
  %v809 = vpack.c.b16 %v612, %v611
  %v810 = vpack.c.b16 %v614, %v613
  %v811 = vpack.c.b16 %v616, %v615
  %v812 = vpack.c.b16 %v618, %v617
  %v813 = vpack.c.b16 %v620, %v619
  %v814 = vpack.c.b16 %v622, %v621
  %v815 = vpack.c.b16 %v624, %v623
  %v816 = vpack.c.b16 %v626, %v625
  %v817 = vpack.c.b16 %v628, %v627
  %v818 = vpack.c.b16 %v630, %v629
  %v819 = vpack.c.b16 %v632, %v631
  %v820 = vpack.c.b16 %v634, %v633
  %v821 = vpack.c.b16 %v636, %v635
  %v822 = vpack.c.b16 %v638, %v637
  %v823 = vpack.c.b16 %v640, %v639
  %v824 = vpack.c.b16 %v642, %v641
  %v825 = vpack.c.b16 %v644, %v643
  %v826 = vpack.c.b16 %v646, %v645
  %v827 = vpack.c.b16 %v648, %v647
  %v828 = vpack.c.b16 %v650, %v649
  %v829 = vpack.c.b16 %v652, %v651
  %v830 = vpack.c.b16 %v654, %v653
  %v831 = vpack.c.b16 %v656, %v655
  %v832 = vpack.c.b16 %v658, %v657
  %v833 = vpack.c.b16 %v660, %v659
  %v834 = vpack.c.b16 %v662, %v661
  %v835 = vpack.c.b16 %v664, %v663
  %v836 = vpack.c.b16 %v666, %v665
  %v837 = vpack.c.b16 %v668, %v667
  %v838 = vpack.c.b16 %v670, %v669
  %v839 = vpack.c.b16 %v672, %v671
  %v840 = vpack.c.b16 %v674, %v673
  %v841 = vpack.c.b16 %v676, %v675
  %v842 = vpack.c.b16 %v678, %v677
  %v843 = vpack.c.b16 %v680, %v679
  %v844 = vpack.c.b16 %v682, %v681
  %v845 = vpack.c.b16 %v684, %v683
  %v846 = vpack.c.b16 %v686, %v685
  %v847 = vpack.c.b16 %v688, %v687
  %v848 = vpack.c.b16 %v690, %v689
  %v849 = vpack.c.b16 %v692, %v691
  %v850 = vpack.c.b16 %v694, %v693
  %v851 = vpack.c.b16 %v696, %v695
  %v852 = vpack.c.b16 %v698, %v697
  %v853 = vpack.c.b16 %v700, %v699
  %v854 = vpack.c.b16 %v702, %v701
  %v855 = vpack.c.b16 %v704, %v703
  %v856 = vpack.c.b16 %v706, %v705
  %v857 = vpack.c.b16 %v708, %v707
  %v858 = vpack.c.b16 %v710, %v709
  %v859 = vpack.c.b16 %v712, %v711
  %v860 = vpack.c.b16 %v714, %v713
  %v861 = vpack.c.b16 %v716, %v715
  %v862 = vpack.c.b16 %v718, %v717
  %v863 = vpack.c.b16 %v720, %v719
  %v864 = vpack.c.b16 %v722, %v721
  %v865 = vpack.c.b16 %v724, %v723
  %v866 = vpack.c.b16 %v726, %v725
  %v867 = vpack.c.b16 %v728, %v727
  %v868 = vpack.c.b16 %v730, %v729
  %v869 = vpack.c.b16 %v732, %v731
  %v870 = vpack.c.b16 %v734, %v733
  %v871 = vpack.c.b16 %v736, %v735
  %v872 = vpack.c.b16 %v738, %v737
  %v873 = vpack.c.b16 %v740, %v739
  %v874 = vpack.c.b16 %v742, %v741
  %v875 = vpack.c.b16 %v744, %v743
  %v876 = vpack.c.b16 %v746, %v745
  %v877 = vpack.c.b16 %v748, %v747
  %v878 = vpack.c.b16 %v750, %v749
  %v879 = vpack.c.b16 %v752, %v751
  %v880 = vpack.c.b16 %v754, %v753
  %v881 = vpack.c.b16 %v756, %v755
  %v882 = vpack.c.b16 %v758, %v757
  %v883 = vpack.c.b16 %v760, %v759
  %v884 = vpack.c.b16 %v762, %v761
  %v885 = vpack.c.b16 %v764, %v763
  %v886 = vpack.c.b16 %v766, %v765
  %v887 = vpack.c.b16 %v768, %v767
  %v888 = vpack.c.b16 %v770, %v769
  %v889 = vpack.c.b16 %v772, %v771
  %v890 = vpack.c.b16 %v774, %v773
  %v891 = vpack.c.b16 %v776, %v775
  %v892 = vpack.c.b16 %v778, %v777
  %v893 = vpack.c.b16 %v780, %v779
  %v894 = vpack.c.b16 %v782, %v781
  %v895 = vpack.c.b16 %v784, %v783
  %v896 = vpack.c.b16 %v786, %v785
  %v897 = vpack.c.b16 %v788, %v787
  %v898 = vpack.c.b16 %v790, %v789
  %v899 = vpack.c.b16 %v792, %v791
  %v900 = vpack.c.b16 %v794, %v793
  %v901 = vpack.c.b16 %v796, %v795
  %v902 = vpack.c.b16 %v798, %v797
  %v903 = vpack.c.b16 %v800, %v799
  %v904 = vpack.c.b16 %v802, %v801
  %v905 = vpack.c.b16 %v804, %v803
  %v906 = vpack.c.b16 %v806, %v805
  %vm1007 = vcmask 523264
  %v1009 = vsel %vm1007, %v147, 0
  %v1012 = vsel %vm1007, %v160, 0
  %v1015 = vsel %vm1007, %v173, 0
  %v1018 = vsel %vm1007, %v186, 0
  %v1021 = vsel %vm1007, %v199, 0
  %1023 = vmatprep.subr.bf16.mxu0 0
  %1024 = vmatpush1.bf16.msra.mxu0 %v807
  %1025 = vmatprep.subr.bf16.mxu0 0
  %1026 = vmatpush1.bf16.msra.mxu0 %v808
  %1027 = vmatprep.subr.bf16.mxu0 0
  %1028 = vmatpush1.bf16.msra.mxu0 %v809
  %1029 = vmatprep.subr.bf16.mxu0 0
  %1030 = vmatpush1.bf16.msra.mxu0 %v810
  %1031 = vmatprep.subr.bf16.mxu0 0
  %1032 = vmatpush1.bf16.msra.mxu0 %v811
  %1033 = vmatprep.subr.bf16.mxu0 0
  %1034 = vmatpush1.bf16.msra.mxu0 %v812
  %1035 = vmatprep.subr.bf16.mxu0 0
  %1036 = vmatpush1.bf16.msra.mxu0 %v813
  %1037 = vmatprep.subr.bf16.mxu0 0
  %1038 = vmatpush1.bf16.msra.mxu0 %v814
  %1039 = vmatprep.subr.bf16.mxu0 0
  %1040 = vmatpush1.bf16.msra.mxu0 %v815
  %1041 = vmatprep.subr.bf16.mxu0 0
  %1042 = vmatpush1.bf16.msra.mxu0 %v816
  %1043 = vmatprep.subr.bf16.mxu0 0
  %1044 = vmatpush1.bf16.msra.mxu0 %v817
  %1045 = vmatprep.subr.bf16.mxu0 0
  %1046 = vmatpush1.bf16.msra.mxu0 %v818
  %1047 = vmatprep.subr.bf16.mxu0 0
  %1048 = vmatpush1.bf16.msra.mxu0 %v819
  %1049 = vmatprep.subr.bf16.mxu0 0
  %1050 = vmatpush1.bf16.msra.mxu0 %v820
  %1051 = vmatprep.subr.bf16.mxu0 0
  %1052 = vmatpush1.bf16.msra.mxu0 %v821
  %1053 = vmatprep.subr.bf16.mxu0 0
  %1054 = vmatpush1.bf16.msra.mxu0 %v822
  %1055 = vmatprep.mubr.bf16.mxu0 %v136
  %1056 = vmatmul.mubr.bf16.gmra.mrb[0].mxu0 %v135
  %v1057 = vpop.f32.mrb[0].mxu0
  %v1058 = vadd.f32 %v405, %v1057
  %v1059 = vpop.f32.mrb[0].mxu0
  %v1060 = vpop.f32.mrb[0].mxu0
  %v1061 = vadd.f32 %v405, %v1060
  %v1062 = vpop.f32.mrb[0].mxu0
  %1063 = vmatprep.mubr.bf16.mxu0 %v149
  %1064 = vmatmul.mubr.bf16.gmra.mrb[0].mxu0 %v148
  %v1065 = vpop.f32.mrb[0].mxu0
  %v1066 = vadd.f32 %v405, %v1065
  %v1067 = vpop.f32.mrb[0].mxu0
  %v1068 = vpop.f32.mrb[0].mxu0
  %v1069 = vadd.f32 %v405, %v1068
  %v1070 = vpop.f32.mrb[0].mxu0
  %1071 = vmatprep.mubr.bf16.mxu0 %v162
  %1072 = vmatmul.mubr.bf16.gmra.mrb[0].mxu0 %v161
  %v1073 = vpop.f32.mrb[0].mxu0
  %v1074 = vadd.f32 %v405, %v1073
  %v1075 = vpop.f32.mrb[0].mxu0
  %v1076 = vpop.f32.mrb[0].mxu0
  %v1077 = vadd.f32 %v405, %v1076
  %v1078 = vpop.f32.mrb[0].mxu0
  %1079 = vmatprep.mubr.bf16.mxu0 %v175
  %1080 = vmatmul.mubr.bf16.gmra.mrb[0].mxu0 %v174
  %v1081 = vpop.f32.mrb[0].mxu0
  %v1082 = vadd.f32 %v405, %v1081
  %v1083 = vpop.f32.mrb[0].mxu0
  %v1084 = vpop.f32.mrb[0].mxu0
  %v1085 = vadd.f32 %v405, %v1084
  %v1086 = vpop.f32.mrb[0].mxu0
  %1087 = vmatprep.mubr.bf16.mxu0 %v188
  %1088 = vmatmul.mubr.bf16.gmra.mrb[0].mxu0 %v187
  %v1089 = vpop.f32.mrb[0].mxu0
  %v1090 = vadd.f32 %v405, %v1089
  %v1091 = vpop.f32.mrb[0].mxu0
  %v1092 = vpop.f32.mrb[0].mxu0
  %v1093 = vpop.f32.mrb[0].mxu0
  %1094 = vdwg.mxu0
  %1095 = vmatprep.subr.bf16.mxu0 0
  %1096 = vmatpush1.bf16.msra.mxu0 %v823
  %1097 = vmatprep.subr.bf16.mxu0 0
  %1098 = vmatpush1.bf16.msra.mxu0 %v824
  %1099 = vmatprep.subr.bf16.mxu0 0
  %1100 = vmatpush1.bf16.msra.mxu0 %v825
  %1101 = vmatprep.subr.bf16.mxu0 0
  %1102 = vmatpush1.bf16.msra.mxu0 %v826
  %1103 = vmatprep.subr.bf16.mxu0 0
  %1104 = vmatpush1.bf16.msra.mxu0 %v827
  %1105 = vmatprep.subr.bf16.mxu0 0
  %1106 = vmatpush1.bf16.msra.mxu0 %v828
  %1107 = vmatprep.subr.bf16.mxu0 0
  %1108 = vmatpush1.bf16.msra.mxu0 %v829
  %1109 = vmatprep.subr.bf16.mxu0 0
  %1110 = vmatpush1.bf16.msra.mxu0 %v830
  %1111 = vmatprep.subr.bf16.mxu0 0
  %1112 = vmatpush1.bf16.msra.mxu0 %v831
  %1113 = vmatprep.subr.bf16.mxu0 0
  %1114 = vmatpush1.bf16.msra.mxu0 %v832
  %1115 = vmatprep.subr.bf16.mxu0 0
  %1116 = vmatpush1.bf16.msra.mxu0 %v833
  %1117 = vmatprep.subr.bf16.mxu0 0
  %1118 = vmatpush1.bf16.msra.mxu0 %v834
  %1119 = vmatprep.subr.bf16.mxu0 0
  %1120 = vmatpush1.bf16.msra.mxu0 %v835
  %1121 = vmatprep.subr.bf16.mxu0 0
  %1122 = vmatpush1.bf16.msra.mxu0 %v836
  %1123 = vmatprep.subr.bf16.mxu0 0
  %1124 = vmatpush1.bf16.msra.mxu0 %v837
  %1125 = vmatprep.subr.bf16.mxu0 0
  %1126 = vmatpush1.bf16.msra.mxu0 %v838
  %1127 = vmatprep.mubr.bf16.mxu0 %v138
  %1128 = vmatmul.mubr.bf16.gmra.mrb[0].mxu0 %v137
  %v1129 = vpop.f32.mrb[0].mxu0
  %v1130 = vadd.f32 %v1058, %v1129
  %v1131 = vpop.f32.mrb[0].mxu0
  %v1132 = vpop.f32.mrb[0].mxu0
  %v1133 = vadd.f32 %v1061, %v1132
  %v1134 = vpop.f32.mrb[0].mxu0
  %1135 = vmatprep.mubr.bf16.mxu0 %v151
  %1136 = vmatmul.mubr.bf16.gmra.mrb[0].mxu0 %v150
  %v1137 = vpop.f32.mrb[0].mxu0
  %v1138 = vadd.f32 %v1066, %v1137
  %v1139 = vpop.f32.mrb[0].mxu0
  %v1140 = vpop.f32.mrb[0].mxu0
  %v1141 = vadd.f32 %v1069, %v1140
  %v1142 = vpop.f32.mrb[0].mxu0
  %1143 = vmatprep.mubr.bf16.mxu0 %v164
  %1144 = vmatmul.mubr.bf16.gmra.mrb[0].mxu0 %v163
  %v1145 = vpop.f32.mrb[0].mxu0
  %v1146 = vadd.f32 %v1074, %v1145
  %v1147 = vpop.f32.mrb[0].mxu0
  %v1148 = vpop.f32.mrb[0].mxu0
  %v1149 = vadd.f32 %v1077, %v1148
  %v1150 = vpop.f32.mrb[0].mxu0
  %1151 = vmatprep.mubr.bf16.mxu0 %v177
  %1152 = vmatmul.mubr.bf16.gmra.mrb[0].mxu0 %v176
  %v1153 = vpop.f32.mrb[0].mxu0
  %v1154 = vadd.f32 %v1082, %v1153
  %v1155 = vpop.f32.mrb[0].mxu0
  %v1156 = vpop.f32.mrb[0].mxu0
  %v1157 = vadd.f32 %v1085, %v1156
  %v1158 = vpop.f32.mrb[0].mxu0
  %1159 = vmatprep.mubr.bf16.mxu0 %v190
  %1160 = vmatmul.mubr.bf16.gmra.mrb[0].mxu0 %v189
  %v1161 = vpop.f32.mrb[0].mxu0
  %v1162 = vadd.f32 %v1090, %v1161
  %v1163 = vpop.f32.mrb[0].mxu0
  %v1164 = vpop.f32.mrb[0].mxu0
  %v1165 = vpop.f32.mrb[0].mxu0
  %1166 = vdwg.mxu0
  %1167 = vmatprep.subr.bf16.mxu0 0
  %1168 = vmatpush1.bf16.msra.mxu0 %v839
  %1169 = vmatprep.subr.bf16.mxu0 0
  %1170 = vmatpush1.bf16.msra.mxu0 %v840
  %1171 = vmatprep.subr.bf16.mxu0 0
  %1172 = vmatpush1.bf16.msra.mxu0 %v841
  %1173 = vmatprep.subr.bf16.mxu0 0
  %1174 = vmatpush1.bf16.msra.mxu0 %v842
  %1175 = vmatprep.subr.bf16.mxu0 0
  %1176 = vmatpush1.bf16.msra.mxu0 %v843
  %1177 = vmatprep.subr.bf16.mxu0 0
  %1178 = vmatpush1.bf16.msra.mxu0 %v844
  %1179 = vmatprep.subr.bf16.mxu0 0
  %1180 = vmatpush1.bf16.msra.mxu0 %v845
  %1181 = vmatprep.subr.bf16.mxu0 0
  %1182 = vmatpush1.bf16.msra.mxu0 %v846
  %1183 = vmatprep.subr.bf16.mxu0 0
  %1184 = vmatpush1.bf16.msra.mxu0 %v847
  %1185 = vmatprep.subr.bf16.mxu0 0
  %1186 = vmatpush1.bf16.msra.mxu0 %v848
  %1187 = vmatprep.subr.bf16.mxu0 0
  %1188 = vmatpush1.bf16.msra.mxu0 %v849
  %1189 = vmatprep.subr.bf16.mxu0 0
  %1190 = vmatpush1.bf16.msra.mxu0 %v850
  %1191 = vmatprep.subr.bf16.mxu0 0
  %1192 = vmatpush1.bf16.msra.mxu0 %v851
  %1193 = vmatprep.subr.bf16.mxu0 0
  %1194 = vmatpush1.bf16.msra.mxu0 %v852
  %1195 = vmatprep.subr.bf16.mxu0 0
  %1196 = vmatpush1.bf16.msra.mxu0 %v853
  %1197 = vmatprep.subr.bf16.mxu0 0
  %1198 = vmatpush1.bf16.msra.mxu0 %v854
  %1199 = vmatprep.mubr.bf16.mxu0 %v140
  %1200 = vmatmul.mubr.bf16.gmra.mrb[0].mxu0 %v139
  %v1201 = vpop.f32.mrb[0].mxu0
  %v1202 = vadd.f32 %v1130, %v1201
  %v1203 = vpop.f32.mrb[0].mxu0
  %v1204 = vpop.f32.mrb[0].mxu0
  %v1205 = vadd.f32 %v1133, %v1204
  %v1206 = vpop.f32.mrb[0].mxu0
  %1207 = vmatprep.mubr.bf16.mxu0 %v153
  %1208 = vmatmul.mubr.bf16.gmra.mrb[0].mxu0 %v152
  %v1209 = vpop.f32.mrb[0].mxu0
  %v1210 = vadd.f32 %v1138, %v1209
  %v1211 = vpop.f32.mrb[0].mxu0
  %v1212 = vpop.f32.mrb[0].mxu0
  %v1213 = vadd.f32 %v1141, %v1212
  %v1214 = vpop.f32.mrb[0].mxu0
  %1215 = vmatprep.mubr.bf16.mxu0 %v166
  %1216 = vmatmul.mubr.bf16.gmra.mrb[0].mxu0 %v165
  %v1217 = vpop.f32.mrb[0].mxu0
  %v1218 = vadd.f32 %v1146, %v1217
  %v1219 = vpop.f32.mrb[0].mxu0
  %v1220 = vpop.f32.mrb[0].mxu0
  %v1221 = vadd.f32 %v1149, %v1220
  %v1222 = vpop.f32.mrb[0].mxu0
  %1223 = vmatprep.mubr.bf16.mxu0 %v179
  %1224 = vmatmul.mubr.bf16.gmra.mrb[0].mxu0 %v178
  %v1225 = vpop.f32.mrb[0].mxu0
  %v1226 = vadd.f32 %v1154, %v1225
  %v1227 = vpop.f32.mrb[0].mxu0
  %v1228 = vpop.f32.mrb[0].mxu0
  %v1229 = vadd.f32 %v1157, %v1228
  %v1230 = vpop.f32.mrb[0].mxu0
  %1231 = vmatprep.mubr.bf16.mxu0 %v192
  %1232 = vmatmul.mubr.bf16.gmra.mrb[0].mxu0 %v191
  %v1233 = vpop.f32.mrb[0].mxu0
  %v1234 = vadd.f32 %v1162, %v1233
  %v1235 = vpop.f32.mrb[0].mxu0
  %v1236 = vpop.f32.mrb[0].mxu0
  %v1237 = vpop.f32.mrb[0].mxu0
  %1238 = vdwg.mxu0
  %1239 = vmatprep.subr.bf16.mxu0 0
  %1240 = vmatpush1.bf16.msra.mxu0 %v855
  %1241 = vmatprep.subr.bf16.mxu0 0
  %1242 = vmatpush1.bf16.msra.mxu0 %v856
  %1243 = vmatprep.subr.bf16.mxu0 0
  %1244 = vmatpush1.bf16.msra.mxu0 %v857
  %1245 = vmatprep.subr.bf16.mxu0 0
  %1246 = vmatpush1.bf16.msra.mxu0 %v858
  %1247 = vmatprep.subr.bf16.mxu0 0
  %1248 = vmatpush1.bf16.msra.mxu0 %v859
  %1249 = vmatprep.subr.bf16.mxu0 0
  %1250 = vmatpush1.bf16.msra.mxu0 %v860
  %1251 = vmatprep.subr.bf16.mxu0 0
  %1252 = vmatpush1.bf16.msra.mxu0 %v861
  %1253 = vmatprep.subr.bf16.mxu0 0
  %1254 = vmatpush1.bf16.msra.mxu0 %v862
  %1255 = vmatprep.subr.bf16.mxu0 0
  %1256 = vmatpush1.bf16.msra.mxu0 %v863
  %1257 = vmatprep.subr.bf16.mxu0 0
  %1258 = vmatpush1.bf16.msra.mxu0 %v864
  %1259 = vmatprep.subr.bf16.mxu0 0
  %1260 = vmatpush1.bf16.msra.mxu0 %v865
  %1261 = vmatprep.subr.bf16.mxu0 0
  %1262 = vmatpush1.bf16.msra.mxu0 %v866
  %1263 = vmatprep.subr.bf16.mxu0 0
  %1264 = vmatpush1.bf16.msra.mxu0 %v867
  %1265 = vmatprep.subr.bf16.mxu0 0
  %1266 = vmatpush1.bf16.msra.mxu0 %v868
  %1267 = vmatprep.subr.bf16.mxu0 0
  %1268 = vmatpush1.bf16.msra.mxu0 %v869
  %1269 = vmatprep.subr.bf16.mxu0 0
  %1270 = vmatpush1.bf16.msra.mxu0 %v870
  %1271 = vmatprep.mubr.bf16.mxu0 %v142
  %1272 = vmatmul.mubr.bf16.gmra.mrb[0].mxu0 %v141
  %v1273 = vpop.f32.mrb[0].mxu0
  %v1274 = vadd.f32 %v1202, %v1273
  %v1275 = vpop.f32.mrb[0].mxu0
  %v1276 = vpop.f32.mrb[0].mxu0
  %v1277 = vadd.f32 %v1205, %v1276
  %v1278 = vpop.f32.mrb[0].mxu0
  %1279 = vmatprep.mubr.bf16.mxu0 %v155
  %1280 = vmatmul.mubr.bf16.gmra.mrb[0].mxu0 %v154
  %v1281 = vpop.f32.mrb[0].mxu0
  %v1282 = vadd.f32 %v1210, %v1281
  %v1283 = vpop.f32.mrb[0].mxu0
  %v1284 = vpop.f32.mrb[0].mxu0
  %v1285 = vadd.f32 %v1213, %v1284
  %v1286 = vpop.f32.mrb[0].mxu0
  %1287 = vmatprep.mubr.bf16.mxu0 %v168
  %1288 = vmatmul.mubr.bf16.gmra.mrb[0].mxu0 %v167
  %v1289 = vpop.f32.mrb[0].mxu0
  %v1290 = vadd.f32 %v1218, %v1289
  %v1291 = vpop.f32.mrb[0].mxu0
  %v1292 = vpop.f32.mrb[0].mxu0
  %v1293 = vadd.f32 %v1221, %v1292
  %v1294 = vpop.f32.mrb[0].mxu0
  %1295 = vmatprep.mubr.bf16.mxu0 %v181
  %1296 = vmatmul.mubr.bf16.gmra.mrb[0].mxu0 %v180
  %v1297 = vpop.f32.mrb[0].mxu0
  %v1298 = vadd.f32 %v1226, %v1297
  %v1299 = vpop.f32.mrb[0].mxu0
  %v1300 = vpop.f32.mrb[0].mxu0
  %v1301 = vadd.f32 %v1229, %v1300
  %v1302 = vpop.f32.mrb[0].mxu0
  %1303 = vmatprep.mubr.bf16.mxu0 %v194
  %1304 = vmatmul.mubr.bf16.gmra.mrb[0].mxu0 %v193
  %v1305 = vpop.f32.mrb[0].mxu0
  %v1306 = vadd.f32 %v1234, %v1305
  %v1307 = vpop.f32.mrb[0].mxu0
  %v1308 = vpop.f32.mrb[0].mxu0
  %v1309 = vpop.f32.mrb[0].mxu0
  %1310 = vdwg.mxu0
  %1311 = vmatprep.subr.bf16.mxu0 0
  %1312 = vmatpush1.bf16.msra.mxu0 %v871
  %1313 = vmatprep.subr.bf16.mxu0 0
  %1314 = vmatpush1.bf16.msra.mxu0 %v872
  %1315 = vmatprep.subr.bf16.mxu0 0
  %1316 = vmatpush1.bf16.msra.mxu0 %v873
  %1317 = vmatprep.subr.bf16.mxu0 0
  %1318 = vmatpush1.bf16.msra.mxu0 %v874
  %1319 = vmatprep.subr.bf16.mxu0 0
  %1320 = vmatpush1.bf16.msra.mxu0 %v875
  %1321 = vmatprep.subr.bf16.mxu0 0
  %1322 = vmatpush1.bf16.msra.mxu0 %v876
  %1323 = vmatprep.subr.bf16.mxu0 0
  %1324 = vmatpush1.bf16.msra.mxu0 %v877
  %1325 = vmatprep.subr.bf16.mxu0 0
  %1326 = vmatpush1.bf16.msra.mxu0 %v878
  %1327 = vmatprep.subr.bf16.mxu0 0
  %1328 = vmatpush1.bf16.msra.mxu0 %v879
  %1329 = vmatprep.subr.bf16.mxu0 0
  %1330 = vmatpush1.bf16.msra.mxu0 %v880
  %1331 = vmatprep.subr.bf16.mxu0 0
  %1332 = vmatpush1.bf16.msra.mxu0 %v881
  %1333 = vmatprep.subr.bf16.mxu0 0
  %1334 = vmatpush1.bf16.msra.mxu0 %v882
  %1335 = vmatprep.subr.bf16.mxu0 0
  %1336 = vmatpush1.bf16.msra.mxu0 %v883
  %1337 = vmatprep.subr.bf16.mxu0 0
  %1338 = vmatpush1.bf16.msra.mxu0 %v884
  %1339 = vmatprep.subr.bf16.mxu0 0
  %1340 = vmatpush1.bf16.msra.mxu0 %v885
  %1341 = vmatprep.subr.bf16.mxu0 0
  %1342 = vmatpush1.bf16.msra.mxu0 %v886
  %1343 = vmatprep.mubr.bf16.mxu0 %v144
  %1344 = vmatmul.mubr.bf16.gmra.mrb[0].mxu0 %v143
  %v1345 = vpop.f32.mrb[0].mxu0
  %v1346 = vadd.f32 %v1274, %v1345
  %v1347 = vpop.f32.mrb[0].mxu0
  %v1348 = vpop.f32.mrb[0].mxu0
  %v1349 = vadd.f32 %v1277, %v1348
  %v1350 = vpop.f32.mrb[0].mxu0
  %1351 = vmatprep.mubr.bf16.mxu0 %v157
  %1352 = vmatmul.mubr.bf16.gmra.mrb[0].mxu0 %v156
  %v1353 = vpop.f32.mrb[0].mxu0
  %v1354 = vadd.f32 %v1282, %v1353
  %v1355 = vpop.f32.mrb[0].mxu0
  %v1356 = vpop.f32.mrb[0].mxu0
  %v1357 = vadd.f32 %v1285, %v1356
  %v1358 = vpop.f32.mrb[0].mxu0
  %1359 = vmatprep.mubr.bf16.mxu0 %v170
  %1360 = vmatmul.mubr.bf16.gmra.mrb[0].mxu0 %v169
  %v1361 = vpop.f32.mrb[0].mxu0
  %v1362 = vadd.f32 %v1290, %v1361
  %v1363 = vpop.f32.mrb[0].mxu0
  %v1364 = vpop.f32.mrb[0].mxu0
  %v1365 = vadd.f32 %v1293, %v1364
  %v1366 = vpop.f32.mrb[0].mxu0
  %1367 = vmatprep.mubr.bf16.mxu0 %v183
  %1368 = vmatmul.mubr.bf16.gmra.mrb[0].mxu0 %v182
  %v1369 = vpop.f32.mrb[0].mxu0
  %v1370 = vadd.f32 %v1298, %v1369
  %v1371 = vpop.f32.mrb[0].mxu0
  %v1372 = vpop.f32.mrb[0].mxu0
  %v1373 = vadd.f32 %v1301, %v1372
  %v1374 = vpop.f32.mrb[0].mxu0
  %1375 = vmatprep.mubr.bf16.mxu0 %v196
  %1376 = vmatmul.mubr.bf16.gmra.mrb[0].mxu0 %v195
  %v1377 = vpop.f32.mrb[0].mxu0
  %v1378 = vadd.f32 %v1306, %v1377
  %v1379 = vpop.f32.mrb[0].mxu0
  %v1380 = vpop.f32.mrb[0].mxu0
  %v1381 = vpop.f32.mrb[0].mxu0
  %1382 = vdwg.mxu0
  %1383 = vmatprep.subr.bf16.mxu0 0
  %1384 = vmatpush1.bf16.msra.mxu0 %v887
  %1385 = vmatprep.subr.bf16.mxu0 0
  %1386 = vmatpush1.bf16.msra.mxu0 %v888
  %1387 = vmatprep.subr.bf16.mxu0 0
  %1388 = vmatpush1.bf16.msra.mxu0 %v889
  %1389 = vmatprep.subr.bf16.mxu0 0
  %1390 = vmatpush1.bf16.msra.mxu0 %v890
  %1391 = vmatprep.subr.bf16.mxu0 0
  %1392 = vmatpush1.bf16.msra.mxu0 %v891
  %1393 = vmatprep.subr.bf16.mxu0 0
  %1394 = vmatpush1.bf16.msra.mxu0 %v892
  %1395 = vmatprep.subr.bf16.mxu0 0
  %1396 = vmatpush1.bf16.msra.mxu0 %v893
  %1397 = vmatprep.subr.bf16.mxu0 0
  %1398 = vmatpush1.bf16.msra.mxu0 %v894
  %1399 = vmatprep.subr.bf16.mxu0 0
  %1400 = vmatpush1.bf16.msra.mxu0 %v895
  %1401 = vmatprep.subr.bf16.mxu0 0
  %1402 = vmatpush1.bf16.msra.mxu0 %v896
  %1403 = vmatprep.subr.bf16.mxu0 0
  %1404 = vmatpush1.bf16.msra.mxu0 %v897
  %1405 = vmatprep.subr.bf16.mxu0 0
  %1406 = vmatpush1.bf16.msra.mxu0 %v898
  %1407 = vmatprep.subr.bf16.mxu0 0
  %1408 = vmatpush1.bf16.msra.mxu0 %v899
  %1409 = vmatprep.subr.bf16.mxu0 0
  %1410 = vmatpush1.bf16.msra.mxu0 %v900
  %1411 = vmatprep.subr.bf16.mxu0 0
  %1412 = vmatpush1.bf16.msra.mxu0 %v901
  %1413 = vmatprep.subr.bf16.mxu0 0
  %1414 = vmatpush1.bf16.msra.mxu0 %v902
  %1415 = vmatprep.mubr.bf16.mxu0 %v146
  %1416 = vmatmul.mubr.bf16.gmra.mrb[0].mxu0 %v145
  %v1417 = vpop.f32.mrb[0].mxu0
  %v1418 = vadd.f32 %v1346, %v1417
  %v1419 = vpop.f32.mrb[0].mxu0
  %v1420 = vpop.f32.mrb[0].mxu0
  %v1421 = vadd.f32 %v1349, %v1420
  %v1422 = vpop.f32.mrb[0].mxu0
  %1423 = vmatprep.mubr.bf16.mxu0 %v159
  %1424 = vmatmul.mubr.bf16.gmra.mrb[0].mxu0 %v158
  %v1425 = vpop.f32.mrb[0].mxu0
  %v1426 = vadd.f32 %v1354, %v1425
  %v1427 = vpop.f32.mrb[0].mxu0
  %v1428 = vpop.f32.mrb[0].mxu0
  %v1429 = vadd.f32 %v1357, %v1428
  %v1430 = vpop.f32.mrb[0].mxu0
  %1431 = vmatprep.mubr.bf16.mxu0 %v172
  %1432 = vmatmul.mubr.bf16.gmra.mrb[0].mxu0 %v171
  %v1433 = vpop.f32.mrb[0].mxu0
  %v1434 = vadd.f32 %v1362, %v1433
  %v1435 = vpop.f32.mrb[0].mxu0
  %v1436 = vpop.f32.mrb[0].mxu0
  %v1437 = vadd.f32 %v1365, %v1436
  %v1438 = vpop.f32.mrb[0].mxu0
  %1439 = vmatprep.mubr.bf16.mxu0 %v185
  %1440 = vmatmul.mubr.bf16.gmra.mrb[0].mxu0 %v184
  %v1441 = vpop.f32.mrb[0].mxu0
  %v1442 = vadd.f32 %v1370, %v1441
  %v1443 = vpop.f32.mrb[0].mxu0
  %v1444 = vpop.f32.mrb[0].mxu0
  %v1445 = vadd.f32 %v1373, %v1444
  %v1446 = vpop.f32.mrb[0].mxu0
  %1447 = vmatprep.mubr.bf16.mxu0 %v198
  %1448 = vmatmul.mubr.bf16.gmra.mrb[0].mxu0 %v197
  %v1449 = vpop.f32.mrb[0].mxu0
  %v1450 = vadd.f32 %v1378, %v1449
  %v1451 = vpop.f32.mrb[0].mxu0
  %v1452 = vpop.f32.mrb[0].mxu0
  %v1453 = vpop.f32.mrb[0].mxu0
  %1454 = vdwg.mxu0
  %1455 = vmatprep.subr.bf16.mxu0 0
  %1456 = vmatpush1.bf16.msra.mxu0 %v903
  %1457 = vmatprep.subr.bf16.mxu0 0
  %1458 = vmatpush1.bf16.msra.mxu0 %v904
  %1459 = vmatprep.subr.bf16.mxu0 0
  %1460 = vmatpush1.bf16.msra.mxu0 %v905
  %1461 = vmatprep.subr.bf16.mxu0 0
  %1462 = vmatpush1.bf16.msra.mxu0 %v906
  %1463 = vmatprep.subr.bf16.mxu0 0
  %1464 = vmatpush1.bf16.msra.mxu0 0
  %1465 = vmatprep.subr.bf16.mxu0 0
  %1466 = vmatpush1.bf16.msra.mxu0 0
  %1467 = vmatprep.subr.bf16.mxu0 0
  %1468 = vmatpush1.bf16.msra.mxu0 0
  %1469 = vmatprep.subr.bf16.mxu0 0
  %1470 = vmatpush1.bf16.msra.mxu0 0
  %1471 = vmatprep.subr.bf16.mxu0 0
  %1472 = vmatpush1.bf16.msra.mxu0 0
  %1473 = vmatprep.subr.bf16.mxu0 0
  %1474 = vmatpush1.bf16.msra.mxu0 0
  %1475 = vmatprep.subr.bf16.mxu0 0
  %1476 = vmatpush1.bf16.msra.mxu0 0
  %1477 = vmatprep.subr.bf16.mxu0 0
  %1478 = vmatpush1.bf16.msra.mxu0 0
  %1479 = vmatprep.subr.bf16.mxu0 0
  %1480 = vmatpush1.bf16.msra.mxu0 0
  %1481 = vmatprep.subr.bf16.mxu0 0
  %1482 = vmatpush1.bf16.msra.mxu0 0
  %1483 = vmatprep.subr.bf16.mxu0 0
  %1484 = vmatpush1.bf16.msra.mxu0 0
  %1485 = vmatprep.subr.bf16.mxu0 0
  %1486 = vmatpush1.bf16.msra.mxu0 0
  %1487 = vmatprep.mubr.bf16.mxu0 0
  %1488 = vmatmul.mubr.bf16.gmra.mrb[0].mxu0 %v1009
  %v1489 = vpop.f32.mrb[0].mxu0
  %v1490 = vadd.f32 %v1418, %v1489
  %v1491 = vpop.f32.mrb[0].mxu0
  %v1492 = vpop.f32.mrb[0].mxu0
  %v1493 = vadd.f32 %v1421, %v1492
  %v1494 = vpop.f32.mrb[0].mxu0
  %1495 = vmatprep.mubr.bf16.mxu0 0
  %1496 = vmatmul.mubr.bf16.gmra.mrb[0].mxu0 %v1012
  %v1497 = vpop.f32.mrb[0].mxu0
  %v1498 = vadd.f32 %v1426, %v1497
  %v1499 = vpop.f32.mrb[0].mxu0
  %v1500 = vpop.f32.mrb[0].mxu0
  %v1501 = vadd.f32 %v1429, %v1500
  %v1502 = vpop.f32.mrb[0].mxu0
  %1503 = vmatprep.mubr.bf16.mxu0 0
  %1504 = vmatmul.mubr.bf16.gmra.mrb[0].mxu0 %v1015
  %v1505 = vpop.f32.mrb[0].mxu0
  %v1506 = vadd.f32 %v1434, %v1505
  %v1507 = vpop.f32.mrb[0].mxu0
  %v1508 = vpop.f32.mrb[0].mxu0
  %v1509 = vadd.f32 %v1437, %v1508
  %v1510 = vpop.f32.mrb[0].mxu0
  %1511 = vmatprep.mubr.bf16.mxu0 0
  %1512 = vmatmul.mubr.bf16.gmra.mrb[0].mxu0 %v1018
  %v1513 = vpop.f32.mrb[0].mxu0
  %v1514 = vadd.f32 %v1442, %v1513
  %v1515 = vpop.f32.mrb[0].mxu0
  %v1516 = vpop.f32.mrb[0].mxu0
  %v1517 = vadd.f32 %v1445, %v1516
  %v1518 = vpop.f32.mrb[0].mxu0
  %1519 = vmatprep.mubr.bf16.mxu0 0
  %1520 = vmatmul.mubr.bf16.gmra.mrb[0].mxu0 %v1021
  %v1521 = vpop.f32.mrb[0].mxu0
  %v1522 = vadd.f32 %v1450, %v1521
  %v1523 = vpop.f32.mrb[0].mxu0
  %v1524 = vpop.f32.mrb[0].mxu0
  %v1525 = vpop.f32.mrb[0].mxu0
  %1526 = vdwg.mxu0
  %v1527 = vlaneseq
  %v1528 = vshrl.u32 %v1527, 7
  %v1529 = vadd.s32 %v1528, 8
  %v1530 = vadd.s32 %v1528, 16
  %v1531 = vadd.s32 %v1528, 24
  %v1532 = vadd.s32 %v1528, 32
  %v1533 = vadd.s32 %v1528, 40
  %v1534 = vadd.s32 %v1528, 48
  %v1535 = vadd.s32 %v1528, 56
  %v1536 = vadd.s32 %v1528, 64
  %s1537 = smul.u32 0, 72
  %v1538 = vstv %s1537
  %v1539 = vadd.s32 %v1528, %v1538
  %v1540 = vadd.s32 %v1529, %v1538
  %v1541 = vadd.s32 %v1530, %v1538
  %v1542 = vadd.s32 %v1531, %v1538
  %v1543 = vadd.s32 %v1532, %v1538
  %v1544 = vadd.s32 %v1533, %v1538
  %v1545 = vadd.s32 %v1534, %v1538
  %v1546 = vadd.s32 %v1535, %v1538
  %v1547 = vadd.s32 %v1536, %v1538
  %vm1548 = vcmp.lt.s32.totalorder %v1539, 72
  %vm1549 = vcmp.lt.s32.totalorder %v1540, 72
  %vm1550 = vcmp.lt.s32.totalorder %v1541, 72
  %vm1551 = vcmp.lt.s32.totalorder %v1542, 72
  %vm1552 = vcmp.lt.s32.totalorder %v1543, 72
  %vm1553 = vcmp.lt.s32.totalorder %v1544, 72
  %vm1554 = vcmp.lt.s32.totalorder %v1545, 72
  %vm1555 = vcmp.lt.s32.totalorder %v1546, 72
  %vm1556 = vcmp.lt.s32.totalorder %v1547, 72
  %v1557 = vsel %vm1548, %v1490, 0.0
  %v1558 = vsel %vm1549, %v1493, 0.0
  %v1559 = vsel %vm1550, %v1498, 0.0
  %v1560 = vsel %vm1551, %v1501, 0.0
  %v1561 = vsel %vm1552, %v1506, 0.0
  %v1562 = vsel %vm1553, %v1509, 0.0
  %v1563 = vsel %vm1554, %v1514, 0.0
  %v1564 = vsel %vm1555, %v1517, 0.0
  %v1565 = vsel %vm1556, %v1522, 0.0
  %v1566 = vadd.f32 %v1557, %v1558
  %v1567 = vadd.f32 %v1566, %v1559
  %v1568 = vadd.f32 %v1567, %v1560
  %v1569 = vadd.f32 %v1568, %v1561
  %v1570 = vadd.f32 %v1569, %v1562
  %v1571 = vadd.f32 %v1570, %v1563
  %v1572 = vadd.f32 %v1571, %v1564
  %v1573 = vadd.f32 %v1572, %v1565
  %v1574 = vrot.slane %v1573, 4
  %v1575 = vadd.f32 %v1573, %v1574
  %v1576 = vrot.slane %v1575, 2
  %v1577 = vadd.f32 %v1575, %v1576
  %v1578 = vrot.slane %v1577, 1
  %v1579 = vadd.f32 %v1577, %v1578
  %1580 = vst [vmem:[%s4] sm:$0x1] %v1579
  %v1581 = vmul.f32 %v1557, %v1557
  %v1582 = vmul.f32 %v1558, %v1558
  %v1583 = vmul.f32 %v1559, %v1559
  %v1584 = vmul.f32 %v1560, %v1560
  %v1585 = vmul.f32 %v1561, %v1561
  %v1586 = vmul.f32 %v1562, %v1562
  %v1587 = vmul.f32 %v1563, %v1563
  %v1588 = vmul.f32 %v1564, %v1564
  %v1589 = vmul.f32 %v1565, %v1565
  %v1590 = vadd.f32 %v1581, %v1582
  %v1591 = vadd.f32 %v1590, %v1583
  %v1592 = vadd.f32 %v1591, %v1584
  %v1593 = vadd.f32 %v1592, %v1585
  %v1594 = vadd.f32 %v1593, %v1586
  %v1595 = vadd.f32 %v1594, %v1587
  %v1596 = vadd.f32 %v1595, %v1588
  %v1597 = vadd.f32 %v1596, %v1589
  %v1598 = vrot.slane %v1597, 4
  %v1599 = vadd.f32 %v1597, %v1598
  %v1600 = vrot.slane %v1599, 2
  %v1601 = vadd.f32 %v1599, %v1600
  %v1602 = vrot.slane %v1601, 1
  %v1603 = vadd.f32 %v1601, %v1602
  %1604 = vst [vmem:[%s5] sm:$0x1] %v1603
  %1605 = vst [vmem:[%s3] sm:$0xff] %v1490
  %1606 = vst [vmem:[%s3 + $0x8] sm:$0xff] %v1493
  %1607 = vst [vmem:[%s3 + $0x10] sm:$0xff] %v1498
  %1608 = vst [vmem:[%s3 + $0x18] sm:$0xff] %v1501
  %1609 = vst [vmem:[%s3 + $0x20] sm:$0xff] %v1506
  %1610 = vst [vmem:[%s3 + $0x28] sm:$0xff] %v1509
  %1611 = vst [vmem:[%s3 + $0x30] sm:$0xff] %v1514
  %1612 = vst [vmem:[%s3 + $0x38] sm:$0xff] %v1517
  %1613 = vst [vmem:[%s3 + $0x40] sm:$0xff] %v1522
  // Predicated region
  $region14: #{cnn_norm_forward.9} parent=0 // pred_check
    _
  $region15: #{cnn_norm_forward.9} parent=0 // pred_check_branch
    %1615 = sbr.rel (0) target = $region17
  $region16: #{cnn_norm_forward.9} parent=0 // pred_region
    _
  $region17: #{cnn_norm_forward.9} parent=0 // pred_fallthru
    _
  // Predicated region
  $region18: #{cnn_norm_forward.9} parent=0 // pred_check
    _
  $region19: #{cnn_norm_forward.9} parent=0 // pred_check_branch
    %1617 = sbr.rel (0) target = $region21
  $region20: #{cnn_norm_forward.9} parent=0 // pred_region
    _
  $region21: #{cnn_norm_forward.9} parent=0 // pred_fallthru
    _
  // Predicated region
  $region22: #{cnn_norm_forward.9} parent=0 // pred_check
    _
  $region23: #{cnn_norm_forward.9} parent=0 // pred_check_branch
    %1619 = sbr.rel (0) target = $region25
  $region24: #{cnn_norm_forward.9} parent=0 // pred_region
    _
  $region25: #{cnn_norm_forward.9} parent=0 // pred_fallthru
    _
  // Predicated region
  $region26: #{cnn_norm_forward.9} parent=0 // pred_check
    _
  $region27: #{cnn_norm_forward.9} parent=0 // pred_check_branch
    %1621 = sbr.rel (0) target = $region29
  $region28: #{cnn_norm_forward.9} parent=0 // pred_region
    _
  $region29: #{cnn_norm_forward.9} parent=0 // pred_fallthru
    _
  // Predicated region
  $region30: #{cnn_norm_forward.9} parent=0 // pred_check
    _
  $region31: #{cnn_norm_forward.9} parent=0 // pred_check_branch
    %1623 = sbr.rel (0) target = $region33
  $region32: #{cnn_norm_forward.9} parent=0 // pred_region
    _
  $region33: #{cnn_norm_forward.9} parent=0 // pred_fallthru
    _
  // Predicated region
  $region34: #{cnn_norm_forward.9} parent=0 // pred_check
    _
  $region35: #{cnn_norm_forward.9} parent=0 // pred_check_branch
    %1625 = sbr.rel (0) target = $region37
  $region36: #{cnn_norm_forward.9} parent=0 // pred_region
    _
  $region37: #{cnn_norm_forward.9} parent=0 // pred_fallthru
    _

// kernel: cnn_norm_forward.10
$region0: #{cnn_norm_forward.10}
  #allocation0 [shape = 'u32[]', space=smem, size = 0x4, offset = 0x4, fixed_abs, tag = 'smem constant byte address 0x4 - core index']
  #allocation1 [shape = 'u32[144,128]{1,0:T(1,128)}', space=vmem, size = 0x12000, scoped, tag = 'internal scratch']
  %s0 = inlined_call_operand.vmem [shape: f32[2,6,3,256], index: 0, kind: input, shape index: {}]
  %s1 = inlined_call_operand.vmem [shape: f32[1,128], index: 1, kind: input, shape index: {}]
  %s2 = inlined_call_operand.vmem [shape: f32[1,128], index: 2, kind: input, shape index: {}]
  %s3 = inlined_call_operand.vmem [shape: f32[1,128], index: 3, kind: input, shape index: {}]
  %s4 = inlined_call_operand.vmem [shape: f32[1,128], index: 4, kind: input, shape index: {}]
  %s5 = inlined_call_operand.vmem [shape: f32[2,3,3,128], index: 5, kind: output, shape index: {}]
  %s6 = sld [smem:[#allocation0]]
  $region53: #{cnn_norm_forward.10} parent=0
    _
  %s8 = ssub.s32 1, %s6
  %s9 = scalar_select 0, %s8, %s6
  loop: start=0, step=1, limit=4
  $region2: #{cnn_norm_forward.10} parent=0 // loop_pre_header
    _
  $region3: #{cnn_norm_forward.10} parent=0 // loop_header
    %s11 = sphi 0, %s15
    %p12 = scmp.ge.s32.totalorder %s11, 4
    %s18 = sphi 0, %s30
    %s19 = sphi 0, %s26
    %s20 = sphi 0, %s18
    %s21 = sphi 0, %s19
    %s22 = sphi 0, %s20
    %s23 = sphi 0, %s21
    %s35 = sphi 0, %s37
    %s38 = sphi 0, %s35
    %s39 = sphi 0, %s38
    %s55 = sphi 0, %s39
    %s59 = sphi 0, %s59
    %s61 = sphi 0, %s59
    %s62 = sphi 0, %s61
    %s76 = sphi 0, %s62
    %s80 = sphi 0, %s80
    %s82 = sphi 0, %s80
    %s83 = sphi 0, %s82
    %s97 = sphi 0, %s83
    %s101 = sphi 0, %s101
    %s103 = sphi 0, %s101
    %s104 = sphi 0, %s103
    %s118 = sphi 0, %s104
    %s122 = sphi 0, %s122
    %s124 = sphi 0, %s122
    %s125 = sphi 0, %s124
    %s139 = sphi 0, %s125
    %s147 = sphi 0, %s149
    %s150 = sphi 0, %s147
    %s151 = sphi 0, %s150
    %s167 = sphi 0, %s151
  $region4: #{cnn_norm_forward.10} parent=0 // loop_header_branch
    %14 = sbr.rel (%p12) target = $region8
  $region5: #{cnn_norm_forward.10} parent=0 // loop_body
    %s16 = ssub.s32 %s11, 1
    %s17 = ssub.s32 %s11, 2
    %s24 = sadd.s32 1, %s19
    %p25 = scmp.ge.s32.totalorder %s24, 1
    %s26 = scalar_select %p25, 0, %s24
    %s27 = sadd.s32 1, %s18
    %s28 = scalar_select %p25, %s27, %s18
    %p29 = scmp.ge.s32.totalorder %s28, 2
    %s30 = scalar_select %p29, 0, %s28
    %s31 = ssub.s32 %s18, %s30
    %s32 = ssub.s32 %s19, %s26
    %s33 = sor.u32 %s31, %s32
    %p34 = scmp.eq.s32.totalorder %s33, 0
    %s36 = sadd.s32 %s35, 1
    %s37 = scalar_select %p34, %s35, %s36
    %p40 = pneg %p34
    %p41 = scmp.eq.s32.totalorder %s11, 1
    %p42 = por %p40, %p41
    %p43 = scmp.ne.s32.totalorder %s35, %s38
    %p44 = scmp.eq.s32.totalorder %s11, 0
    %p45 = por %p43, %p44
    %p46 = scmp.ne.s32.totalorder %s35, %s38
    %p47 = scmp.eq.s32.totalorder %s16, 1
    %p48 = por %p46, %p47
    %p49 = scmp.ne.s32.totalorder %s38, %s39
    %p50 = scmp.eq.s32.totalorder %s16, 0
    %p51 = por %p49, %p50
    %p52 = scmp.ne.s32.totalorder %s38, %s39
    %p53 = scmp.eq.s32.totalorder %s17, 1
    %p54 = por %p52, %p53
    %p56 = scmp.ne.s32.totalorder %s39, %s55
    %p57 = scmp.eq.s32.totalorder %s17, 0
    %p58 = por %p56, %p57
    %s60 = sadd.s32 %s59, 1
    %p63 = scmp.eq.s32.totalorder %s11, 1
    %p64 = scmp.ne.s32.totalorder %s59, %s61
    %p65 = scmp.eq.s32.totalorder %s11, 0
    %p66 = por %p64, %p65
    %p67 = scmp.ne.s32.totalorder %s59, %s61
    %p68 = scmp.eq.s32.totalorder %s16, 1
    %p69 = por %p67, %p68
    %p70 = scmp.ne.s32.totalorder %s61, %s62
    %p71 = scmp.eq.s32.totalorder %s16, 0
    %p72 = por %p70, %p71
    %p73 = scmp.ne.s32.totalorder %s61, %s62
    %p74 = scmp.eq.s32.totalorder %s17, 1
    %p75 = por %p73, %p74
    %p77 = scmp.ne.s32.totalorder %s62, %s76
    %p78 = scmp.eq.s32.totalorder %s17, 0
    %p79 = por %p77, %p78
    %s81 = sadd.s32 %s80, 1
    %p84 = scmp.eq.s32.totalorder %s11, 1
    %p85 = scmp.ne.s32.totalorder %s80, %s82
    %p86 = scmp.eq.s32.totalorder %s11, 0
    %p87 = por %p85, %p86
    %p88 = scmp.ne.s32.totalorder %s80, %s82
    %p89 = scmp.eq.s32.totalorder %s16, 1
    %p90 = por %p88, %p89
    %p91 = scmp.ne.s32.totalorder %s82, %s83
    %p92 = scmp.eq.s32.totalorder %s16, 0
    %p93 = por %p91, %p92
    %p94 = scmp.ne.s32.totalorder %s82, %s83
    %p95 = scmp.eq.s32.totalorder %s17, 1
    %p96 = por %p94, %p95
    %p98 = scmp.ne.s32.totalorder %s83, %s97
    %p99 = scmp.eq.s32.totalorder %s17, 0
    %p100 = por %p98, %p99
    %s102 = sadd.s32 %s101, 1
    %p105 = scmp.eq.s32.totalorder %s11, 1
    %p106 = scmp.ne.s32.totalorder %s101, %s103
    %p107 = scmp.eq.s32.totalorder %s11, 0
    %p108 = por %p106, %p107
    %p109 = scmp.ne.s32.totalorder %s101, %s103
    %p110 = scmp.eq.s32.totalorder %s16, 1
    %p111 = por %p109, %p110
    %p112 = scmp.ne.s32.totalorder %s103, %s104
    %p113 = scmp.eq.s32.totalorder %s16, 0
    %p114 = por %p112, %p113
    %p115 = scmp.ne.s32.totalorder %s103, %s104
    %p116 = scmp.eq.s32.totalorder %s17, 1
    %p117 = por %p115, %p116
    %p119 = scmp.ne.s32.totalorder %s104, %s118
    %p120 = scmp.eq.s32.totalorder %s17, 0
    %p121 = por %p119, %p120
    %s123 = sadd.s32 %s122, 1
    %p126 = scmp.eq.s32.totalorder %s11, 1
    %p127 = scmp.ne.s32.totalorder %s122, %s124
    %p128 = scmp.eq.s32.totalorder %s11, 0
    %p129 = por %p127, %p128
    %p130 = scmp.ne.s32.totalorder %s122, %s124
    %p131 = scmp.eq.s32.totalorder %s16, 1
    %p132 = por %p130, %p131
    %p133 = scmp.ne.s32.totalorder %s124, %s125
    %p134 = scmp.eq.s32.totalorder %s16, 0
    %p135 = por %p133, %p134
    %p136 = scmp.ne.s32.totalorder %s124, %s125
    %p137 = scmp.eq.s32.totalorder %s17, 1
    %p138 = por %p136, %p137
    %p140 = scmp.ne.s32.totalorder %s125, %s139
    %p141 = scmp.eq.s32.totalorder %s17, 0
    %p142 = por %p140, %p141
    %s143 = ssub.s32 %s18, %s30
    %s144 = ssub.s32 %s19, %s26
    %s145 = sor.u32 %s143, %s144
    %p146 = scmp.eq.s32.totalorder %s145, 0
    %s148 = sadd.s32 %s147, 1
    %s149 = scalar_select %p146, %s147, %s148
    %p152 = pneg %p146
    %p153 = scmp.eq.s32.totalorder %s11, 1
    %p154 = por %p152, %p153
    %p155 = scmp.ne.s32.totalorder %s147, %s150
    %p156 = scmp.eq.s32.totalorder %s11, 0
    %p157 = por %p155, %p156
    %p158 = scmp.ne.s32.totalorder %s147, %s150
    %p159 = scmp.eq.s32.totalorder %s16, 1
    %p160 = por %p158, %p159
    %p161 = scmp.ne.s32.totalorder %s150, %s151
    %p162 = scmp.eq.s32.totalorder %s16, 0
    %p163 = por %p161, %p162
    %p164 = scmp.ne.s32.totalorder %s150, %s151
    %p165 = scmp.eq.s32.totalorder %s17, 1
    %p166 = por %p164, %p165
    %p168 = scmp.ne.s32.totalorder %s151, %s167
    %p169 = scmp.eq.s32.totalorder %s17, 0
    %p170 = por %p168, %p169
    %p171 = scmp.le.s32.totalorder 1, %s11
    %p172 = scmp.lt.s32.totalorder %s11, 3
    %p173 = pnand %p171, %p172
    %p174 = pneg %p173
    // Predicated region
    $region9: #{cnn_norm_forward.10} parent=5 // pred_check
      _
    $region10: #{cnn_norm_forward.10} parent=5 // pred_check_branch
      %176 = sbr.rel (%p173) target = $region12
    $region11: #{cnn_norm_forward.10} parent=5 // pred_region
      %s177 = ssub.s32 %s11, 1
      // Predicated region
      $region13: #{cnn_norm_forward.10} parent=11 // pred_check
        %p178 = pneg %p72
      $region14: #{cnn_norm_forward.10} parent=11 // pred_check_branch
        %180 = sbr.rel (%p178) target = $region16
      $region15: #{cnn_norm_forward.10} parent=11 // pred_region
        _
      $region16: #{cnn_norm_forward.10} parent=11 // pred_fallthru
        _
      // Predicated region
      $region17: #{cnn_norm_forward.10} parent=11 // pred_check
        %p181 = pneg %p93
      $region18: #{cnn_norm_forward.10} parent=11 // pred_check_branch
        %183 = sbr.rel (%p181) target = $region20
      $region19: #{cnn_norm_forward.10} parent=11 // pred_region
        _
      $region20: #{cnn_norm_forward.10} parent=11 // pred_fallthru
        _
      // Predicated region
      $region21: #{cnn_norm_forward.10} parent=11 // pred_check
        %p184 = pneg %p114
      $region22: #{cnn_norm_forward.10} parent=11 // pred_check_branch
        %186 = sbr.rel (%p184) target = $region24
      $region23: #{cnn_norm_forward.10} parent=11 // pred_region
        _
      $region24: #{cnn_norm_forward.10} parent=11 // pred_fallthru
        _
      // Predicated region
      $region25: #{cnn_norm_forward.10} parent=11 // pred_check
        %p187 = pneg %p135
      $region26: #{cnn_norm_forward.10} parent=11 // pred_check_branch
        %189 = sbr.rel (%p187) target = $region28
      $region27: #{cnn_norm_forward.10} parent=11 // pred_region
        _
      $region28: #{cnn_norm_forward.10} parent=11 // pred_fallthru
        _
    $region12: #{cnn_norm_forward.10} parent=5 // pred_fallthru
      _
    %p190 = scmp.lt.s32.totalorder %s11, 2
    // Predicated region
    $region29: #{cnn_norm_forward.10} parent=5 // pred_check
      %p191 = pneg %p190
    $region30: #{cnn_norm_forward.10} parent=5 // pred_check_branch
      %193 = sbr.rel (%p191) target = $region32
    $region31: #{cnn_norm_forward.10} parent=5 // pred_region
      // Predicated region
      $region33: #{cnn_norm_forward.10} parent=31 // pred_check
        %p194 = pneg %p45
      $region34: #{cnn_norm_forward.10} parent=31 // pred_check_branch
        %196 = sbr.rel (%p194) target = $region36
      $region35: #{cnn_norm_forward.10} parent=31 // pred_region
        %s197 = smul.u32 6, %s19
        %p198 = scmp.lt.s32.totalorder %s18, 1
        %s199 = scalar_select %p198, %s18, 1
        %p200 = scmp.lt.s32.totalorder %s197, 5
        %s201 = scalar_select %p200, %s197, 5
        %s202 = smul.addr %s201, 2
        %s203 = smul.addr %s199, 12
        %s204 = sadd.s32 %s202, %s203
        %s205 = smul.addr %s204, 4
        %s206 = scalar_lea.vmem %s0, %s205
        %s207 = smul.u32 6, %s19
      $region36: #{cnn_norm_forward.10} parent=31 // pred_fallthru
        _
    $region32: #{cnn_norm_forward.10} parent=5 // pred_fallthru
      _
    %p208 = scmp.le.s32.totalorder 1, %s11
    %p209 = scmp.lt.s32.totalorder %s11, 3
    %p210 = pnand %p208, %p209
    %p211 = pneg %p210
    // Predicated region
    $region37: #{cnn_norm_forward.10} parent=5 // pred_check
      _
    $region38: #{cnn_norm_forward.10} parent=5 // pred_check_branch
      %213 = sbr.rel (%p210) target = $region40
    $region39: #{cnn_norm_forward.10} parent=5 // pred_region
      %s214 = ssub.s32 %s11, 1
      %s215 = smul.u32 6, %s21
      %p216 = scmp.lt.s32.totalorder %s20, 1
      %s217 = scalar_select %p216, %s20, 1
      %p218 = scmp.lt.s32.totalorder %s215, 5
      %s219 = scalar_select %p218, %s215, 5
      %s220 = smul.addr %s219, 2
      %s221 = smul.addr %s217, 12
      %s222 = sadd.s32 %s220, %s221
      %s223 = smul.addr %s222, 4
      %s224 = scalar_lea.vmem %s0, %s223
      %p225 = pneg %p51
      %p226 = pneg %p48
      %p227 = pneg %p72
      %p228 = pneg %p69
      %p229 = pneg %p93
      %p230 = pneg %p90
      %p231 = pneg %p114
      %p232 = pneg %p111
      %p233 = pneg %p135
      %p234 = pneg %p132
      %p235 = pneg %p163
      %p236 = pneg %p160
      %s237 = smul.u32 3, %s21
      %p238 = scmp.lt.s32.totalorder %s20, 1
      %s239 = scalar_select %p238, %s20, 1
      %p240 = scmp.lt.s32.totalorder %s237, 2
      %s241 = scalar_select %p240, %s237, 2
      %s242 = smul.addr %s239, 3
      %s243 = sadd.s32 %s241, %s242
      %s244 = smul.addr %s243, 4
      %s245 = scalar_lea.vmem %s5, %s244
      %s246 = smul.u32 6, %s21
      %p247 = scmp.lt.s32.totalorder %s20, 1
      %s248 = scalar_select %p247, %s20, 1
      %p249 = scmp.lt.s32.totalorder %s246, 5
      %s250 = scalar_select %p249, %s246, 5
      %s251 = smul.addr %s250, 2
      %s252 = smul.addr %s248, 12
      %s253 = sadd.s32 %s251, %s252
      %s254 = smul.addr %s253, 4
      %s255 = scalar_lea.vmem %s0, %s254
      %s256 = smul.u32 6, %s21
      %s257 = smul.u32 3, %s21
      %p258 = scmp.lt.s32.totalorder %s20, 1
      %s259 = scalar_select %p258, %s20, 1
      %p260 = scmp.lt.s32.totalorder %s257, 2
      %s261 = scalar_select %p260, %s257, 2
      %s262 = smul.addr %s259, 3
      %s263 = sadd.s32 %s261, %s262
      %s264 = smul.addr %s263, 4
      %s265 = scalar_lea.vmem %s5, %s264
      %s266 = smul.u32 3, %s21
      %v267 = vld [vmem:[%s1] sm:$0x1]
      %v268 = vmul.f32 %v267, 0.013888889
      %v269 = vmul.f32 %v267, 0.0
      %v270 = vld [vmem:[%s2] sm:$0x1]
      %v271 = vmul.f32 %v270, 0.013888889
      %v272 = vadd.f32 %v269, %v271
      %v273 = vmul.f32 %v268, %v268
      %v274 = vsub.f32 %v272, %v273
      %v275 = vld [vmem:[%s3] sm:$0x1]
      %v276 = vadd.f32 %v274, 1e-05
      %v277 = vrsqrt.pop %v276
      %v278 = vmul.f32 %v275, %v277
      %v279 = vld [vmem:[%s4] sm:$0x1]
      %v280 = vmul.f32 %v268, %v278
      %v281 = vsub.f32 %v279, %v280
      %v282 = vld [vmem:[%s255] sm:$0x77]
      %v283 = vlaneseq
      %v284 = vshrl.u32 %v283, 7
      %v285 = vsub.s32 0, %v284
      %v286 = vrot.slane %v278, %v285
      %v288 = vcombine.low %v286, %v286
      %v290 = vmul.f32 %v282, %v288
      %v291 = vlaneseq
      %v292 = vshrl.u32 %v291, 7
      %v293 = vsub.s32 0, %v292
      %v294 = vrot.slane %v281, %v293
      %v296 = vcombine.low %v294, %v294
      %v298 = vadd.f32 %v290, %v296
      %vm299 = vcmp.ge.f32.partialorder %v298, 0.0
      %v300 = vmul.f32 %v298, 0.01
      %v301 = vsel %vm299, %v298, %v300
      %s302 = scalar_lea.vmem %s255, 8
      %v303 = vld [vmem:[%s302] sm:$0x77]
      %v304 = vmul.f32 %v303, %v288
      %v305 = vadd.f32 %v304, %v296
      %vm306 = vcmp.ge.f32.partialorder %v305, 0.0
      %v307 = vmul.f32 %v305, 0.01
      %v308 = vsel %vm306, %v305, %v307
      %v309 = vmax.f32 %v301, %v308
      %v311 = vrot.slane %v309, 4
      %v313 = vmax.f32 %v309, %v311
      %314 = vst [vmem:[%s265] sm:$0x7] %v313
      %s315 = scalar_lea.vmem %s255, 16
      %v316 = vld [vmem:[%s315] sm:$0x77]
      %v317 = vmul.f32 %v316, %v288
      %v318 = vadd.f32 %v317, %v296
      %vm319 = vcmp.ge.f32.partialorder %v318, 0.0
      %v320 = vmul.f32 %v318, 0.01
      %v321 = vsel %vm319, %v318, %v320
      %s322 = scalar_lea.vmem %s255, 24
      %v323 = vld [vmem:[%s322] sm:$0x77]
      %v324 = vmul.f32 %v323, %v288
      %v325 = vadd.f32 %v324, %v296
      %vm326 = vcmp.ge.f32.partialorder %v325, 0.0
      %v327 = vmul.f32 %v325, 0.01
      %v328 = vsel %vm326, %v325, %v327
      %v329 = vmax.f32 %v321, %v328
      %v331 = vrot.slane %v329, 4
      %v333 = vmax.f32 %v329, %v331
      %s334 = scalar_lea.vmem %s265, 4
      %335 = vst [vmem:[%s334] sm:$0x7] %v333
      %s336 = scalar_lea.vmem %s255, 32
      %v337 = vld [vmem:[%s336] sm:$0x77]
      %v338 = vmul.f32 %v337, %v288
      %v339 = vadd.f32 %v338, %v296
      %vm340 = vcmp.ge.f32.partialorder %v339, 0.0
      %v341 = vmul.f32 %v339, 0.01
      %v342 = vsel %vm340, %v339, %v341
      %s343 = scalar_lea.vmem %s255, 40
      %v344 = vld [vmem:[%s343] sm:$0x77]
      %v345 = vmul.f32 %v344, %v288
      %v346 = vadd.f32 %v345, %v296
      %vm347 = vcmp.ge.f32.partialorder %v346, 0.0
      %v348 = vmul.f32 %v346, 0.01
      %v349 = vsel %vm347, %v346, %v348
      %v350 = vmax.f32 %v342, %v349
      %v352 = vrot.slane %v350, 4
      %v354 = vmax.f32 %v350, %v352
      %s355 = scalar_lea.vmem %s265, 8
      %356 = vst [vmem:[%s355] sm:$0x7] %v354
      %s357 = smul.u32 3, %s21
      %p358 = scmp.lt.s32.totalorder %s20, 1
      %s359 = scalar_select %p358, %s20, 1
      %p360 = scmp.lt.s32.totalorder %s357, 2
      %s361 = scalar_select %p360, %s357, 2
      %s362 = smul.addr %s359, 3
      %s363 = sadd.s32 %s361, %s362
      %s364 = smul.addr %s363, 4
      %s365 = scalar_lea.vmem %s5, %s364
      // Predicated region
      $region41: #{cnn_norm_forward.10} parent=39 // pred_check
        %p366 = pneg %p160
      $region42: #{cnn_norm_forward.10} parent=39 // pred_check_branch
        %368 = sbr.rel (%p366) target = $region44
      $region43: #{cnn_norm_forward.10} parent=39 // pred_region
        %s369 = smul.u32 3, %s21
      $region44: #{cnn_norm_forward.10} parent=39 // pred_fallthru
        _
    $region40: #{cnn_norm_forward.10} parent=5 // pred_fallthru
      _
    %p370 = scmp.le.s32.totalorder 2, %s11
    // Predicated region
    $region45: #{cnn_norm_forward.10} parent=5 // pred_check
      %p371 = pneg %p370
    $region46: #{cnn_norm_forward.10} parent=5 // pred_check_branch
      %373 = sbr.rel (%p371) target = $region48
    $region47: #{cnn_norm_forward.10} parent=5 // pred_region
      %s374 = ssub.s32 %s11, 2
      // Predicated region
      $region49: #{cnn_norm_forward.10} parent=47 // pred_check
        %p375 = pneg %p166
      $region50: #{cnn_norm_forward.10} parent=47 // pred_check_branch
        %377 = sbr.rel (%p375) target = $region52
      $region51: #{cnn_norm_forward.10} parent=47 // pred_region
        %s378 = smul.u32 3, %s23
        %p379 = scmp.lt.s32.totalorder %s22, 1
        %s380 = scalar_select %p379, %s22, 1
        %p381 = scmp.lt.s32.totalorder %s378, 2
        %s382 = scalar_select %p381, %s378, 2
        %s383 = smul.addr %s380, 3
        %s384 = sadd.s32 %s382, %s383
        %s385 = smul.addr %s384, 4
        %s386 = scalar_lea.vmem %s5, %s385
      $region52: #{cnn_norm_forward.10} parent=47 // pred_fallthru
        _
    $region48: #{cnn_norm_forward.10} parent=5 // pred_fallthru
      _
  $region6: #{cnn_norm_forward.10} parent=0 // loop_footer
    %s15 = sadd.s32 1, %s11
  $region7: #{cnn_norm_forward.10} parent=0 // loop_footer_branch
    %10 = sbr.rel target = $region3
  $region8: #{cnn_norm_forward.10} parent=0 // loop_exit
    _

// kernel: cnn_norm_forward.12
$region0: #{cnn_norm_forward.12}
  #allocation0 [shape = 'u32[]', space=smem, size = 0x4, offset = 0x4, fixed_abs, tag = 'smem constant byte address 0x4 - core index']
  #allocation1 [shape = 'u32[144,128]{1,0:T(1,128)}', space=vmem, size = 0x12000, scoped, tag = 'internal scratch']
  %s0 = inlined_call_operand.vmem [shape: f32[2,2,1,512], index: 0, kind: input, shape index: {}]
  %s1 = inlined_call_operand.vmem [shape: f32[1,256], index: 1, kind: input, shape index: {}]
  %s2 = inlined_call_operand.vmem [shape: f32[1,256], index: 2, kind: input, shape index: {}]
  %s3 = inlined_call_operand.vmem [shape: f32[1,256], index: 3, kind: input, shape index: {}]
  %s4 = inlined_call_operand.vmem [shape: f32[1,256], index: 4, kind: input, shape index: {}]
  %s5 = inlined_call_operand.vmem [shape: f32[2,1,1,256], index: 5, kind: output, shape index: {}]
  %s6 = sld [smem:[#allocation0]]
  $region53: #{cnn_norm_forward.12} parent=0
    _
  %s8 = ssub.s32 1, %s6
  %s9 = scalar_select 0, %s8, %s6
  loop: start=0, step=1, limit=4
  $region2: #{cnn_norm_forward.12} parent=0 // loop_pre_header
    _
  $region3: #{cnn_norm_forward.12} parent=0 // loop_header
    %s11 = sphi 0, %s15
    %p12 = scmp.ge.s32.totalorder %s11, 4
    %s18 = sphi 0, %s30
    %s19 = sphi 0, %s26
    %s20 = sphi 0, %s18
    %s21 = sphi 0, %s19
    %s22 = sphi 0, %s20
    %s23 = sphi 0, %s21
    %s35 = sphi 0, %s37
    %s38 = sphi 0, %s35
    %s39 = sphi 0, %s38
    %s55 = sphi 0, %s39
    %s59 = sphi 0, %s59
    %s61 = sphi 0, %s59
    %s62 = sphi 0, %s61
    %s76 = sphi 0, %s62
    %s80 = sphi 0, %s80
    %s82 = sphi 0, %s80
    %s83 = sphi 0, %s82
    %s97 = sphi 0, %s83
    %s101 = sphi 0, %s101
    %s103 = sphi 0, %s101
    %s104 = sphi 0, %s103
    %s118 = sphi 0, %s104
    %s122 = sphi 0, %s122
    %s124 = sphi 0, %s122
    %s125 = sphi 0, %s124
    %s139 = sphi 0, %s125
    %s147 = sphi 0, %s149
    %s150 = sphi 0, %s147
    %s151 = sphi 0, %s150
    %s167 = sphi 0, %s151
  $region4: #{cnn_norm_forward.12} parent=0 // loop_header_branch
    %14 = sbr.rel (%p12) target = $region8
  $region5: #{cnn_norm_forward.12} parent=0 // loop_body
    %s16 = ssub.s32 %s11, 1
    %s17 = ssub.s32 %s11, 2
    %s24 = sadd.s32 1, %s19
    %p25 = scmp.ge.s32.totalorder %s24, 1
    %s26 = scalar_select %p25, 0, %s24
    %s27 = sadd.s32 1, %s18
    %s28 = scalar_select %p25, %s27, %s18
    %p29 = scmp.ge.s32.totalorder %s28, 2
    %s30 = scalar_select %p29, 0, %s28
    %s31 = ssub.s32 %s18, %s30
    %s32 = ssub.s32 %s19, %s26
    %s33 = sor.u32 %s31, %s32
    %p34 = scmp.eq.s32.totalorder %s33, 0
    %s36 = sadd.s32 %s35, 1
    %s37 = scalar_select %p34, %s35, %s36
    %p40 = pneg %p34
    %p41 = scmp.eq.s32.totalorder %s11, 1
    %p42 = por %p40, %p41
    %p43 = scmp.ne.s32.totalorder %s35, %s38
    %p44 = scmp.eq.s32.totalorder %s11, 0
    %p45 = por %p43, %p44
    %p46 = scmp.ne.s32.totalorder %s35, %s38
    %p47 = scmp.eq.s32.totalorder %s16, 1
    %p48 = por %p46, %p47
    %p49 = scmp.ne.s32.totalorder %s38, %s39
    %p50 = scmp.eq.s32.totalorder %s16, 0
    %p51 = por %p49, %p50
    %p52 = scmp.ne.s32.totalorder %s38, %s39
    %p53 = scmp.eq.s32.totalorder %s17, 1
    %p54 = por %p52, %p53
    %p56 = scmp.ne.s32.totalorder %s39, %s55
    %p57 = scmp.eq.s32.totalorder %s17, 0
    %p58 = por %p56, %p57
    %s60 = sadd.s32 %s59, 1
    %p63 = scmp.eq.s32.totalorder %s11, 1
    %p64 = scmp.ne.s32.totalorder %s59, %s61
    %p65 = scmp.eq.s32.totalorder %s11, 0
    %p66 = por %p64, %p65
    %p67 = scmp.ne.s32.totalorder %s59, %s61
    %p68 = scmp.eq.s32.totalorder %s16, 1
    %p69 = por %p67, %p68
    %p70 = scmp.ne.s32.totalorder %s61, %s62
    %p71 = scmp.eq.s32.totalorder %s16, 0
    %p72 = por %p70, %p71
    %p73 = scmp.ne.s32.totalorder %s61, %s62
    %p74 = scmp.eq.s32.totalorder %s17, 1
    %p75 = por %p73, %p74
    %p77 = scmp.ne.s32.totalorder %s62, %s76
    %p78 = scmp.eq.s32.totalorder %s17, 0
    %p79 = por %p77, %p78
    %s81 = sadd.s32 %s80, 1
    %p84 = scmp.eq.s32.totalorder %s11, 1
    %p85 = scmp.ne.s32.totalorder %s80, %s82
    %p86 = scmp.eq.s32.totalorder %s11, 0
    %p87 = por %p85, %p86
    %p88 = scmp.ne.s32.totalorder %s80, %s82
    %p89 = scmp.eq.s32.totalorder %s16, 1
    %p90 = por %p88, %p89
    %p91 = scmp.ne.s32.totalorder %s82, %s83
    %p92 = scmp.eq.s32.totalorder %s16, 0
    %p93 = por %p91, %p92
    %p94 = scmp.ne.s32.totalorder %s82, %s83
    %p95 = scmp.eq.s32.totalorder %s17, 1
    %p96 = por %p94, %p95
    %p98 = scmp.ne.s32.totalorder %s83, %s97
    %p99 = scmp.eq.s32.totalorder %s17, 0
    %p100 = por %p98, %p99
    %s102 = sadd.s32 %s101, 1
    %p105 = scmp.eq.s32.totalorder %s11, 1
    %p106 = scmp.ne.s32.totalorder %s101, %s103
    %p107 = scmp.eq.s32.totalorder %s11, 0
    %p108 = por %p106, %p107
    %p109 = scmp.ne.s32.totalorder %s101, %s103
    %p110 = scmp.eq.s32.totalorder %s16, 1
    %p111 = por %p109, %p110
    %p112 = scmp.ne.s32.totalorder %s103, %s104
    %p113 = scmp.eq.s32.totalorder %s16, 0
    %p114 = por %p112, %p113
    %p115 = scmp.ne.s32.totalorder %s103, %s104
    %p116 = scmp.eq.s32.totalorder %s17, 1
    %p117 = por %p115, %p116
    %p119 = scmp.ne.s32.totalorder %s104, %s118
    %p120 = scmp.eq.s32.totalorder %s17, 0
    %p121 = por %p119, %p120
    %s123 = sadd.s32 %s122, 1
    %p126 = scmp.eq.s32.totalorder %s11, 1
    %p127 = scmp.ne.s32.totalorder %s122, %s124
    %p128 = scmp.eq.s32.totalorder %s11, 0
    %p129 = por %p127, %p128
    %p130 = scmp.ne.s32.totalorder %s122, %s124
    %p131 = scmp.eq.s32.totalorder %s16, 1
    %p132 = por %p130, %p131
    %p133 = scmp.ne.s32.totalorder %s124, %s125
    %p134 = scmp.eq.s32.totalorder %s16, 0
    %p135 = por %p133, %p134
    %p136 = scmp.ne.s32.totalorder %s124, %s125
    %p137 = scmp.eq.s32.totalorder %s17, 1
    %p138 = por %p136, %p137
    %p140 = scmp.ne.s32.totalorder %s125, %s139
    %p141 = scmp.eq.s32.totalorder %s17, 0
    %p142 = por %p140, %p141
    %s143 = ssub.s32 %s18, %s30
    %s144 = ssub.s32 %s19, %s26
    %s145 = sor.u32 %s143, %s144
    %p146 = scmp.eq.s32.totalorder %s145, 0
    %s148 = sadd.s32 %s147, 1
    %s149 = scalar_select %p146, %s147, %s148
    %p152 = pneg %p146
    %p153 = scmp.eq.s32.totalorder %s11, 1
    %p154 = por %p152, %p153
    %p155 = scmp.ne.s32.totalorder %s147, %s150
    %p156 = scmp.eq.s32.totalorder %s11, 0
    %p157 = por %p155, %p156
    %p158 = scmp.ne.s32.totalorder %s147, %s150
    %p159 = scmp.eq.s32.totalorder %s16, 1
    %p160 = por %p158, %p159
    %p161 = scmp.ne.s32.totalorder %s150, %s151
    %p162 = scmp.eq.s32.totalorder %s16, 0
    %p163 = por %p161, %p162
    %p164 = scmp.ne.s32.totalorder %s150, %s151
    %p165 = scmp.eq.s32.totalorder %s17, 1
    %p166 = por %p164, %p165
    %p168 = scmp.ne.s32.totalorder %s151, %s167
    %p169 = scmp.eq.s32.totalorder %s17, 0
    %p170 = por %p168, %p169
    %p171 = scmp.le.s32.totalorder 1, %s11
    %p172 = scmp.lt.s32.totalorder %s11, 3
    %p173 = pnand %p171, %p172
    %p174 = pneg %p173
    // Predicated region
    $region9: #{cnn_norm_forward.12} parent=5 // pred_check
      _
    $region10: #{cnn_norm_forward.12} parent=5 // pred_check_branch
      %176 = sbr.rel (%p173) target = $region12
    $region11: #{cnn_norm_forward.12} parent=5 // pred_region
      %s177 = ssub.s32 %s11, 1
      // Predicated region
      $region13: #{cnn_norm_forward.12} parent=11 // pred_check
        %p178 = pneg %p72
      $region14: #{cnn_norm_forward.12} parent=11 // pred_check_branch
        %180 = sbr.rel (%p178) target = $region16
      $region15: #{cnn_norm_forward.12} parent=11 // pred_region
        _
      $region16: #{cnn_norm_forward.12} parent=11 // pred_fallthru
        _
      // Predicated region
      $region17: #{cnn_norm_forward.12} parent=11 // pred_check
        %p181 = pneg %p93
      $region18: #{cnn_norm_forward.12} parent=11 // pred_check_branch
        %183 = sbr.rel (%p181) target = $region20
      $region19: #{cnn_norm_forward.12} parent=11 // pred_region
        _
      $region20: #{cnn_norm_forward.12} parent=11 // pred_fallthru
        _
      // Predicated region
      $region21: #{cnn_norm_forward.12} parent=11 // pred_check
        %p184 = pneg %p114
      $region22: #{cnn_norm_forward.12} parent=11 // pred_check_branch
        %186 = sbr.rel (%p184) target = $region24
      $region23: #{cnn_norm_forward.12} parent=11 // pred_region
        _
      $region24: #{cnn_norm_forward.12} parent=11 // pred_fallthru
        _
      // Predicated region
      $region25: #{cnn_norm_forward.12} parent=11 // pred_check
        %p187 = pneg %p135
      $region26: #{cnn_norm_forward.12} parent=11 // pred_check_branch
        %189 = sbr.rel (%p187) target = $region28
      $region27: #{cnn_norm_forward.12} parent=11 // pred_region
        _
      $region28: #{cnn_norm_forward.12} parent=11 // pred_fallthru
        _
    $region12: #{cnn_norm_forward.12} parent=5 // pred_fallthru
      _
    %p190 = scmp.lt.s32.totalorder %s11, 2
    // Predicated region
    $region29: #{cnn_norm_forward.12} parent=5 // pred_check
      %p191 = pneg %p190
    $region30: #{cnn_norm_forward.12} parent=5 // pred_check_branch
      %193 = sbr.rel (%p191) target = $region32
    $region31: #{cnn_norm_forward.12} parent=5 // pred_region
      // Predicated region
      $region33: #{cnn_norm_forward.12} parent=31 // pred_check
        %p194 = pneg %p45
      $region34: #{cnn_norm_forward.12} parent=31 // pred_check_branch
        %196 = sbr.rel (%p194) target = $region36
      $region35: #{cnn_norm_forward.12} parent=31 // pred_region
        %s197 = smul.u32 2, %s19
        %p198 = scmp.lt.s32.totalorder %s18, 1
        %s199 = scalar_select %p198, %s18, 1
        %p200 = scmp.lt.s32.totalorder %s197, 1
        %s201 = scalar_select %p200, %s197, 1
        %s202 = smul.addr %s201, 4
        %s203 = smul.addr %s199, 8
        %s204 = sadd.s32 %s202, %s203
        %s205 = scalar_lea.vmem %s0, %s204
        %s206 = smul.u32 2, %s19
      $region36: #{cnn_norm_forward.12} parent=31 // pred_fallthru
        _
    $region32: #{cnn_norm_forward.12} parent=5 // pred_fallthru
      _
    %p207 = scmp.le.s32.totalorder 1, %s11
    %p208 = scmp.lt.s32.totalorder %s11, 3
    %p209 = pnand %p207, %p208
    %p210 = pneg %p209
    // Predicated region
    $region37: #{cnn_norm_forward.12} parent=5 // pred_check
      _
    $region38: #{cnn_norm_forward.12} parent=5 // pred_check_branch
      %212 = sbr.rel (%p209) target = $region40
    $region39: #{cnn_norm_forward.12} parent=5 // pred_region
      %s213 = ssub.s32 %s11, 1
      %s214 = smul.u32 2, %s21
      %p215 = scmp.lt.s32.totalorder %s20, 1
      %s216 = scalar_select %p215, %s20, 1
      %p217 = scmp.lt.s32.totalorder %s214, 1
      %s218 = scalar_select %p217, %s214, 1
      %s219 = smul.addr %s218, 4
      %s220 = smul.addr %s216, 8
      %s221 = sadd.s32 %s219, %s220
      %s222 = scalar_lea.vmem %s0, %s221
      %p223 = pneg %p51
      %p224 = pneg %p48
      %p225 = pneg %p72
      %p226 = pneg %p69
      %p227 = pneg %p93
      %p228 = pneg %p90
      %p229 = pneg %p114
      %p230 = pneg %p111
      %p231 = pneg %p135
      %p232 = pneg %p132
      %p233 = pneg %p163
      %p234 = pneg %p160
      %p235 = scmp.lt.s32.totalorder %s20, 1
      %s236 = scalar_select %p235, %s20, 1
      %p237 = scmp.lt.s32.totalorder %s21, 0
      %s238 = scalar_select %p237, %s21, 0
      %s239 = smul.addr %s238, 2
      %s240 = smul.addr %s236, 2
      %s241 = sadd.s32 %s239, %s240
      %s242 = scalar_lea.vmem %s5, %s241
      %s243 = smul.u32 2, %s21
      %p244 = scmp.lt.s32.totalorder %s20, 1
      %s245 = scalar_select %p244, %s20, 1
      %p246 = scmp.lt.s32.totalorder %s243, 1
      %s247 = scalar_select %p246, %s243, 1
      %s248 = smul.addr %s247, 4
      %s249 = smul.addr %s245, 8
      %s250 = sadd.s32 %s248, %s249
      %s251 = scalar_lea.vmem %s0, %s250
      %s252 = smul.u32 2, %s21
      %p253 = scmp.lt.s32.totalorder %s20, 1
      %s254 = scalar_select %p253, %s20, 1
      %p255 = scmp.lt.s32.totalorder %s21, 0
      %s256 = scalar_select %p255, %s21, 0
      %s257 = smul.addr %s256, 2
      %s258 = smul.addr %s254, 2
      %s259 = sadd.s32 %s257, %s258
      %s260 = scalar_lea.vmem %s5, %s259
      %v261 = vld [vmem:[%s1] sm:$0x3]
      %v262 = vmul.f32 %v261, 0.125
      %v263 = vmul.f32 %v261, 0.0
      %v264 = vld [vmem:[%s2] sm:$0x3]
      %v265 = vmul.f32 %v264, 0.125
      %v266 = vadd.f32 %v263, %v265
      %v267 = vmul.f32 %v262, %v262
      %v268 = vsub.f32 %v266, %v267
      %v269 = vld [vmem:[%s3] sm:$0x3]
      %v270 = vadd.f32 %v268, 1e-05
      %v271 = vrsqrt.pop %v270
      %v272 = vmul.f32 %v269, %v271
      %v273 = vld [vmem:[%s4] sm:$0x3]
      %v274 = vmul.f32 %v262, %v272
      %v275 = vsub.f32 %v273, %v274
      %v277 = vlaneseq
      %v278 = vshrl.u32 %v277, 7
      %v279 = vsub.s32 0, %v278
      %v280 = vrot.slane %v272, %v279
      %v281 = vlaneseq
      %v282 = vshrl.u32 %v281, 7
      %v283 = vsub.s32 1, %v282
      %v284 = vrot.slane %v272, %v283
      %v286 = vlaneseq
      %v287 = vshrl.u32 %v286, 7
      %v288 = vsub.s32 0, %v287
      %v289 = vrot.slane %v275, %v288
      %v290 = vlaneseq
      %v291 = vshrl.u32 %v290, 7
      %v292 = vsub.s32 1, %v291
      %v293 = vrot.slane %v275, %v292
      %v294 = vld [vmem:[%s251] sm:$0xf]
      %v295 = vcombine.low %v280, %v284
      %v297 = vunpack.c.l.s4 1966171168
      %v298 = vunpack.c.0.s8 %v297
      %v299 = vlaneseq
      %v300 = vshrl.u32 %v299, 7
      %v301 = vsub.s32 %v298, %v300
      %v302 = vrot.slane %v295, %v301
      %v303 = vcombine.low %v302, %v302
      %v305 = vunpack.c.l.s4 1966171168
      %v306 = vunpack.c.0.s8 %v305
      %v307 = vlaneseq
      %v308 = vshrl.u32 %v307, 7
      %v309 = vsub.s32 %v306, %v308
      %v310 = vrot.slane %v303, %v309
      %v312 = vmul.f32 %v294, %v310
      %v313 = vcombine.low %v289, %v293
      %v315 = vunpack.c.l.s4 1966171168
      %v316 = vunpack.c.0.s8 %v315
      %v317 = vlaneseq
      %v318 = vshrl.u32 %v317, 7
      %v319 = vsub.s32 %v316, %v318
      %v320 = vrot.slane %v313, %v319
      %v321 = vcombine.low %v320, %v320
      %v323 = vunpack.c.l.s4 1966171168
      %v324 = vunpack.c.0.s8 %v323
      %v325 = vlaneseq
      %v326 = vshrl.u32 %v325, 7
      %v327 = vsub.s32 %v324, %v326
      %v328 = vrot.slane %v321, %v327
      %v330 = vadd.f32 %v312, %v328
      %vm331 = vcmp.ge.f32.partialorder %v330, 0.0
      %v332 = vmul.f32 %v330, 0.01
      %v333 = vsel %vm331, %v330, %v332
      %s334 = scalar_lea.vmem %s251, 4
      %v335 = vld [vmem:[%s334] sm:$0xf]
      %v336 = vmul.f32 %v335, %v310
      %v337 = vadd.f32 %v336, %v328
      %vm338 = vcmp.ge.f32.partialorder %v337, 0.0
      %v339 = vmul.f32 %v337, 0.01
      %v340 = vsel %vm338, %v337, %v339
      %v341 = vmax.f32 %v333, %v340
      %v343 = vrot.slane %v341, 2
      %v345 = vmax.f32 %v341, %v343
      %v346 = vlaneseq
      %vm347 = vcmp.ge.s32.totalorder %v346, 0
      %vm348 = vcmp.lt.s32.totalorder %v346, 256
      %vm349 = vmand %vm347, %vm348
      %350 = vst.msk [vmem:[%s260] sm:$0x3] %vm349, %v345
      %p351 = scmp.lt.s32.totalorder %s20, 1
      %s352 = scalar_select %p351, %s20, 1
      %p353 = scmp.lt.s32.totalorder %s21, 0
      %s354 = scalar_select %p353, %s21, 0
      %s355 = smul.addr %s354, 2
      %s356 = smul.addr %s352, 2
      %s357 = sadd.s32 %s355, %s356
      %s358 = scalar_lea.vmem %s5, %s357
      // Predicated region
      $region41: #{cnn_norm_forward.12} parent=39 // pred_check
        %p359 = pneg %p160
      $region42: #{cnn_norm_forward.12} parent=39 // pred_check_branch
        %361 = sbr.rel (%p359) target = $region44
      $region43: #{cnn_norm_forward.12} parent=39 // pred_region
        _
      $region44: #{cnn_norm_forward.12} parent=39 // pred_fallthru
        _
    $region40: #{cnn_norm_forward.12} parent=5 // pred_fallthru
      _
    %p362 = scmp.le.s32.totalorder 2, %s11
    // Predicated region
    $region45: #{cnn_norm_forward.12} parent=5 // pred_check
      %p363 = pneg %p362
    $region46: #{cnn_norm_forward.12} parent=5 // pred_check_branch
      %365 = sbr.rel (%p363) target = $region48
    $region47: #{cnn_norm_forward.12} parent=5 // pred_region
      %s366 = ssub.s32 %s11, 2
      // Predicated region
      $region49: #{cnn_norm_forward.12} parent=47 // pred_check
        %p367 = pneg %p166
      $region50: #{cnn_norm_forward.12} parent=47 // pred_check_branch
        %369 = sbr.rel (%p367) target = $region52
      $region51: #{cnn_norm_forward.12} parent=47 // pred_region
        %p370 = scmp.lt.s32.totalorder %s22, 1
        %s371 = scalar_select %p370, %s22, 1
        %p372 = scmp.lt.s32.totalorder %s23, 0
        %s373 = scalar_select %p372, %s23, 0
        %s374 = smul.addr %s373, 2
        %s375 = smul.addr %s371, 2
        %s376 = sadd.s32 %s374, %s375
        %s377 = scalar_lea.vmem %s5, %s376
      $region52: #{cnn_norm_forward.12} parent=47 // pred_fallthru
        _
    $region48: #{cnn_norm_forward.12} parent=5 // pred_fallthru
      _
  $region6: #{cnn_norm_forward.12} parent=0 // loop_footer
    %s15 = sadd.s32 1, %s11
  $region7: #{cnn_norm_forward.12} parent=0 // loop_footer_branch
    %10 = sbr.rel target = $region3
  $region8: #{cnn_norm_forward.12} parent=0 // loop_exit
    _

// kernel: cnn_norm_forward.11
$region0: #{cnn_norm_forward.11}
  #allocation0 [shape = 'u32[]', space=smem, size = 0x4, offset = 0x4, fixed_abs, tag = 'smem constant byte address 0x4 - core index']
  #allocation1 [shape = 'u32[144,128]{1,0:T(1,128)}', space=vmem, size = 0x12000, scoped, tag = 'internal scratch']
  %s0 = inlined_call_operand.vmem [shape: f32[8,1152], index: 0, kind: input, shape index: {}]
  %s1 = inlined_call_operand.vmem [shape: bf16[1152,256], index: 1, kind: input, shape index: {}]
  %s2 = inlined_call_operand.vmem [shape: f32[1,256], index: 2, kind: input, shape index: {}]
  %s3 = inlined_call_operand.vmem [shape: f32[8,256], index: 3, kind: output, shape index: {0}]
  %s4 = inlined_call_operand.vmem [shape: f32[1,1,256], index: 4, kind: output, shape index: {1}]
  %s5 = inlined_call_operand.vmem [shape: f32[1,1,256], index: 5, kind: output, shape index: {2}]
  %6 = xla_tuple %s3, %s4, %s5
  %s7 = sld [smem:[#allocation0]]
  $region102: #{cnn_norm_forward.11} parent=0
    _
  %s9 = ssub.s32 1, %s7
  %s10 = scalar_select 0, %s9, %s7
  $region1: #{cnn_norm_forward.11} parent=0
    #allocation2 [shape = 'u8[589824]{0}', space=vmem, size = 0x90000, scoped, tag = 'input window, operand 1']
    loop: start=0, step=1, limit=4
    $region2: #{cnn_norm_forward.11} parent=1 // loop_pre_header
      _
    $region3: #{cnn_norm_forward.11} parent=1 // loop_header
      %s12 = sphi 0, %s16
      %p13 = scmp.ge.s32.totalorder %s12, 4
      %s19 = sphi 0, %s31
      %s20 = sphi 0, %s27
      %s21 = sphi 0, %s19
      %s22 = sphi 0, %s20
      %s23 = sphi 0, %s21
      %s24 = sphi 0, %s22
      %s34 = sphi 0, %s36
      %s37 = sphi 0, %s34
      %s38 = sphi 0, %s37
      %s54 = sphi 0, %s38
      %s60 = sphi 0, %s62
      %s63 = sphi 0, %s60
      %s64 = sphi 0, %s63
      %s80 = sphi 0, %s64
      %s86 = sphi 0, %s88
      %s89 = sphi 0, %s86
      %s90 = sphi 0, %s89
      %s106 = sphi 0, %s90
      %s114 = sphi 0, %s116
      %s117 = sphi 0, %s114
      %s118 = sphi 0, %s117
      %s134 = sphi 0, %s118
      %s142 = sphi 0, %s144
      %s145 = sphi 0, %s142
      %s146 = sphi 0, %s145
      %s162 = sphi 0, %s146
      %s170 = sphi 0, %s172
      %s173 = sphi 0, %s170
      %s174 = sphi 0, %s173
      %s190 = sphi 0, %s174
    $region4: #{cnn_norm_forward.11} parent=1 // loop_header_branch
      %15 = sbr.rel (%p13) target = $region8
    $region5: #{cnn_norm_forward.11} parent=1 // loop_body
      %s17 = ssub.s32 %s12, 1
      %s18 = ssub.s32 %s12, 2
      %s25 = sadd.s32 1, %s20
      %p26 = scmp.ge.s32.totalorder %s25, 2
      %s27 = scalar_select %p26, 0, %s25
      %s28 = sadd.s32 1, %s19
      %s29 = scalar_select %p26, %s28, %s19
      %p30 = scmp.ge.s32.totalorder %s29, 1
      %s31 = scalar_select %p30, 0, %s29
      %s32 = ssub.s32 %s19, %s31
      %p33 = scmp.eq.s32.totalorder %s32, 0
      %s35 = sadd.s32 %s34, 1
      %s36 = scalar_select %p33, %s34, %s35
      %p39 = pneg %p33
      %p40 = scmp.eq.s32.totalorder %s12, 1
      %p41 = por %p39, %p40
      %p42 = scmp.ne.s32.totalorder %s34, %s37
      %p43 = scmp.eq.s32.totalorder %s12, 0
      %p44 = por %p42, %p43
      %p45 = scmp.ne.s32.totalorder %s34, %s37
      %p46 = scmp.eq.s32.totalorder %s17, 1
      %p47 = por %p45, %p46
      %p48 = scmp.ne.s32.totalorder %s37, %s38
      %p49 = scmp.eq.s32.totalorder %s17, 0
      %p50 = por %p48, %p49
      %p51 = scmp.ne.s32.totalorder %s37, %s38
      %p52 = scmp.eq.s32.totalorder %s18, 1
      %p53 = por %p51, %p52
      %p55 = scmp.ne.s32.totalorder %s38, %s54
      %p56 = scmp.eq.s32.totalorder %s18, 0
      %p57 = por %p55, %p56
      %s58 = ssub.s32 %s20, %s27
      %p59 = scmp.eq.s32.totalorder %s58, 0
      %s61 = sadd.s32 %s60, 1
      %s62 = scalar_select %p59, %s60, %s61
      %p65 = pneg %p59
      %p66 = scmp.eq.s32.totalorder %s12, 1
      %p67 = por %p65, %p66
      %p68 = scmp.ne.s32.totalorder %s60, %s63
      %p69 = scmp.eq.s32.totalorder %s12, 0
      %p70 = por %p68, %p69
      %p71 = scmp.ne.s32.totalorder %s60, %s63
      %p72 = scmp.eq.s32.totalorder %s17, 1
      %p73 = por %p71, %p72
      %p74 = scmp.ne.s32.totalorder %s63, %s64
      %p75 = scmp.eq.s32.totalorder %s17, 0
      %p76 = por %p74, %p75
      %p77 = scmp.ne.s32.totalorder %s63, %s64
      %p78 = scmp.eq.s32.totalorder %s18, 1
      %p79 = por %p77, %p78
      %p81 = scmp.ne.s32.totalorder %s64, %s80
      %p82 = scmp.eq.s32.totalorder %s18, 0
      %p83 = por %p81, %p82
      %s84 = ssub.s32 %s20, %s27
      %p85 = scmp.eq.s32.totalorder %s84, 0
      %s87 = sadd.s32 %s86, 1
      %s88 = scalar_select %p85, %s86, %s87
      %p91 = pneg %p85
      %p92 = scmp.eq.s32.totalorder %s12, 1
      %p93 = por %p91, %p92
      %p94 = scmp.ne.s32.totalorder %s86, %s89
      %p95 = scmp.eq.s32.totalorder %s12, 0
      %p96 = por %p94, %p95
      %p97 = scmp.ne.s32.totalorder %s86, %s89
      %p98 = scmp.eq.s32.totalorder %s17, 1
      %p99 = por %p97, %p98
      %p100 = scmp.ne.s32.totalorder %s89, %s90
      %p101 = scmp.eq.s32.totalorder %s17, 0
      %p102 = por %p100, %p101
      %p103 = scmp.ne.s32.totalorder %s89, %s90
      %p104 = scmp.eq.s32.totalorder %s18, 1
      %p105 = por %p103, %p104
      %p107 = scmp.ne.s32.totalorder %s90, %s106
      %p108 = scmp.eq.s32.totalorder %s18, 0
      %p109 = por %p107, %p108
      %s110 = ssub.s32 %s19, %s31
      %s111 = ssub.s32 %s20, %s27
      %s112 = sor.u32 %s110, %s111
      %p113 = scmp.eq.s32.totalorder %s112, 0
      %s115 = sadd.s32 %s114, 1
      %s116 = scalar_select %p113, %s114, %s115
      %p119 = pneg %p113
      %p120 = scmp.eq.s32.totalorder %s12, 1
      %p121 = por %p119, %p120
      %p122 = scmp.ne.s32.totalorder %s114, %s117
      %p123 = scmp.eq.s32.totalorder %s12, 0
      %p124 = por %p122, %p123
      %p125 = scmp.ne.s32.totalorder %s114, %s117
      %p126 = scmp.eq.s32.totalorder %s17, 1
      %p127 = por %p125, %p126
      %p128 = scmp.ne.s32.totalorder %s117, %s118
      %p129 = scmp.eq.s32.totalorder %s17, 0
      %p130 = por %p128, %p129
      %p131 = scmp.ne.s32.totalorder %s117, %s118
      %p132 = scmp.eq.s32.totalorder %s18, 1
      %p133 = por %p131, %p132
      %p135 = scmp.ne.s32.totalorder %s118, %s134
      %p136 = scmp.eq.s32.totalorder %s18, 0
      %p137 = por %p135, %p136
      %s138 = ssub.s32 %s19, %s31
      %s139 = ssub.s32 %s20, %s27
      %s140 = sor.u32 %s138, %s139
      %p141 = scmp.eq.s32.totalorder %s140, 0
      %s143 = sadd.s32 %s142, 1
      %s144 = scalar_select %p141, %s142, %s143
      %p147 = pneg %p141
      %p148 = scmp.eq.s32.totalorder %s12, 1
      %p149 = por %p147, %p148
      %p150 = scmp.ne.s32.totalorder %s142, %s145
      %p151 = scmp.eq.s32.totalorder %s12, 0
      %p152 = por %p150, %p151
      %p153 = scmp.ne.s32.totalorder %s142, %s145
      %p154 = scmp.eq.s32.totalorder %s17, 1
      %p155 = por %p153, %p154
      %p156 = scmp.ne.s32.totalorder %s145, %s146
      %p157 = scmp.eq.s32.totalorder %s17, 0
      %p158 = por %p156, %p157
      %p159 = scmp.ne.s32.totalorder %s145, %s146
      %p160 = scmp.eq.s32.totalorder %s18, 1
      %p161 = por %p159, %p160
      %p163 = scmp.ne.s32.totalorder %s146, %s162
      %p164 = scmp.eq.s32.totalorder %s18, 0
      %p165 = por %p163, %p164
      %s166 = ssub.s32 %s19, %s31
      %s167 = ssub.s32 %s20, %s27
      %s168 = sor.u32 %s166, %s167
      %p169 = scmp.eq.s32.totalorder %s168, 0
      %s171 = sadd.s32 %s170, 1
      %s172 = scalar_select %p169, %s170, %s171
      %p175 = pneg %p169
      %p176 = scmp.eq.s32.totalorder %s12, 1
      %p177 = por %p175, %p176
      %p178 = scmp.ne.s32.totalorder %s170, %s173
      %p179 = scmp.eq.s32.totalorder %s12, 0
      %p180 = por %p178, %p179
      %p181 = scmp.ne.s32.totalorder %s170, %s173
      %p182 = scmp.eq.s32.totalorder %s17, 1
      %p183 = por %p181, %p182
      %p184 = scmp.ne.s32.totalorder %s173, %s174
      %p185 = scmp.eq.s32.totalorder %s17, 0
      %p186 = por %p184, %p185
      %p187 = scmp.ne.s32.totalorder %s173, %s174
      %p188 = scmp.eq.s32.totalorder %s18, 1
      %p189 = por %p187, %p188
      %p191 = scmp.ne.s32.totalorder %s174, %s190
      %p192 = scmp.eq.s32.totalorder %s18, 0
      %p193 = por %p191, %p192
      %p194 = scmp.le.s32.totalorder 1, %s12
      %p195 = scmp.lt.s32.totalorder %s12, 3
      %p196 = pnand %p194, %p195
      %p197 = pneg %p196
      // Predicated region
      $region9: #{cnn_norm_forward.11} parent=5 // pred_check
        _
      $region10: #{cnn_norm_forward.11} parent=5 // pred_check_branch
        %199 = sbr.rel (%p196) target = $region12
      $region11: #{cnn_norm_forward.11} parent=5 // pred_region
        %s200 = ssub.s32 %s12, 1
        // Predicated region
        $region13: #{cnn_norm_forward.11} parent=11 // pred_check
          %p201 = pneg %p50
        $region14: #{cnn_norm_forward.11} parent=11 // pred_check_branch
          %203 = sbr.rel (%p201) target = $region16
        $region15: #{cnn_norm_forward.11} parent=11 // pred_region
          %p204 = scmp.lt.s32.totalorder %s21, 0
          %s205 = scalar_select %p204, %s21, 0
          %s206 = smul.addr %s205, 9
          %s207 = smul.addr %s206, 8
          %s208 = scalar_lea.vmem %s0, %s207
        $region16: #{cnn_norm_forward.11} parent=11 // pred_fallthru
          _
      $region12: #{cnn_norm_forward.11} parent=5 // pred_fallthru
        _
      %p209 = scmp.lt.s32.totalorder %s12, 2
      // Predicated region
      $region17: #{cnn_norm_forward.11} parent=5 // pred_check
        %p210 = pneg %p209
      $region18: #{cnn_norm_forward.11} parent=5 // pred_check_branch
        %212 = sbr.rel (%p210) target = $region20
      $region19: #{cnn_norm_forward.11} parent=5 // pred_region
        // Predicated region
        $region21: #{cnn_norm_forward.11} parent=19 // pred_check
          %p213 = pneg %p70
        $region22: #{cnn_norm_forward.11} parent=19 // pred_check_branch
          %215 = sbr.rel (%p213) target = $region24
        $region23: #{cnn_norm_forward.11} parent=19 // pred_region
          %s216 = sand.u32 %s60, 1
          %s217 = sand.u32 %s60, 1
          %s218 = smul.addr %s217, 576
          %s219 = scalar_lea.vmem [#allocation2], %s218
          %s220 = smul.addr %s20, 4
          %s221 = scalar_lea.vmem %s1, %s220
          // Predicated region
          $region25: #{cnn_norm_forward.11} parent=23 // pred_check
            _
          $region26: #{cnn_norm_forward.11} parent=23 // pred_check_branch
            %223 = sbr.rel (0) target = $region28
          $region27: #{cnn_norm_forward.11} parent=23 // pred_region
            // Predicated region
            $region29: #{cnn_norm_forward.11} parent=27 // pred_check
              _
            $region30: #{cnn_norm_forward.11} parent=27 // pred_check_branch
              %225 = sbr.rel target = $region32
            $region31: #{cnn_norm_forward.11} parent=27 // pred_region
              // Predicated region
              $region44: #{cnn_norm_forward.11} parent=31 // pred_check
                _
              $region45: #{cnn_norm_forward.11} parent=31 // pred_check_branch
                %526 = sbr.rel (0) target = $region47
              $region46: #{cnn_norm_forward.11} parent=31 // pred_region
                loop: start=0, step=1, limit=1
                $region48: #{cnn_norm_forward.11} parent=46 // loop_pre_header
                  _
                $region49: #{cnn_norm_forward.11} parent=46 // loop_header
                  %s528 = sphi 0, %s532
                  %p529 = scmp.ge.s32.totalorder %s528, 1
                  %s533 = sphi %s221, %s221
                  %s534 = sphi %s219, %s219
                $region50: #{cnn_norm_forward.11} parent=46 // loop_header_branch
                  %531 = sbr.rel (%p529) target = $region54
                $region51: #{cnn_norm_forward.11} parent=46 // loop_body
                  _
                $region52: #{cnn_norm_forward.11} parent=46 // loop_footer
                  %s532 = sadd.s32 1, %s528
                $region53: #{cnn_norm_forward.11} parent=46 // loop_footer_branch
                  %527 = sbr.rel target = $region49
                $region54: #{cnn_norm_forward.11} parent=46 // loop_exit
                  _
                loop: start=0, step=1, limit=1
                $region55: #{cnn_norm_forward.11} parent=46 // loop_pre_header
                  _
                $region56: #{cnn_norm_forward.11} parent=46 // loop_header
                  %s537 = sphi 0, %s541
                  %p538 = scmp.ge.s32.totalorder %s537, 1
                  %s542 = sphi %s221, %s221
                  %s543 = sphi %s219, %s219
                $region57: #{cnn_norm_forward.11} parent=46 // loop_header_branch
                  %540 = sbr.rel (%p538) target = $region61
                $region58: #{cnn_norm_forward.11} parent=46 // loop_body
                  %v544 = vld [vmem:[%s542] sm:$0xf]
                  %545 = vst [vmem:[%s543] sm:$0xf] %v544
                  %v546 = vld [vmem:[%s542 + $0x8] sm:$0xf]
                  %547 = vst [vmem:[%s543 + $0x4] sm:$0xf] %v546
                  %v548 = vld [vmem:[%s542 + $0x10] sm:$0xf]
                  %549 = vst [vmem:[%s543 + $0x8] sm:$0xf] %v548
                  %v550 = vld [vmem:[%s542 + $0x18] sm:$0xf]
                  %551 = vst [vmem:[%s543 + $0xc] sm:$0xf] %v550
                  %v552 = vld [vmem:[%s542 + $0x20] sm:$0xf]
                  %553 = vst [vmem:[%s543 + $0x10] sm:$0xf] %v552
                  %v554 = vld [vmem:[%s542 + $0x28] sm:$0xf]
                  %555 = vst [vmem:[%s543 + $0x14] sm:$0xf] %v554
                  %v556 = vld [vmem:[%s542 + $0x30] sm:$0xf]
                  %557 = vst [vmem:[%s543 + $0x18] sm:$0xf] %v556
                  %v558 = vld [vmem:[%s542 + $0x38] sm:$0xf]
                  %559 = vst [vmem:[%s543 + $0x1c] sm:$0xf] %v558
                  %v560 = vld [vmem:[%s542 + $0x40] sm:$0xf]
                  %561 = vst [vmem:[%s543 + $0x20] sm:$0xf] %v560
                  %v562 = vld [vmem:[%s542 + $0x48] sm:$0xf]
                  %563 = vst [vmem:[%s543 + $0x24] sm:$0xf] %v562
                  %v564 = vld [vmem:[%s542 + $0x50] sm:$0xf]
                  %565 = vst [vmem:[%s543 + $0x28] sm:$0xf] %v564
                  %v566 = vld [vmem:[%s542 + $0x58] sm:$0xf]
                  %567 = vst [vmem:[%s543 + $0x2c] sm:$0xf] %v566
                  %v568 = vld [vmem:[%s542 + $0x60] sm:$0xf]
                  %569 = vst [vmem:[%s543 + $0x30] sm:$0xf] %v568
                  %v570 = vld [vmem:[%s542 + $0x68] sm:$0xf]
                  %571 = vst [vmem:[%s543 + $0x34] sm:$0xf] %v570
                  %v572 = vld [vmem:[%s542 + $0x70] sm:$0xf]
                  %573 = vst [vmem:[%s543 + $0x38] sm:$0xf] %v572
                  %v574 = vld [vmem:[%s542 + $0x78] sm:$0xf]
                  %575 = vst [vmem:[%s543 + $0x3c] sm:$0xf] %v574
                  %v576 = vld [vmem:[%s542 + $0x80] sm:$0xf]
                  %577 = vst [vmem:[%s543 + $0x40] sm:$0xf] %v576
                  %v578 = vld [vmem:[%s542 + $0x88] sm:$0xf]
                  %579 = vst [vmem:[%s543 + $0x44] sm:$0xf] %v578
                  %v580 = vld [vmem:[%s542 + $0x90] sm:$0xf]
                  %581 = vst [vmem:[%s543 + $0x48] sm:$0xf] %v580
                  %v582 = vld [vmem:[%s542 + $0x98] sm:$0xf]
                  %583 = vst [vmem:[%s543 + $0x4c] sm:$0xf] %v582
                  %v584 = vld [vmem:[%s542 + $0xa0] sm:$0xf]
                  %585 = vst [vmem:[%s543 + $0x50] sm:$0xf] %v584
                  %v586 = vld [vmem:[%s542 + $0xa8] sm:$0xf]
                  %587 = vst [vmem:[%s543 + $0x54] sm:$0xf] %v586
                  %v588 = vld [vmem:[%s542 + $0xb0] sm:$0xf]
                  %589 = vst [vmem:[%s543 + $0x58] sm:$0xf] %v588
                  %v590 = vld [vmem:[%s542 + $0xb8] sm:$0xf]
                  %591 = vst [vmem:[%s543 + $0x5c] sm:$0xf] %v590
                  %v592 = vld [vmem:[%s542 + $0xc0] sm:$0xf]
                  %593 = vst [vmem:[%s543 + $0x60] sm:$0xf] %v592
                  %v594 = vld [vmem:[%s542 + $0xc8] sm:$0xf]
                  %595 = vst [vmem:[%s543 + $0x64] sm:$0xf] %v594
                  %v596 = vld [vmem:[%s542 + $0xd0] sm:$0xf]
                  %597 = vst [vmem:[%s543 + $0x68] sm:$0xf] %v596
                  %v598 = vld [vmem:[%s542 + $0xd8] sm:$0xf]
                  %599 = vst [vmem:[%s543 + $0x6c] sm:$0xf] %v598
                  %v600 = vld [vmem:[%s542 + $0xe0] sm:$0xf]
                  %601 = vst [vmem:[%s543 + $0x70] sm:$0xf] %v600
                  %v602 = vld [vmem:[%s542 + $0xe8] sm:$0xf]
                  %603 = vst [vmem:[%s543 + $0x74] sm:$0xf] %v602
                  %v604 = vld [vmem:[%s542 + $0xf0] sm:$0xf]
                  %605 = vst [vmem:[%s543 + $0x78] sm:$0xf] %v604
                  %v606 = vld [vmem:[%s542 + $0xf8] sm:$0xf]
                  %607 = vst [vmem:[%s543 + $0x7c] sm:$0xf] %v606
                  %v608 = vld [vmem:[%s542 + $0x100] sm:$0xf]
                  %609 = vst [vmem:[%s543 + $0x80] sm:$0xf] %v608
                  %v610 = vld [vmem:[%s542 + $0x108] sm:$0xf]
                  %611 = vst [vmem:[%s543 + $0x84] sm:$0xf] %v610
                  %v612 = vld [vmem:[%s542 + $0x110] sm:$0xf]
                  %613 = vst [vmem:[%s543 + $0x88] sm:$0xf] %v612
                  %v614 = vld [vmem:[%s542 + $0x118] sm:$0xf]
                  %615 = vst [vmem:[%s543 + $0x8c] sm:$0xf] %v614
                  %v616 = vld [vmem:[%s542 + $0x120] sm:$0xf]
                  %617 = vst [vmem:[%s543 + $0x90] sm:$0xf] %v616
                  %v618 = vld [vmem:[%s542 + $0x128] sm:$0xf]
                  %619 = vst [vmem:[%s543 + $0x94] sm:$0xf] %v618
                  %v620 = vld [vmem:[%s542 + $0x130] sm:$0xf]
                  %621 = vst [vmem:[%s543 + $0x98] sm:$0xf] %v620
                  %v622 = vld [vmem:[%s542 + $0x138] sm:$0xf]
                  %623 = vst [vmem:[%s543 + $0x9c] sm:$0xf] %v622
                  %v624 = vld [vmem:[%s542 + $0x140] sm:$0xf]
                  %625 = vst [vmem:[%s543 + $0xa0] sm:$0xf] %v624
                  %v626 = vld [vmem:[%s542 + $0x148] sm:$0xf]
                  %627 = vst [vmem:[%s543 + $0xa4] sm:$0xf] %v626
                  %v628 = vld [vmem:[%s542 + $0x150] sm:$0xf]
                  %629 = vst [vmem:[%s543 + $0xa8] sm:$0xf] %v628
                  %v630 = vld [vmem:[%s542 + $0x158] sm:$0xf]
                  %631 = vst [vmem:[%s543 + $0xac] sm:$0xf] %v630
                  %v632 = vld [vmem:[%s542 + $0x160] sm:$0xf]
                  %633 = vst [vmem:[%s543 + $0xb0] sm:$0xf] %v632
                  %v634 = vld [vmem:[%s542 + $0x168] sm:$0xf]
                  %635 = vst [vmem:[%s543 + $0xb4] sm:$0xf] %v634
                  %v636 = vld [vmem:[%s542 + $0x170] sm:$0xf]
                  %637 = vst [vmem:[%s543 + $0xb8] sm:$0xf] %v636
                  %v638 = vld [vmem:[%s542 + $0x178] sm:$0xf]
                  %639 = vst [vmem:[%s543 + $0xbc] sm:$0xf] %v638
                  %v640 = vld [vmem:[%s542 + $0x180] sm:$0xf]
                  %641 = vst [vmem:[%s543 + $0xc0] sm:$0xf] %v640
                  %v642 = vld [vmem:[%s542 + $0x188] sm:$0xf]
                  %643 = vst [vmem:[%s543 + $0xc4] sm:$0xf] %v642
                  %v644 = vld [vmem:[%s542 + $0x190] sm:$0xf]
                  %645 = vst [vmem:[%s543 + $0xc8] sm:$0xf] %v644
                  %v646 = vld [vmem:[%s542 + $0x198] sm:$0xf]
                  %647 = vst [vmem:[%s543 + $0xcc] sm:$0xf] %v646
                  %v648 = vld [vmem:[%s542 + $0x1a0] sm:$0xf]
                  %649 = vst [vmem:[%s543 + $0xd0] sm:$0xf] %v648
                  %v650 = vld [vmem:[%s542 + $0x1a8] sm:$0xf]
                  %651 = vst [vmem:[%s543 + $0xd4] sm:$0xf] %v650
                  %v652 = vld [vmem:[%s542 + $0x1b0] sm:$0xf]
                  %653 = vst [vmem:[%s543 + $0xd8] sm:$0xf] %v652
                  %v654 = vld [vmem:[%s542 + $0x1b8] sm:$0xf]
                  %655 = vst [vmem:[%s543 + $0xdc] sm:$0xf] %v654
                  %v656 = vld [vmem:[%s542 + $0x1c0] sm:$0xf]
                  %657 = vst [vmem:[%s543 + $0xe0] sm:$0xf] %v656
                  %v658 = vld [vmem:[%s542 + $0x1c8] sm:$0xf]
                  %659 = vst [vmem:[%s543 + $0xe4] sm:$0xf] %v658
                  %v660 = vld [vmem:[%s542 + $0x1d0] sm:$0xf]
                  %661 = vst [vmem:[%s543 + $0xe8] sm:$0xf] %v660
                  %v662 = vld [vmem:[%s542 + $0x1d8] sm:$0xf]
                  %663 = vst [vmem:[%s543 + $0xec] sm:$0xf] %v662
                  %v664 = vld [vmem:[%s542 + $0x1e0] sm:$0xf]
                  %665 = vst [vmem:[%s543 + $0xf0] sm:$0xf] %v664
                  %v666 = vld [vmem:[%s542 + $0x1e8] sm:$0xf]
                  %667 = vst [vmem:[%s543 + $0xf4] sm:$0xf] %v666
                  %v668 = vld [vmem:[%s542 + $0x1f0] sm:$0xf]
                  %669 = vst [vmem:[%s543 + $0xf8] sm:$0xf] %v668
                  %v670 = vld [vmem:[%s542 + $0x1f8] sm:$0xf]
                  %671 = vst [vmem:[%s543 + $0xfc] sm:$0xf] %v670
                  %v672 = vld [vmem:[%s542 + $0x200] sm:$0xf]
                  %673 = vst [vmem:[%s543 + $0x100] sm:$0xf] %v672
                  %v674 = vld [vmem:[%s542 + $0x208] sm:$0xf]
                  %675 = vst [vmem:[%s543 + $0x104] sm:$0xf] %v674
                  %v676 = vld [vmem:[%s542 + $0x210] sm:$0xf]
                  %677 = vst [vmem:[%s543 + $0x108] sm:$0xf] %v676
                  %v678 = vld [vmem:[%s542 + $0x218] sm:$0xf]
                  %679 = vst [vmem:[%s543 + $0x10c] sm:$0xf] %v678
                  %v680 = vld [vmem:[%s542 + $0x220] sm:$0xf]
                  %681 = vst [vmem:[%s543 + $0x110] sm:$0xf] %v680
                  %v682 = vld [vmem:[%s542 + $0x228] sm:$0xf]
                  %683 = vst [vmem:[%s543 + $0x114] sm:$0xf] %v682
                  %v684 = vld [vmem:[%s542 + $0x230] sm:$0xf]
                  %685 = vst [vmem:[%s543 + $0x118] sm:$0xf] %v684
                  %v686 = vld [vmem:[%s542 + $0x238] sm:$0xf]
                  %687 = vst [vmem:[%s543 + $0x11c] sm:$0xf] %v686
                  %v688 = vld [vmem:[%s542 + $0x240] sm:$0xf]
                  %689 = vst [vmem:[%s543 + $0x120] sm:$0xf] %v688
                  %v690 = vld [vmem:[%s542 + $0x248] sm:$0xf]
                  %691 = vst [vmem:[%s543 + $0x124] sm:$0xf] %v690
                  %v692 = vld [vmem:[%s542 + $0x250] sm:$0xf]
                  %693 = vst [vmem:[%s543 + $0x128] sm:$0xf] %v692
                  %v694 = vld [vmem:[%s542 + $0x258] sm:$0xf]
                  %695 = vst [vmem:[%s543 + $0x12c] sm:$0xf] %v694
                  %v696 = vld [vmem:[%s542 + $0x260] sm:$0xf]
                  %697 = vst [vmem:[%s543 + $0x130] sm:$0xf] %v696
                  %v698 = vld [vmem:[%s542 + $0x268] sm:$0xf]
                  %699 = vst [vmem:[%s543 + $0x134] sm:$0xf] %v698
                  %v700 = vld [vmem:[%s542 + $0x270] sm:$0xf]
                  %701 = vst [vmem:[%s543 + $0x138] sm:$0xf] %v700
                  %v702 = vld [vmem:[%s542 + $0x278] sm:$0xf]
                  %703 = vst [vmem:[%s543 + $0x13c] sm:$0xf] %v702
                  %v704 = vld [vmem:[%s542 + $0x280] sm:$0xf]
                  %705 = vst [vmem:[%s543 + $0x140] sm:$0xf] %v704
                  %v706 = vld [vmem:[%s542 + $0x288] sm:$0xf]
                  %707 = vst [vmem:[%s543 + $0x144] sm:$0xf] %v706
                  %v708 = vld [vmem:[%s542 + $0x290] sm:$0xf]
                  %709 = vst [vmem:[%s543 + $0x148] sm:$0xf] %v708
                  %v710 = vld [vmem:[%s542 + $0x298] sm:$0xf]
                  %711 = vst [vmem:[%s543 + $0x14c] sm:$0xf] %v710
                  %v712 = vld [vmem:[%s542 + $0x2a0] sm:$0xf]
                  %713 = vst [vmem:[%s543 + $0x150] sm:$0xf] %v712
                  %v714 = vld [vmem:[%s542 + $0x2a8] sm:$0xf]
                  %715 = vst [vmem:[%s543 + $0x154] sm:$0xf] %v714
                  %v716 = vld [vmem:[%s542 + $0x2b0] sm:$0xf]
                  %717 = vst [vmem:[%s543 + $0x158] sm:$0xf] %v716
                  %v718 = vld [vmem:[%s542 + $0x2b8] sm:$0xf]
                  %719 = vst [vmem:[%s543 + $0x15c] sm:$0xf] %v718
                  %v720 = vld [vmem:[%s542 + $0x2c0] sm:$0xf]
                  %721 = vst [vmem:[%s543 + $0x160] sm:$0xf] %v720
                  %v722 = vld [vmem:[%s542 + $0x2c8] sm:$0xf]
                  %723 = vst [vmem:[%s543 + $0x164] sm:$0xf] %v722
                  %v724 = vld [vmem:[%s542 + $0x2d0] sm:$0xf]
                  %725 = vst [vmem:[%s543 + $0x168] sm:$0xf] %v724
                  %v726 = vld [vmem:[%s542 + $0x2d8] sm:$0xf]
                  %727 = vst [vmem:[%s543 + $0x16c] sm:$0xf] %v726
                  %v728 = vld [vmem:[%s542 + $0x2e0] sm:$0xf]
                  %729 = vst [vmem:[%s543 + $0x170] sm:$0xf] %v728
                  %v730 = vld [vmem:[%s542 + $0x2e8] sm:$0xf]
                  %731 = vst [vmem:[%s543 + $0x174] sm:$0xf] %v730
                  %v732 = vld [vmem:[%s542 + $0x2f0] sm:$0xf]
                  %733 = vst [vmem:[%s543 + $0x178] sm:$0xf] %v732
                  %v734 = vld [vmem:[%s542 + $0x2f8] sm:$0xf]
                  %735 = vst [vmem:[%s543 + $0x17c] sm:$0xf] %v734
                  %v736 = vld [vmem:[%s542 + $0x300] sm:$0xf]
                  %737 = vst [vmem:[%s543 + $0x180] sm:$0xf] %v736
                  %v738 = vld [vmem:[%s542 + $0x308] sm:$0xf]
                  %739 = vst [vmem:[%s543 + $0x184] sm:$0xf] %v738
                  %v740 = vld [vmem:[%s542 + $0x310] sm:$0xf]
                  %741 = vst [vmem:[%s543 + $0x188] sm:$0xf] %v740
                  %v742 = vld [vmem:[%s542 + $0x318] sm:$0xf]
                  %743 = vst [vmem:[%s543 + $0x18c] sm:$0xf] %v742
                  %v744 = vld [vmem:[%s542 + $0x320] sm:$0xf]
                  %745 = vst [vmem:[%s543 + $0x190] sm:$0xf] %v744
                  %v746 = vld [vmem:[%s542 + $0x328] sm:$0xf]
                  %747 = vst [vmem:[%s543 + $0x194] sm:$0xf] %v746
                  %v748 = vld [vmem:[%s542 + $0x330] sm:$0xf]
                  %749 = vst [vmem:[%s543 + $0x198] sm:$0xf] %v748
                  %v750 = vld [vmem:[%s542 + $0x338] sm:$0xf]
                  %751 = vst [vmem:[%s543 + $0x19c] sm:$0xf] %v750
                  %v752 = vld [vmem:[%s542 + $0x340] sm:$0xf]
                  %753 = vst [vmem:[%s543 + $0x1a0] sm:$0xf] %v752
                  %v754 = vld [vmem:[%s542 + $0x348] sm:$0xf]
                  %755 = vst [vmem:[%s543 + $0x1a4] sm:$0xf] %v754
                  %v756 = vld [vmem:[%s542 + $0x350] sm:$0xf]
                  %757 = vst [vmem:[%s543 + $0x1a8] sm:$0xf] %v756
                  %v758 = vld [vmem:[%s542 + $0x358] sm:$0xf]
                  %759 = vst [vmem:[%s543 + $0x1ac] sm:$0xf] %v758
                  %v760 = vld [vmem:[%s542 + $0x360] sm:$0xf]
                  %761 = vst [vmem:[%s543 + $0x1b0] sm:$0xf] %v760
                  %v762 = vld [vmem:[%s542 + $0x368] sm:$0xf]
                  %763 = vst [vmem:[%s543 + $0x1b4] sm:$0xf] %v762
                  %v764 = vld [vmem:[%s542 + $0x370] sm:$0xf]
                  %765 = vst [vmem:[%s543 + $0x1b8] sm:$0xf] %v764
                  %v766 = vld [vmem:[%s542 + $0x378] sm:$0xf]
                  %767 = vst [vmem:[%s543 + $0x1bc] sm:$0xf] %v766
                  %v768 = vld [vmem:[%s542 + $0x380] sm:$0xf]
                  %769 = vst [vmem:[%s543 + $0x1c0] sm:$0xf] %v768
                  %v770 = vld [vmem:[%s542 + $0x388] sm:$0xf]
                  %771 = vst [vmem:[%s543 + $0x1c4] sm:$0xf] %v770
                  %v772 = vld [vmem:[%s542 + $0x390] sm:$0xf]
                  %773 = vst [vmem:[%s543 + $0x1c8] sm:$0xf] %v772
                  %v774 = vld [vmem:[%s542 + $0x398] sm:$0xf]
                  %775 = vst [vmem:[%s543 + $0x1cc] sm:$0xf] %v774
                  %v776 = vld [vmem:[%s542 + $0x3a0] sm:$0xf]
                  %777 = vst [vmem:[%s543 + $0x1d0] sm:$0xf] %v776
                  %v778 = vld [vmem:[%s542 + $0x3a8] sm:$0xf]
                  %779 = vst [vmem:[%s543 + $0x1d4] sm:$0xf] %v778
                  %v780 = vld [vmem:[%s542 + $0x3b0] sm:$0xf]
                  %781 = vst [vmem:[%s543 + $0x1d8] sm:$0xf] %v780
                  %v782 = vld [vmem:[%s542 + $0x3b8] sm:$0xf]
                  %783 = vst [vmem:[%s543 + $0x1dc] sm:$0xf] %v782
                  %v784 = vld [vmem:[%s542 + $0x3c0] sm:$0xf]
                  %785 = vst [vmem:[%s543 + $0x1e0] sm:$0xf] %v784
                  %v786 = vld [vmem:[%s542 + $0x3c8] sm:$0xf]
                  %787 = vst [vmem:[%s543 + $0x1e4] sm:$0xf] %v786
                  %v788 = vld [vmem:[%s542 + $0x3d0] sm:$0xf]
                  %789 = vst [vmem:[%s543 + $0x1e8] sm:$0xf] %v788
                  %v790 = vld [vmem:[%s542 + $0x3d8] sm:$0xf]
                  %791 = vst [vmem:[%s543 + $0x1ec] sm:$0xf] %v790
                  %v792 = vld [vmem:[%s542 + $0x3e0] sm:$0xf]
                  %793 = vst [vmem:[%s543 + $0x1f0] sm:$0xf] %v792
                  %v794 = vld [vmem:[%s542 + $0x3e8] sm:$0xf]
                  %795 = vst [vmem:[%s543 + $0x1f4] sm:$0xf] %v794
                  %v796 = vld [vmem:[%s542 + $0x3f0] sm:$0xf]
                  %797 = vst [vmem:[%s543 + $0x1f8] sm:$0xf] %v796
                  %v798 = vld [vmem:[%s542 + $0x3f8] sm:$0xf]
                  %799 = vst [vmem:[%s543 + $0x1fc] sm:$0xf] %v798
                  %v800 = vld [vmem:[%s542 + $0x400] sm:$0xf]
                  %801 = vst [vmem:[%s543 + $0x200] sm:$0xf] %v800
                  %v802 = vld [vmem:[%s542 + $0x408] sm:$0xf]
                  %803 = vst [vmem:[%s543 + $0x204] sm:$0xf] %v802
                  %v804 = vld [vmem:[%s542 + $0x410] sm:$0xf]
                  %805 = vst [vmem:[%s543 + $0x208] sm:$0xf] %v804
                  %v806 = vld [vmem:[%s542 + $0x418] sm:$0xf]
                  %807 = vst [vmem:[%s543 + $0x20c] sm:$0xf] %v806
                  %v808 = vld [vmem:[%s542 + $0x420] sm:$0xf]
                  %809 = vst [vmem:[%s543 + $0x210] sm:$0xf] %v808
                  %v810 = vld [vmem:[%s542 + $0x428] sm:$0xf]
                  %811 = vst [vmem:[%s543 + $0x214] sm:$0xf] %v810
                  %v812 = vld [vmem:[%s542 + $0x430] sm:$0xf]
                  %813 = vst [vmem:[%s543 + $0x218] sm:$0xf] %v812
                  %v814 = vld [vmem:[%s542 + $0x438] sm:$0xf]
                  %815 = vst [vmem:[%s543 + $0x21c] sm:$0xf] %v814
                  %v816 = vld [vmem:[%s542 + $0x440] sm:$0xf]
                  %817 = vst [vmem:[%s543 + $0x220] sm:$0xf] %v816
                  %v818 = vld [vmem:[%s542 + $0x448] sm:$0xf]
                  %819 = vst [vmem:[%s543 + $0x224] sm:$0xf] %v818
                  %v820 = vld [vmem:[%s542 + $0x450] sm:$0xf]
                  %821 = vst [vmem:[%s543 + $0x228] sm:$0xf] %v820
                  %v822 = vld [vmem:[%s542 + $0x458] sm:$0xf]
                  %823 = vst [vmem:[%s543 + $0x22c] sm:$0xf] %v822
                  %v824 = vld [vmem:[%s542 + $0x460] sm:$0xf]
                  %825 = vst [vmem:[%s543 + $0x230] sm:$0xf] %v824
                  %v826 = vld [vmem:[%s542 + $0x468] sm:$0xf]
                  %827 = vst [vmem:[%s543 + $0x234] sm:$0xf] %v826
                  %v828 = vld [vmem:[%s542 + $0x470] sm:$0xf]
                  %829 = vst [vmem:[%s543 + $0x238] sm:$0xf] %v828
                  %v830 = vld [vmem:[%s542 + $0x478] sm:$0xf]
                  %831 = vst [vmem:[%s543 + $0x23c] sm:$0xf] %v830
                $region59: #{cnn_norm_forward.11} parent=46 // loop_footer
                  %s541 = sadd.s32 1, %s537
                $region60: #{cnn_norm_forward.11} parent=46 // loop_footer_branch
                  %536 = sbr.rel target = $region56
                $region61: #{cnn_norm_forward.11} parent=46 // loop_exit
                  _
              $region47: #{cnn_norm_forward.11} parent=31 // pred_fallthru
                _
            $region32: #{cnn_norm_forward.11} parent=27 // pred_fallthru
              _
            // Predicated region
            $region33: #{cnn_norm_forward.11} parent=27 // pred_check
              _
            $region34: #{cnn_norm_forward.11} parent=27 // pred_check_branch
              %227 = sbr.rel (0) target = $region36
            $region35: #{cnn_norm_forward.11} parent=27 // pred_region
              loop: start=0, step=1, limit=1
              $region37: #{cnn_norm_forward.11} parent=35 // loop_pre_header
                _
              $region38: #{cnn_norm_forward.11} parent=35 // loop_header
                %s230 = sphi 0, %s234
                %p231 = scmp.ge.s32.totalorder %s230, 1
                %s235 = sphi %s221, %s221
                %s236 = sphi %s219, %s219
              $region39: #{cnn_norm_forward.11} parent=35 // loop_header_branch
                %233 = sbr.rel (%p231) target = $region43
              $region40: #{cnn_norm_forward.11} parent=35 // loop_body
                %v237 = vld [vmem:[%s235] sm:$0xf]
                %238 = vst [vmem:[%s236] sm:$0xf] %v237
                %v239 = vld [vmem:[%s235 + $0x8] sm:$0xf]
                %240 = vst [vmem:[%s236 + $0x4] sm:$0xf] %v239
                %v241 = vld [vmem:[%s235 + $0x10] sm:$0xf]
                %242 = vst [vmem:[%s236 + $0x8] sm:$0xf] %v241
                %v243 = vld [vmem:[%s235 + $0x18] sm:$0xf]
                %244 = vst [vmem:[%s236 + $0xc] sm:$0xf] %v243
                %v245 = vld [vmem:[%s235 + $0x20] sm:$0xf]
                %246 = vst [vmem:[%s236 + $0x10] sm:$0xf] %v245
                %v247 = vld [vmem:[%s235 + $0x28] sm:$0xf]
                %248 = vst [vmem:[%s236 + $0x14] sm:$0xf] %v247
                %v249 = vld [vmem:[%s235 + $0x30] sm:$0xf]
                %250 = vst [vmem:[%s236 + $0x18] sm:$0xf] %v249
                %v251 = vld [vmem:[%s235 + $0x38] sm:$0xf]
                %252 = vst [vmem:[%s236 + $0x1c] sm:$0xf] %v251
                %v253 = vld [vmem:[%s235 + $0x40] sm:$0xf]
                %254 = vst [vmem:[%s236 + $0x20] sm:$0xf] %v253
                %v255 = vld [vmem:[%s235 + $0x48] sm:$0xf]
                %256 = vst [vmem:[%s236 + $0x24] sm:$0xf] %v255
                %v257 = vld [vmem:[%s235 + $0x50] sm:$0xf]
                %258 = vst [vmem:[%s236 + $0x28] sm:$0xf] %v257
                %v259 = vld [vmem:[%s235 + $0x58] sm:$0xf]
                %260 = vst [vmem:[%s236 + $0x2c] sm:$0xf] %v259
                %v261 = vld [vmem:[%s235 + $0x60] sm:$0xf]
                %262 = vst [vmem:[%s236 + $0x30] sm:$0xf] %v261
                %v263 = vld [vmem:[%s235 + $0x68] sm:$0xf]
                %264 = vst [vmem:[%s236 + $0x34] sm:$0xf] %v263
                %v265 = vld [vmem:[%s235 + $0x70] sm:$0xf]
                %266 = vst [vmem:[%s236 + $0x38] sm:$0xf] %v265
                %v267 = vld [vmem:[%s235 + $0x78] sm:$0xf]
                %268 = vst [vmem:[%s236 + $0x3c] sm:$0xf] %v267
                %v269 = vld [vmem:[%s235 + $0x80] sm:$0xf]
                %270 = vst [vmem:[%s236 + $0x40] sm:$0xf] %v269
                %v271 = vld [vmem:[%s235 + $0x88] sm:$0xf]
                %272 = vst [vmem:[%s236 + $0x44] sm:$0xf] %v271
                %v273 = vld [vmem:[%s235 + $0x90] sm:$0xf]
                %274 = vst [vmem:[%s236 + $0x48] sm:$0xf] %v273
                %v275 = vld [vmem:[%s235 + $0x98] sm:$0xf]
                %276 = vst [vmem:[%s236 + $0x4c] sm:$0xf] %v275
                %v277 = vld [vmem:[%s235 + $0xa0] sm:$0xf]
                %278 = vst [vmem:[%s236 + $0x50] sm:$0xf] %v277
                %v279 = vld [vmem:[%s235 + $0xa8] sm:$0xf]
                %280 = vst [vmem:[%s236 + $0x54] sm:$0xf] %v279
                %v281 = vld [vmem:[%s235 + $0xb0] sm:$0xf]
                %282 = vst [vmem:[%s236 + $0x58] sm:$0xf] %v281
                %v283 = vld [vmem:[%s235 + $0xb8] sm:$0xf]
                %284 = vst [vmem:[%s236 + $0x5c] sm:$0xf] %v283
                %v285 = vld [vmem:[%s235 + $0xc0] sm:$0xf]
                %286 = vst [vmem:[%s236 + $0x60] sm:$0xf] %v285
                %v287 = vld [vmem:[%s235 + $0xc8] sm:$0xf]
                %288 = vst [vmem:[%s236 + $0x64] sm:$0xf] %v287
                %v289 = vld [vmem:[%s235 + $0xd0] sm:$0xf]
                %290 = vst [vmem:[%s236 + $0x68] sm:$0xf] %v289
                %v291 = vld [vmem:[%s235 + $0xd8] sm:$0xf]
                %292 = vst [vmem:[%s236 + $0x6c] sm:$0xf] %v291
                %v293 = vld [vmem:[%s235 + $0xe0] sm:$0xf]
                %294 = vst [vmem:[%s236 + $0x70] sm:$0xf] %v293
                %v295 = vld [vmem:[%s235 + $0xe8] sm:$0xf]
                %296 = vst [vmem:[%s236 + $0x74] sm:$0xf] %v295
                %v297 = vld [vmem:[%s235 + $0xf0] sm:$0xf]
                %298 = vst [vmem:[%s236 + $0x78] sm:$0xf] %v297
                %v299 = vld [vmem:[%s235 + $0xf8] sm:$0xf]
                %300 = vst [vmem:[%s236 + $0x7c] sm:$0xf] %v299
                %v301 = vld [vmem:[%s235 + $0x100] sm:$0xf]
                %302 = vst [vmem:[%s236 + $0x80] sm:$0xf] %v301
                %v303 = vld [vmem:[%s235 + $0x108] sm:$0xf]
                %304 = vst [vmem:[%s236 + $0x84] sm:$0xf] %v303
                %v305 = vld [vmem:[%s235 + $0x110] sm:$0xf]
                %306 = vst [vmem:[%s236 + $0x88] sm:$0xf] %v305
                %v307 = vld [vmem:[%s235 + $0x118] sm:$0xf]
                %308 = vst [vmem:[%s236 + $0x8c] sm:$0xf] %v307
                %v309 = vld [vmem:[%s235 + $0x120] sm:$0xf]
                %310 = vst [vmem:[%s236 + $0x90] sm:$0xf] %v309
                %v311 = vld [vmem:[%s235 + $0x128] sm:$0xf]
                %312 = vst [vmem:[%s236 + $0x94] sm:$0xf] %v311
                %v313 = vld [vmem:[%s235 + $0x130] sm:$0xf]
                %314 = vst [vmem:[%s236 + $0x98] sm:$0xf] %v313
                %v315 = vld [vmem:[%s235 + $0x138] sm:$0xf]
                %316 = vst [vmem:[%s236 + $0x9c] sm:$0xf] %v315
                %v317 = vld [vmem:[%s235 + $0x140] sm:$0xf]
                %318 = vst [vmem:[%s236 + $0xa0] sm:$0xf] %v317
                %v319 = vld [vmem:[%s235 + $0x148] sm:$0xf]
                %320 = vst [vmem:[%s236 + $0xa4] sm:$0xf] %v319
                %v321 = vld [vmem:[%s235 + $0x150] sm:$0xf]
                %322 = vst [vmem:[%s236 + $0xa8] sm:$0xf] %v321
                %v323 = vld [vmem:[%s235 + $0x158] sm:$0xf]
                %324 = vst [vmem:[%s236 + $0xac] sm:$0xf] %v323
                %v325 = vld [vmem:[%s235 + $0x160] sm:$0xf]
                %326 = vst [vmem:[%s236 + $0xb0] sm:$0xf] %v325
                %v327 = vld [vmem:[%s235 + $0x168] sm:$0xf]
                %328 = vst [vmem:[%s236 + $0xb4] sm:$0xf] %v327
                %v329 = vld [vmem:[%s235 + $0x170] sm:$0xf]
                %330 = vst [vmem:[%s236 + $0xb8] sm:$0xf] %v329
                %v331 = vld [vmem:[%s235 + $0x178] sm:$0xf]
                %332 = vst [vmem:[%s236 + $0xbc] sm:$0xf] %v331
                %v333 = vld [vmem:[%s235 + $0x180] sm:$0xf]
                %334 = vst [vmem:[%s236 + $0xc0] sm:$0xf] %v333
                %v335 = vld [vmem:[%s235 + $0x188] sm:$0xf]
                %336 = vst [vmem:[%s236 + $0xc4] sm:$0xf] %v335
                %v337 = vld [vmem:[%s235 + $0x190] sm:$0xf]
                %338 = vst [vmem:[%s236 + $0xc8] sm:$0xf] %v337
                %v339 = vld [vmem:[%s235 + $0x198] sm:$0xf]
                %340 = vst [vmem:[%s236 + $0xcc] sm:$0xf] %v339
                %v341 = vld [vmem:[%s235 + $0x1a0] sm:$0xf]
                %342 = vst [vmem:[%s236 + $0xd0] sm:$0xf] %v341
                %v343 = vld [vmem:[%s235 + $0x1a8] sm:$0xf]
                %344 = vst [vmem:[%s236 + $0xd4] sm:$0xf] %v343
                %v345 = vld [vmem:[%s235 + $0x1b0] sm:$0xf]
                %346 = vst [vmem:[%s236 + $0xd8] sm:$0xf] %v345
                %v347 = vld [vmem:[%s235 + $0x1b8] sm:$0xf]
                %348 = vst [vmem:[%s236 + $0xdc] sm:$0xf] %v347
                %v349 = vld [vmem:[%s235 + $0x1c0] sm:$0xf]
                %350 = vst [vmem:[%s236 + $0xe0] sm:$0xf] %v349
                %v351 = vld [vmem:[%s235 + $0x1c8] sm:$0xf]
                %352 = vst [vmem:[%s236 + $0xe4] sm:$0xf] %v351
                %v353 = vld [vmem:[%s235 + $0x1d0] sm:$0xf]
                %354 = vst [vmem:[%s236 + $0xe8] sm:$0xf] %v353
                %v355 = vld [vmem:[%s235 + $0x1d8] sm:$0xf]
                %356 = vst [vmem:[%s236 + $0xec] sm:$0xf] %v355
                %v357 = vld [vmem:[%s235 + $0x1e0] sm:$0xf]
                %358 = vst [vmem:[%s236 + $0xf0] sm:$0xf] %v357
                %v359 = vld [vmem:[%s235 + $0x1e8] sm:$0xf]
                %360 = vst [vmem:[%s236 + $0xf4] sm:$0xf] %v359
                %v361 = vld [vmem:[%s235 + $0x1f0] sm:$0xf]
                %362 = vst [vmem:[%s236 + $0xf8] sm:$0xf] %v361
                %v363 = vld [vmem:[%s235 + $0x1f8] sm:$0xf]
                %364 = vst [vmem:[%s236 + $0xfc] sm:$0xf] %v363
                %v365 = vld [vmem:[%s235 + $0x200] sm:$0xf]
                %366 = vst [vmem:[%s236 + $0x100] sm:$0xf] %v365
                %v367 = vld [vmem:[%s235 + $0x208] sm:$0xf]
                %368 = vst [vmem:[%s236 + $0x104] sm:$0xf] %v367
                %v369 = vld [vmem:[%s235 + $0x210] sm:$0xf]
                %370 = vst [vmem:[%s236 + $0x108] sm:$0xf] %v369
                %v371 = vld [vmem:[%s235 + $0x218] sm:$0xf]
                %372 = vst [vmem:[%s236 + $0x10c] sm:$0xf] %v371
                %v373 = vld [vmem:[%s235 + $0x220] sm:$0xf]
                %374 = vst [vmem:[%s236 + $0x110] sm:$0xf] %v373
                %v375 = vld [vmem:[%s235 + $0x228] sm:$0xf]
                %376 = vst [vmem:[%s236 + $0x114] sm:$0xf] %v375
                %v377 = vld [vmem:[%s235 + $0x230] sm:$0xf]
                %378 = vst [vmem:[%s236 + $0x118] sm:$0xf] %v377
                %v379 = vld [vmem:[%s235 + $0x238] sm:$0xf]
                %380 = vst [vmem:[%s236 + $0x11c] sm:$0xf] %v379
                %v381 = vld [vmem:[%s235 + $0x240] sm:$0xf]
                %382 = vst [vmem:[%s236 + $0x120] sm:$0xf] %v381
                %v383 = vld [vmem:[%s235 + $0x248] sm:$0xf]
                %384 = vst [vmem:[%s236 + $0x124] sm:$0xf] %v383
                %v385 = vld [vmem:[%s235 + $0x250] sm:$0xf]
                %386 = vst [vmem:[%s236 + $0x128] sm:$0xf] %v385
                %v387 = vld [vmem:[%s235 + $0x258] sm:$0xf]
                %388 = vst [vmem:[%s236 + $0x12c] sm:$0xf] %v387
                %v389 = vld [vmem:[%s235 + $0x260] sm:$0xf]
                %390 = vst [vmem:[%s236 + $0x130] sm:$0xf] %v389
                %v391 = vld [vmem:[%s235 + $0x268] sm:$0xf]
                %392 = vst [vmem:[%s236 + $0x134] sm:$0xf] %v391
                %v393 = vld [vmem:[%s235 + $0x270] sm:$0xf]
                %394 = vst [vmem:[%s236 + $0x138] sm:$0xf] %v393
                %v395 = vld [vmem:[%s235 + $0x278] sm:$0xf]
                %396 = vst [vmem:[%s236 + $0x13c] sm:$0xf] %v395
                %v397 = vld [vmem:[%s235 + $0x280] sm:$0xf]
                %398 = vst [vmem:[%s236 + $0x140] sm:$0xf] %v397
                %v399 = vld [vmem:[%s235 + $0x288] sm:$0xf]
                %400 = vst [vmem:[%s236 + $0x144] sm:$0xf] %v399
                %v401 = vld [vmem:[%s235 + $0x290] sm:$0xf]
                %402 = vst [vmem:[%s236 + $0x148] sm:$0xf] %v401
                %v403 = vld [vmem:[%s235 + $0x298] sm:$0xf]
                %404 = vst [vmem:[%s236 + $0x14c] sm:$0xf] %v403
                %v405 = vld [vmem:[%s235 + $0x2a0] sm:$0xf]
                %406 = vst [vmem:[%s236 + $0x150] sm:$0xf] %v405
                %v407 = vld [vmem:[%s235 + $0x2a8] sm:$0xf]
                %408 = vst [vmem:[%s236 + $0x154] sm:$0xf] %v407
                %v409 = vld [vmem:[%s235 + $0x2b0] sm:$0xf]
                %410 = vst [vmem:[%s236 + $0x158] sm:$0xf] %v409
                %v411 = vld [vmem:[%s235 + $0x2b8] sm:$0xf]
                %412 = vst [vmem:[%s236 + $0x15c] sm:$0xf] %v411
                %v413 = vld [vmem:[%s235 + $0x2c0] sm:$0xf]
                %414 = vst [vmem:[%s236 + $0x160] sm:$0xf] %v413
                %v415 = vld [vmem:[%s235 + $0x2c8] sm:$0xf]
                %416 = vst [vmem:[%s236 + $0x164] sm:$0xf] %v415
                %v417 = vld [vmem:[%s235 + $0x2d0] sm:$0xf]
                %418 = vst [vmem:[%s236 + $0x168] sm:$0xf] %v417
                %v419 = vld [vmem:[%s235 + $0x2d8] sm:$0xf]
                %420 = vst [vmem:[%s236 + $0x16c] sm:$0xf] %v419
                %v421 = vld [vmem:[%s235 + $0x2e0] sm:$0xf]
                %422 = vst [vmem:[%s236 + $0x170] sm:$0xf] %v421
                %v423 = vld [vmem:[%s235 + $0x2e8] sm:$0xf]
                %424 = vst [vmem:[%s236 + $0x174] sm:$0xf] %v423
                %v425 = vld [vmem:[%s235 + $0x2f0] sm:$0xf]
                %426 = vst [vmem:[%s236 + $0x178] sm:$0xf] %v425
                %v427 = vld [vmem:[%s235 + $0x2f8] sm:$0xf]
                %428 = vst [vmem:[%s236 + $0x17c] sm:$0xf] %v427
                %v429 = vld [vmem:[%s235 + $0x300] sm:$0xf]
                %430 = vst [vmem:[%s236 + $0x180] sm:$0xf] %v429
                %v431 = vld [vmem:[%s235 + $0x308] sm:$0xf]
                %432 = vst [vmem:[%s236 + $0x184] sm:$0xf] %v431
                %v433 = vld [vmem:[%s235 + $0x310] sm:$0xf]
                %434 = vst [vmem:[%s236 + $0x188] sm:$0xf] %v433
                %v435 = vld [vmem:[%s235 + $0x318] sm:$0xf]
                %436 = vst [vmem:[%s236 + $0x18c] sm:$0xf] %v435
                %v437 = vld [vmem:[%s235 + $0x320] sm:$0xf]
                %438 = vst [vmem:[%s236 + $0x190] sm:$0xf] %v437
                %v439 = vld [vmem:[%s235 + $0x328] sm:$0xf]
                %440 = vst [vmem:[%s236 + $0x194] sm:$0xf] %v439
                %v441 = vld [vmem:[%s235 + $0x330] sm:$0xf]
                %442 = vst [vmem:[%s236 + $0x198] sm:$0xf] %v441
                %v443 = vld [vmem:[%s235 + $0x338] sm:$0xf]
                %444 = vst [vmem:[%s236 + $0x19c] sm:$0xf] %v443
                %v445 = vld [vmem:[%s235 + $0x340] sm:$0xf]
                %446 = vst [vmem:[%s236 + $0x1a0] sm:$0xf] %v445
                %v447 = vld [vmem:[%s235 + $0x348] sm:$0xf]
                %448 = vst [vmem:[%s236 + $0x1a4] sm:$0xf] %v447
                %v449 = vld [vmem:[%s235 + $0x350] sm:$0xf]
                %450 = vst [vmem:[%s236 + $0x1a8] sm:$0xf] %v449
                %v451 = vld [vmem:[%s235 + $0x358] sm:$0xf]
                %452 = vst [vmem:[%s236 + $0x1ac] sm:$0xf] %v451
                %v453 = vld [vmem:[%s235 + $0x360] sm:$0xf]
                %454 = vst [vmem:[%s236 + $0x1b0] sm:$0xf] %v453
                %v455 = vld [vmem:[%s235 + $0x368] sm:$0xf]
                %456 = vst [vmem:[%s236 + $0x1b4] sm:$0xf] %v455
                %v457 = vld [vmem:[%s235 + $0x370] sm:$0xf]
                %458 = vst [vmem:[%s236 + $0x1b8] sm:$0xf] %v457
                %v459 = vld [vmem:[%s235 + $0x378] sm:$0xf]
                %460 = vst [vmem:[%s236 + $0x1bc] sm:$0xf] %v459
                %v461 = vld [vmem:[%s235 + $0x380] sm:$0xf]
                %462 = vst [vmem:[%s236 + $0x1c0] sm:$0xf] %v461
                %v463 = vld [vmem:[%s235 + $0x388] sm:$0xf]
                %464 = vst [vmem:[%s236 + $0x1c4] sm:$0xf] %v463
                %v465 = vld [vmem:[%s235 + $0x390] sm:$0xf]
                %466 = vst [vmem:[%s236 + $0x1c8] sm:$0xf] %v465
                %v467 = vld [vmem:[%s235 + $0x398] sm:$0xf]
                %468 = vst [vmem:[%s236 + $0x1cc] sm:$0xf] %v467
                %v469 = vld [vmem:[%s235 + $0x3a0] sm:$0xf]
                %470 = vst [vmem:[%s236 + $0x1d0] sm:$0xf] %v469
                %v471 = vld [vmem:[%s235 + $0x3a8] sm:$0xf]
                %472 = vst [vmem:[%s236 + $0x1d4] sm:$0xf] %v471
                %v473 = vld [vmem:[%s235 + $0x3b0] sm:$0xf]
                %474 = vst [vmem:[%s236 + $0x1d8] sm:$0xf] %v473
                %v475 = vld [vmem:[%s235 + $0x3b8] sm:$0xf]
                %476 = vst [vmem:[%s236 + $0x1dc] sm:$0xf] %v475
                %v477 = vld [vmem:[%s235 + $0x3c0] sm:$0xf]
                %478 = vst [vmem:[%s236 + $0x1e0] sm:$0xf] %v477
                %v479 = vld [vmem:[%s235 + $0x3c8] sm:$0xf]
                %480 = vst [vmem:[%s236 + $0x1e4] sm:$0xf] %v479
                %v481 = vld [vmem:[%s235 + $0x3d0] sm:$0xf]
                %482 = vst [vmem:[%s236 + $0x1e8] sm:$0xf] %v481
                %v483 = vld [vmem:[%s235 + $0x3d8] sm:$0xf]
                %484 = vst [vmem:[%s236 + $0x1ec] sm:$0xf] %v483
                %v485 = vld [vmem:[%s235 + $0x3e0] sm:$0xf]
                %486 = vst [vmem:[%s236 + $0x1f0] sm:$0xf] %v485
                %v487 = vld [vmem:[%s235 + $0x3e8] sm:$0xf]
                %488 = vst [vmem:[%s236 + $0x1f4] sm:$0xf] %v487
                %v489 = vld [vmem:[%s235 + $0x3f0] sm:$0xf]
                %490 = vst [vmem:[%s236 + $0x1f8] sm:$0xf] %v489
                %v491 = vld [vmem:[%s235 + $0x3f8] sm:$0xf]
                %492 = vst [vmem:[%s236 + $0x1fc] sm:$0xf] %v491
                %v493 = vld [vmem:[%s235 + $0x400] sm:$0xf]
                %494 = vst [vmem:[%s236 + $0x200] sm:$0xf] %v493
                %v495 = vld [vmem:[%s235 + $0x408] sm:$0xf]
                %496 = vst [vmem:[%s236 + $0x204] sm:$0xf] %v495
                %v497 = vld [vmem:[%s235 + $0x410] sm:$0xf]
                %498 = vst [vmem:[%s236 + $0x208] sm:$0xf] %v497
                %v499 = vld [vmem:[%s235 + $0x418] sm:$0xf]
                %500 = vst [vmem:[%s236 + $0x20c] sm:$0xf] %v499
                %v501 = vld [vmem:[%s235 + $0x420] sm:$0xf]
                %502 = vst [vmem:[%s236 + $0x210] sm:$0xf] %v501
                %v503 = vld [vmem:[%s235 + $0x428] sm:$0xf]
                %504 = vst [vmem:[%s236 + $0x214] sm:$0xf] %v503
                %v505 = vld [vmem:[%s235 + $0x430] sm:$0xf]
                %506 = vst [vmem:[%s236 + $0x218] sm:$0xf] %v505
                %v507 = vld [vmem:[%s235 + $0x438] sm:$0xf]
                %508 = vst [vmem:[%s236 + $0x21c] sm:$0xf] %v507
                %v509 = vld [vmem:[%s235 + $0x440] sm:$0xf]
                %510 = vst [vmem:[%s236 + $0x220] sm:$0xf] %v509
                %v511 = vld [vmem:[%s235 + $0x448] sm:$0xf]
                %512 = vst [vmem:[%s236 + $0x224] sm:$0xf] %v511
                %v513 = vld [vmem:[%s235 + $0x450] sm:$0xf]
                %514 = vst [vmem:[%s236 + $0x228] sm:$0xf] %v513
                %v515 = vld [vmem:[%s235 + $0x458] sm:$0xf]
                %516 = vst [vmem:[%s236 + $0x22c] sm:$0xf] %v515
                %v517 = vld [vmem:[%s235 + $0x460] sm:$0xf]
                %518 = vst [vmem:[%s236 + $0x230] sm:$0xf] %v517
                %v519 = vld [vmem:[%s235 + $0x468] sm:$0xf]
                %520 = vst [vmem:[%s236 + $0x234] sm:$0xf] %v519
                %v521 = vld [vmem:[%s235 + $0x470] sm:$0xf]
                %522 = vst [vmem:[%s236 + $0x238] sm:$0xf] %v521
                %v523 = vld [vmem:[%s235 + $0x478] sm:$0xf]
                %524 = vst [vmem:[%s236 + $0x23c] sm:$0xf] %v523
              $region41: #{cnn_norm_forward.11} parent=35 // loop_footer
                %s234 = sadd.s32 1, %s230
              $region42: #{cnn_norm_forward.11} parent=35 // loop_footer_branch
                %229 = sbr.rel target = $region38
              $region43: #{cnn_norm_forward.11} parent=35 // loop_exit
                _
            $region36: #{cnn_norm_forward.11} parent=27 // pred_fallthru
              _
          $region28: #{cnn_norm_forward.11} parent=23 // pred_fallthru
            _
          %832 = vnop
        $region24: #{cnn_norm_forward.11} parent=19 // pred_fallthru
          _
        // Predicated region
        $region62: #{cnn_norm_forward.11} parent=19 // pred_check
          %p833 = pneg %p96
        $region63: #{cnn_norm_forward.11} parent=19 // pred_check_branch
          %835 = sbr.rel (%p833) target = $region65
        $region64: #{cnn_norm_forward.11} parent=19 // pred_region
          %p836 = scmp.lt.s32.totalorder %s20, 1
          %s837 = scalar_select %p836, %s20, 1
          %s838 = scalar_lea.vmem %s2, %s837
        $region65: #{cnn_norm_forward.11} parent=19 // pred_fallthru
          _
      $region20: #{cnn_norm_forward.11} parent=5 // pred_fallthru
        _
      %p839 = scmp.le.s32.totalorder 1, %s12
      %p840 = scmp.lt.s32.totalorder %s12, 3
      %p841 = pnand %p839, %p840
      %p842 = pneg %p841
      // Predicated region
      $region66: #{cnn_norm_forward.11} parent=5 // pred_check
        _
      $region67: #{cnn_norm_forward.11} parent=5 // pred_check_branch
        %844 = sbr.rel (%p841) target = $region69
      $region68: #{cnn_norm_forward.11} parent=5 // pred_region
        %s845 = ssub.s32 %s12, 1
        %s846 = sand.u32 %s63, 1
        %s847 = sand.u32 %s63, 1
        %s848 = smul.addr %s847, 576
        %s849 = scalar_lea.vmem [#allocation2], %s848
        // Predicated region
        $region70: #{cnn_norm_forward.11} parent=68 // pred_check
          %p850 = pneg %p76
        $region71: #{cnn_norm_forward.11} parent=68 // pred_check_branch
          %852 = sbr.rel (%p850) target = $region73
        $region72: #{cnn_norm_forward.11} parent=68 // pred_region
          _
        $region73: #{cnn_norm_forward.11} parent=68 // pred_fallthru
          _
        %p853 = scmp.lt.s32.totalorder %s21, 0
        %s854 = scalar_select %p853, %s21, 0
        %s855 = smul.addr %s854, 9
        %s856 = smul.addr %s855, 8
        %s857 = scalar_lea.vmem %s0, %s856
        %p858 = pneg %p50
        %p859 = pneg %p47
        %s860 = sand.u32 %s63, 1
        %s861 = sand.u32 %s63, 1
        %s862 = smul.addr %s861, 576
        %s863 = scalar_lea.vmem [#allocation2], %s862
        %p864 = pneg %p76
        %p865 = pneg %p73
        %p866 = scmp.lt.s32.totalorder %s22, 1
        %s867 = scalar_select %p866, %s22, 1
        %s868 = scalar_lea.vmem %s2, %s867
        %p869 = pneg %p102
        %p870 = pneg %p99
        %p871 = pneg %p130
        %p872 = pneg %p127
        %p873 = scmp.lt.s32.totalorder %s21, 0
        %s874 = scalar_select %p873, %s21, 0
        %p875 = scmp.lt.s32.totalorder %s22, 1
        %s876 = scalar_select %p875, %s22, 1
        %s877 = smul.addr %s874, 2
        %s878 = sadd.s32 %s876, %s877
        %s879 = smul.addr %s878, 8
        %s880 = scalar_lea.vmem %s3, %s879
        %p881 = pneg %p158
        %p882 = pneg %p155
        %p883 = scmp.lt.s32.totalorder %s21, 0
        %s884 = scalar_select %p883, %s21, 0
        %p885 = scmp.lt.s32.totalorder %s22, 1
        %s886 = scalar_select %p885, %s22, 1
        %s887 = smul.addr %s884, 2
        %s888 = sadd.s32 %s886, %s887
        %s889 = scalar_lea.vmem %s4, %s888
        %p890 = pneg %p186
        %p891 = pneg %p183
        %p892 = scmp.lt.s32.totalorder %s21, 0
        %s893 = scalar_select %p892, %s21, 0
        %p894 = scmp.lt.s32.totalorder %s22, 1
        %s895 = scalar_select %p894, %s22, 1
        %s896 = smul.addr %s893, 2
        %s897 = sadd.s32 %s895, %s896
        %s898 = scalar_lea.vmem %s5, %s897
        %p899 = scmp.lt.s32.totalorder %s21, 0
        %s900 = scalar_select %p899, %s21, 0
        %s901 = smul.addr %s900, 9
        %s902 = smul.addr %s901, 8
        %s903 = scalar_lea.vmem %s0, %s902
        %p904 = scmp.lt.s32.totalorder %s22, 1
        %s905 = scalar_select %p904, %s22, 1
        %s906 = scalar_lea.vmem %s2, %s905
        %p907 = scmp.lt.s32.totalorder %s21, 0
        %s908 = scalar_select %p907, %s21, 0
        %p909 = scmp.lt.s32.totalorder %s22, 1
        %s910 = scalar_select %p909, %s22, 1
        %s911 = smul.addr %s908, 2
        %s912 = sadd.s32 %s910, %s911
        %s913 = smul.addr %s912, 8
        %s914 = scalar_lea.vmem %s3, %s913
        %p915 = scmp.lt.s32.totalorder %s21, 0
        %s916 = scalar_select %p915, %s21, 0
        %p917 = scmp.lt.s32.totalorder %s22, 1
        %s918 = scalar_select %p917, %s22, 1
        %s919 = smul.addr %s916, 2
        %s920 = sadd.s32 %s918, %s919
        %s921 = scalar_lea.vmem %s4, %s920
        %p922 = scmp.lt.s32.totalorder %s21, 0
        %s923 = scalar_select %p922, %s21, 0
        %p924 = scmp.lt.s32.totalorder %s22, 1
        %s925 = scalar_select %p924, %s22, 1
        %s926 = smul.addr %s923, 2
        %s927 = sadd.s32 %s925, %s926
        %s928 = scalar_lea.vmem %s5, %s927
        %v930 = vld [vmem:[%s903] sm:$0xff]
        %v931 = vld [vmem:[%s903 + $0x8] sm:$0xff]
        %v932 = vld [vmem:[%s903 + $0x10] sm:$0xff]
        %v933 = vld [vmem:[%s903 + $0x18] sm:$0xff]
        %v934 = vld [vmem:[%s903 + $0x20] sm:$0xff]
        %v935 = vld [vmem:[%s903 + $0x28] sm:$0xff]
        %v936 = vld [vmem:[%s903 + $0x30] sm:$0xff]
        %v937 = vld [vmem:[%s903 + $0x38] sm:$0xff]
        %v938 = vld [vmem:[%s903 + $0x40] sm:$0xff]
        %v939 = vpack.c.bf16 %v930, %v930
        %v940 = vpack.c.bf16 %v931, %v931
        %v941 = vpack.c.bf16 %v932, %v932
        %v942 = vpack.c.bf16 %v933, %v933
        %v943 = vpack.c.bf16 %v934, %v934
        %v944 = vpack.c.bf16 %v935, %v935
        %v945 = vpack.c.bf16 %v936, %v936
        %v946 = vpack.c.bf16 %v937, %v937
        %v947 = vpack.c.bf16 %v938, %v938
        %v948 = vld [vmem:[%s849] sm:$0xf]
        %v949 = vld [vmem:[%s849 + $0x4] sm:$0xf]
        %v950 = vld [vmem:[%s849 + $0x8] sm:$0xf]
        %v951 = vld [vmem:[%s849 + $0xc] sm:$0xf]
        %v952 = vld [vmem:[%s849 + $0x10] sm:$0xf]
        %v953 = vld [vmem:[%s849 + $0x14] sm:$0xf]
        %v954 = vld [vmem:[%s849 + $0x18] sm:$0xf]
        %v955 = vld [vmem:[%s849 + $0x1c] sm:$0xf]
        %v956 = vld [vmem:[%s849 + $0x20] sm:$0xf]
        %v957 = vld [vmem:[%s849 + $0x24] sm:$0xf]
        %v958 = vld [vmem:[%s849 + $0x28] sm:$0xf]
        %v959 = vld [vmem:[%s849 + $0x2c] sm:$0xf]
        %v960 = vld [vmem:[%s849 + $0x30] sm:$0xf]
        %v961 = vld [vmem:[%s849 + $0x34] sm:$0xf]
        %v962 = vld [vmem:[%s849 + $0x38] sm:$0xf]
        %v963 = vld [vmem:[%s849 + $0x3c] sm:$0xf]
        %v964 = vld [vmem:[%s849 + $0x40] sm:$0xf]
        %v965 = vld [vmem:[%s849 + $0x44] sm:$0xf]
        %v966 = vld [vmem:[%s849 + $0x48] sm:$0xf]
        %v967 = vld [vmem:[%s849 + $0x4c] sm:$0xf]
        %v968 = vld [vmem:[%s849 + $0x50] sm:$0xf]
        %v969 = vld [vmem:[%s849 + $0x54] sm:$0xf]
        %v970 = vld [vmem:[%s849 + $0x58] sm:$0xf]
        %v971 = vld [vmem:[%s849 + $0x5c] sm:$0xf]
        %v972 = vld [vmem:[%s849 + $0x60] sm:$0xf]
        %v973 = vld [vmem:[%s849 + $0x64] sm:$0xf]
        %v974 = vld [vmem:[%s849 + $0x68] sm:$0xf]
        %v975 = vld [vmem:[%s849 + $0x6c] sm:$0xf]
        %v976 = vld [vmem:[%s849 + $0x70] sm:$0xf]
        %v977 = vld [vmem:[%s849 + $0x74] sm:$0xf]
        %v978 = vld [vmem:[%s849 + $0x78] sm:$0xf]
        %v979 = vld [vmem:[%s849 + $0x7c] sm:$0xf]
        %v980 = vld [vmem:[%s849 + $0x80] sm:$0xf]
        %v981 = vld [vmem:[%s849 + $0x84] sm:$0xf]
        %v982 = vld [vmem:[%s849 + $0x88] sm:$0xf]
        %v983 = vld [vmem:[%s849 + $0x8c] sm:$0xf]
        %v984 = vld [vmem:[%s849 + $0x90] sm:$0xf]
        %v985 = vld [vmem:[%s849 + $0x94] sm:$0xf]
        %v986 = vld [vmem:[%s849 + $0x98] sm:$0xf]
        %v987 = vld [vmem:[%s849 + $0x9c] sm:$0xf]
        %v988 = vld [vmem:[%s849 + $0xa0] sm:$0xf]
        %v989 = vld [vmem:[%s849 + $0xa4] sm:$0xf]
        %v990 = vld [vmem:[%s849 + $0xa8] sm:$0xf]
        %v991 = vld [vmem:[%s849 + $0xac] sm:$0xf]
        %v992 = vld [vmem:[%s849 + $0xb0] sm:$0xf]
        %v993 = vld [vmem:[%s849 + $0xb4] sm:$0xf]
        %v994 = vld [vmem:[%s849 + $0xb8] sm:$0xf]
        %v995 = vld [vmem:[%s849 + $0xbc] sm:$0xf]
        %v996 = vld [vmem:[%s849 + $0xc0] sm:$0xf]
        %v997 = vld [vmem:[%s849 + $0xc4] sm:$0xf]
        %v998 = vld [vmem:[%s849 + $0xc8] sm:$0xf]
        %v999 = vld [vmem:[%s849 + $0xcc] sm:$0xf]
        %v1000 = vld [vmem:[%s849 + $0xd0] sm:$0xf]
        %v1001 = vld [vmem:[%s849 + $0xd4] sm:$0xf]
        %v1002 = vld [vmem:[%s849 + $0xd8] sm:$0xf]
        %v1003 = vld [vmem:[%s849 + $0xdc] sm:$0xf]
        %v1004 = vld [vmem:[%s849 + $0xe0] sm:$0xf]
        %v1005 = vld [vmem:[%s849 + $0xe4] sm:$0xf]
        %v1006 = vld [vmem:[%s849 + $0xe8] sm:$0xf]
        %v1007 = vld [vmem:[%s849 + $0xec] sm:$0xf]
        %v1008 = vld [vmem:[%s849 + $0xf0] sm:$0xf]
        %v1009 = vld [vmem:[%s849 + $0xf4] sm:$0xf]
        %v1010 = vld [vmem:[%s849 + $0xf8] sm:$0xf]
        %v1011 = vld [vmem:[%s849 + $0xfc] sm:$0xf]
        %v1012 = vld [vmem:[%s849 + $0x100] sm:$0xf]
        %v1013 = vld [vmem:[%s849 + $0x104] sm:$0xf]
        %v1014 = vld [vmem:[%s849 + $0x108] sm:$0xf]
        %v1015 = vld [vmem:[%s849 + $0x10c] sm:$0xf]
        %v1016 = vld [vmem:[%s849 + $0x110] sm:$0xf]
        %v1017 = vld [vmem:[%s849 + $0x114] sm:$0xf]
        %v1018 = vld [vmem:[%s849 + $0x118] sm:$0xf]
        %v1019 = vld [vmem:[%s849 + $0x11c] sm:$0xf]
        %v1020 = vld [vmem:[%s849 + $0x120] sm:$0xf]
        %v1021 = vld [vmem:[%s849 + $0x124] sm:$0xf]
        %v1022 = vld [vmem:[%s849 + $0x128] sm:$0xf]
        %v1023 = vld [vmem:[%s849 + $0x12c] sm:$0xf]
        %v1024 = vld [vmem:[%s849 + $0x130] sm:$0xf]
        %v1025 = vld [vmem:[%s849 + $0x134] sm:$0xf]
        %v1026 = vld [vmem:[%s849 + $0x138] sm:$0xf]
        %v1027 = vld [vmem:[%s849 + $0x13c] sm:$0xf]
        %v1028 = vld [vmem:[%s849 + $0x140] sm:$0xf]
        %v1029 = vld [vmem:[%s849 + $0x144] sm:$0xf]
        %v1030 = vld [vmem:[%s849 + $0x148] sm:$0xf]
        %v1031 = vld [vmem:[%s849 + $0x14c] sm:$0xf]
        %v1032 = vld [vmem:[%s849 + $0x150] sm:$0xf]
        %v1033 = vld [vmem:[%s849 + $0x154] sm:$0xf]
        %v1034 = vld [vmem:[%s849 + $0x158] sm:$0xf]
        %v1035 = vld [vmem:[%s849 + $0x15c] sm:$0xf]
        %v1036 = vld [vmem:[%s849 + $0x160] sm:$0xf]
        %v1037 = vld [vmem:[%s849 + $0x164] sm:$0xf]
        %v1038 = vld [vmem:[%s849 + $0x168] sm:$0xf]
        %v1039 = vld [vmem:[%s849 + $0x16c] sm:$0xf]
        %v1040 = vld [vmem:[%s849 + $0x170] sm:$0xf]
        %v1041 = vld [vmem:[%s849 + $0x174] sm:$0xf]
        %v1042 = vld [vmem:[%s849 + $0x178] sm:$0xf]
        %v1043 = vld [vmem:[%s849 + $0x17c] sm:$0xf]
        %v1044 = vld [vmem:[%s849 + $0x180] sm:$0xf]
        %v1045 = vld [vmem:[%s849 + $0x184] sm:$0xf]
        %v1046 = vld [vmem:[%s849 + $0x188] sm:$0xf]
        %v1047 = vld [vmem:[%s849 + $0x18c] sm:$0xf]
        %v1048 = vld [vmem:[%s849 + $0x190] sm:$0xf]
        %v1049 = vld [vmem:[%s849 + $0x194] sm:$0xf]
        %v1050 = vld [vmem:[%s849 + $0x198] sm:$0xf]
        %v1051 = vld [vmem:[%s849 + $0x19c] sm:$0xf]
        %v1052 = vld [vmem:[%s849 + $0x1a0] sm:$0xf]
        %v1053 = vld [vmem:[%s849 + $0x1a4] sm:$0xf]
        %v1054 = vld [vmem:[%s849 + $0x1a8] sm:$0xf]
        %v1055 = vld [vmem:[%s849 + $0x1ac] sm:$0xf]
        %v1056 = vld [vmem:[%s849 + $0x1b0] sm:$0xf]
        %v1057 = vld [vmem:[%s849 + $0x1b4] sm:$0xf]
        %v1058 = vld [vmem:[%s849 + $0x1b8] sm:$0xf]
        %v1059 = vld [vmem:[%s849 + $0x1bc] sm:$0xf]
        %v1060 = vld [vmem:[%s849 + $0x1c0] sm:$0xf]
        %v1061 = vld [vmem:[%s849 + $0x1c4] sm:$0xf]
        %v1062 = vld [vmem:[%s849 + $0x1c8] sm:$0xf]
        %v1063 = vld [vmem:[%s849 + $0x1cc] sm:$0xf]
        %v1064 = vld [vmem:[%s849 + $0x1d0] sm:$0xf]
        %v1065 = vld [vmem:[%s849 + $0x1d4] sm:$0xf]
        %v1066 = vld [vmem:[%s849 + $0x1d8] sm:$0xf]
        %v1067 = vld [vmem:[%s849 + $0x1dc] sm:$0xf]
        %v1068 = vld [vmem:[%s849 + $0x1e0] sm:$0xf]
        %v1069 = vld [vmem:[%s849 + $0x1e4] sm:$0xf]
        %v1070 = vld [vmem:[%s849 + $0x1e8] sm:$0xf]
        %v1071 = vld [vmem:[%s849 + $0x1ec] sm:$0xf]
        %v1072 = vld [vmem:[%s849 + $0x1f0] sm:$0xf]
        %v1073 = vld [vmem:[%s849 + $0x1f4] sm:$0xf]
        %v1074 = vld [vmem:[%s849 + $0x1f8] sm:$0xf]
        %v1075 = vld [vmem:[%s849 + $0x1fc] sm:$0xf]
        %v1076 = vld [vmem:[%s849 + $0x200] sm:$0xf]
        %v1077 = vld [vmem:[%s849 + $0x204] sm:$0xf]
        %v1078 = vld [vmem:[%s849 + $0x208] sm:$0xf]
        %v1079 = vld [vmem:[%s849 + $0x20c] sm:$0xf]
        %v1080 = vld [vmem:[%s849 + $0x210] sm:$0xf]
        %v1081 = vld [vmem:[%s849 + $0x214] sm:$0xf]
        %v1082 = vld [vmem:[%s849 + $0x218] sm:$0xf]
        %v1083 = vld [vmem:[%s849 + $0x21c] sm:$0xf]
        %v1084 = vld [vmem:[%s849 + $0x220] sm:$0xf]
        %v1085 = vld [vmem:[%s849 + $0x224] sm:$0xf]
        %v1086 = vld [vmem:[%s849 + $0x228] sm:$0xf]
        %v1087 = vld [vmem:[%s849 + $0x22c] sm:$0xf]
        %v1088 = vld [vmem:[%s849 + $0x230] sm:$0xf]
        %v1089 = vld [vmem:[%s849 + $0x234] sm:$0xf]
        %v1090 = vld [vmem:[%s849 + $0x238] sm:$0xf]
        %v1091 = vld [vmem:[%s849 + $0x23c] sm:$0xf]
        %v1092 = vld [vmem:[%s906] sm:$0x1]
        %v1094 = vlaneseq
        %v1095 = vshrl.u32 %v1094, 7
        %v1096 = vsub.s32 0, %v1095
        %v1097 = vrot.slane %v1092, %v1096
        %v1243 = vunpack.c.l.b16 %v948
        %v1244 = vunpack.c.l.b16 %v949
        %v1245 = vunpack.c.l.b16 %v950
        %v1246 = vunpack.c.l.b16 %v951
        %v1247 = vunpack.c.l.b16 %v952
        %v1248 = vunpack.c.l.b16 %v953
        %v1249 = vunpack.c.l.b16 %v954
        %v1250 = vunpack.c.l.b16 %v955
        %v1251 = vunpack.c.l.b16 %v956
        %v1252 = vunpack.c.l.b16 %v957
        %v1253 = vunpack.c.l.b16 %v958
        %v1254 = vunpack.c.l.b16 %v959
        %v1255 = vunpack.c.l.b16 %v960
        %v1256 = vunpack.c.l.b16 %v961
        %v1257 = vunpack.c.l.b16 %v962
        %v1258 = vunpack.c.l.b16 %v963
        %v1259 = vunpack.c.l.b16 %v964
        %v1260 = vunpack.c.l.b16 %v965
        %v1261 = vunpack.c.l.b16 %v966
        %v1262 = vunpack.c.l.b16 %v967
        %v1263 = vunpack.c.l.b16 %v968
        %v1264 = vunpack.c.l.b16 %v969
        %v1265 = vunpack.c.l.b16 %v970
        %v1266 = vunpack.c.l.b16 %v971
        %v1267 = vunpack.c.l.b16 %v972
        %v1268 = vunpack.c.l.b16 %v973
        %v1269 = vunpack.c.l.b16 %v974
        %v1270 = vunpack.c.l.b16 %v975
        %v1271 = vunpack.c.l.b16 %v976
        %v1272 = vunpack.c.l.b16 %v977
        %v1273 = vunpack.c.l.b16 %v978
        %v1274 = vunpack.c.l.b16 %v979
        %v1275 = vunpack.c.l.b16 %v980
        %v1276 = vunpack.c.l.b16 %v981
        %v1277 = vunpack.c.l.b16 %v982
        %v1278 = vunpack.c.l.b16 %v983
        %v1279 = vunpack.c.l.b16 %v984
        %v1280 = vunpack.c.l.b16 %v985
        %v1281 = vunpack.c.l.b16 %v986
        %v1282 = vunpack.c.l.b16 %v987
        %v1283 = vunpack.c.l.b16 %v988
        %v1284 = vunpack.c.l.b16 %v989
        %v1285 = vunpack.c.l.b16 %v990
        %v1286 = vunpack.c.l.b16 %v991
        %v1287 = vunpack.c.l.b16 %v992
        %v1288 = vunpack.c.l.b16 %v993
        %v1289 = vunpack.c.l.b16 %v994
        %v1290 = vunpack.c.l.b16 %v995
        %v1291 = vunpack.c.l.b16 %v996
        %v1292 = vunpack.c.l.b16 %v997
        %v1293 = vunpack.c.l.b16 %v998
        %v1294 = vunpack.c.l.b16 %v999
        %v1295 = vunpack.c.l.b16 %v1000
        %v1296 = vunpack.c.l.b16 %v1001
        %v1297 = vunpack.c.l.b16 %v1002
        %v1298 = vunpack.c.l.b16 %v1003
        %v1299 = vunpack.c.l.b16 %v1004
        %v1300 = vunpack.c.l.b16 %v1005
        %v1301 = vunpack.c.l.b16 %v1006
        %v1302 = vunpack.c.l.b16 %v1007
        %v1303 = vunpack.c.l.b16 %v1008
        %v1304 = vunpack.c.l.b16 %v1009
        %v1305 = vunpack.c.l.b16 %v1010
        %v1306 = vunpack.c.l.b16 %v1011
        %v1307 = vunpack.c.l.b16 %v1012
        %v1308 = vunpack.c.l.b16 %v1013
        %v1309 = vunpack.c.l.b16 %v1014
        %v1310 = vunpack.c.l.b16 %v1015
        %v1311 = vunpack.c.l.b16 %v1016
        %v1312 = vunpack.c.l.b16 %v1017
        %v1313 = vunpack.c.l.b16 %v1018
        %v1314 = vunpack.c.l.b16 %v1019
        %v1315 = vunpack.c.l.b16 %v1020
        %v1316 = vunpack.c.l.b16 %v1021
        %v1317 = vunpack.c.l.b16 %v1022
        %v1318 = vunpack.c.l.b16 %v1023
        %v1319 = vunpack.c.l.b16 %v1024
        %v1320 = vunpack.c.l.b16 %v1025
        %v1321 = vunpack.c.l.b16 %v1026
        %v1322 = vunpack.c.l.b16 %v1027
        %v1323 = vunpack.c.l.b16 %v1028
        %v1324 = vunpack.c.l.b16 %v1029
        %v1325 = vunpack.c.l.b16 %v1030
        %v1326 = vunpack.c.l.b16 %v1031
        %v1327 = vunpack.c.l.b16 %v1032
        %v1328 = vunpack.c.l.b16 %v1033
        %v1329 = vunpack.c.l.b16 %v1034
        %v1330 = vunpack.c.l.b16 %v1035
        %v1331 = vunpack.c.l.b16 %v1036
        %v1332 = vunpack.c.l.b16 %v1037
        %v1333 = vunpack.c.l.b16 %v1038
        %v1334 = vunpack.c.l.b16 %v1039
        %v1335 = vunpack.c.l.b16 %v1040
        %v1336 = vunpack.c.l.b16 %v1041
        %v1337 = vunpack.c.l.b16 %v1042
        %v1338 = vunpack.c.l.b16 %v1043
        %v1339 = vunpack.c.l.b16 %v1044
        %v1340 = vunpack.c.l.b16 %v1045
        %v1341 = vunpack.c.l.b16 %v1046
        %v1342 = vunpack.c.l.b16 %v1047
        %v1343 = vunpack.c.l.b16 %v1048
        %v1344 = vunpack.c.l.b16 %v1049
        %v1345 = vunpack.c.l.b16 %v1050
        %v1346 = vunpack.c.l.b16 %v1051
        %v1347 = vunpack.c.l.b16 %v1052
        %v1348 = vunpack.c.l.b16 %v1053
        %v1349 = vunpack.c.l.b16 %v1054
        %v1350 = vunpack.c.l.b16 %v1055
        %v1351 = vunpack.c.l.b16 %v1056
        %v1352 = vunpack.c.l.b16 %v1057
        %v1353 = vunpack.c.l.b16 %v1058
        %v1354 = vunpack.c.l.b16 %v1059
        %v1355 = vunpack.c.l.b16 %v1060
        %v1356 = vunpack.c.l.b16 %v1061
        %v1357 = vunpack.c.l.b16 %v1062
        %v1358 = vunpack.c.l.b16 %v1063
        %v1359 = vunpack.c.l.b16 %v1064
        %v1360 = vunpack.c.l.b16 %v1065
        %v1361 = vunpack.c.l.b16 %v1066
        %v1362 = vunpack.c.l.b16 %v1067
        %v1363 = vunpack.c.l.b16 %v1068
        %v1364 = vunpack.c.l.b16 %v1069
        %v1365 = vunpack.c.l.b16 %v1070
        %v1366 = vunpack.c.l.b16 %v1071
        %v1367 = vunpack.c.l.b16 %v1072
        %v1368 = vunpack.c.l.b16 %v1073
        %v1369 = vunpack.c.l.b16 %v1074
        %v1370 = vunpack.c.l.b16 %v1075
        %v1371 = vunpack.c.l.b16 %v1076
        %v1372 = vunpack.c.l.b16 %v1077
        %v1373 = vunpack.c.l.b16 %v1078
        %v1374 = vunpack.c.l.b16 %v1079
        %v1375 = vunpack.c.l.b16 %v1080
        %v1376 = vunpack.c.l.b16 %v1081
        %v1377 = vunpack.c.l.b16 %v1082
        %v1378 = vunpack.c.l.b16 %v1083
        %v1379 = vunpack.c.l.b16 %v1084
        %v1380 = vunpack.c.l.b16 %v1085
        %v1381 = vunpack.c.l.b16 %v1086
        %v1382 = vunpack.c.l.b16 %v1087
        %v1383 = vunpack.c.l.b16 %v1088
        %v1384 = vunpack.c.l.b16 %v1089
        %v1385 = vunpack.c.l.b16 %v1090
        %v1386 = vunpack.c.l.b16 %v1091
        %v1387 = vpack.c.b16 %v1244, %v1243
        %v1388 = vpack.c.b16 %v1246, %v1245
        %v1389 = vpack.c.b16 %v1248, %v1247
        %v1390 = vpack.c.b16 %v1250, %v1249
        %v1391 = vpack.c.b16 %v1252, %v1251
        %v1392 = vpack.c.b16 %v1254, %v1253
        %v1393 = vpack.c.b16 %v1256, %v1255
        %v1394 = vpack.c.b16 %v1258, %v1257
        %v1395 = vpack.c.b16 %v1260, %v1259
        %v1396 = vpack.c.b16 %v1262, %v1261
        %v1397 = vpack.c.b16 %v1264, %v1263
        %v1398 = vpack.c.b16 %v1266, %v1265
        %v1399 = vpack.c.b16 %v1268, %v1267
        %v1400 = vpack.c.b16 %v1270, %v1269
        %v1401 = vpack.c.b16 %v1272, %v1271
        %v1402 = vpack.c.b16 %v1274, %v1273
        %v1403 = vpack.c.b16 %v1276, %v1275
        %v1404 = vpack.c.b16 %v1278, %v1277
        %v1405 = vpack.c.b16 %v1280, %v1279
        %v1406 = vpack.c.b16 %v1282, %v1281
        %v1407 = vpack.c.b16 %v1284, %v1283
        %v1408 = vpack.c.b16 %v1286, %v1285
        %v1409 = vpack.c.b16 %v1288, %v1287
        %v1410 = vpack.c.b16 %v1290, %v1289
        %v1411 = vpack.c.b16 %v1292, %v1291
        %v1412 = vpack.c.b16 %v1294, %v1293
        %v1413 = vpack.c.b16 %v1296, %v1295
        %v1414 = vpack.c.b16 %v1298, %v1297
        %v1415 = vpack.c.b16 %v1300, %v1299
        %v1416 = vpack.c.b16 %v1302, %v1301
        %v1417 = vpack.c.b16 %v1304, %v1303
        %v1418 = vpack.c.b16 %v1306, %v1305
        %v1419 = vpack.c.b16 %v1308, %v1307
        %v1420 = vpack.c.b16 %v1310, %v1309
        %v1421 = vpack.c.b16 %v1312, %v1311
        %v1422 = vpack.c.b16 %v1314, %v1313
        %v1423 = vpack.c.b16 %v1316, %v1315
        %v1424 = vpack.c.b16 %v1318, %v1317
        %v1425 = vpack.c.b16 %v1320, %v1319
        %v1426 = vpack.c.b16 %v1322, %v1321
        %v1427 = vpack.c.b16 %v1324, %v1323
        %v1428 = vpack.c.b16 %v1326, %v1325
        %v1429 = vpack.c.b16 %v1328, %v1327
        %v1430 = vpack.c.b16 %v1330, %v1329
        %v1431 = vpack.c.b16 %v1332, %v1331
        %v1432 = vpack.c.b16 %v1334, %v1333
        %v1433 = vpack.c.b16 %v1336, %v1335
        %v1434 = vpack.c.b16 %v1338, %v1337
        %v1435 = vpack.c.b16 %v1340, %v1339
        %v1436 = vpack.c.b16 %v1342, %v1341
        %v1437 = vpack.c.b16 %v1344, %v1343
        %v1438 = vpack.c.b16 %v1346, %v1345
        %v1439 = vpack.c.b16 %v1348, %v1347
        %v1440 = vpack.c.b16 %v1350, %v1349
        %v1441 = vpack.c.b16 %v1352, %v1351
        %v1442 = vpack.c.b16 %v1354, %v1353
        %v1443 = vpack.c.b16 %v1356, %v1355
        %v1444 = vpack.c.b16 %v1358, %v1357
        %v1445 = vpack.c.b16 %v1360, %v1359
        %v1446 = vpack.c.b16 %v1362, %v1361
        %v1447 = vpack.c.b16 %v1364, %v1363
        %v1448 = vpack.c.b16 %v1366, %v1365
        %v1449 = vpack.c.b16 %v1368, %v1367
        %v1450 = vpack.c.b16 %v1370, %v1369
        %v1451 = vpack.c.b16 %v1372, %v1371
        %v1452 = vpack.c.b16 %v1374, %v1373
        %v1453 = vpack.c.b16 %v1376, %v1375
        %v1454 = vpack.c.b16 %v1378, %v1377
        %v1455 = vpack.c.b16 %v1380, %v1379
        %v1456 = vpack.c.b16 %v1382, %v1381
        %v1457 = vpack.c.b16 %v1384, %v1383
        %v1458 = vpack.c.b16 %v1386, %v1385
        %1531 = vmatprep.subr.bf16.mxu0 0
        %1532 = vmatpush1.bf16.msra.mxu0 %v1387
        %1533 = vmatprep.subr.bf16.mxu0 0
        %1534 = vmatpush1.bf16.msra.mxu0 %v1388
        %1535 = vmatprep.subr.bf16.mxu0 0
        %1536 = vmatpush1.bf16.msra.mxu0 %v1389
        %1537 = vmatprep.subr.bf16.mxu0 0
        %1538 = vmatpush1.bf16.msra.mxu0 %v1390
        %1539 = vmatprep.subr.bf16.mxu0 0
        %1540 = vmatpush1.bf16.msra.mxu0 %v1391
        %1541 = vmatprep.subr.bf16.mxu0 0
        %1542 = vmatpush1.bf16.msra.mxu0 %v1392
        %1543 = vmatprep.subr.bf16.mxu0 0
        %1544 = vmatpush1.bf16.msra.mxu0 %v1393
        %1545 = vmatprep.subr.bf16.mxu0 0
        %1546 = vmatpush1.bf16.msra.mxu0 %v1394
        %1547 = vmatprep.subr.bf16.mxu0 0
        %1548 = vmatpush1.bf16.msra.mxu0 %v1395
        %1549 = vmatprep.subr.bf16.mxu0 0
        %1550 = vmatpush1.bf16.msra.mxu0 %v1396
        %1551 = vmatprep.subr.bf16.mxu0 0
        %1552 = vmatpush1.bf16.msra.mxu0 %v1397
        %1553 = vmatprep.subr.bf16.mxu0 0
        %1554 = vmatpush1.bf16.msra.mxu0 %v1398
        %1555 = vmatprep.subr.bf16.mxu0 0
        %1556 = vmatpush1.bf16.msra.mxu0 %v1399
        %1557 = vmatprep.subr.bf16.mxu0 0
        %1558 = vmatpush1.bf16.msra.mxu0 %v1400
        %1559 = vmatprep.subr.bf16.mxu0 0
        %1560 = vmatpush1.bf16.msra.mxu0 %v1401
        %1561 = vmatprep.subr.bf16.mxu0 0
        %1562 = vmatpush1.bf16.msra.mxu0 %v1402
        %1563 = vmatprep.mubr.bf16.mxu0 %v940
        %1564 = vmatmul.mubr.bf16.gmra.mrb[0].mxu0 %v939
        %v1565 = vpop.f32.mrb[0].mxu0
        %v1566 = vadd.f32 %v1097, %v1565
        %v1567 = vpop.f32.mrb[0].mxu0
        %v1568 = vpop.f32.mrb[0].mxu0
        %v1569 = vpop.f32.mrb[0].mxu0
        %1570 = vdwg.mxu0
        %1571 = vmatprep.subr.bf16.mxu0 0
        %1572 = vmatpush1.bf16.msra.mxu0 %v1403
        %1573 = vmatprep.subr.bf16.mxu0 0
        %1574 = vmatpush1.bf16.msra.mxu0 %v1404
        %1575 = vmatprep.subr.bf16.mxu0 0
        %1576 = vmatpush1.bf16.msra.mxu0 %v1405
        %1577 = vmatprep.subr.bf16.mxu0 0
        %1578 = vmatpush1.bf16.msra.mxu0 %v1406
        %1579 = vmatprep.subr.bf16.mxu0 0
        %1580 = vmatpush1.bf16.msra.mxu0 %v1407
        %1581 = vmatprep.subr.bf16.mxu0 0
        %1582 = vmatpush1.bf16.msra.mxu0 %v1408
        %1583 = vmatprep.subr.bf16.mxu0 0
        %1584 = vmatpush1.bf16.msra.mxu0 %v1409
        %1585 = vmatprep.subr.bf16.mxu0 0
        %1586 = vmatpush1.bf16.msra.mxu0 %v1410
        %1587 = vmatprep.subr.bf16.mxu0 0
        %1588 = vmatpush1.bf16.msra.mxu0 %v1411
        %1589 = vmatprep.subr.bf16.mxu0 0
        %1590 = vmatpush1.bf16.msra.mxu0 %v1412
        %1591 = vmatprep.subr.bf16.mxu0 0
        %1592 = vmatpush1.bf16.msra.mxu0 %v1413
        %1593 = vmatprep.subr.bf16.mxu0 0
        %1594 = vmatpush1.bf16.msra.mxu0 %v1414
        %1595 = vmatprep.subr.bf16.mxu0 0
        %1596 = vmatpush1.bf16.msra.mxu0 %v1415
        %1597 = vmatprep.subr.bf16.mxu0 0
        %1598 = vmatpush1.bf16.msra.mxu0 %v1416
        %1599 = vmatprep.subr.bf16.mxu0 0
        %1600 = vmatpush1.bf16.msra.mxu0 %v1417
        %1601 = vmatprep.subr.bf16.mxu0 0
        %1602 = vmatpush1.bf16.msra.mxu0 %v1418
        %1603 = vmatprep.mubr.bf16.mxu0 %v942
        %1604 = vmatmul.mubr.bf16.gmra.mrb[0].mxu0 %v941
        %v1605 = vpop.f32.mrb[0].mxu0
        %v1606 = vadd.f32 %v1566, %v1605
        %v1607 = vpop.f32.mrb[0].mxu0
        %v1608 = vpop.f32.mrb[0].mxu0
        %v1609 = vpop.f32.mrb[0].mxu0
        %1610 = vdwg.mxu0
        %1611 = vmatprep.subr.bf16.mxu0 0
        %1612 = vmatpush1.bf16.msra.mxu0 %v1419
        %1613 = vmatprep.subr.bf16.mxu0 0
        %1614 = vmatpush1.bf16.msra.mxu0 %v1420
        %1615 = vmatprep.subr.bf16.mxu0 0
        %1616 = vmatpush1.bf16.msra.mxu0 %v1421
        %1617 = vmatprep.subr.bf16.mxu0 0
        %1618 = vmatpush1.bf16.msra.mxu0 %v1422
        %1619 = vmatprep.subr.bf16.mxu0 0
        %1620 = vmatpush1.bf16.msra.mxu0 %v1423
        %1621 = vmatprep.subr.bf16.mxu0 0
        %1622 = vmatpush1.bf16.msra.mxu0 %v1424
        %1623 = vmatprep.subr.bf16.mxu0 0
        %1624 = vmatpush1.bf16.msra.mxu0 %v1425
        %1625 = vmatprep.subr.bf16.mxu0 0
        %1626 = vmatpush1.bf16.msra.mxu0 %v1426
        %1627 = vmatprep.subr.bf16.mxu0 0
        %1628 = vmatpush1.bf16.msra.mxu0 %v1427
        %1629 = vmatprep.subr.bf16.mxu0 0
        %1630 = vmatpush1.bf16.msra.mxu0 %v1428
        %1631 = vmatprep.subr.bf16.mxu0 0
        %1632 = vmatpush1.bf16.msra.mxu0 %v1429
        %1633 = vmatprep.subr.bf16.mxu0 0
        %1634 = vmatpush1.bf16.msra.mxu0 %v1430
        %1635 = vmatprep.subr.bf16.mxu0 0
        %1636 = vmatpush1.bf16.msra.mxu0 %v1431
        %1637 = vmatprep.subr.bf16.mxu0 0
        %1638 = vmatpush1.bf16.msra.mxu0 %v1432
        %1639 = vmatprep.subr.bf16.mxu0 0
        %1640 = vmatpush1.bf16.msra.mxu0 %v1433
        %1641 = vmatprep.subr.bf16.mxu0 0
        %1642 = vmatpush1.bf16.msra.mxu0 %v1434
        %1643 = vmatprep.mubr.bf16.mxu0 %v944
        %1644 = vmatmul.mubr.bf16.gmra.mrb[0].mxu0 %v943
        %v1645 = vpop.f32.mrb[0].mxu0
        %v1646 = vadd.f32 %v1606, %v1645
        %v1647 = vpop.f32.mrb[0].mxu0
        %v1648 = vpop.f32.mrb[0].mxu0
        %v1649 = vpop.f32.mrb[0].mxu0
        %1650 = vdwg.mxu0
        %1651 = vmatprep.subr.bf16.mxu0 0
        %1652 = vmatpush1.bf16.msra.mxu0 %v1435
        %1653 = vmatprep.subr.bf16.mxu0 0
        %1654 = vmatpush1.bf16.msra.mxu0 %v1436
        %1655 = vmatprep.subr.bf16.mxu0 0
        %1656 = vmatpush1.bf16.msra.mxu0 %v1437
        %1657 = vmatprep.subr.bf16.mxu0 0
        %1658 = vmatpush1.bf16.msra.mxu0 %v1438
        %1659 = vmatprep.subr.bf16.mxu0 0
        %1660 = vmatpush1.bf16.msra.mxu0 %v1439
        %1661 = vmatprep.subr.bf16.mxu0 0
        %1662 = vmatpush1.bf16.msra.mxu0 %v1440
        %1663 = vmatprep.subr.bf16.mxu0 0
        %1664 = vmatpush1.bf16.msra.mxu0 %v1441
        %1665 = vmatprep.subr.bf16.mxu0 0
        %1666 = vmatpush1.bf16.msra.mxu0 %v1442
        %1667 = vmatprep.subr.bf16.mxu0 0
        %1668 = vmatpush1.bf16.msra.mxu0 %v1443
        %1669 = vmatprep.subr.bf16.mxu0 0
        %1670 = vmatpush1.bf16.msra.mxu0 %v1444
        %1671 = vmatprep.subr.bf16.mxu0 0
        %1672 = vmatpush1.bf16.msra.mxu0 %v1445
        %1673 = vmatprep.subr.bf16.mxu0 0
        %1674 = vmatpush1.bf16.msra.mxu0 %v1446
        %1675 = vmatprep.subr.bf16.mxu0 0
        %1676 = vmatpush1.bf16.msra.mxu0 %v1447
        %1677 = vmatprep.subr.bf16.mxu0 0
        %1678 = vmatpush1.bf16.msra.mxu0 %v1448
        %1679 = vmatprep.subr.bf16.mxu0 0
        %1680 = vmatpush1.bf16.msra.mxu0 %v1449
        %1681 = vmatprep.subr.bf16.mxu0 0
        %1682 = vmatpush1.bf16.msra.mxu0 %v1450
        %1683 = vmatprep.mubr.bf16.mxu0 %v946
        %1684 = vmatmul.mubr.bf16.gmra.mrb[0].mxu0 %v945
        %v1685 = vpop.f32.mrb[0].mxu0
        %v1686 = vadd.f32 %v1646, %v1685
        %v1687 = vpop.f32.mrb[0].mxu0
        %v1688 = vpop.f32.mrb[0].mxu0
        %v1689 = vpop.f32.mrb[0].mxu0
        %1690 = vdwg.mxu0
        %1691 = vmatprep.subr.bf16.mxu0 0
        %1692 = vmatpush1.bf16.msra.mxu0 %v1451
        %1693 = vmatprep.subr.bf16.mxu0 0
        %1694 = vmatpush1.bf16.msra.mxu0 %v1452
        %1695 = vmatprep.subr.bf16.mxu0 0
        %1696 = vmatpush1.bf16.msra.mxu0 %v1453
        %1697 = vmatprep.subr.bf16.mxu0 0
        %1698 = vmatpush1.bf16.msra.mxu0 %v1454
        %1699 = vmatprep.subr.bf16.mxu0 0
        %1700 = vmatpush1.bf16.msra.mxu0 %v1455
        %1701 = vmatprep.subr.bf16.mxu0 0
        %1702 = vmatpush1.bf16.msra.mxu0 %v1456
        %1703 = vmatprep.subr.bf16.mxu0 0
        %1704 = vmatpush1.bf16.msra.mxu0 %v1457
        %1705 = vmatprep.subr.bf16.mxu0 0
        %1706 = vmatpush1.bf16.msra.mxu0 %v1458
        %1707 = vmatprep.subr.bf16.mxu0 0
        %1708 = vmatpush1.bf16.msra.mxu0 0
        %1709 = vmatprep.subr.bf16.mxu0 0
        %1710 = vmatpush1.bf16.msra.mxu0 0
        %1711 = vmatprep.subr.bf16.mxu0 0
        %1712 = vmatpush1.bf16.msra.mxu0 0
        %1713 = vmatprep.subr.bf16.mxu0 0
        %1714 = vmatpush1.bf16.msra.mxu0 0
        %1715 = vmatprep.subr.bf16.mxu0 0
        %1716 = vmatpush1.bf16.msra.mxu0 0
        %1717 = vmatprep.subr.bf16.mxu0 0
        %1718 = vmatpush1.bf16.msra.mxu0 0
        %1719 = vmatprep.subr.bf16.mxu0 0
        %1720 = vmatpush1.bf16.msra.mxu0 0
        %1721 = vmatprep.subr.bf16.mxu0 0
        %1722 = vmatpush1.bf16.msra.mxu0 0
        %1723 = vmatprep.mubr.bf16.mxu0 0
        %1724 = vmatmul.mubr.bf16.gmra.mrb[0].mxu0 %v947
        %v1725 = vpop.f32.mrb[0].mxu0
        %v1726 = vadd.f32 %v1686, %v1725
        %v1727 = vpop.f32.mrb[0].mxu0
        %v1728 = vpop.f32.mrb[0].mxu0
        %v1729 = vpop.f32.mrb[0].mxu0
        %1730 = vdwg.mxu0
        %v1731 = vlaneseq
        %v1732 = vshrl.u32 %v1731, 7
        %s1733 = smul.u32 %s21, 8
        %v1734 = vstv %s1733
        %v1735 = vadd.s32 %v1732, %v1734
        %vm1736 = vcmp.lt.s32.totalorder %v1735, 8
        %v1737 = vsel %vm1736, %v1726, 0.0
        %v1738 = vrot.slane %v1737, 4
        %v1739 = vadd.f32 %v1737, %v1738
        %v1740 = vrot.slane %v1739, 2
        %v1741 = vadd.f32 %v1739, %v1740
        %v1742 = vrot.slane %v1741, 1
        %v1743 = vadd.f32 %v1741, %v1742
        %1744 = vst [vmem:[%s921] sm:$0x1] %v1743
        %v1745 = vmul.f32 %v1737, %v1737
        %v1746 = vrot.slane %v1745, 4
        %v1747 = vadd.f32 %v1745, %v1746
        %v1748 = vrot.slane %v1747, 2
        %v1749 = vadd.f32 %v1747, %v1748
        %v1750 = vrot.slane %v1749, 1
        %v1751 = vadd.f32 %v1749, %v1750
        %1752 = vst [vmem:[%s928] sm:$0x1] %v1751
        %1753 = vst [vmem:[%s914] sm:$0xff] %v1726
        %p1754 = scmp.lt.s32.totalorder %s21, 0
        %s1755 = scalar_select %p1754, %s21, 0
        %p1756 = scmp.lt.s32.totalorder %s22, 1
        %s1757 = scalar_select %p1756, %s22, 1
        %s1758 = smul.addr %s1755, 2
        %s1759 = sadd.s32 %s1757, %s1758
        %s1760 = smul.addr %s1759, 8
        %s1761 = scalar_lea.vmem %s3, %s1760
        %p1762 = scmp.lt.s32.totalorder %s21, 0
        %s1763 = scalar_select %p1762, %s21, 0
        %p1764 = scmp.lt.s32.totalorder %s22, 1
        %s1765 = scalar_select %p1764, %s22, 1
        %s1766 = smul.addr %s1763, 2
        %s1767 = sadd.s32 %s1765, %s1766
        %s1768 = scalar_lea.vmem %s4, %s1767
        %p1769 = scmp.lt.s32.totalorder %s21, 0
        %s1770 = scalar_select %p1769, %s21, 0
        %p1771 = scmp.lt.s32.totalorder %s22, 1
        %s1772 = scalar_select %p1771, %s22, 1
        %s1773 = smul.addr %s1770, 2
        %s1774 = sadd.s32 %s1772, %s1773
        %s1775 = scalar_lea.vmem %s5, %s1774
        // Predicated region
        $region74: #{cnn_norm_forward.11} parent=68 // pred_check
          %p1776 = pneg %p127
        $region75: #{cnn_norm_forward.11} parent=68 // pred_check_branch
          %1778 = sbr.rel (%p1776) target = $region77
        $region76: #{cnn_norm_forward.11} parent=68 // pred_region
          _
        $region77: #{cnn_norm_forward.11} parent=68 // pred_fallthru
          _
        // Predicated region
        $region78: #{cnn_norm_forward.11} parent=68 // pred_check
          %p1779 = pneg %p155
        $region79: #{cnn_norm_forward.11} parent=68 // pred_check_branch
          %1781 = sbr.rel (%p1779) target = $region81
        $region80: #{cnn_norm_forward.11} parent=68 // pred_region
          _
        $region81: #{cnn_norm_forward.11} parent=68 // pred_fallthru
          _
        // Predicated region
        $region82: #{cnn_norm_forward.11} parent=68 // pred_check
          %p1782 = pneg %p183
        $region83: #{cnn_norm_forward.11} parent=68 // pred_check_branch
          %1784 = sbr.rel (%p1782) target = $region85
        $region84: #{cnn_norm_forward.11} parent=68 // pred_region
          _
        $region85: #{cnn_norm_forward.11} parent=68 // pred_fallthru
          _
      $region69: #{cnn_norm_forward.11} parent=5 // pred_fallthru
        _
      %p1785 = scmp.le.s32.totalorder 2, %s12
      // Predicated region
      $region86: #{cnn_norm_forward.11} parent=5 // pred_check
        %p1786 = pneg %p1785
      $region87: #{cnn_norm_forward.11} parent=5 // pred_check_branch
        %1788 = sbr.rel (%p1786) target = $region89
      $region88: #{cnn_norm_forward.11} parent=5 // pred_region
        %s1789 = ssub.s32 %s12, 2
        // Predicated region
        $region90: #{cnn_norm_forward.11} parent=88 // pred_check
          %p1790 = pneg %p133
        $region91: #{cnn_norm_forward.11} parent=88 // pred_check_branch
          %1792 = sbr.rel (%p1790) target = $region93
        $region92: #{cnn_norm_forward.11} parent=88 // pred_region
          %p1793 = scmp.lt.s32.totalorder %s23, 0
          %s1794 = scalar_select %p1793, %s23, 0
          %p1795 = scmp.lt.s32.totalorder %s24, 1
          %s1796 = scalar_select %p1795, %s24, 1
          %s1797 = smul.addr %s1794, 2
          %s1798 = sadd.s32 %s1796, %s1797
          %s1799 = smul.addr %s1798, 8
          %s1800 = scalar_lea.vmem %s3, %s1799
        $region93: #{cnn_norm_forward.11} parent=88 // pred_fallthru
          _
        // Predicated region
        $region94: #{cnn_norm_forward.11} parent=88 // pred_check
          %p1801 = pneg %p161
        $region95: #{cnn_norm_forward.11} parent=88 // pred_check_branch
          %1803 = sbr.rel (%p1801) target = $region97
        $region96: #{cnn_norm_forward.11} parent=88 // pred_region
          %p1804 = scmp.lt.s32.totalorder %s23, 0
          %s1805 = scalar_select %p1804, %s23, 0
          %p1806 = scmp.lt.s32.totalorder %s24, 1
          %s1807 = scalar_select %p1806, %s24, 1
          %s1808 = smul.addr %s1805, 2
          %s1809 = sadd.s32 %s1807, %s1808
          %s1810 = scalar_lea.vmem %s4, %s1809
        $region97: #{cnn_norm_forward.11} parent=88 // pred_fallthru
          _
        // Predicated region
        $region98: #{cnn_norm_forward.11} parent=88 // pred_check
          %p1811 = pneg %p189
        $region99: #{cnn_norm_forward.11} parent=88 // pred_check_branch
          %1813 = sbr.rel (%p1811) target = $region101
        $region100: #{cnn_norm_forward.11} parent=88 // pred_region
          %p1814 = scmp.lt.s32.totalorder %s23, 0
          %s1815 = scalar_select %p1814, %s23, 0
          %p1816 = scmp.lt.s32.totalorder %s24, 1
          %s1817 = scalar_select %p1816, %s24, 1
          %s1818 = smul.addr %s1815, 2
          %s1819 = sadd.s32 %s1817, %s1818
          %s1820 = scalar_lea.vmem %s5, %s1819
        $region101: #{cnn_norm_forward.11} parent=88 // pred_fallthru
          _
      $region89: #{cnn_norm_forward.11} parent=5 // pred_fallthru
        _
    $region6: #{cnn_norm_forward.11} parent=1 // loop_footer
      %s16 = sadd.s32 1, %s12
    $region7: #{cnn_norm_forward.11} parent=1 // loop_footer_branch
      %11 = sbr.rel target = $region3
    $region8: #{cnn_norm_forward.11} parent=1 // loop_exit
      _

// kernel: cnn_norm_forward.13
$region0: #{cnn_norm_forward.13}
  #allocation0 [shape = 'u32[]', space=smem, size = 0x4, offset = 0x4, fixed_abs, tag = 'smem constant byte address 0x4 - core index']
  #allocation1 [shape = 'u32[144,128]{1,0:T(1,128)}', space=vmem, size = 0x12000, scoped, tag = 'internal scratch']
  %s0 = inlined_call_operand.vmem [shape: f32[8,2304], index: 0, kind: input, shape index: {}]
  %s1 = inlined_call_operand.vmem [shape: bf16[2304,256], index: 1, kind: input, shape index: {}]
  %s2 = inlined_call_operand.vmem [shape: f32[1,256], index: 2, kind: input, shape index: {}]
  %s3 = inlined_call_operand.vmem [shape: bf16[256,256], index: 3, kind: input, shape index: {}]
  %s4 = inlined_call_operand.vmem [shape: f32[1,256], index: 4, kind: input, shape index: {}]
  %s5 = inlined_call_operand.vmem [shape: bf16[256,256], index: 5, kind: input, shape index: {}]
  %s6 = inlined_call_operand.vmem [shape: f32[1,256], index: 6, kind: input, shape index: {}]
  %s7 = inlined_call_operand.vmem [shape: bf16[256,256], index: 7, kind: input, shape index: {}]
  %s8 = inlined_call_operand.vmem [shape: f32[1,256], index: 8, kind: input, shape index: {}]
  %s9 = inlined_call_operand.vmem [shape: f32[8,256], index: 9, kind: output, shape index: {}]
  %s10 = sld [smem:[#allocation0]]
  $region46: #{cnn_norm_forward.13} parent=0
    _
  %s12 = ssub.s32 1, %s10
  %s13 = scalar_select 0, %s12, %s10
  // Predicated region
  $region2: #{cnn_norm_forward.13} parent=0 // pred_check
    _
  $region3: #{cnn_norm_forward.13} parent=0 // pred_check_branch
    %15 = sbr.rel (0) target = $region5
  $region4: #{cnn_norm_forward.13} parent=0 // pred_region
    _
  $region5: #{cnn_norm_forward.13} parent=0 // pred_fallthru
    _
  // Predicated region
  $region6: #{cnn_norm_forward.13} parent=0 // pred_check
    _
  $region7: #{cnn_norm_forward.13} parent=0 // pred_check_branch
    %17 = sbr.rel (0) target = $region9
  $region8: #{cnn_norm_forward.13} parent=0 // pred_region
    _
  $region9: #{cnn_norm_forward.13} parent=0 // pred_fallthru
    _
  // Predicated region
  $region10: #{cnn_norm_forward.13} parent=0 // pred_check
    _
  $region11: #{cnn_norm_forward.13} parent=0 // pred_check_branch
    %19 = sbr.rel (0) target = $region13
  $region12: #{cnn_norm_forward.13} parent=0 // pred_region
    _
  $region13: #{cnn_norm_forward.13} parent=0 // pred_fallthru
    _
  // Predicated region
  $region14: #{cnn_norm_forward.13} parent=0 // pred_check
    _
  $region15: #{cnn_norm_forward.13} parent=0 // pred_check_branch
    %21 = sbr.rel (0) target = $region17
  $region16: #{cnn_norm_forward.13} parent=0 // pred_region
    _
  $region17: #{cnn_norm_forward.13} parent=0 // pred_fallthru
    _
  // Predicated region
  $region18: #{cnn_norm_forward.13} parent=0 // pred_check
    _
  $region19: #{cnn_norm_forward.13} parent=0 // pred_check_branch
    %23 = sbr.rel (0) target = $region21
  $region20: #{cnn_norm_forward.13} parent=0 // pred_region
    _
  $region21: #{cnn_norm_forward.13} parent=0 // pred_fallthru
    _
  // Predicated region
  $region22: #{cnn_norm_forward.13} parent=0 // pred_check
    _
  $region23: #{cnn_norm_forward.13} parent=0 // pred_check_branch
    %25 = sbr.rel (0) target = $region25
  $region24: #{cnn_norm_forward.13} parent=0 // pred_region
    _
  $region25: #{cnn_norm_forward.13} parent=0 // pred_fallthru
    _
  // Predicated region
  $region26: #{cnn_norm_forward.13} parent=0 // pred_check
    _
  $region27: #{cnn_norm_forward.13} parent=0 // pred_check_branch
    %27 = sbr.rel (0) target = $region29
  $region28: #{cnn_norm_forward.13} parent=0 // pred_region
    _
  $region29: #{cnn_norm_forward.13} parent=0 // pred_fallthru
    _
  // Predicated region
  $region30: #{cnn_norm_forward.13} parent=0 // pred_check
    _
  $region31: #{cnn_norm_forward.13} parent=0 // pred_check_branch
    %29 = sbr.rel (0) target = $region33
  $region32: #{cnn_norm_forward.13} parent=0 // pred_region
    _
  $region33: #{cnn_norm_forward.13} parent=0 // pred_fallthru
    _
  // Predicated region
  $region34: #{cnn_norm_forward.13} parent=0 // pred_check
    _
  $region35: #{cnn_norm_forward.13} parent=0 // pred_check_branch
    %31 = sbr.rel (0) target = $region37
  $region36: #{cnn_norm_forward.13} parent=0 // pred_region
    _
  $region37: #{cnn_norm_forward.13} parent=0 // pred_fallthru
    _
  %v32 = vld [vmem:[%s0] sm:$0xff]
  %v33 = vld [vmem:[%s0 + $0x8] sm:$0xff]
  %v34 = vld [vmem:[%s0 + $0x10] sm:$0xff]
  %v35 = vld [vmem:[%s0 + $0x18] sm:$0xff]
  %v36 = vld [vmem:[%s0 + $0x20] sm:$0xff]
  %v37 = vld [vmem:[%s0 + $0x28] sm:$0xff]
  %v38 = vld [vmem:[%s0 + $0x30] sm:$0xff]
  %v39 = vld [vmem:[%s0 + $0x38] sm:$0xff]
  %v40 = vld [vmem:[%s0 + $0x40] sm:$0xff]
  %v41 = vld [vmem:[%s0 + $0x48] sm:$0xff]
  %v42 = vld [vmem:[%s0 + $0x50] sm:$0xff]
  %v43 = vld [vmem:[%s0 + $0x58] sm:$0xff]
  %v44 = vld [vmem:[%s0 + $0x60] sm:$0xff]
  %v45 = vld [vmem:[%s0 + $0x68] sm:$0xff]
  %v46 = vld [vmem:[%s0 + $0x70] sm:$0xff]
  %v47 = vld [vmem:[%s0 + $0x78] sm:$0xff]
  %v48 = vld [vmem:[%s0 + $0x80] sm:$0xff]
  %v49 = vld [vmem:[%s0 + $0x88] sm:$0xff]
  %v50 = vpack.c.bf16 %v32, %v32
  %v51 = vpack.c.bf16 %v33, %v33
  %v52 = vpack.c.bf16 %v34, %v34
  %v53 = vpack.c.bf16 %v35, %v35
  %v54 = vpack.c.bf16 %v36, %v36
  %v55 = vpack.c.bf16 %v37, %v37
  %v56 = vpack.c.bf16 %v38, %v38
  %v57 = vpack.c.bf16 %v39, %v39
  %v58 = vpack.c.bf16 %v40, %v40
  %v59 = vpack.c.bf16 %v41, %v41
  %v60 = vpack.c.bf16 %v42, %v42
  %v61 = vpack.c.bf16 %v43, %v43
  %v62 = vpack.c.bf16 %v44, %v44
  %v63 = vpack.c.bf16 %v45, %v45
  %v64 = vpack.c.bf16 %v46, %v46
  %v65 = vpack.c.bf16 %v47, %v47
  %v66 = vpack.c.bf16 %v48, %v48
  %v67 = vpack.c.bf16 %v49, %v49
  %v68 = vld [vmem:[%s1] sm:$0xff]
  %v69 = vld [vmem:[%s1 + $0x8] sm:$0xff]
  %v70 = vld [vmem:[%s1 + $0x10] sm:$0xff]
  %v71 = vld [vmem:[%s1 + $0x18] sm:$0xff]
  %v72 = vld [vmem:[%s1 + $0x20] sm:$0xff]
  %v73 = vld [vmem:[%s1 + $0x28] sm:$0xff]
  %v74 = vld [vmem:[%s1 + $0x30] sm:$0xff]
  %v75 = vld [vmem:[%s1 + $0x38] sm:$0xff]
  %v76 = vld [vmem:[%s1 + $0x40] sm:$0xff]
  %v77 = vld [vmem:[%s1 + $0x48] sm:$0xff]
  %v78 = vld [vmem:[%s1 + $0x50] sm:$0xff]
  %v79 = vld [vmem:[%s1 + $0x58] sm:$0xff]
  %v80 = vld [vmem:[%s1 + $0x60] sm:$0xff]
  %v81 = vld [vmem:[%s1 + $0x68] sm:$0xff]
  %v82 = vld [vmem:[%s1 + $0x70] sm:$0xff]
  %v83 = vld [vmem:[%s1 + $0x78] sm:$0xff]
  %v84 = vld [vmem:[%s1 + $0x80] sm:$0xff]
  %v85 = vld [vmem:[%s1 + $0x88] sm:$0xff]
  %v86 = vld [vmem:[%s1 + $0x90] sm:$0xff]
  %v87 = vld [vmem:[%s1 + $0x98] sm:$0xff]
  %v88 = vld [vmem:[%s1 + $0xa0] sm:$0xff]
  %v89 = vld [vmem:[%s1 + $0xa8] sm:$0xff]
  %v90 = vld [vmem:[%s1 + $0xb0] sm:$0xff]
  %v91 = vld [vmem:[%s1 + $0xb8] sm:$0xff]
  %v92 = vld [vmem:[%s1 + $0xc0] sm:$0xff]
  %v93 = vld [vmem:[%s1 + $0xc8] sm:$0xff]
  %v94 = vld [vmem:[%s1 + $0xd0] sm:$0xff]
  %v95 = vld [vmem:[%s1 + $0xd8] sm:$0xff]
  %v96 = vld [vmem:[%s1 + $0xe0] sm:$0xff]
  %v97 = vld [vmem:[%s1 + $0xe8] sm:$0xff]
  %v98 = vld [vmem:[%s1 + $0xf0] sm:$0xff]
  %v99 = vld [vmem:[%s1 + $0xf8] sm:$0xff]
  %v100 = vld [vmem:[%s1 + $0x100] sm:$0xff]
  %v101 = vld [vmem:[%s1 + $0x108] sm:$0xff]
  %v102 = vld [vmem:[%s1 + $0x110] sm:$0xff]
  %v103 = vld [vmem:[%s1 + $0x118] sm:$0xff]
  %v104 = vld [vmem:[%s1 + $0x120] sm:$0xff]
  %v105 = vld [vmem:[%s1 + $0x128] sm:$0xff]
  %v106 = vld [vmem:[%s1 + $0x130] sm:$0xff]
  %v107 = vld [vmem:[%s1 + $0x138] sm:$0xff]
  %v108 = vld [vmem:[%s1 + $0x140] sm:$0xff]
  %v109 = vld [vmem:[%s1 + $0x148] sm:$0xff]
  %v110 = vld [vmem:[%s1 + $0x150] sm:$0xff]
  %v111 = vld [vmem:[%s1 + $0x158] sm:$0xff]
  %v112 = vld [vmem:[%s1 + $0x160] sm:$0xff]
  %v113 = vld [vmem:[%s1 + $0x168] sm:$0xff]
  %v114 = vld [vmem:[%s1 + $0x170] sm:$0xff]
  %v115 = vld [vmem:[%s1 + $0x178] sm:$0xff]
  %v116 = vld [vmem:[%s1 + $0x180] sm:$0xff]
  %v117 = vld [vmem:[%s1 + $0x188] sm:$0xff]
  %v118 = vld [vmem:[%s1 + $0x190] sm:$0xff]
  %v119 = vld [vmem:[%s1 + $0x198] sm:$0xff]
  %v120 = vld [vmem:[%s1 + $0x1a0] sm:$0xff]
  %v121 = vld [vmem:[%s1 + $0x1a8] sm:$0xff]
  %v122 = vld [vmem:[%s1 + $0x1b0] sm:$0xff]
  %v123 = vld [vmem:[%s1 + $0x1b8] sm:$0xff]
  %v124 = vld [vmem:[%s1 + $0x1c0] sm:$0xff]
  %v125 = vld [vmem:[%s1 + $0x1c8] sm:$0xff]
  %v126 = vld [vmem:[%s1 + $0x1d0] sm:$0xff]
  %v127 = vld [vmem:[%s1 + $0x1d8] sm:$0xff]
  %v128 = vld [vmem:[%s1 + $0x1e0] sm:$0xff]
  %v129 = vld [vmem:[%s1 + $0x1e8] sm:$0xff]
  %v130 = vld [vmem:[%s1 + $0x1f0] sm:$0xff]
  %v131 = vld [vmem:[%s1 + $0x1f8] sm:$0xff]
  %v132 = vld [vmem:[%s1 + $0x200] sm:$0xff]
  %v133 = vld [vmem:[%s1 + $0x208] sm:$0xff]
  %v134 = vld [vmem:[%s1 + $0x210] sm:$0xff]
  %v135 = vld [vmem:[%s1 + $0x218] sm:$0xff]
  %v136 = vld [vmem:[%s1 + $0x220] sm:$0xff]
  %v137 = vld [vmem:[%s1 + $0x228] sm:$0xff]
  %v138 = vld [vmem:[%s1 + $0x230] sm:$0xff]
  %v139 = vld [vmem:[%s1 + $0x238] sm:$0xff]
  %v140 = vld [vmem:[%s1 + $0x240] sm:$0xff]
  %v141 = vld [vmem:[%s1 + $0x248] sm:$0xff]
  %v142 = vld [vmem:[%s1 + $0x250] sm:$0xff]
  %v143 = vld [vmem:[%s1 + $0x258] sm:$0xff]
  %v144 = vld [vmem:[%s1 + $0x260] sm:$0xff]
  %v145 = vld [vmem:[%s1 + $0x268] sm:$0xff]
  %v146 = vld [vmem:[%s1 + $0x270] sm:$0xff]
  %v147 = vld [vmem:[%s1 + $0x278] sm:$0xff]
  %v148 = vld [vmem:[%s1 + $0x280] sm:$0xff]
  %v149 = vld [vmem:[%s1 + $0x288] sm:$0xff]
  %v150 = vld [vmem:[%s1 + $0x290] sm:$0xff]
  %v151 = vld [vmem:[%s1 + $0x298] sm:$0xff]
  %v152 = vld [vmem:[%s1 + $0x2a0] sm:$0xff]
  %v153 = vld [vmem:[%s1 + $0x2a8] sm:$0xff]
  %v154 = vld [vmem:[%s1 + $0x2b0] sm:$0xff]
  %v155 = vld [vmem:[%s1 + $0x2b8] sm:$0xff]
  %v156 = vld [vmem:[%s1 + $0x2c0] sm:$0xff]
  %v157 = vld [vmem:[%s1 + $0x2c8] sm:$0xff]
  %v158 = vld [vmem:[%s1 + $0x2d0] sm:$0xff]
  %v159 = vld [vmem:[%s1 + $0x2d8] sm:$0xff]
  %v160 = vld [vmem:[%s1 + $0x2e0] sm:$0xff]
  %v161 = vld [vmem:[%s1 + $0x2e8] sm:$0xff]
  %v162 = vld [vmem:[%s1 + $0x2f0] sm:$0xff]
  %v163 = vld [vmem:[%s1 + $0x2f8] sm:$0xff]
  %v164 = vld [vmem:[%s1 + $0x300] sm:$0xff]
  %v165 = vld [vmem:[%s1 + $0x308] sm:$0xff]
  %v166 = vld [vmem:[%s1 + $0x310] sm:$0xff]
  %v167 = vld [vmem:[%s1 + $0x318] sm:$0xff]
  %v168 = vld [vmem:[%s1 + $0x320] sm:$0xff]
  %v169 = vld [vmem:[%s1 + $0x328] sm:$0xff]
  %v170 = vld [vmem:[%s1 + $0x330] sm:$0xff]
  %v171 = vld [vmem:[%s1 + $0x338] sm:$0xff]
  %v172 = vld [vmem:[%s1 + $0x340] sm:$0xff]
  %v173 = vld [vmem:[%s1 + $0x348] sm:$0xff]
  %v174 = vld [vmem:[%s1 + $0x350] sm:$0xff]
  %v175 = vld [vmem:[%s1 + $0x358] sm:$0xff]
  %v176 = vld [vmem:[%s1 + $0x360] sm:$0xff]
  %v177 = vld [vmem:[%s1 + $0x368] sm:$0xff]
  %v178 = vld [vmem:[%s1 + $0x370] sm:$0xff]
  %v179 = vld [vmem:[%s1 + $0x378] sm:$0xff]
  %v180 = vld [vmem:[%s1 + $0x380] sm:$0xff]
  %v181 = vld [vmem:[%s1 + $0x388] sm:$0xff]
  %v182 = vld [vmem:[%s1 + $0x390] sm:$0xff]
  %v183 = vld [vmem:[%s1 + $0x398] sm:$0xff]
  %v184 = vld [vmem:[%s1 + $0x3a0] sm:$0xff]
  %v185 = vld [vmem:[%s1 + $0x3a8] sm:$0xff]
  %v186 = vld [vmem:[%s1 + $0x3b0] sm:$0xff]
  %v187 = vld [vmem:[%s1 + $0x3b8] sm:$0xff]
  %v188 = vld [vmem:[%s1 + $0x3c0] sm:$0xff]
  %v189 = vld [vmem:[%s1 + $0x3c8] sm:$0xff]
  %v190 = vld [vmem:[%s1 + $0x3d0] sm:$0xff]
  %v191 = vld [vmem:[%s1 + $0x3d8] sm:$0xff]
  %v192 = vld [vmem:[%s1 + $0x3e0] sm:$0xff]
  %v193 = vld [vmem:[%s1 + $0x3e8] sm:$0xff]
  %v194 = vld [vmem:[%s1 + $0x3f0] sm:$0xff]
  %v195 = vld [vmem:[%s1 + $0x3f8] sm:$0xff]
  %v196 = vld [vmem:[%s1 + $0x400] sm:$0xff]
  %v197 = vld [vmem:[%s1 + $0x408] sm:$0xff]
  %v198 = vld [vmem:[%s1 + $0x410] sm:$0xff]
  %v199 = vld [vmem:[%s1 + $0x418] sm:$0xff]
  %v200 = vld [vmem:[%s1 + $0x420] sm:$0xff]
  %v201 = vld [vmem:[%s1 + $0x428] sm:$0xff]
  %v202 = vld [vmem:[%s1 + $0x430] sm:$0xff]
  %v203 = vld [vmem:[%s1 + $0x438] sm:$0xff]
  %v204 = vld [vmem:[%s1 + $0x440] sm:$0xff]
  %v205 = vld [vmem:[%s1 + $0x448] sm:$0xff]
  %v206 = vld [vmem:[%s1 + $0x450] sm:$0xff]
  %v207 = vld [vmem:[%s1 + $0x458] sm:$0xff]
  %v208 = vld [vmem:[%s1 + $0x460] sm:$0xff]
  %v209 = vld [vmem:[%s1 + $0x468] sm:$0xff]
  %v210 = vld [vmem:[%s1 + $0x470] sm:$0xff]
  %v211 = vld [vmem:[%s1 + $0x478] sm:$0xff]
  %v212 = vld [vmem:[%s1 + $0x480] sm:$0xff]
  %v213 = vld [vmem:[%s1 + $0x488] sm:$0xff]
  %v214 = vld [vmem:[%s1 + $0x490] sm:$0xff]
  %v215 = vld [vmem:[%s1 + $0x498] sm:$0xff]
  %v216 = vld [vmem:[%s1 + $0x4a0] sm:$0xff]
  %v217 = vld [vmem:[%s1 + $0x4a8] sm:$0xff]
  %v218 = vld [vmem:[%s1 + $0x4b0] sm:$0xff]
  %v219 = vld [vmem:[%s1 + $0x4b8] sm:$0xff]
  %v220 = vld [vmem:[%s1 + $0x4c0] sm:$0xff]
  %v221 = vld [vmem:[%s1 + $0x4c8] sm:$0xff]
  %v222 = vld [vmem:[%s1 + $0x4d0] sm:$0xff]
  %v223 = vld [vmem:[%s1 + $0x4d8] sm:$0xff]
  %v224 = vld [vmem:[%s1 + $0x4e0] sm:$0xff]
  %v225 = vld [vmem:[%s1 + $0x4e8] sm:$0xff]
  %v226 = vld [vmem:[%s1 + $0x4f0] sm:$0xff]
  %v227 = vld [vmem:[%s1 + $0x4f8] sm:$0xff]
  %v228 = vld [vmem:[%s1 + $0x500] sm:$0xff]
  %v229 = vld [vmem:[%s1 + $0x508] sm:$0xff]
  %v230 = vld [vmem:[%s1 + $0x510] sm:$0xff]
  %v231 = vld [vmem:[%s1 + $0x518] sm:$0xff]
  %v232 = vld [vmem:[%s1 + $0x520] sm:$0xff]
  %v233 = vld [vmem:[%s1 + $0x528] sm:$0xff]
  %v234 = vld [vmem:[%s1 + $0x530] sm:$0xff]
  %v235 = vld [vmem:[%s1 + $0x538] sm:$0xff]
  %v236 = vld [vmem:[%s1 + $0x540] sm:$0xff]
  %v237 = vld [vmem:[%s1 + $0x548] sm:$0xff]
  %v238 = vld [vmem:[%s1 + $0x550] sm:$0xff]
  %v239 = vld [vmem:[%s1 + $0x558] sm:$0xff]
  %v240 = vld [vmem:[%s1 + $0x560] sm:$0xff]
  %v241 = vld [vmem:[%s1 + $0x568] sm:$0xff]
  %v242 = vld [vmem:[%s1 + $0x570] sm:$0xff]
  %v243 = vld [vmem:[%s1 + $0x578] sm:$0xff]
  %v244 = vld [vmem:[%s1 + $0x580] sm:$0xff]
  %v245 = vld [vmem:[%s1 + $0x588] sm:$0xff]
  %v246 = vld [vmem:[%s1 + $0x590] sm:$0xff]
  %v247 = vld [vmem:[%s1 + $0x598] sm:$0xff]
  %v248 = vld [vmem:[%s1 + $0x5a0] sm:$0xff]
  %v249 = vld [vmem:[%s1 + $0x5a8] sm:$0xff]
  %v250 = vld [vmem:[%s1 + $0x5b0] sm:$0xff]
  %v251 = vld [vmem:[%s1 + $0x5b8] sm:$0xff]
  %v252 = vld [vmem:[%s1 + $0x5c0] sm:$0xff]
  %v253 = vld [vmem:[%s1 + $0x5c8] sm:$0xff]
  %v254 = vld [vmem:[%s1 + $0x5d0] sm:$0xff]
  %v255 = vld [vmem:[%s1 + $0x5d8] sm:$0xff]
  %v256 = vld [vmem:[%s1 + $0x5e0] sm:$0xff]
  %v257 = vld [vmem:[%s1 + $0x5e8] sm:$0xff]
  %v258 = vld [vmem:[%s1 + $0x5f0] sm:$0xff]
  %v259 = vld [vmem:[%s1 + $0x5f8] sm:$0xff]
  %v260 = vld [vmem:[%s1 + $0x600] sm:$0xff]
  %v261 = vld [vmem:[%s1 + $0x608] sm:$0xff]
  %v262 = vld [vmem:[%s1 + $0x610] sm:$0xff]
  %v263 = vld [vmem:[%s1 + $0x618] sm:$0xff]
  %v264 = vld [vmem:[%s1 + $0x620] sm:$0xff]
  %v265 = vld [vmem:[%s1 + $0x628] sm:$0xff]
  %v266 = vld [vmem:[%s1 + $0x630] sm:$0xff]
  %v267 = vld [vmem:[%s1 + $0x638] sm:$0xff]
  %v268 = vld [vmem:[%s1 + $0x640] sm:$0xff]
  %v269 = vld [vmem:[%s1 + $0x648] sm:$0xff]
  %v270 = vld [vmem:[%s1 + $0x650] sm:$0xff]
  %v271 = vld [vmem:[%s1 + $0x658] sm:$0xff]
  %v272 = vld [vmem:[%s1 + $0x660] sm:$0xff]
  %v273 = vld [vmem:[%s1 + $0x668] sm:$0xff]
  %v274 = vld [vmem:[%s1 + $0x670] sm:$0xff]
  %v275 = vld [vmem:[%s1 + $0x678] sm:$0xff]
  %v276 = vld [vmem:[%s1 + $0x680] sm:$0xff]
  %v277 = vld [vmem:[%s1 + $0x688] sm:$0xff]
  %v278 = vld [vmem:[%s1 + $0x690] sm:$0xff]
  %v279 = vld [vmem:[%s1 + $0x698] sm:$0xff]
  %v280 = vld [vmem:[%s1 + $0x6a0] sm:$0xff]
  %v281 = vld [vmem:[%s1 + $0x6a8] sm:$0xff]
  %v282 = vld [vmem:[%s1 + $0x6b0] sm:$0xff]
  %v283 = vld [vmem:[%s1 + $0x6b8] sm:$0xff]
  %v284 = vld [vmem:[%s1 + $0x6c0] sm:$0xff]
  %v285 = vld [vmem:[%s1 + $0x6c8] sm:$0xff]
  %v286 = vld [vmem:[%s1 + $0x6d0] sm:$0xff]
  %v287 = vld [vmem:[%s1 + $0x6d8] sm:$0xff]
  %v288 = vld [vmem:[%s1 + $0x6e0] sm:$0xff]
  %v289 = vld [vmem:[%s1 + $0x6e8] sm:$0xff]
  %v290 = vld [vmem:[%s1 + $0x6f0] sm:$0xff]
  %v291 = vld [vmem:[%s1 + $0x6f8] sm:$0xff]
  %v292 = vld [vmem:[%s1 + $0x700] sm:$0xff]
  %v293 = vld [vmem:[%s1 + $0x708] sm:$0xff]
  %v294 = vld [vmem:[%s1 + $0x710] sm:$0xff]
  %v295 = vld [vmem:[%s1 + $0x718] sm:$0xff]
  %v296 = vld [vmem:[%s1 + $0x720] sm:$0xff]
  %v297 = vld [vmem:[%s1 + $0x728] sm:$0xff]
  %v298 = vld [vmem:[%s1 + $0x730] sm:$0xff]
  %v299 = vld [vmem:[%s1 + $0x738] sm:$0xff]
  %v300 = vld [vmem:[%s1 + $0x740] sm:$0xff]
  %v301 = vld [vmem:[%s1 + $0x748] sm:$0xff]
  %v302 = vld [vmem:[%s1 + $0x750] sm:$0xff]
  %v303 = vld [vmem:[%s1 + $0x758] sm:$0xff]
  %v304 = vld [vmem:[%s1 + $0x760] sm:$0xff]
  %v305 = vld [vmem:[%s1 + $0x768] sm:$0xff]
  %v306 = vld [vmem:[%s1 + $0x770] sm:$0xff]
  %v307 = vld [vmem:[%s1 + $0x778] sm:$0xff]
  %v308 = vld [vmem:[%s1 + $0x780] sm:$0xff]
  %v309 = vld [vmem:[%s1 + $0x788] sm:$0xff]
  %v310 = vld [vmem:[%s1 + $0x790] sm:$0xff]
  %v311 = vld [vmem:[%s1 + $0x798] sm:$0xff]
  %v312 = vld [vmem:[%s1 + $0x7a0] sm:$0xff]
  %v313 = vld [vmem:[%s1 + $0x7a8] sm:$0xff]
  %v314 = vld [vmem:[%s1 + $0x7b0] sm:$0xff]
  %v315 = vld [vmem:[%s1 + $0x7b8] sm:$0xff]
  %v316 = vld [vmem:[%s1 + $0x7c0] sm:$0xff]
  %v317 = vld [vmem:[%s1 + $0x7c8] sm:$0xff]
  %v318 = vld [vmem:[%s1 + $0x7d0] sm:$0xff]
  %v319 = vld [vmem:[%s1 + $0x7d8] sm:$0xff]
  %v320 = vld [vmem:[%s1 + $0x7e0] sm:$0xff]
  %v321 = vld [vmem:[%s1 + $0x7e8] sm:$0xff]
  %v322 = vld [vmem:[%s1 + $0x7f0] sm:$0xff]
  %v323 = vld [vmem:[%s1 + $0x7f8] sm:$0xff]
  %v324 = vld [vmem:[%s1 + $0x800] sm:$0xff]
  %v325 = vld [vmem:[%s1 + $0x808] sm:$0xff]
  %v326 = vld [vmem:[%s1 + $0x810] sm:$0xff]
  %v327 = vld [vmem:[%s1 + $0x818] sm:$0xff]
  %v328 = vld [vmem:[%s1 + $0x820] sm:$0xff]
  %v329 = vld [vmem:[%s1 + $0x828] sm:$0xff]
  %v330 = vld [vmem:[%s1 + $0x830] sm:$0xff]
  %v331 = vld [vmem:[%s1 + $0x838] sm:$0xff]
  %v332 = vld [vmem:[%s1 + $0x840] sm:$0xff]
  %v333 = vld [vmem:[%s1 + $0x848] sm:$0xff]
  %v334 = vld [vmem:[%s1 + $0x850] sm:$0xff]
  %v335 = vld [vmem:[%s1 + $0x858] sm:$0xff]
  %v336 = vld [vmem:[%s1 + $0x860] sm:$0xff]
  %v337 = vld [vmem:[%s1 + $0x868] sm:$0xff]
  %v338 = vld [vmem:[%s1 + $0x870] sm:$0xff]
  %v339 = vld [vmem:[%s1 + $0x878] sm:$0xff]
  %v340 = vld [vmem:[%s1 + $0x880] sm:$0xff]
  %v341 = vld [vmem:[%s1 + $0x888] sm:$0xff]
  %v342 = vld [vmem:[%s1 + $0x890] sm:$0xff]
  %v343 = vld [vmem:[%s1 + $0x898] sm:$0xff]
  %v344 = vld [vmem:[%s1 + $0x8a0] sm:$0xff]
  %v345 = vld [vmem:[%s1 + $0x8a8] sm:$0xff]
  %v346 = vld [vmem:[%s1 + $0x8b0] sm:$0xff]
  %v347 = vld [vmem:[%s1 + $0x8b8] sm:$0xff]
  %v348 = vld [vmem:[%s1 + $0x8c0] sm:$0xff]
  %v349 = vld [vmem:[%s1 + $0x8c8] sm:$0xff]
  %v350 = vld [vmem:[%s1 + $0x8d0] sm:$0xff]
  %v351 = vld [vmem:[%s1 + $0x8d8] sm:$0xff]
  %v352 = vld [vmem:[%s1 + $0x8e0] sm:$0xff]
  %v353 = vld [vmem:[%s1 + $0x8e8] sm:$0xff]
  %v354 = vld [vmem:[%s1 + $0x8f0] sm:$0xff]
  %v355 = vld [vmem:[%s1 + $0x8f8] sm:$0xff]
  %v356 = vld [vmem:[%s2] sm:$0x3]
  %v358 = vlaneseq
  %v359 = vshrl.u32 %v358, 7
  %v360 = vsub.s32 0, %v359
  %v361 = vrot.slane %v356, %v360
  %v362 = vlaneseq
  %v363 = vshrl.u32 %v362, 7
  %v364 = vsub.s32 1, %v363
  %v365 = vrot.slane %v356, %v364
  %v656 = vunpack.c.l.b16 %v68
  %v657 = vunpack.c.h.b16 %v68
  %v658 = vunpack.c.l.b16 %v69
  %v659 = vunpack.c.h.b16 %v69
  %v660 = vunpack.c.l.b16 %v70
  %v661 = vunpack.c.h.b16 %v70
  %v662 = vunpack.c.l.b16 %v71
  %v663 = vunpack.c.h.b16 %v71
  %v664 = vunpack.c.l.b16 %v72
  %v665 = vunpack.c.h.b16 %v72
  %v666 = vunpack.c.l.b16 %v73
  %v667 = vunpack.c.h.b16 %v73
  %v668 = vunpack.c.l.b16 %v74
  %v669 = vunpack.c.h.b16 %v74
  %v670 = vunpack.c.l.b16 %v75
  %v671 = vunpack.c.h.b16 %v75
  %v672 = vunpack.c.l.b16 %v76
  %v673 = vunpack.c.h.b16 %v76
  %v674 = vunpack.c.l.b16 %v77
  %v675 = vunpack.c.h.b16 %v77
  %v676 = vunpack.c.l.b16 %v78
  %v677 = vunpack.c.h.b16 %v78
  %v678 = vunpack.c.l.b16 %v79
  %v679 = vunpack.c.h.b16 %v79
  %v680 = vunpack.c.l.b16 %v80
  %v681 = vunpack.c.h.b16 %v80
  %v682 = vunpack.c.l.b16 %v81
  %v683 = vunpack.c.h.b16 %v81
  %v684 = vunpack.c.l.b16 %v82
  %v685 = vunpack.c.h.b16 %v82
  %v686 = vunpack.c.l.b16 %v83
  %v687 = vunpack.c.h.b16 %v83
  %v688 = vunpack.c.l.b16 %v84
  %v689 = vunpack.c.h.b16 %v84
  %v690 = vunpack.c.l.b16 %v85
  %v691 = vunpack.c.h.b16 %v85
  %v692 = vunpack.c.l.b16 %v86
  %v693 = vunpack.c.h.b16 %v86
  %v694 = vunpack.c.l.b16 %v87
  %v695 = vunpack.c.h.b16 %v87
  %v696 = vunpack.c.l.b16 %v88
  %v697 = vunpack.c.h.b16 %v88
  %v698 = vunpack.c.l.b16 %v89
  %v699 = vunpack.c.h.b16 %v89
  %v700 = vunpack.c.l.b16 %v90
  %v701 = vunpack.c.h.b16 %v90
  %v702 = vunpack.c.l.b16 %v91
  %v703 = vunpack.c.h.b16 %v91
  %v704 = vunpack.c.l.b16 %v92
  %v705 = vunpack.c.h.b16 %v92
  %v706 = vunpack.c.l.b16 %v93
  %v707 = vunpack.c.h.b16 %v93
  %v708 = vunpack.c.l.b16 %v94
  %v709 = vunpack.c.h.b16 %v94
  %v710 = vunpack.c.l.b16 %v95
  %v711 = vunpack.c.h.b16 %v95
  %v712 = vunpack.c.l.b16 %v96
  %v713 = vunpack.c.h.b16 %v96
  %v714 = vunpack.c.l.b16 %v97
  %v715 = vunpack.c.h.b16 %v97
  %v716 = vunpack.c.l.b16 %v98
  %v717 = vunpack.c.h.b16 %v98
  %v718 = vunpack.c.l.b16 %v99
  %v719 = vunpack.c.h.b16 %v99
  %v720 = vunpack.c.l.b16 %v100
  %v721 = vunpack.c.h.b16 %v100
  %v722 = vunpack.c.l.b16 %v101
  %v723 = vunpack.c.h.b16 %v101
  %v724 = vunpack.c.l.b16 %v102
  %v725 = vunpack.c.h.b16 %v102
  %v726 = vunpack.c.l.b16 %v103
  %v727 = vunpack.c.h.b16 %v103
  %v728 = vunpack.c.l.b16 %v104
  %v729 = vunpack.c.h.b16 %v104
  %v730 = vunpack.c.l.b16 %v105
  %v731 = vunpack.c.h.b16 %v105
  %v732 = vunpack.c.l.b16 %v106
  %v733 = vunpack.c.h.b16 %v106
  %v734 = vunpack.c.l.b16 %v107
  %v735 = vunpack.c.h.b16 %v107
  %v736 = vunpack.c.l.b16 %v108
  %v737 = vunpack.c.h.b16 %v108
  %v738 = vunpack.c.l.b16 %v109
  %v739 = vunpack.c.h.b16 %v109
  %v740 = vunpack.c.l.b16 %v110
  %v741 = vunpack.c.h.b16 %v110
  %v742 = vunpack.c.l.b16 %v111
  %v743 = vunpack.c.h.b16 %v111
  %v744 = vunpack.c.l.b16 %v112
  %v745 = vunpack.c.h.b16 %v112
  %v746 = vunpack.c.l.b16 %v113
  %v747 = vunpack.c.h.b16 %v113
  %v748 = vunpack.c.l.b16 %v114
  %v749 = vunpack.c.h.b16 %v114
  %v750 = vunpack.c.l.b16 %v115
  %v751 = vunpack.c.h.b16 %v115
  %v752 = vunpack.c.l.b16 %v116
  %v753 = vunpack.c.h.b16 %v116
  %v754 = vunpack.c.l.b16 %v117
  %v755 = vunpack.c.h.b16 %v117
  %v756 = vunpack.c.l.b16 %v118
  %v757 = vunpack.c.h.b16 %v118
  %v758 = vunpack.c.l.b16 %v119
  %v759 = vunpack.c.h.b16 %v119
  %v760 = vunpack.c.l.b16 %v120
  %v761 = vunpack.c.h.b16 %v120
  %v762 = vunpack.c.l.b16 %v121
  %v763 = vunpack.c.h.b16 %v121
  %v764 = vunpack.c.l.b16 %v122
  %v765 = vunpack.c.h.b16 %v122
  %v766 = vunpack.c.l.b16 %v123
  %v767 = vunpack.c.h.b16 %v123
  %v768 = vunpack.c.l.b16 %v124
  %v769 = vunpack.c.h.b16 %v124
  %v770 = vunpack.c.l.b16 %v125
  %v771 = vunpack.c.h.b16 %v125
  %v772 = vunpack.c.l.b16 %v126
  %v773 = vunpack.c.h.b16 %v126
  %v774 = vunpack.c.l.b16 %v127
  %v775 = vunpack.c.h.b16 %v127
  %v776 = vunpack.c.l.b16 %v128
  %v777 = vunpack.c.h.b16 %v128
  %v778 = vunpack.c.l.b16 %v129
  %v779 = vunpack.c.h.b16 %v129
  %v780 = vunpack.c.l.b16 %v130
  %v781 = vunpack.c.h.b16 %v130
  %v782 = vunpack.c.l.b16 %v131
  %v783 = vunpack.c.h.b16 %v131
  %v784 = vunpack.c.l.b16 %v132
  %v785 = vunpack.c.h.b16 %v132
  %v786 = vunpack.c.l.b16 %v133
  %v787 = vunpack.c.h.b16 %v133
  %v788 = vunpack.c.l.b16 %v134
  %v789 = vunpack.c.h.b16 %v134
  %v790 = vunpack.c.l.b16 %v135
  %v791 = vunpack.c.h.b16 %v135
  %v792 = vunpack.c.l.b16 %v136
  %v793 = vunpack.c.h.b16 %v136
  %v794 = vunpack.c.l.b16 %v137
  %v795 = vunpack.c.h.b16 %v137
  %v796 = vunpack.c.l.b16 %v138
  %v797 = vunpack.c.h.b16 %v138
  %v798 = vunpack.c.l.b16 %v139
  %v799 = vunpack.c.h.b16 %v139
  %v800 = vunpack.c.l.b16 %v140
  %v801 = vunpack.c.h.b16 %v140
  %v802 = vunpack.c.l.b16 %v141
  %v803 = vunpack.c.h.b16 %v141
  %v804 = vunpack.c.l.b16 %v142
  %v805 = vunpack.c.h.b16 %v142
  %v806 = vunpack.c.l.b16 %v143
  %v807 = vunpack.c.h.b16 %v143
  %v808 = vunpack.c.l.b16 %v144
  %v809 = vunpack.c.h.b16 %v144
  %v810 = vunpack.c.l.b16 %v145
  %v811 = vunpack.c.h.b16 %v145
  %v812 = vunpack.c.l.b16 %v146
  %v813 = vunpack.c.h.b16 %v146
  %v814 = vunpack.c.l.b16 %v147
  %v815 = vunpack.c.h.b16 %v147
  %v816 = vunpack.c.l.b16 %v148
  %v817 = vunpack.c.h.b16 %v148
  %v818 = vunpack.c.l.b16 %v149
  %v819 = vunpack.c.h.b16 %v149
  %v820 = vunpack.c.l.b16 %v150
  %v821 = vunpack.c.h.b16 %v150
  %v822 = vunpack.c.l.b16 %v151
  %v823 = vunpack.c.h.b16 %v151
  %v824 = vunpack.c.l.b16 %v152
  %v825 = vunpack.c.h.b16 %v152
  %v826 = vunpack.c.l.b16 %v153
  %v827 = vunpack.c.h.b16 %v153
  %v828 = vunpack.c.l.b16 %v154
  %v829 = vunpack.c.h.b16 %v154
  %v830 = vunpack.c.l.b16 %v155
  %v831 = vunpack.c.h.b16 %v155
  %v832 = vunpack.c.l.b16 %v156
  %v833 = vunpack.c.h.b16 %v156
  %v834 = vunpack.c.l.b16 %v157
  %v835 = vunpack.c.h.b16 %v157
  %v836 = vunpack.c.l.b16 %v158
  %v837 = vunpack.c.h.b16 %v158
  %v838 = vunpack.c.l.b16 %v159
  %v839 = vunpack.c.h.b16 %v159
  %v840 = vunpack.c.l.b16 %v160
  %v841 = vunpack.c.h.b16 %v160
  %v842 = vunpack.c.l.b16 %v161
  %v843 = vunpack.c.h.b16 %v161
  %v844 = vunpack.c.l.b16 %v162
  %v845 = vunpack.c.h.b16 %v162
  %v846 = vunpack.c.l.b16 %v163
  %v847 = vunpack.c.h.b16 %v163
  %v848 = vunpack.c.l.b16 %v164
  %v849 = vunpack.c.h.b16 %v164
  %v850 = vunpack.c.l.b16 %v165
  %v851 = vunpack.c.h.b16 %v165
  %v852 = vunpack.c.l.b16 %v166
  %v853 = vunpack.c.h.b16 %v166
  %v854 = vunpack.c.l.b16 %v167
  %v855 = vunpack.c.h.b16 %v167
  %v856 = vunpack.c.l.b16 %v168
  %v857 = vunpack.c.h.b16 %v168
  %v858 = vunpack.c.l.b16 %v169
  %v859 = vunpack.c.h.b16 %v169
  %v860 = vunpack.c.l.b16 %v170
  %v861 = vunpack.c.h.b16 %v170
  %v862 = vunpack.c.l.b16 %v171
  %v863 = vunpack.c.h.b16 %v171
  %v864 = vunpack.c.l.b16 %v172
  %v865 = vunpack.c.h.b16 %v172
  %v866 = vunpack.c.l.b16 %v173
  %v867 = vunpack.c.h.b16 %v173
  %v868 = vunpack.c.l.b16 %v174
  %v869 = vunpack.c.h.b16 %v174
  %v870 = vunpack.c.l.b16 %v175
  %v871 = vunpack.c.h.b16 %v175
  %v872 = vunpack.c.l.b16 %v176
  %v873 = vunpack.c.h.b16 %v176
  %v874 = vunpack.c.l.b16 %v177
  %v875 = vunpack.c.h.b16 %v177
  %v876 = vunpack.c.l.b16 %v178
  %v877 = vunpack.c.h.b16 %v178
  %v878 = vunpack.c.l.b16 %v179
  %v879 = vunpack.c.h.b16 %v179
  %v880 = vunpack.c.l.b16 %v180
  %v881 = vunpack.c.h.b16 %v180
  %v882 = vunpack.c.l.b16 %v181
  %v883 = vunpack.c.h.b16 %v181
  %v884 = vunpack.c.l.b16 %v182
  %v885 = vunpack.c.h.b16 %v182
  %v886 = vunpack.c.l.b16 %v183
  %v887 = vunpack.c.h.b16 %v183
  %v888 = vunpack.c.l.b16 %v184
  %v889 = vunpack.c.h.b16 %v184
  %v890 = vunpack.c.l.b16 %v185
  %v891 = vunpack.c.h.b16 %v185
  %v892 = vunpack.c.l.b16 %v186
  %v893 = vunpack.c.h.b16 %v186
  %v894 = vunpack.c.l.b16 %v187
  %v895 = vunpack.c.h.b16 %v187
  %v896 = vunpack.c.l.b16 %v188
  %v897 = vunpack.c.h.b16 %v188
  %v898 = vunpack.c.l.b16 %v189
  %v899 = vunpack.c.h.b16 %v189
  %v900 = vunpack.c.l.b16 %v190
  %v901 = vunpack.c.h.b16 %v190
  %v902 = vunpack.c.l.b16 %v191
  %v903 = vunpack.c.h.b16 %v191
  %v904 = vunpack.c.l.b16 %v192
  %v905 = vunpack.c.h.b16 %v192
  %v906 = vunpack.c.l.b16 %v193
  %v907 = vunpack.c.h.b16 %v193
  %v908 = vunpack.c.l.b16 %v194
  %v909 = vunpack.c.h.b16 %v194
  %v910 = vunpack.c.l.b16 %v195
  %v911 = vunpack.c.h.b16 %v195
  %v912 = vunpack.c.l.b16 %v196
  %v913 = vunpack.c.h.b16 %v196
  %v914 = vunpack.c.l.b16 %v197
  %v915 = vunpack.c.h.b16 %v197
  %v916 = vunpack.c.l.b16 %v198
  %v917 = vunpack.c.h.b16 %v198
  %v918 = vunpack.c.l.b16 %v199
  %v919 = vunpack.c.h.b16 %v199
  %v920 = vunpack.c.l.b16 %v200
  %v921 = vunpack.c.h.b16 %v200
  %v922 = vunpack.c.l.b16 %v201
  %v923 = vunpack.c.h.b16 %v201
  %v924 = vunpack.c.l.b16 %v202
  %v925 = vunpack.c.h.b16 %v202
  %v926 = vunpack.c.l.b16 %v203
  %v927 = vunpack.c.h.b16 %v203
  %v928 = vunpack.c.l.b16 %v204
  %v929 = vunpack.c.h.b16 %v204
  %v930 = vunpack.c.l.b16 %v205
  %v931 = vunpack.c.h.b16 %v205
  %v932 = vunpack.c.l.b16 %v206
  %v933 = vunpack.c.h.b16 %v206
  %v934 = vunpack.c.l.b16 %v207
  %v935 = vunpack.c.h.b16 %v207
  %v936 = vunpack.c.l.b16 %v208
  %v937 = vunpack.c.h.b16 %v208
  %v938 = vunpack.c.l.b16 %v209
  %v939 = vunpack.c.h.b16 %v209
  %v940 = vunpack.c.l.b16 %v210
  %v941 = vunpack.c.h.b16 %v210
  %v942 = vunpack.c.l.b16 %v211
  %v943 = vunpack.c.h.b16 %v211
  %v944 = vunpack.c.l.b16 %v212
  %v945 = vunpack.c.h.b16 %v212
  %v946 = vunpack.c.l.b16 %v213
  %v947 = vunpack.c.h.b16 %v213
  %v948 = vunpack.c.l.b16 %v214
  %v949 = vunpack.c.h.b16 %v214
  %v950 = vunpack.c.l.b16 %v215
  %v951 = vunpack.c.h.b16 %v215
  %v952 = vunpack.c.l.b16 %v216
  %v953 = vunpack.c.h.b16 %v216
  %v954 = vunpack.c.l.b16 %v217
  %v955 = vunpack.c.h.b16 %v217
  %v956 = vunpack.c.l.b16 %v218
  %v957 = vunpack.c.h.b16 %v218
  %v958 = vunpack.c.l.b16 %v219
  %v959 = vunpack.c.h.b16 %v219
  %v960 = vunpack.c.l.b16 %v220
  %v961 = vunpack.c.h.b16 %v220
  %v962 = vunpack.c.l.b16 %v221
  %v963 = vunpack.c.h.b16 %v221
  %v964 = vunpack.c.l.b16 %v222
  %v965 = vunpack.c.h.b16 %v222
  %v966 = vunpack.c.l.b16 %v223
  %v967 = vunpack.c.h.b16 %v223
  %v968 = vunpack.c.l.b16 %v224
  %v969 = vunpack.c.h.b16 %v224
  %v970 = vunpack.c.l.b16 %v225
  %v971 = vunpack.c.h.b16 %v225
  %v972 = vunpack.c.l.b16 %v226
  %v973 = vunpack.c.h.b16 %v226
  %v974 = vunpack.c.l.b16 %v227
  %v975 = vunpack.c.h.b16 %v227
  %v976 = vunpack.c.l.b16 %v228
  %v977 = vunpack.c.h.b16 %v228
  %v978 = vunpack.c.l.b16 %v229
  %v979 = vunpack.c.h.b16 %v229
  %v980 = vunpack.c.l.b16 %v230
  %v981 = vunpack.c.h.b16 %v230
  %v982 = vunpack.c.l.b16 %v231
  %v983 = vunpack.c.h.b16 %v231
  %v984 = vunpack.c.l.b16 %v232
  %v985 = vunpack.c.h.b16 %v232
  %v986 = vunpack.c.l.b16 %v233
  %v987 = vunpack.c.h.b16 %v233
  %v988 = vunpack.c.l.b16 %v234
  %v989 = vunpack.c.h.b16 %v234
  %v990 = vunpack.c.l.b16 %v235
  %v991 = vunpack.c.h.b16 %v235
  %v992 = vunpack.c.l.b16 %v236
  %v993 = vunpack.c.h.b16 %v236
  %v994 = vunpack.c.l.b16 %v237
  %v995 = vunpack.c.h.b16 %v237
  %v996 = vunpack.c.l.b16 %v238
  %v997 = vunpack.c.h.b16 %v238
  %v998 = vunpack.c.l.b16 %v239
  %v999 = vunpack.c.h.b16 %v239
  %v1000 = vunpack.c.l.b16 %v240
  %v1001 = vunpack.c.h.b16 %v240
  %v1002 = vunpack.c.l.b16 %v241
  %v1003 = vunpack.c.h.b16 %v241
  %v1004 = vunpack.c.l.b16 %v242
  %v1005 = vunpack.c.h.b16 %v242
  %v1006 = vunpack.c.l.b16 %v243
  %v1007 = vunpack.c.h.b16 %v243
  %v1008 = vunpack.c.l.b16 %v244
  %v1009 = vunpack.c.h.b16 %v244
  %v1010 = vunpack.c.l.b16 %v245
  %v1011 = vunpack.c.h.b16 %v245
  %v1012 = vunpack.c.l.b16 %v246
  %v1013 = vunpack.c.h.b16 %v246
  %v1014 = vunpack.c.l.b16 %v247
  %v1015 = vunpack.c.h.b16 %v247
  %v1016 = vunpack.c.l.b16 %v248
  %v1017 = vunpack.c.h.b16 %v248
  %v1018 = vunpack.c.l.b16 %v249
  %v1019 = vunpack.c.h.b16 %v249
  %v1020 = vunpack.c.l.b16 %v250
  %v1021 = vunpack.c.h.b16 %v250
  %v1022 = vunpack.c.l.b16 %v251
  %v1023 = vunpack.c.h.b16 %v251
  %v1024 = vunpack.c.l.b16 %v252
  %v1025 = vunpack.c.h.b16 %v252
  %v1026 = vunpack.c.l.b16 %v253
  %v1027 = vunpack.c.h.b16 %v253
  %v1028 = vunpack.c.l.b16 %v254
  %v1029 = vunpack.c.h.b16 %v254
  %v1030 = vunpack.c.l.b16 %v255
  %v1031 = vunpack.c.h.b16 %v255
  %v1032 = vunpack.c.l.b16 %v256
  %v1033 = vunpack.c.h.b16 %v256
  %v1034 = vunpack.c.l.b16 %v257
  %v1035 = vunpack.c.h.b16 %v257
  %v1036 = vunpack.c.l.b16 %v258
  %v1037 = vunpack.c.h.b16 %v258
  %v1038 = vunpack.c.l.b16 %v259
  %v1039 = vunpack.c.h.b16 %v259
  %v1040 = vunpack.c.l.b16 %v260
  %v1041 = vunpack.c.h.b16 %v260
  %v1042 = vunpack.c.l.b16 %v261
  %v1043 = vunpack.c.h.b16 %v261
  %v1044 = vunpack.c.l.b16 %v262
  %v1045 = vunpack.c.h.b16 %v262
  %v1046 = vunpack.c.l.b16 %v263
  %v1047 = vunpack.c.h.b16 %v263
  %v1048 = vunpack.c.l.b16 %v264
  %v1049 = vunpack.c.h.b16 %v264
  %v1050 = vunpack.c.l.b16 %v265
  %v1051 = vunpack.c.h.b16 %v265
  %v1052 = vunpack.c.l.b16 %v266
  %v1053 = vunpack.c.h.b16 %v266
  %v1054 = vunpack.c.l.b16 %v267
  %v1055 = vunpack.c.h.b16 %v267
  %v1056 = vunpack.c.l.b16 %v268
  %v1057 = vunpack.c.h.b16 %v268
  %v1058 = vunpack.c.l.b16 %v269
  %v1059 = vunpack.c.h.b16 %v269
  %v1060 = vunpack.c.l.b16 %v270
  %v1061 = vunpack.c.h.b16 %v270
  %v1062 = vunpack.c.l.b16 %v271
  %v1063 = vunpack.c.h.b16 %v271
  %v1064 = vunpack.c.l.b16 %v272
  %v1065 = vunpack.c.h.b16 %v272
  %v1066 = vunpack.c.l.b16 %v273
  %v1067 = vunpack.c.h.b16 %v273
  %v1068 = vunpack.c.l.b16 %v274
  %v1069 = vunpack.c.h.b16 %v274
  %v1070 = vunpack.c.l.b16 %v275
  %v1071 = vunpack.c.h.b16 %v275
  %v1072 = vunpack.c.l.b16 %v276
  %v1073 = vunpack.c.h.b16 %v276
  %v1074 = vunpack.c.l.b16 %v277
  %v1075 = vunpack.c.h.b16 %v277
  %v1076 = vunpack.c.l.b16 %v278
  %v1077 = vunpack.c.h.b16 %v278
  %v1078 = vunpack.c.l.b16 %v279
  %v1079 = vunpack.c.h.b16 %v279
  %v1080 = vunpack.c.l.b16 %v280
  %v1081 = vunpack.c.h.b16 %v280
  %v1082 = vunpack.c.l.b16 %v281
  %v1083 = vunpack.c.h.b16 %v281
  %v1084 = vunpack.c.l.b16 %v282
  %v1085 = vunpack.c.h.b16 %v282
  %v1086 = vunpack.c.l.b16 %v283
  %v1087 = vunpack.c.h.b16 %v283
  %v1088 = vunpack.c.l.b16 %v284
  %v1089 = vunpack.c.h.b16 %v284
  %v1090 = vunpack.c.l.b16 %v285
  %v1091 = vunpack.c.h.b16 %v285
  %v1092 = vunpack.c.l.b16 %v286
  %v1093 = vunpack.c.h.b16 %v286
  %v1094 = vunpack.c.l.b16 %v287
  %v1095 = vunpack.c.h.b16 %v287
  %v1096 = vunpack.c.l.b16 %v288
  %v1097 = vunpack.c.h.b16 %v288
  %v1098 = vunpack.c.l.b16 %v289
  %v1099 = vunpack.c.h.b16 %v289
  %v1100 = vunpack.c.l.b16 %v290
  %v1101 = vunpack.c.h.b16 %v290
  %v1102 = vunpack.c.l.b16 %v291
  %v1103 = vunpack.c.h.b16 %v291
  %v1104 = vunpack.c.l.b16 %v292
  %v1105 = vunpack.c.h.b16 %v292
  %v1106 = vunpack.c.l.b16 %v293
  %v1107 = vunpack.c.h.b16 %v293
  %v1108 = vunpack.c.l.b16 %v294
  %v1109 = vunpack.c.h.b16 %v294
  %v1110 = vunpack.c.l.b16 %v295
  %v1111 = vunpack.c.h.b16 %v295
  %v1112 = vunpack.c.l.b16 %v296
  %v1113 = vunpack.c.h.b16 %v296
  %v1114 = vunpack.c.l.b16 %v297
  %v1115 = vunpack.c.h.b16 %v297
  %v1116 = vunpack.c.l.b16 %v298
  %v1117 = vunpack.c.h.b16 %v298
  %v1118 = vunpack.c.l.b16 %v299
  %v1119 = vunpack.c.h.b16 %v299
  %v1120 = vunpack.c.l.b16 %v300
  %v1121 = vunpack.c.h.b16 %v300
  %v1122 = vunpack.c.l.b16 %v301
  %v1123 = vunpack.c.h.b16 %v301
  %v1124 = vunpack.c.l.b16 %v302
  %v1125 = vunpack.c.h.b16 %v302
  %v1126 = vunpack.c.l.b16 %v303
  %v1127 = vunpack.c.h.b16 %v303
  %v1128 = vunpack.c.l.b16 %v304
  %v1129 = vunpack.c.h.b16 %v304
  %v1130 = vunpack.c.l.b16 %v305
  %v1131 = vunpack.c.h.b16 %v305
  %v1132 = vunpack.c.l.b16 %v306
  %v1133 = vunpack.c.h.b16 %v306
  %v1134 = vunpack.c.l.b16 %v307
  %v1135 = vunpack.c.h.b16 %v307
  %v1136 = vunpack.c.l.b16 %v308
  %v1137 = vunpack.c.h.b16 %v308
  %v1138 = vunpack.c.l.b16 %v309
  %v1139 = vunpack.c.h.b16 %v309
  %v1140 = vunpack.c.l.b16 %v310
  %v1141 = vunpack.c.h.b16 %v310
  %v1142 = vunpack.c.l.b16 %v311
  %v1143 = vunpack.c.h.b16 %v311
  %v1144 = vunpack.c.l.b16 %v312
  %v1145 = vunpack.c.h.b16 %v312
  %v1146 = vunpack.c.l.b16 %v313
  %v1147 = vunpack.c.h.b16 %v313
  %v1148 = vunpack.c.l.b16 %v314
  %v1149 = vunpack.c.h.b16 %v314
  %v1150 = vunpack.c.l.b16 %v315
  %v1151 = vunpack.c.h.b16 %v315
  %v1152 = vunpack.c.l.b16 %v316
  %v1153 = vunpack.c.h.b16 %v316
  %v1154 = vunpack.c.l.b16 %v317
  %v1155 = vunpack.c.h.b16 %v317
  %v1156 = vunpack.c.l.b16 %v318
  %v1157 = vunpack.c.h.b16 %v318
  %v1158 = vunpack.c.l.b16 %v319
  %v1159 = vunpack.c.h.b16 %v319
  %v1160 = vunpack.c.l.b16 %v320
  %v1161 = vunpack.c.h.b16 %v320
  %v1162 = vunpack.c.l.b16 %v321
  %v1163 = vunpack.c.h.b16 %v321
  %v1164 = vunpack.c.l.b16 %v322
  %v1165 = vunpack.c.h.b16 %v322
  %v1166 = vunpack.c.l.b16 %v323
  %v1167 = vunpack.c.h.b16 %v323
  %v1168 = vunpack.c.l.b16 %v324
  %v1169 = vunpack.c.h.b16 %v324
  %v1170 = vunpack.c.l.b16 %v325
  %v1171 = vunpack.c.h.b16 %v325
  %v1172 = vunpack.c.l.b16 %v326
  %v1173 = vunpack.c.h.b16 %v326
  %v1174 = vunpack.c.l.b16 %v327
  %v1175 = vunpack.c.h.b16 %v327
  %v1176 = vunpack.c.l.b16 %v328
  %v1177 = vunpack.c.h.b16 %v328
  %v1178 = vunpack.c.l.b16 %v329
  %v1179 = vunpack.c.h.b16 %v329
  %v1180 = vunpack.c.l.b16 %v330
  %v1181 = vunpack.c.h.b16 %v330
  %v1182 = vunpack.c.l.b16 %v331
  %v1183 = vunpack.c.h.b16 %v331
  %v1184 = vunpack.c.l.b16 %v332
  %v1185 = vunpack.c.h.b16 %v332
  %v1186 = vunpack.c.l.b16 %v333
  %v1187 = vunpack.c.h.b16 %v333
  %v1188 = vunpack.c.l.b16 %v334
  %v1189 = vunpack.c.h.b16 %v334
  %v1190 = vunpack.c.l.b16 %v335
  %v1191 = vunpack.c.h.b16 %v335
  %v1192 = vunpack.c.l.b16 %v336
  %v1193 = vunpack.c.h.b16 %v336
  %v1194 = vunpack.c.l.b16 %v337
  %v1195 = vunpack.c.h.b16 %v337
  %v1196 = vunpack.c.l.b16 %v338
  %v1197 = vunpack.c.h.b16 %v338
  %v1198 = vunpack.c.l.b16 %v339
  %v1199 = vunpack.c.h.b16 %v339
  %v1200 = vunpack.c.l.b16 %v340
  %v1201 = vunpack.c.h.b16 %v340
  %v1202 = vunpack.c.l.b16 %v341
  %v1203 = vunpack.c.h.b16 %v341
  %v1204 = vunpack.c.l.b16 %v342
  %v1205 = vunpack.c.h.b16 %v342
  %v1206 = vunpack.c.l.b16 %v343
  %v1207 = vunpack.c.h.b16 %v343
  %v1208 = vunpack.c.l.b16 %v344
  %v1209 = vunpack.c.h.b16 %v344
  %v1210 = vunpack.c.l.b16 %v345
  %v1211 = vunpack.c.h.b16 %v345
  %v1212 = vunpack.c.l.b16 %v346
  %v1213 = vunpack.c.h.b16 %v346
  %v1214 = vunpack.c.l.b16 %v347
  %v1215 = vunpack.c.h.b16 %v347
  %v1216 = vunpack.c.l.b16 %v348
  %v1217 = vunpack.c.h.b16 %v348
  %v1218 = vunpack.c.l.b16 %v349
  %v1219 = vunpack.c.h.b16 %v349
  %v1220 = vunpack.c.l.b16 %v350
  %v1221 = vunpack.c.h.b16 %v350
  %v1222 = vunpack.c.l.b16 %v351
  %v1223 = vunpack.c.h.b16 %v351
  %v1224 = vunpack.c.l.b16 %v352
  %v1225 = vunpack.c.h.b16 %v352
  %v1226 = vunpack.c.l.b16 %v353
  %v1227 = vunpack.c.h.b16 %v353
  %v1228 = vunpack.c.l.b16 %v354
  %v1229 = vunpack.c.h.b16 %v354
  %v1230 = vunpack.c.l.b16 %v355
  %v1231 = vunpack.c.h.b16 %v355
  %v1232 = vpack.c.b16 %v658, %v656
  %v1233 = vpack.c.b16 %v659, %v657
  %v1234 = vpack.c.b16 %v662, %v660
  %v1235 = vpack.c.b16 %v663, %v661
  %v1236 = vpack.c.b16 %v666, %v664
  %v1237 = vpack.c.b16 %v667, %v665
  %v1238 = vpack.c.b16 %v670, %v668
  %v1239 = vpack.c.b16 %v671, %v669
  %v1240 = vpack.c.b16 %v674, %v672
  %v1241 = vpack.c.b16 %v675, %v673
  %v1242 = vpack.c.b16 %v678, %v676
  %v1243 = vpack.c.b16 %v679, %v677
  %v1244 = vpack.c.b16 %v682, %v680
  %v1245 = vpack.c.b16 %v683, %v681
  %v1246 = vpack.c.b16 %v686, %v684
  %v1247 = vpack.c.b16 %v687, %v685
  %v1248 = vpack.c.b16 %v690, %v688
  %v1249 = vpack.c.b16 %v691, %v689
  %v1250 = vpack.c.b16 %v694, %v692
  %v1251 = vpack.c.b16 %v695, %v693
  %v1252 = vpack.c.b16 %v698, %v696
  %v1253 = vpack.c.b16 %v699, %v697
  %v1254 = vpack.c.b16 %v702, %v700
  %v1255 = vpack.c.b16 %v703, %v701
  %v1256 = vpack.c.b16 %v706, %v704
  %v1257 = vpack.c.b16 %v707, %v705
  %v1258 = vpack.c.b16 %v710, %v708
  %v1259 = vpack.c.b16 %v711, %v709
  %v1260 = vpack.c.b16 %v714, %v712
  %v1261 = vpack.c.b16 %v715, %v713
  %v1262 = vpack.c.b16 %v718, %v716
  %v1263 = vpack.c.b16 %v719, %v717
  %v1264 = vpack.c.b16 %v722, %v720
  %v1265 = vpack.c.b16 %v723, %v721
  %v1266 = vpack.c.b16 %v726, %v724
  %v1267 = vpack.c.b16 %v727, %v725
  %v1268 = vpack.c.b16 %v730, %v728
  %v1269 = vpack.c.b16 %v731, %v729
  %v1270 = vpack.c.b16 %v734, %v732
  %v1271 = vpack.c.b16 %v735, %v733
  %v1272 = vpack.c.b16 %v738, %v736
  %v1273 = vpack.c.b16 %v739, %v737
  %v1274 = vpack.c.b16 %v742, %v740
  %v1275 = vpack.c.b16 %v743, %v741
  %v1276 = vpack.c.b16 %v746, %v744
  %v1277 = vpack.c.b16 %v747, %v745
  %v1278 = vpack.c.b16 %v750, %v748
  %v1279 = vpack.c.b16 %v751, %v749
  %v1280 = vpack.c.b16 %v754, %v752
  %v1281 = vpack.c.b16 %v755, %v753
  %v1282 = vpack.c.b16 %v758, %v756
  %v1283 = vpack.c.b16 %v759, %v757
  %v1284 = vpack.c.b16 %v762, %v760
  %v1285 = vpack.c.b16 %v763, %v761
  %v1286 = vpack.c.b16 %v766, %v764
  %v1287 = vpack.c.b16 %v767, %v765
  %v1288 = vpack.c.b16 %v770, %v768
  %v1289 = vpack.c.b16 %v771, %v769
  %v1290 = vpack.c.b16 %v774, %v772
  %v1291 = vpack.c.b16 %v775, %v773
  %v1292 = vpack.c.b16 %v778, %v776
  %v1293 = vpack.c.b16 %v779, %v777
  %v1294 = vpack.c.b16 %v782, %v780
  %v1295 = vpack.c.b16 %v783, %v781
  %v1296 = vpack.c.b16 %v786, %v784
  %v1297 = vpack.c.b16 %v787, %v785
  %v1298 = vpack.c.b16 %v790, %v788
  %v1299 = vpack.c.b16 %v791, %v789
  %v1300 = vpack.c.b16 %v794, %v792
  %v1301 = vpack.c.b16 %v795, %v793
  %v1302 = vpack.c.b16 %v798, %v796
  %v1303 = vpack.c.b16 %v799, %v797
  %v1304 = vpack.c.b16 %v802, %v800
  %v1305 = vpack.c.b16 %v803, %v801
  %v1306 = vpack.c.b16 %v806, %v804
  %v1307 = vpack.c.b16 %v807, %v805
  %v1308 = vpack.c.b16 %v810, %v808
  %v1309 = vpack.c.b16 %v811, %v809
  %v1310 = vpack.c.b16 %v814, %v812
  %v1311 = vpack.c.b16 %v815, %v813
  %v1312 = vpack.c.b16 %v818, %v816
  %v1313 = vpack.c.b16 %v819, %v817
  %v1314 = vpack.c.b16 %v822, %v820
  %v1315 = vpack.c.b16 %v823, %v821
  %v1316 = vpack.c.b16 %v826, %v824
  %v1317 = vpack.c.b16 %v827, %v825
  %v1318 = vpack.c.b16 %v830, %v828
  %v1319 = vpack.c.b16 %v831, %v829
  %v1320 = vpack.c.b16 %v834, %v832
  %v1321 = vpack.c.b16 %v835, %v833
  %v1322 = vpack.c.b16 %v838, %v836
  %v1323 = vpack.c.b16 %v839, %v837
  %v1324 = vpack.c.b16 %v842, %v840
  %v1325 = vpack.c.b16 %v843, %v841
  %v1326 = vpack.c.b16 %v846, %v844
  %v1327 = vpack.c.b16 %v847, %v845
  %v1328 = vpack.c.b16 %v850, %v848
  %v1329 = vpack.c.b16 %v851, %v849
  %v1330 = vpack.c.b16 %v854, %v852
  %v1331 = vpack.c.b16 %v855, %v853
  %v1332 = vpack.c.b16 %v858, %v856
  %v1333 = vpack.c.b16 %v859, %v857
  %v1334 = vpack.c.b16 %v862, %v860
  %v1335 = vpack.c.b16 %v863, %v861
  %v1336 = vpack.c.b16 %v866, %v864
  %v1337 = vpack.c.b16 %v867, %v865
  %v1338 = vpack.c.b16 %v870, %v868
  %v1339 = vpack.c.b16 %v871, %v869
  %v1340 = vpack.c.b16 %v874, %v872
  %v1341 = vpack.c.b16 %v875, %v873
  %v1342 = vpack.c.b16 %v878, %v876
  %v1343 = vpack.c.b16 %v879, %v877
  %v1344 = vpack.c.b16 %v882, %v880
  %v1345 = vpack.c.b16 %v883, %v881
  %v1346 = vpack.c.b16 %v886, %v884
  %v1347 = vpack.c.b16 %v887, %v885
  %v1348 = vpack.c.b16 %v890, %v888
  %v1349 = vpack.c.b16 %v891, %v889
  %v1350 = vpack.c.b16 %v894, %v892
  %v1351 = vpack.c.b16 %v895, %v893
  %v1352 = vpack.c.b16 %v898, %v896
  %v1353 = vpack.c.b16 %v899, %v897
  %v1354 = vpack.c.b16 %v902, %v900
  %v1355 = vpack.c.b16 %v903, %v901
  %v1356 = vpack.c.b16 %v906, %v904
  %v1357 = vpack.c.b16 %v907, %v905
  %v1358 = vpack.c.b16 %v910, %v908
  %v1359 = vpack.c.b16 %v911, %v909
  %v1360 = vpack.c.b16 %v914, %v912
  %v1361 = vpack.c.b16 %v915, %v913
  %v1362 = vpack.c.b16 %v918, %v916
  %v1363 = vpack.c.b16 %v919, %v917
  %v1364 = vpack.c.b16 %v922, %v920
  %v1365 = vpack.c.b16 %v923, %v921
  %v1366 = vpack.c.b16 %v926, %v924
  %v1367 = vpack.c.b16 %v927, %v925
  %v1368 = vpack.c.b16 %v930, %v928
  %v1369 = vpack.c.b16 %v931, %v929
  %v1370 = vpack.c.b16 %v934, %v932
  %v1371 = vpack.c.b16 %v935, %v933
  %v1372 = vpack.c.b16 %v938, %v936
  %v1373 = vpack.c.b16 %v939, %v937
  %v1374 = vpack.c.b16 %v942, %v940
  %v1375 = vpack.c.b16 %v943, %v941
  %v1376 = vpack.c.b16 %v946, %v944
  %v1377 = vpack.c.b16 %v947, %v945
  %v1378 = vpack.c.b16 %v950, %v948
  %v1379 = vpack.c.b16 %v951, %v949
  %v1380 = vpack.c.b16 %v954, %v952
  %v1381 = vpack.c.b16 %v955, %v953
  %v1382 = vpack.c.b16 %v958, %v956
  %v1383 = vpack.c.b16 %v959, %v957
  %v1384 = vpack.c.b16 %v962, %v960
  %v1385 = vpack.c.b16 %v963, %v961
  %v1386 = vpack.c.b16 %v966, %v964
  %v1387 = vpack.c.b16 %v967, %v965
  %v1388 = vpack.c.b16 %v970, %v968
  %v1389 = vpack.c.b16 %v971, %v969
  %v1390 = vpack.c.b16 %v974, %v972
  %v1391 = vpack.c.b16 %v975, %v973
  %v1392 = vpack.c.b16 %v978, %v976
  %v1393 = vpack.c.b16 %v979, %v977
  %v1394 = vpack.c.b16 %v982, %v980
  %v1395 = vpack.c.b16 %v983, %v981
  %v1396 = vpack.c.b16 %v986, %v984
  %v1397 = vpack.c.b16 %v987, %v985
  %v1398 = vpack.c.b16 %v990, %v988
  %v1399 = vpack.c.b16 %v991, %v989
  %v1400 = vpack.c.b16 %v994, %v992
  %v1401 = vpack.c.b16 %v995, %v993
  %v1402 = vpack.c.b16 %v998, %v996
  %v1403 = vpack.c.b16 %v999, %v997
  %v1404 = vpack.c.b16 %v1002, %v1000
  %v1405 = vpack.c.b16 %v1003, %v1001
  %v1406 = vpack.c.b16 %v1006, %v1004
  %v1407 = vpack.c.b16 %v1007, %v1005
  %v1408 = vpack.c.b16 %v1010, %v1008
  %v1409 = vpack.c.b16 %v1011, %v1009
  %v1410 = vpack.c.b16 %v1014, %v1012
  %v1411 = vpack.c.b16 %v1015, %v1013
  %v1412 = vpack.c.b16 %v1018, %v1016
  %v1413 = vpack.c.b16 %v1019, %v1017
  %v1414 = vpack.c.b16 %v1022, %v1020
  %v1415 = vpack.c.b16 %v1023, %v1021
  %v1416 = vpack.c.b16 %v1026, %v1024
  %v1417 = vpack.c.b16 %v1027, %v1025
  %v1418 = vpack.c.b16 %v1030, %v1028
  %v1419 = vpack.c.b16 %v1031, %v1029
  %v1420 = vpack.c.b16 %v1034, %v1032
  %v1421 = vpack.c.b16 %v1035, %v1033
  %v1422 = vpack.c.b16 %v1038, %v1036
  %v1423 = vpack.c.b16 %v1039, %v1037
  %v1424 = vpack.c.b16 %v1042, %v1040
  %v1425 = vpack.c.b16 %v1043, %v1041
  %v1426 = vpack.c.b16 %v1046, %v1044
  %v1427 = vpack.c.b16 %v1047, %v1045
  %v1428 = vpack.c.b16 %v1050, %v1048
  %v1429 = vpack.c.b16 %v1051, %v1049
  %v1430 = vpack.c.b16 %v1054, %v1052
  %v1431 = vpack.c.b16 %v1055, %v1053
  %v1432 = vpack.c.b16 %v1058, %v1056
  %v1433 = vpack.c.b16 %v1059, %v1057
  %v1434 = vpack.c.b16 %v1062, %v1060
  %v1435 = vpack.c.b16 %v1063, %v1061
  %v1436 = vpack.c.b16 %v1066, %v1064
  %v1437 = vpack.c.b16 %v1067, %v1065
  %v1438 = vpack.c.b16 %v1070, %v1068
  %v1439 = vpack.c.b16 %v1071, %v1069
  %v1440 = vpack.c.b16 %v1074, %v1072
  %v1441 = vpack.c.b16 %v1075, %v1073
  %v1442 = vpack.c.b16 %v1078, %v1076
  %v1443 = vpack.c.b16 %v1079, %v1077
  %v1444 = vpack.c.b16 %v1082, %v1080
  %v1445 = vpack.c.b16 %v1083, %v1081
  %v1446 = vpack.c.b16 %v1086, %v1084
  %v1447 = vpack.c.b16 %v1087, %v1085
  %v1448 = vpack.c.b16 %v1090, %v1088
  %v1449 = vpack.c.b16 %v1091, %v1089
  %v1450 = vpack.c.b16 %v1094, %v1092
  %v1451 = vpack.c.b16 %v1095, %v1093
  %v1452 = vpack.c.b16 %v1098, %v1096
  %v1453 = vpack.c.b16 %v1099, %v1097
  %v1454 = vpack.c.b16 %v1102, %v1100
  %v1455 = vpack.c.b16 %v1103, %v1101
  %v1456 = vpack.c.b16 %v1106, %v1104
  %v1457 = vpack.c.b16 %v1107, %v1105
  %v1458 = vpack.c.b16 %v1110, %v1108
  %v1459 = vpack.c.b16 %v1111, %v1109
  %v1460 = vpack.c.b16 %v1114, %v1112
  %v1461 = vpack.c.b16 %v1115, %v1113
  %v1462 = vpack.c.b16 %v1118, %v1116
  %v1463 = vpack.c.b16 %v1119, %v1117
  %v1464 = vpack.c.b16 %v1122, %v1120
  %v1465 = vpack.c.b16 %v1123, %v1121
  %v1466 = vpack.c.b16 %v1126, %v1124
  %v1467 = vpack.c.b16 %v1127, %v1125
  %v1468 = vpack.c.b16 %v1130, %v1128
  %v1469 = vpack.c.b16 %v1131, %v1129
  %v1470 = vpack.c.b16 %v1134, %v1132
  %v1471 = vpack.c.b16 %v1135, %v1133
  %v1472 = vpack.c.b16 %v1138, %v1136
  %v1473 = vpack.c.b16 %v1139, %v1137
  %v1474 = vpack.c.b16 %v1142, %v1140
  %v1475 = vpack.c.b16 %v1143, %v1141
  %v1476 = vpack.c.b16 %v1146, %v1144
  %v1477 = vpack.c.b16 %v1147, %v1145
  %v1478 = vpack.c.b16 %v1150, %v1148
  %v1479 = vpack.c.b16 %v1151, %v1149
  %v1480 = vpack.c.b16 %v1154, %v1152
  %v1481 = vpack.c.b16 %v1155, %v1153
  %v1482 = vpack.c.b16 %v1158, %v1156
  %v1483 = vpack.c.b16 %v1159, %v1157
  %v1484 = vpack.c.b16 %v1162, %v1160
  %v1485 = vpack.c.b16 %v1163, %v1161
  %v1486 = vpack.c.b16 %v1166, %v1164
  %v1487 = vpack.c.b16 %v1167, %v1165
  %v1488 = vpack.c.b16 %v1170, %v1168
  %v1489 = vpack.c.b16 %v1171, %v1169
  %v1490 = vpack.c.b16 %v1174, %v1172
  %v1491 = vpack.c.b16 %v1175, %v1173
  %v1492 = vpack.c.b16 %v1178, %v1176
  %v1493 = vpack.c.b16 %v1179, %v1177
  %v1494 = vpack.c.b16 %v1182, %v1180
  %v1495 = vpack.c.b16 %v1183, %v1181
  %v1496 = vpack.c.b16 %v1186, %v1184
  %v1497 = vpack.c.b16 %v1187, %v1185
  %v1498 = vpack.c.b16 %v1190, %v1188
  %v1499 = vpack.c.b16 %v1191, %v1189
  %v1500 = vpack.c.b16 %v1194, %v1192
  %v1501 = vpack.c.b16 %v1195, %v1193
  %v1502 = vpack.c.b16 %v1198, %v1196
  %v1503 = vpack.c.b16 %v1199, %v1197
  %v1504 = vpack.c.b16 %v1202, %v1200
  %v1505 = vpack.c.b16 %v1203, %v1201
  %v1506 = vpack.c.b16 %v1206, %v1204
  %v1507 = vpack.c.b16 %v1207, %v1205
  %v1508 = vpack.c.b16 %v1210, %v1208
  %v1509 = vpack.c.b16 %v1211, %v1209
  %v1510 = vpack.c.b16 %v1214, %v1212
  %v1511 = vpack.c.b16 %v1215, %v1213
  %v1512 = vpack.c.b16 %v1218, %v1216
  %v1513 = vpack.c.b16 %v1219, %v1217
  %v1514 = vpack.c.b16 %v1222, %v1220
  %v1515 = vpack.c.b16 %v1223, %v1221
  %v1516 = vpack.c.b16 %v1226, %v1224
  %v1517 = vpack.c.b16 %v1227, %v1225
  %v1518 = vpack.c.b16 %v1230, %v1228
  %v1519 = vpack.c.b16 %v1231, %v1229
  %1808 = vmatprep.subr.bf16.mxu0 %v1233
  %1809 = vmatpush1.bf16.msra.mxu0 %v1232
  %1810 = vmatprep.subr.bf16.mxu0 %v1235
  %1811 = vmatpush1.bf16.msra.mxu0 %v1234
  %1812 = vmatprep.subr.bf16.mxu0 %v1237
  %1813 = vmatpush1.bf16.msra.mxu0 %v1236
  %1814 = vmatprep.subr.bf16.mxu0 %v1239
  %1815 = vmatpush1.bf16.msra.mxu0 %v1238
  %1816 = vmatprep.subr.bf16.mxu0 %v1241
  %1817 = vmatpush1.bf16.msra.mxu0 %v1240
  %1818 = vmatprep.subr.bf16.mxu0 %v1243
  %1819 = vmatpush1.bf16.msra.mxu0 %v1242
  %1820 = vmatprep.subr.bf16.mxu0 %v1245
  %1821 = vmatpush1.bf16.msra.mxu0 %v1244
  %1822 = vmatprep.subr.bf16.mxu0 %v1247
  %1823 = vmatpush1.bf16.msra.mxu0 %v1246
  %1824 = vmatprep.subr.bf16.mxu0 %v1249
  %1825 = vmatpush1.bf16.msra.mxu0 %v1248
  %1826 = vmatprep.subr.bf16.mxu0 %v1251
  %1827 = vmatpush1.bf16.msra.mxu0 %v1250
  %1828 = vmatprep.subr.bf16.mxu0 %v1253
  %1829 = vmatpush1.bf16.msra.mxu0 %v1252
  %1830 = vmatprep.subr.bf16.mxu0 %v1255
  %1831 = vmatpush1.bf16.msra.mxu0 %v1254
  %1832 = vmatprep.subr.bf16.mxu0 %v1257
  %1833 = vmatpush1.bf16.msra.mxu0 %v1256
  %1834 = vmatprep.subr.bf16.mxu0 %v1259
  %1835 = vmatpush1.bf16.msra.mxu0 %v1258
  %1836 = vmatprep.subr.bf16.mxu0 %v1261
  %1837 = vmatpush1.bf16.msra.mxu0 %v1260
  %1838 = vmatprep.subr.bf16.mxu0 %v1263
  %1839 = vmatpush1.bf16.msra.mxu0 %v1262
  %1840 = vmatprep.mubr.bf16.mxu0 %v51
  %1841 = vmatmul.mubr.bf16.gmra.mrb[0].mxu0 %v50
  %v1842 = vpop.f32.mrb[0].mxu0
  %v1843 = vadd.f32 %v361, %v1842
  %v1844 = vpop.f32.mrb[0].mxu0
  %v1845 = vadd.f32 %v365, %v1844
  %v1846 = vpop.f32.mrb[0].mxu0
  %v1847 = vpop.f32.mrb[0].mxu0
  %1848 = vdwg.mxu0
  %1849 = vmatprep.subr.bf16.mxu0 %v1265
  %1850 = vmatpush1.bf16.msra.mxu0 %v1264
  %1851 = vmatprep.subr.bf16.mxu0 %v1267
  %1852 = vmatpush1.bf16.msra.mxu0 %v1266
  %1853 = vmatprep.subr.bf16.mxu0 %v1269
  %1854 = vmatpush1.bf16.msra.mxu0 %v1268
  %1855 = vmatprep.subr.bf16.mxu0 %v1271
  %1856 = vmatpush1.bf16.msra.mxu0 %v1270
  %1857 = vmatprep.subr.bf16.mxu0 %v1273
  %1858 = vmatpush1.bf16.msra.mxu0 %v1272
  %1859 = vmatprep.subr.bf16.mxu0 %v1275
  %1860 = vmatpush1.bf16.msra.mxu0 %v1274
  %1861 = vmatprep.subr.bf16.mxu0 %v1277
  %1862 = vmatpush1.bf16.msra.mxu0 %v1276
  %1863 = vmatprep.subr.bf16.mxu0 %v1279
  %1864 = vmatpush1.bf16.msra.mxu0 %v1278
  %1865 = vmatprep.subr.bf16.mxu0 %v1281
  %1866 = vmatpush1.bf16.msra.mxu0 %v1280
  %1867 = vmatprep.subr.bf16.mxu0 %v1283
  %1868 = vmatpush1.bf16.msra.mxu0 %v1282
  %1869 = vmatprep.subr.bf16.mxu0 %v1285
  %1870 = vmatpush1.bf16.msra.mxu0 %v1284
  %1871 = vmatprep.subr.bf16.mxu0 %v1287
  %1872 = vmatpush1.bf16.msra.mxu0 %v1286
  %1873 = vmatprep.subr.bf16.mxu0 %v1289
  %1874 = vmatpush1.bf16.msra.mxu0 %v1288
  %1875 = vmatprep.subr.bf16.mxu0 %v1291
  %1876 = vmatpush1.bf16.msra.mxu0 %v1290
  %1877 = vmatprep.subr.bf16.mxu0 %v1293
  %1878 = vmatpush1.bf16.msra.mxu0 %v1292
  %1879 = vmatprep.subr.bf16.mxu0 %v1295
  %1880 = vmatpush1.bf16.msra.mxu0 %v1294
  %1881 = vmatprep.mubr.bf16.mxu0 %v53
  %1882 = vmatmul.mubr.bf16.gmra.mrb[0].mxu0 %v52
  %v1883 = vpop.f32.mrb[0].mxu0
  %v1884 = vadd.f32 %v1843, %v1883
  %v1885 = vpop.f32.mrb[0].mxu0
  %v1886 = vadd.f32 %v1845, %v1885
  %v1887 = vpop.f32.mrb[0].mxu0
  %v1888 = vpop.f32.mrb[0].mxu0
  %1889 = vdwg.mxu0
  %1890 = vmatprep.subr.bf16.mxu0 %v1297
  %1891 = vmatpush1.bf16.msra.mxu0 %v1296
  %1892 = vmatprep.subr.bf16.mxu0 %v1299
  %1893 = vmatpush1.bf16.msra.mxu0 %v1298
  %1894 = vmatprep.subr.bf16.mxu0 %v1301
  %1895 = vmatpush1.bf16.msra.mxu0 %v1300
  %1896 = vmatprep.subr.bf16.mxu0 %v1303
  %1897 = vmatpush1.bf16.msra.mxu0 %v1302
  %1898 = vmatprep.subr.bf16.mxu0 %v1305
  %1899 = vmatpush1.bf16.msra.mxu0 %v1304
  %1900 = vmatprep.subr.bf16.mxu0 %v1307
  %1901 = vmatpush1.bf16.msra.mxu0 %v1306
  %1902 = vmatprep.subr.bf16.mxu0 %v1309
  %1903 = vmatpush1.bf16.msra.mxu0 %v1308
  %1904 = vmatprep.subr.bf16.mxu0 %v1311
  %1905 = vmatpush1.bf16.msra.mxu0 %v1310
  %1906 = vmatprep.subr.bf16.mxu0 %v1313
  %1907 = vmatpush1.bf16.msra.mxu0 %v1312
  %1908 = vmatprep.subr.bf16.mxu0 %v1315
  %1909 = vmatpush1.bf16.msra.mxu0 %v1314
  %1910 = vmatprep.subr.bf16.mxu0 %v1317
  %1911 = vmatpush1.bf16.msra.mxu0 %v1316
  %1912 = vmatprep.subr.bf16.mxu0 %v1319
  %1913 = vmatpush1.bf16.msra.mxu0 %v1318
  %1914 = vmatprep.subr.bf16.mxu0 %v1321
  %1915 = vmatpush1.bf16.msra.mxu0 %v1320
  %1916 = vmatprep.subr.bf16.mxu0 %v1323
  %1917 = vmatpush1.bf16.msra.mxu0 %v1322
  %1918 = vmatprep.subr.bf16.mxu0 %v1325
  %1919 = vmatpush1.bf16.msra.mxu0 %v1324
  %1920 = vmatprep.subr.bf16.mxu0 %v1327
  %1921 = vmatpush1.bf16.msra.mxu0 %v1326
  %1922 = vmatprep.mubr.bf16.mxu0 %v55
  %1923 = vmatmul.mubr.bf16.gmra.mrb[0].mxu0 %v54
  %v1924 = vpop.f32.mrb[0].mxu0
  %v1925 = vadd.f32 %v1884, %v1924
  %v1926 = vpop.f32.mrb[0].mxu0
  %v1927 = vadd.f32 %v1886, %v1926
  %v1928 = vpop.f32.mrb[0].mxu0
  %v1929 = vpop.f32.mrb[0].mxu0
  %1930 = vdwg.mxu0
  %1931 = vmatprep.subr.bf16.mxu0 %v1329
  %1932 = vmatpush1.bf16.msra.mxu0 %v1328
  %1933 = vmatprep.subr.bf16.mxu0 %v1331
  %1934 = vmatpush1.bf16.msra.mxu0 %v1330
  %1935 = vmatprep.subr.bf16.mxu0 %v1333
  %1936 = vmatpush1.bf16.msra.mxu0 %v1332
  %1937 = vmatprep.subr.bf16.mxu0 %v1335
  %1938 = vmatpush1.bf16.msra.mxu0 %v1334
  %1939 = vmatprep.subr.bf16.mxu0 %v1337
  %1940 = vmatpush1.bf16.msra.mxu0 %v1336
  %1941 = vmatprep.subr.bf16.mxu0 %v1339
  %1942 = vmatpush1.bf16.msra.mxu0 %v1338
  %1943 = vmatprep.subr.bf16.mxu0 %v1341
  %1944 = vmatpush1.bf16.msra.mxu0 %v1340
  %1945 = vmatprep.subr.bf16.mxu0 %v1343
  %1946 = vmatpush1.bf16.msra.mxu0 %v1342
  %1947 = vmatprep.subr.bf16.mxu0 %v1345
  %1948 = vmatpush1.bf16.msra.mxu0 %v1344
  %1949 = vmatprep.subr.bf16.mxu0 %v1347
  %1950 = vmatpush1.bf16.msra.mxu0 %v1346
  %1951 = vmatprep.subr.bf16.mxu0 %v1349
  %1952 = vmatpush1.bf16.msra.mxu0 %v1348
  %1953 = vmatprep.subr.bf16.mxu0 %v1351
  %1954 = vmatpush1.bf16.msra.mxu0 %v1350
  %1955 = vmatprep.subr.bf16.mxu0 %v1353
  %1956 = vmatpush1.bf16.msra.mxu0 %v1352
  %1957 = vmatprep.subr.bf16.mxu0 %v1355
  %1958 = vmatpush1.bf16.msra.mxu0 %v1354
  %1959 = vmatprep.subr.bf16.mxu0 %v1357
  %1960 = vmatpush1.bf16.msra.mxu0 %v1356
  %1961 = vmatprep.subr.bf16.mxu0 %v1359
  %1962 = vmatpush1.bf16.msra.mxu0 %v1358
  %1963 = vmatprep.mubr.bf16.mxu0 %v57
  %1964 = vmatmul.mubr.bf16.gmra.mrb[0].mxu0 %v56
  %v1965 = vpop.f32.mrb[0].mxu0
  %v1966 = vadd.f32 %v1925, %v1965
  %v1967 = vpop.f32.mrb[0].mxu0
  %v1968 = vadd.f32 %v1927, %v1967
  %v1969 = vpop.f32.mrb[0].mxu0
  %v1970 = vpop.f32.mrb[0].mxu0
  %1971 = vdwg.mxu0
  %1972 = vmatprep.subr.bf16.mxu0 %v1361
  %1973 = vmatpush1.bf16.msra.mxu0 %v1360
  %1974 = vmatprep.subr.bf16.mxu0 %v1363
  %1975 = vmatpush1.bf16.msra.mxu0 %v1362
  %1976 = vmatprep.subr.bf16.mxu0 %v1365
  %1977 = vmatpush1.bf16.msra.mxu0 %v1364
  %1978 = vmatprep.subr.bf16.mxu0 %v1367
  %1979 = vmatpush1.bf16.msra.mxu0 %v1366
  %1980 = vmatprep.subr.bf16.mxu0 %v1369
  %1981 = vmatpush1.bf16.msra.mxu0 %v1368
  %1982 = vmatprep.subr.bf16.mxu0 %v1371
  %1983 = vmatpush1.bf16.msra.mxu0 %v1370
  %1984 = vmatprep.subr.bf16.mxu0 %v1373
  %1985 = vmatpush1.bf16.msra.mxu0 %v1372
  %1986 = vmatprep.subr.bf16.mxu0 %v1375
  %1987 = vmatpush1.bf16.msra.mxu0 %v1374
  %1988 = vmatprep.subr.bf16.mxu0 %v1377
  %1989 = vmatpush1.bf16.msra.mxu0 %v1376
  %1990 = vmatprep.subr.bf16.mxu0 %v1379
  %1991 = vmatpush1.bf16.msra.mxu0 %v1378
  %1992 = vmatprep.subr.bf16.mxu0 %v1381
  %1993 = vmatpush1.bf16.msra.mxu0 %v1380
  %1994 = vmatprep.subr.bf16.mxu0 %v1383
  %1995 = vmatpush1.bf16.msra.mxu0 %v1382
  %1996 = vmatprep.subr.bf16.mxu0 %v1385
  %1997 = vmatpush1.bf16.msra.mxu0 %v1384
  %1998 = vmatprep.subr.bf16.mxu0 %v1387
  %1999 = vmatpush1.bf16.msra.mxu0 %v1386
  %2000 = vmatprep.subr.bf16.mxu0 %v1389
  %2001 = vmatpush1.bf16.msra.mxu0 %v1388
  %2002 = vmatprep.subr.bf16.mxu0 %v1391
  %2003 = vmatpush1.bf16.msra.mxu0 %v1390
  %2004 = vmatprep.mubr.bf16.mxu0 %v59
  %2005 = vmatmul.mubr.bf16.gmra.mrb[0].mxu0 %v58
  %v2006 = vpop.f32.mrb[0].mxu0
  %v2007 = vadd.f32 %v1966, %v2006
  %v2008 = vpop.f32.mrb[0].mxu0
  %v2009 = vadd.f32 %v1968, %v2008
  %v2010 = vpop.f32.mrb[0].mxu0
  %v2011 = vpop.f32.mrb[0].mxu0
  %2012 = vdwg.mxu0
  %2013 = vmatprep.subr.bf16.mxu0 %v1393
  %2014 = vmatpush1.bf16.msra.mxu0 %v1392
  %2015 = vmatprep.subr.bf16.mxu0 %v1395
  %2016 = vmatpush1.bf16.msra.mxu0 %v1394
  %2017 = vmatprep.subr.bf16.mxu0 %v1397
  %2018 = vmatpush1.bf16.msra.mxu0 %v1396
  %2019 = vmatprep.subr.bf16.mxu0 %v1399
  %2020 = vmatpush1.bf16.msra.mxu0 %v1398
  %2021 = vmatprep.subr.bf16.mxu0 %v1401
  %2022 = vmatpush1.bf16.msra.mxu0 %v1400
  %2023 = vmatprep.subr.bf16.mxu0 %v1403
  %2024 = vmatpush1.bf16.msra.mxu0 %v1402
  %2025 = vmatprep.subr.bf16.mxu0 %v1405
  %2026 = vmatpush1.bf16.msra.mxu0 %v1404
  %2027 = vmatprep.subr.bf16.mxu0 %v1407
  %2028 = vmatpush1.bf16.msra.mxu0 %v1406
  %2029 = vmatprep.subr.bf16.mxu0 %v1409
  %2030 = vmatpush1.bf16.msra.mxu0 %v1408
  %2031 = vmatprep.subr.bf16.mxu0 %v1411
  %2032 = vmatpush1.bf16.msra.mxu0 %v1410
  %2033 = vmatprep.subr.bf16.mxu0 %v1413
  %2034 = vmatpush1.bf16.msra.mxu0 %v1412
  %2035 = vmatprep.subr.bf16.mxu0 %v1415
  %2036 = vmatpush1.bf16.msra.mxu0 %v1414
  %2037 = vmatprep.subr.bf16.mxu0 %v1417
  %2038 = vmatpush1.bf16.msra.mxu0 %v1416
  %2039 = vmatprep.subr.bf16.mxu0 %v1419
  %2040 = vmatpush1.bf16.msra.mxu0 %v1418
  %2041 = vmatprep.subr.bf16.mxu0 %v1421
  %2042 = vmatpush1.bf16.msra.mxu0 %v1420
  %2043 = vmatprep.subr.bf16.mxu0 %v1423
  %2044 = vmatpush1.bf16.msra.mxu0 %v1422
  %2045 = vmatprep.mubr.bf16.mxu0 %v61
  %2046 = vmatmul.mubr.bf16.gmra.mrb[0].mxu0 %v60
  %v2047 = vpop.f32.mrb[0].mxu0
  %v2048 = vadd.f32 %v2007, %v2047
  %v2049 = vpop.f32.mrb[0].mxu0
  %v2050 = vadd.f32 %v2009, %v2049
  %v2051 = vpop.f32.mrb[0].mxu0
  %v2052 = vpop.f32.mrb[0].mxu0
  %2053 = vdwg.mxu0
  %2054 = vmatprep.subr.bf16.mxu0 %v1425
  %2055 = vmatpush1.bf16.msra.mxu0 %v1424
  %2056 = vmatprep.subr.bf16.mxu0 %v1427
  %2057 = vmatpush1.bf16.msra.mxu0 %v1426
  %2058 = vmatprep.subr.bf16.mxu0 %v1429
  %2059 = vmatpush1.bf16.msra.mxu0 %v1428
  %2060 = vmatprep.subr.bf16.mxu0 %v1431
  %2061 = vmatpush1.bf16.msra.mxu0 %v1430
  %2062 = vmatprep.subr.bf16.mxu0 %v1433
  %2063 = vmatpush1.bf16.msra.mxu0 %v1432
  %2064 = vmatprep.subr.bf16.mxu0 %v1435
  %2065 = vmatpush1.bf16.msra.mxu0 %v1434
  %2066 = vmatprep.subr.bf16.mxu0 %v1437
  %2067 = vmatpush1.bf16.msra.mxu0 %v1436
  %2068 = vmatprep.subr.bf16.mxu0 %v1439
  %2069 = vmatpush1.bf16.msra.mxu0 %v1438
  %2070 = vmatprep.subr.bf16.mxu0 %v1441
  %2071 = vmatpush1.bf16.msra.mxu0 %v1440
  %2072 = vmatprep.subr.bf16.mxu0 %v1443
  %2073 = vmatpush1.bf16.msra.mxu0 %v1442
  %2074 = vmatprep.subr.bf16.mxu0 %v1445
  %2075 = vmatpush1.bf16.msra.mxu0 %v1444
  %2076 = vmatprep.subr.bf16.mxu0 %v1447
  %2077 = vmatpush1.bf16.msra.mxu0 %v1446
  %2078 = vmatprep.subr.bf16.mxu0 %v1449
  %2079 = vmatpush1.bf16.msra.mxu0 %v1448
  %2080 = vmatprep.subr.bf16.mxu0 %v1451
  %2081 = vmatpush1.bf16.msra.mxu0 %v1450
  %2082 = vmatprep.subr.bf16.mxu0 %v1453
  %2083 = vmatpush1.bf16.msra.mxu0 %v1452
  %2084 = vmatprep.subr.bf16.mxu0 %v1455
  %2085 = vmatpush1.bf16.msra.mxu0 %v1454
  %2086 = vmatprep.mubr.bf16.mxu0 %v63
  %2087 = vmatmul.mubr.bf16.gmra.mrb[0].mxu0 %v62
  %v2088 = vpop.f32.mrb[0].mxu0
  %v2089 = vadd.f32 %v2048, %v2088
  %v2090 = vpop.f32.mrb[0].mxu0
  %v2091 = vadd.f32 %v2050, %v2090
  %v2092 = vpop.f32.mrb[0].mxu0
  %v2093 = vpop.f32.mrb[0].mxu0
  %2094 = vdwg.mxu0
  %2095 = vmatprep.subr.bf16.mxu0 %v1457
  %2096 = vmatpush1.bf16.msra.mxu0 %v1456
  %2097 = vmatprep.subr.bf16.mxu0 %v1459
  %2098 = vmatpush1.bf16.msra.mxu0 %v1458
  %2099 = vmatprep.subr.bf16.mxu0 %v1461
  %2100 = vmatpush1.bf16.msra.mxu0 %v1460
  %2101 = vmatprep.subr.bf16.mxu0 %v1463
  %2102 = vmatpush1.bf16.msra.mxu0 %v1462
  %2103 = vmatprep.subr.bf16.mxu0 %v1465
  %2104 = vmatpush1.bf16.msra.mxu0 %v1464
  %2105 = vmatprep.subr.bf16.mxu0 %v1467
  %2106 = vmatpush1.bf16.msra.mxu0 %v1466
  %2107 = vmatprep.subr.bf16.mxu0 %v1469
  %2108 = vmatpush1.bf16.msra.mxu0 %v1468
  %2109 = vmatprep.subr.bf16.mxu0 %v1471
  %2110 = vmatpush1.bf16.msra.mxu0 %v1470
  %2111 = vmatprep.subr.bf16.mxu0 %v1473
  %2112 = vmatpush1.bf16.msra.mxu0 %v1472
  %2113 = vmatprep.subr.bf16.mxu0 %v1475
  %2114 = vmatpush1.bf16.msra.mxu0 %v1474
  %2115 = vmatprep.subr.bf16.mxu0 %v1477
  %2116 = vmatpush1.bf16.msra.mxu0 %v1476
  %2117 = vmatprep.subr.bf16.mxu0 %v1479
  %2118 = vmatpush1.bf16.msra.mxu0 %v1478
  %2119 = vmatprep.subr.bf16.mxu0 %v1481
  %2120 = vmatpush1.bf16.msra.mxu0 %v1480
  %2121 = vmatprep.subr.bf16.mxu0 %v1483
  %2122 = vmatpush1.bf16.msra.mxu0 %v1482
  %2123 = vmatprep.subr.bf16.mxu0 %v1485
  %2124 = vmatpush1.bf16.msra.mxu0 %v1484
  %2125 = vmatprep.subr.bf16.mxu0 %v1487
  %2126 = vmatpush1.bf16.msra.mxu0 %v1486
  %2127 = vmatprep.mubr.bf16.mxu0 %v65
  %2128 = vmatmul.mubr.bf16.gmra.mrb[0].mxu0 %v64
  %v2129 = vpop.f32.mrb[0].mxu0
  %v2130 = vadd.f32 %v2089, %v2129
  %v2131 = vpop.f32.mrb[0].mxu0
  %v2132 = vadd.f32 %v2091, %v2131
  %v2133 = vpop.f32.mrb[0].mxu0
  %v2134 = vpop.f32.mrb[0].mxu0
  %2135 = vdwg.mxu0
  %2136 = vmatprep.subr.bf16.mxu0 %v1489
  %2137 = vmatpush1.bf16.msra.mxu0 %v1488
  %2138 = vmatprep.subr.bf16.mxu0 %v1491
  %2139 = vmatpush1.bf16.msra.mxu0 %v1490
  %2140 = vmatprep.subr.bf16.mxu0 %v1493
  %2141 = vmatpush1.bf16.msra.mxu0 %v1492
  %2142 = vmatprep.subr.bf16.mxu0 %v1495
  %2143 = vmatpush1.bf16.msra.mxu0 %v1494
  %2144 = vmatprep.subr.bf16.mxu0 %v1497
  %2145 = vmatpush1.bf16.msra.mxu0 %v1496
  %2146 = vmatprep.subr.bf16.mxu0 %v1499
  %2147 = vmatpush1.bf16.msra.mxu0 %v1498
  %2148 = vmatprep.subr.bf16.mxu0 %v1501
  %2149 = vmatpush1.bf16.msra.mxu0 %v1500
  %2150 = vmatprep.subr.bf16.mxu0 %v1503
  %2151 = vmatpush1.bf16.msra.mxu0 %v1502
  %2152 = vmatprep.subr.bf16.mxu0 %v1505
  %2153 = vmatpush1.bf16.msra.mxu0 %v1504
  %2154 = vmatprep.subr.bf16.mxu0 %v1507
  %2155 = vmatpush1.bf16.msra.mxu0 %v1506
  %2156 = vmatprep.subr.bf16.mxu0 %v1509
  %2157 = vmatpush1.bf16.msra.mxu0 %v1508
  %2158 = vmatprep.subr.bf16.mxu0 %v1511
  %2159 = vmatpush1.bf16.msra.mxu0 %v1510
  %2160 = vmatprep.subr.bf16.mxu0 %v1513
  %2161 = vmatpush1.bf16.msra.mxu0 %v1512
  %2162 = vmatprep.subr.bf16.mxu0 %v1515
  %2163 = vmatpush1.bf16.msra.mxu0 %v1514
  %2164 = vmatprep.subr.bf16.mxu0 %v1517
  %2165 = vmatpush1.bf16.msra.mxu0 %v1516
  %2166 = vmatprep.subr.bf16.mxu0 %v1519
  %2167 = vmatpush1.bf16.msra.mxu0 %v1518
  %2168 = vmatprep.mubr.bf16.mxu0 %v67
  %2169 = vmatmul.mubr.bf16.gmra.mrb[0].mxu0 %v66
  %v2170 = vpop.f32.mrb[0].mxu0
  %v2171 = vadd.f32 %v2130, %v2170
  %v2172 = vpop.f32.mrb[0].mxu0
  %v2173 = vadd.f32 %v2132, %v2172
  %v2174 = vpop.f32.mrb[0].mxu0
  %v2175 = vpop.f32.mrb[0].mxu0
  %2176 = vdwg.mxu0
  %vm2177 = vcmp.ge.f32.partialorder %v2171, 0.0
  %vm2178 = vcmp.ge.f32.partialorder %v2173, 0.0
  %v2179 = vmul.f32 %v2171, 0.01
  %v2180 = vmul.f32 %v2173, 0.01
  %v2181 = vsel %vm2177, %v2171, %v2179
  %v2182 = vsel %vm2178, %v2173, %v2180
  %v2183 = vpack.c.bf16 %v2181, %v2181
  %v2184 = vpack.c.bf16 %v2182, %v2182
  %v2185 = vld [vmem:[%s3] sm:$0xff]
  %v2186 = vld [vmem:[%s3 + $0x8] sm:$0xff]
  %v2187 = vld [vmem:[%s3 + $0x10] sm:$0xff]
  %v2188 = vld [vmem:[%s3 + $0x18] sm:$0xff]
  %v2189 = vld [vmem:[%s3 + $0x20] sm:$0xff]
  %v2190 = vld [vmem:[%s3 + $0x28] sm:$0xff]
  %v2191 = vld [vmem:[%s3 + $0x30] sm:$0xff]
  %v2192 = vld [vmem:[%s3 + $0x38] sm:$0xff]
  %v2193 = vld [vmem:[%s3 + $0x40] sm:$0xff]
  %v2194 = vld [vmem:[%s3 + $0x48] sm:$0xff]
  %v2195 = vld [vmem:[%s3 + $0x50] sm:$0xff]
  %v2196 = vld [vmem:[%s3 + $0x58] sm:$0xff]
  %v2197 = vld [vmem:[%s3 + $0x60] sm:$0xff]
  %v2198 = vld [vmem:[%s3 + $0x68] sm:$0xff]
  %v2199 = vld [vmem:[%s3 + $0x70] sm:$0xff]
  %v2200 = vld [vmem:[%s3 + $0x78] sm:$0xff]
  %v2201 = vld [vmem:[%s3 + $0x80] sm:$0xff]
  %v2202 = vld [vmem:[%s3 + $0x88] sm:$0xff]
  %v2203 = vld [vmem:[%s3 + $0x90] sm:$0xff]
  %v2204 = vld [vmem:[%s3 + $0x98] sm:$0xff]
  %v2205 = vld [vmem:[%s3 + $0xa0] sm:$0xff]
  %v2206 = vld [vmem:[%s3 + $0xa8] sm:$0xff]
  %v2207 = vld [vmem:[%s3 + $0xb0] sm:$0xff]
  %v2208 = vld [vmem:[%s3 + $0xb8] sm:$0xff]
  %v2209 = vld [vmem:[%s3 + $0xc0] sm:$0xff]
  %v2210 = vld [vmem:[%s3 + $0xc8] sm:$0xff]
  %v2211 = vld [vmem:[%s3 + $0xd0] sm:$0xff]
  %v2212 = vld [vmem:[%s3 + $0xd8] sm:$0xff]
  %v2213 = vld [vmem:[%s3 + $0xe0] sm:$0xff]
  %v2214 = vld [vmem:[%s3 + $0xe8] sm:$0xff]
  %v2215 = vld [vmem:[%s3 + $0xf0] sm:$0xff]
  %v2216 = vld [vmem:[%s3 + $0xf8] sm:$0xff]
  %v2217 = vld [vmem:[%s4] sm:$0x3]
  %v2219 = vlaneseq
  %v2220 = vshrl.u32 %v2219, 7
  %v2221 = vsub.s32 0, %v2220
  %v2222 = vrot.slane %v2217, %v2221
  %v2223 = vlaneseq
  %v2224 = vshrl.u32 %v2223, 7
  %v2225 = vsub.s32 1, %v2224
  %v2226 = vrot.slane %v2217, %v2225
  %v2261 = vunpack.c.l.b16 %v2185
  %v2262 = vunpack.c.h.b16 %v2185
  %v2263 = vunpack.c.l.b16 %v2186
  %v2264 = vunpack.c.h.b16 %v2186
  %v2265 = vunpack.c.l.b16 %v2187
  %v2266 = vunpack.c.h.b16 %v2187
  %v2267 = vunpack.c.l.b16 %v2188
  %v2268 = vunpack.c.h.b16 %v2188
  %v2269 = vunpack.c.l.b16 %v2189
  %v2270 = vunpack.c.h.b16 %v2189
  %v2271 = vunpack.c.l.b16 %v2190
  %v2272 = vunpack.c.h.b16 %v2190
  %v2273 = vunpack.c.l.b16 %v2191
  %v2274 = vunpack.c.h.b16 %v2191
  %v2275 = vunpack.c.l.b16 %v2192
  %v2276 = vunpack.c.h.b16 %v2192
  %v2277 = vunpack.c.l.b16 %v2193
  %v2278 = vunpack.c.h.b16 %v2193
  %v2279 = vunpack.c.l.b16 %v2194
  %v2280 = vunpack.c.h.b16 %v2194
  %v2281 = vunpack.c.l.b16 %v2195
  %v2282 = vunpack.c.h.b16 %v2195
  %v2283 = vunpack.c.l.b16 %v2196
  %v2284 = vunpack.c.h.b16 %v2196
  %v2285 = vunpack.c.l.b16 %v2197
  %v2286 = vunpack.c.h.b16 %v2197
  %v2287 = vunpack.c.l.b16 %v2198
  %v2288 = vunpack.c.h.b16 %v2198
  %v2289 = vunpack.c.l.b16 %v2199
  %v2290 = vunpack.c.h.b16 %v2199
  %v2291 = vunpack.c.l.b16 %v2200
  %v2292 = vunpack.c.h.b16 %v2200
  %v2293 = vunpack.c.l.b16 %v2201
  %v2294 = vunpack.c.h.b16 %v2201
  %v2295 = vunpack.c.l.b16 %v2202
  %v2296 = vunpack.c.h.b16 %v2202
  %v2297 = vunpack.c.l.b16 %v2203
  %v2298 = vunpack.c.h.b16 %v2203
  %v2299 = vunpack.c.l.b16 %v2204
  %v2300 = vunpack.c.h.b16 %v2204
  %v2301 = vunpack.c.l.b16 %v2205
  %v2302 = vunpack.c.h.b16 %v2205
  %v2303 = vunpack.c.l.b16 %v2206
  %v2304 = vunpack.c.h.b16 %v2206
  %v2305 = vunpack.c.l.b16 %v2207
  %v2306 = vunpack.c.h.b16 %v2207
  %v2307 = vunpack.c.l.b16 %v2208
  %v2308 = vunpack.c.h.b16 %v2208
  %v2309 = vunpack.c.l.b16 %v2209
  %v2310 = vunpack.c.h.b16 %v2209
  %v2311 = vunpack.c.l.b16 %v2210
  %v2312 = vunpack.c.h.b16 %v2210
  %v2313 = vunpack.c.l.b16 %v2211
  %v2314 = vunpack.c.h.b16 %v2211
  %v2315 = vunpack.c.l.b16 %v2212
  %v2316 = vunpack.c.h.b16 %v2212
  %v2317 = vunpack.c.l.b16 %v2213
  %v2318 = vunpack.c.h.b16 %v2213
  %v2319 = vunpack.c.l.b16 %v2214
  %v2320 = vunpack.c.h.b16 %v2214
  %v2321 = vunpack.c.l.b16 %v2215
  %v2322 = vunpack.c.h.b16 %v2215
  %v2323 = vunpack.c.l.b16 %v2216
  %v2324 = vunpack.c.h.b16 %v2216
  %v2325 = vpack.c.b16 %v2263, %v2261
  %v2326 = vpack.c.b16 %v2264, %v2262
  %v2327 = vpack.c.b16 %v2267, %v2265
  %v2328 = vpack.c.b16 %v2268, %v2266
  %v2329 = vpack.c.b16 %v2271, %v2269
  %v2330 = vpack.c.b16 %v2272, %v2270
  %v2331 = vpack.c.b16 %v2275, %v2273
  %v2332 = vpack.c.b16 %v2276, %v2274
  %v2333 = vpack.c.b16 %v2279, %v2277
  %v2334 = vpack.c.b16 %v2280, %v2278
  %v2335 = vpack.c.b16 %v2283, %v2281
  %v2336 = vpack.c.b16 %v2284, %v2282
  %v2337 = vpack.c.b16 %v2287, %v2285
  %v2338 = vpack.c.b16 %v2288, %v2286
  %v2339 = vpack.c.b16 %v2291, %v2289
  %v2340 = vpack.c.b16 %v2292, %v2290
  %v2341 = vpack.c.b16 %v2295, %v2293
  %v2342 = vpack.c.b16 %v2296, %v2294
  %v2343 = vpack.c.b16 %v2299, %v2297
  %v2344 = vpack.c.b16 %v2300, %v2298
  %v2345 = vpack.c.b16 %v2303, %v2301
  %v2346 = vpack.c.b16 %v2304, %v2302
  %v2347 = vpack.c.b16 %v2307, %v2305
  %v2348 = vpack.c.b16 %v2308, %v2306
  %v2349 = vpack.c.b16 %v2311, %v2309
  %v2350 = vpack.c.b16 %v2312, %v2310
  %v2351 = vpack.c.b16 %v2315, %v2313
  %v2352 = vpack.c.b16 %v2316, %v2314
  %v2353 = vpack.c.b16 %v2319, %v2317
  %v2354 = vpack.c.b16 %v2320, %v2318
  %v2355 = vpack.c.b16 %v2323, %v2321
  %v2356 = vpack.c.b16 %v2324, %v2322
  %2389 = vmatprep.subr.bf16.mxu0 %v2326
  %2390 = vmatpush1.bf16.msra.mxu0 %v2325
  %2391 = vmatprep.subr.bf16.mxu0 %v2328
  %2392 = vmatpush1.bf16.msra.mxu0 %v2327
  %2393 = vmatprep.subr.bf16.mxu0 %v2330
  %2394 = vmatpush1.bf16.msra.mxu0 %v2329
  %2395 = vmatprep.subr.bf16.mxu0 %v2332
  %2396 = vmatpush1.bf16.msra.mxu0 %v2331
  %2397 = vmatprep.subr.bf16.mxu0 %v2334
  %2398 = vmatpush1.bf16.msra.mxu0 %v2333
  %2399 = vmatprep.subr.bf16.mxu0 %v2336
  %2400 = vmatpush1.bf16.msra.mxu0 %v2335
  %2401 = vmatprep.subr.bf16.mxu0 %v2338
  %2402 = vmatpush1.bf16.msra.mxu0 %v2337
  %2403 = vmatprep.subr.bf16.mxu0 %v2340
  %2404 = vmatpush1.bf16.msra.mxu0 %v2339
  %2405 = vmatprep.subr.bf16.mxu0 %v2342
  %2406 = vmatpush1.bf16.msra.mxu0 %v2341
  %2407 = vmatprep.subr.bf16.mxu0 %v2344
  %2408 = vmatpush1.bf16.msra.mxu0 %v2343
  %2409 = vmatprep.subr.bf16.mxu0 %v2346
  %2410 = vmatpush1.bf16.msra.mxu0 %v2345
  %2411 = vmatprep.subr.bf16.mxu0 %v2348
  %2412 = vmatpush1.bf16.msra.mxu0 %v2347
  %2413 = vmatprep.subr.bf16.mxu0 %v2350
  %2414 = vmatpush1.bf16.msra.mxu0 %v2349
  %2415 = vmatprep.subr.bf16.mxu0 %v2352
  %2416 = vmatpush1.bf16.msra.mxu0 %v2351
  %2417 = vmatprep.subr.bf16.mxu0 %v2354
  %2418 = vmatpush1.bf16.msra.mxu0 %v2353
  %2419 = vmatprep.subr.bf16.mxu0 %v2356
  %2420 = vmatpush1.bf16.msra.mxu0 %v2355
  %2421 = vmatprep.mubr.bf16.mxu0 %v2184
  %2422 = vmatmul.mubr.bf16.gmra.mrb[0].mxu0 %v2183
  %v2423 = vpop.f32.mrb[0].mxu0
  %v2424 = vadd.f32 %v2222, %v2423
  %v2425 = vpop.f32.mrb[0].mxu0
  %v2426 = vadd.f32 %v2226, %v2425
  %v2427 = vpop.f32.mrb[0].mxu0
  %v2428 = vpop.f32.mrb[0].mxu0
  %2429 = vdwg.mxu0
  %vm2430 = vcmp.ge.f32.partialorder %v2424, 0.0
  %vm2431 = vcmp.ge.f32.partialorder %v2426, 0.0
  %v2432 = vmul.f32 %v2424, 0.01
  %v2433 = vmul.f32 %v2426, 0.01
  %v2434 = vsel %vm2430, %v2424, %v2432
  %v2435 = vsel %vm2431, %v2426, %v2433
  %v2436 = vpack.c.bf16 %v2434, %v2434
  %v2437 = vpack.c.bf16 %v2435, %v2435
  %v2438 = vld [vmem:[%s5] sm:$0xff]
  %v2439 = vld [vmem:[%s5 + $0x8] sm:$0xff]
  %v2440 = vld [vmem:[%s5 + $0x10] sm:$0xff]
  %v2441 = vld [vmem:[%s5 + $0x18] sm:$0xff]
  %v2442 = vld [vmem:[%s5 + $0x20] sm:$0xff]
  %v2443 = vld [vmem:[%s5 + $0x28] sm:$0xff]
  %v2444 = vld [vmem:[%s5 + $0x30] sm:$0xff]
  %v2445 = vld [vmem:[%s5 + $0x38] sm:$0xff]
  %v2446 = vld [vmem:[%s5 + $0x40] sm:$0xff]
  %v2447 = vld [vmem:[%s5 + $0x48] sm:$0xff]
  %v2448 = vld [vmem:[%s5 + $0x50] sm:$0xff]
  %v2449 = vld [vmem:[%s5 + $0x58] sm:$0xff]
  %v2450 = vld [vmem:[%s5 + $0x60] sm:$0xff]
  %v2451 = vld [vmem:[%s5 + $0x68] sm:$0xff]
  %v2452 = vld [vmem:[%s5 + $0x70] sm:$0xff]
  %v2453 = vld [vmem:[%s5 + $0x78] sm:$0xff]
  %v2454 = vld [vmem:[%s5 + $0x80] sm:$0xff]
  %v2455 = vld [vmem:[%s5 + $0x88] sm:$0xff]
  %v2456 = vld [vmem:[%s5 + $0x90] sm:$0xff]
  %v2457 = vld [vmem:[%s5 + $0x98] sm:$0xff]
  %v2458 = vld [vmem:[%s5 + $0xa0] sm:$0xff]
  %v2459 = vld [vmem:[%s5 + $0xa8] sm:$0xff]
  %v2460 = vld [vmem:[%s5 + $0xb0] sm:$0xff]
  %v2461 = vld [vmem:[%s5 + $0xb8] sm:$0xff]
  %v2462 = vld [vmem:[%s5 + $0xc0] sm:$0xff]
  %v2463 = vld [vmem:[%s5 + $0xc8] sm:$0xff]
  %v2464 = vld [vmem:[%s5 + $0xd0] sm:$0xff]
  %v2465 = vld [vmem:[%s5 + $0xd8] sm:$0xff]
  %v2466 = vld [vmem:[%s5 + $0xe0] sm:$0xff]
  %v2467 = vld [vmem:[%s5 + $0xe8] sm:$0xff]
  %v2468 = vld [vmem:[%s5 + $0xf0] sm:$0xff]
  %v2469 = vld [vmem:[%s5 + $0xf8] sm:$0xff]
  %v2470 = vld [vmem:[%s6] sm:$0x3]
  %v2472 = vlaneseq
  %v2473 = vshrl.u32 %v2472, 7
  %v2474 = vsub.s32 0, %v2473
  %v2475 = vrot.slane %v2470, %v2474
  %v2476 = vlaneseq
  %v2477 = vshrl.u32 %v2476, 7
  %v2478 = vsub.s32 1, %v2477
  %v2479 = vrot.slane %v2470, %v2478
  %v2514 = vunpack.c.l.b16 %v2438
  %v2515 = vunpack.c.h.b16 %v2438
  %v2516 = vunpack.c.l.b16 %v2439
  %v2517 = vunpack.c.h.b16 %v2439
  %v2518 = vunpack.c.l.b16 %v2440
  %v2519 = vunpack.c.h.b16 %v2440
  %v2520 = vunpack.c.l.b16 %v2441
  %v2521 = vunpack.c.h.b16 %v2441
  %v2522 = vunpack.c.l.b16 %v2442
  %v2523 = vunpack.c.h.b16 %v2442
  %v2524 = vunpack.c.l.b16 %v2443
  %v2525 = vunpack.c.h.b16 %v2443
  %v2526 = vunpack.c.l.b16 %v2444
  %v2527 = vunpack.c.h.b16 %v2444
  %v2528 = vunpack.c.l.b16 %v2445
  %v2529 = vunpack.c.h.b16 %v2445
  %v2530 = vunpack.c.l.b16 %v2446
  %v2531 = vunpack.c.h.b16 %v2446
  %v2532 = vunpack.c.l.b16 %v2447
  %v2533 = vunpack.c.h.b16 %v2447
  %v2534 = vunpack.c.l.b16 %v2448
  %v2535 = vunpack.c.h.b16 %v2448
  %v2536 = vunpack.c.l.b16 %v2449
  %v2537 = vunpack.c.h.b16 %v2449
  %v2538 = vunpack.c.l.b16 %v2450
  %v2539 = vunpack.c.h.b16 %v2450
  %v2540 = vunpack.c.l.b16 %v2451
  %v2541 = vunpack.c.h.b16 %v2451
  %v2542 = vunpack.c.l.b16 %v2452
  %v2543 = vunpack.c.h.b16 %v2452
  %v2544 = vunpack.c.l.b16 %v2453
  %v2545 = vunpack.c.h.b16 %v2453
  %v2546 = vunpack.c.l.b16 %v2454
  %v2547 = vunpack.c.h.b16 %v2454
  %v2548 = vunpack.c.l.b16 %v2455
  %v2549 = vunpack.c.h.b16 %v2455
  %v2550 = vunpack.c.l.b16 %v2456
  %v2551 = vunpack.c.h.b16 %v2456
  %v2552 = vunpack.c.l.b16 %v2457
  %v2553 = vunpack.c.h.b16 %v2457
  %v2554 = vunpack.c.l.b16 %v2458
  %v2555 = vunpack.c.h.b16 %v2458
  %v2556 = vunpack.c.l.b16 %v2459
  %v2557 = vunpack.c.h.b16 %v2459
  %v2558 = vunpack.c.l.b16 %v2460
  %v2559 = vunpack.c.h.b16 %v2460
  %v2560 = vunpack.c.l.b16 %v2461
  %v2561 = vunpack.c.h.b16 %v2461
  %v2562 = vunpack.c.l.b16 %v2462
  %v2563 = vunpack.c.h.b16 %v2462
  %v2564 = vunpack.c.l.b16 %v2463
  %v2565 = vunpack.c.h.b16 %v2463
  %v2566 = vunpack.c.l.b16 %v2464
  %v2567 = vunpack.c.h.b16 %v2464
  %v2568 = vunpack.c.l.b16 %v2465
  %v2569 = vunpack.c.h.b16 %v2465
  %v2570 = vunpack.c.l.b16 %v2466
  %v2571 = vunpack.c.h.b16 %v2466
  %v2572 = vunpack.c.l.b16 %v2467
  %v2573 = vunpack.c.h.b16 %v2467
  %v2574 = vunpack.c.l.b16 %v2468
  %v2575 = vunpack.c.h.b16 %v2468
  %v2576 = vunpack.c.l.b16 %v2469
  %v2577 = vunpack.c.h.b16 %v2469
  %v2578 = vpack.c.b16 %v2516, %v2514
  %v2579 = vpack.c.b16 %v2517, %v2515
  %v2580 = vpack.c.b16 %v2520, %v2518
  %v2581 = vpack.c.b16 %v2521, %v2519
  %v2582 = vpack.c.b16 %v2524, %v2522
  %v2583 = vpack.c.b16 %v2525, %v2523
  %v2584 = vpack.c.b16 %v2528, %v2526
  %v2585 = vpack.c.b16 %v2529, %v2527
  %v2586 = vpack.c.b16 %v2532, %v2530
  %v2587 = vpack.c.b16 %v2533, %v2531
  %v2588 = vpack.c.b16 %v2536, %v2534
  %v2589 = vpack.c.b16 %v2537, %v2535
  %v2590 = vpack.c.b16 %v2540, %v2538
  %v2591 = vpack.c.b16 %v2541, %v2539
  %v2592 = vpack.c.b16 %v2544, %v2542
  %v2593 = vpack.c.b16 %v2545, %v2543
  %v2594 = vpack.c.b16 %v2548, %v2546
  %v2595 = vpack.c.b16 %v2549, %v2547
  %v2596 = vpack.c.b16 %v2552, %v2550
  %v2597 = vpack.c.b16 %v2553, %v2551
  %v2598 = vpack.c.b16 %v2556, %v2554
  %v2599 = vpack.c.b16 %v2557, %v2555
  %v2600 = vpack.c.b16 %v2560, %v2558
  %v2601 = vpack.c.b16 %v2561, %v2559
  %v2602 = vpack.c.b16 %v2564, %v2562
  %v2603 = vpack.c.b16 %v2565, %v2563
  %v2604 = vpack.c.b16 %v2568, %v2566
  %v2605 = vpack.c.b16 %v2569, %v2567
  %v2606 = vpack.c.b16 %v2572, %v2570
  %v2607 = vpack.c.b16 %v2573, %v2571
  %v2608 = vpack.c.b16 %v2576, %v2574
  %v2609 = vpack.c.b16 %v2577, %v2575
  %2642 = vmatprep.subr.bf16.mxu0 %v2579
  %2643 = vmatpush1.bf16.msra.mxu0 %v2578
  %2644 = vmatprep.subr.bf16.mxu0 %v2581
  %2645 = vmatpush1.bf16.msra.mxu0 %v2580
  %2646 = vmatprep.subr.bf16.mxu0 %v2583
  %2647 = vmatpush1.bf16.msra.mxu0 %v2582
  %2648 = vmatprep.subr.bf16.mxu0 %v2585
  %2649 = vmatpush1.bf16.msra.mxu0 %v2584
  %2650 = vmatprep.subr.bf16.mxu0 %v2587
  %2651 = vmatpush1.bf16.msra.mxu0 %v2586
  %2652 = vmatprep.subr.bf16.mxu0 %v2589
  %2653 = vmatpush1.bf16.msra.mxu0 %v2588
  %2654 = vmatprep.subr.bf16.mxu0 %v2591
  %2655 = vmatpush1.bf16.msra.mxu0 %v2590
  %2656 = vmatprep.subr.bf16.mxu0 %v2593
  %2657 = vmatpush1.bf16.msra.mxu0 %v2592
  %2658 = vmatprep.subr.bf16.mxu0 %v2595
  %2659 = vmatpush1.bf16.msra.mxu0 %v2594
  %2660 = vmatprep.subr.bf16.mxu0 %v2597
  %2661 = vmatpush1.bf16.msra.mxu0 %v2596
  %2662 = vmatprep.subr.bf16.mxu0 %v2599
  %2663 = vmatpush1.bf16.msra.mxu0 %v2598
  %2664 = vmatprep.subr.bf16.mxu0 %v2601
  %2665 = vmatpush1.bf16.msra.mxu0 %v2600
  %2666 = vmatprep.subr.bf16.mxu0 %v2603
  %2667 = vmatpush1.bf16.msra.mxu0 %v2602
  %2668 = vmatprep.subr.bf16.mxu0 %v2605
  %2669 = vmatpush1.bf16.msra.mxu0 %v2604
  %2670 = vmatprep.subr.bf16.mxu0 %v2607
  %2671 = vmatpush1.bf16.msra.mxu0 %v2606
  %2672 = vmatprep.subr.bf16.mxu0 %v2609
  %2673 = vmatpush1.bf16.msra.mxu0 %v2608
  %2674 = vmatprep.mubr.bf16.mxu0 %v2437
  %2675 = vmatmul.mubr.bf16.gmra.mrb[0].mxu0 %v2436
  %v2676 = vpop.f32.mrb[0].mxu0
  %v2677 = vadd.f32 %v2475, %v2676
  %v2678 = vpop.f32.mrb[0].mxu0
  %v2679 = vadd.f32 %v2479, %v2678
  %v2680 = vpop.f32.mrb[0].mxu0
  %v2681 = vpop.f32.mrb[0].mxu0
  %2682 = vdwg.mxu0
  %vm2683 = vcmp.ge.f32.partialorder %v2677, 0.0
  %vm2684 = vcmp.ge.f32.partialorder %v2679, 0.0
  %v2685 = vmul.f32 %v2677, 0.01
  %v2686 = vmul.f32 %v2679, 0.01
  %v2687 = vsel %vm2683, %v2677, %v2685
  %v2688 = vsel %vm2684, %v2679, %v2686
  %v2689 = vpack.c.bf16 %v2687, %v2687
  %v2690 = vpack.c.bf16 %v2688, %v2688
  %v2691 = vld [vmem:[%s7] sm:$0xff]
  %v2692 = vld [vmem:[%s7 + $0x8] sm:$0xff]
  %v2693 = vld [vmem:[%s7 + $0x10] sm:$0xff]
  %v2694 = vld [vmem:[%s7 + $0x18] sm:$0xff]
  %v2695 = vld [vmem:[%s7 + $0x20] sm:$0xff]
  %v2696 = vld [vmem:[%s7 + $0x28] sm:$0xff]
  %v2697 = vld [vmem:[%s7 + $0x30] sm:$0xff]
  %v2698 = vld [vmem:[%s7 + $0x38] sm:$0xff]
  %v2699 = vld [vmem:[%s7 + $0x40] sm:$0xff]
  %v2700 = vld [vmem:[%s7 + $0x48] sm:$0xff]
  %v2701 = vld [vmem:[%s7 + $0x50] sm:$0xff]
  %v2702 = vld [vmem:[%s7 + $0x58] sm:$0xff]
  %v2703 = vld [vmem:[%s7 + $0x60] sm:$0xff]
  %v2704 = vld [vmem:[%s7 + $0x68] sm:$0xff]
  %v2705 = vld [vmem:[%s7 + $0x70] sm:$0xff]
  %v2706 = vld [vmem:[%s7 + $0x78] sm:$0xff]
  %v2707 = vld [vmem:[%s7 + $0x80] sm:$0xff]
  %v2708 = vld [vmem:[%s7 + $0x88] sm:$0xff]
  %v2709 = vld [vmem:[%s7 + $0x90] sm:$0xff]
  %v2710 = vld [vmem:[%s7 + $0x98] sm:$0xff]
  %v2711 = vld [vmem:[%s7 + $0xa0] sm:$0xff]
  %v2712 = vld [vmem:[%s7 + $0xa8] sm:$0xff]
  %v2713 = vld [vmem:[%s7 + $0xb0] sm:$0xff]
  %v2714 = vld [vmem:[%s7 + $0xb8] sm:$0xff]
  %v2715 = vld [vmem:[%s7 + $0xc0] sm:$0xff]
  %v2716 = vld [vmem:[%s7 + $0xc8] sm:$0xff]
  %v2717 = vld [vmem:[%s7 + $0xd0] sm:$0xff]
  %v2718 = vld [vmem:[%s7 + $0xd8] sm:$0xff]
  %v2719 = vld [vmem:[%s7 + $0xe0] sm:$0xff]
  %v2720 = vld [vmem:[%s7 + $0xe8] sm:$0xff]
  %v2721 = vld [vmem:[%s7 + $0xf0] sm:$0xff]
  %v2722 = vld [vmem:[%s7 + $0xf8] sm:$0xff]
  %v2723 = vld [vmem:[%s8] sm:$0x3]
  %v2725 = vlaneseq
  %v2726 = vshrl.u32 %v2725, 7
  %v2727 = vsub.s32 0, %v2726
  %v2728 = vrot.slane %v2723, %v2727
  %v2729 = vlaneseq
  %v2730 = vshrl.u32 %v2729, 7
  %v2731 = vsub.s32 1, %v2730
  %v2732 = vrot.slane %v2723, %v2731
  %v2767 = vunpack.c.l.b16 %v2691
  %v2768 = vunpack.c.h.b16 %v2691
  %v2769 = vunpack.c.l.b16 %v2692
  %v2770 = vunpack.c.h.b16 %v2692
  %v2771 = vunpack.c.l.b16 %v2693
  %v2772 = vunpack.c.h.b16 %v2693
  %v2773 = vunpack.c.l.b16 %v2694
  %v2774 = vunpack.c.h.b16 %v2694
  %v2775 = vunpack.c.l.b16 %v2695
  %v2776 = vunpack.c.h.b16 %v2695
  %v2777 = vunpack.c.l.b16 %v2696
  %v2778 = vunpack.c.h.b16 %v2696
  %v2779 = vunpack.c.l.b16 %v2697
  %v2780 = vunpack.c.h.b16 %v2697
  %v2781 = vunpack.c.l.b16 %v2698
  %v2782 = vunpack.c.h.b16 %v2698
  %v2783 = vunpack.c.l.b16 %v2699
  %v2784 = vunpack.c.h.b16 %v2699
  %v2785 = vunpack.c.l.b16 %v2700
  %v2786 = vunpack.c.h.b16 %v2700
  %v2787 = vunpack.c.l.b16 %v2701
  %v2788 = vunpack.c.h.b16 %v2701
  %v2789 = vunpack.c.l.b16 %v2702
  %v2790 = vunpack.c.h.b16 %v2702
  %v2791 = vunpack.c.l.b16 %v2703
  %v2792 = vunpack.c.h.b16 %v2703
  %v2793 = vunpack.c.l.b16 %v2704
  %v2794 = vunpack.c.h.b16 %v2704
  %v2795 = vunpack.c.l.b16 %v2705
  %v2796 = vunpack.c.h.b16 %v2705
  %v2797 = vunpack.c.l.b16 %v2706
  %v2798 = vunpack.c.h.b16 %v2706
  %v2799 = vunpack.c.l.b16 %v2707
  %v2800 = vunpack.c.h.b16 %v2707
  %v2801 = vunpack.c.l.b16 %v2708
  %v2802 = vunpack.c.h.b16 %v2708
  %v2803 = vunpack.c.l.b16 %v2709
  %v2804 = vunpack.c.h.b16 %v2709
  %v2805 = vunpack.c.l.b16 %v2710
  %v2806 = vunpack.c.h.b16 %v2710
  %v2807 = vunpack.c.l.b16 %v2711
  %v2808 = vunpack.c.h.b16 %v2711
  %v2809 = vunpack.c.l.b16 %v2712
  %v2810 = vunpack.c.h.b16 %v2712
  %v2811 = vunpack.c.l.b16 %v2713
  %v2812 = vunpack.c.h.b16 %v2713
  %v2813 = vunpack.c.l.b16 %v2714
  %v2814 = vunpack.c.h.b16 %v2714
  %v2815 = vunpack.c.l.b16 %v2715
  %v2816 = vunpack.c.h.b16 %v2715
  %v2817 = vunpack.c.l.b16 %v2716
  %v2818 = vunpack.c.h.b16 %v2716
  %v2819 = vunpack.c.l.b16 %v2717
  %v2820 = vunpack.c.h.b16 %v2717
  %v2821 = vunpack.c.l.b16 %v2718
  %v2822 = vunpack.c.h.b16 %v2718
  %v2823 = vunpack.c.l.b16 %v2719
  %v2824 = vunpack.c.h.b16 %v2719
  %v2825 = vunpack.c.l.b16 %v2720
  %v2826 = vunpack.c.h.b16 %v2720
  %v2827 = vunpack.c.l.b16 %v2721
  %v2828 = vunpack.c.h.b16 %v2721
  %v2829 = vunpack.c.l.b16 %v2722
  %v2830 = vunpack.c.h.b16 %v2722
  %v2831 = vpack.c.b16 %v2769, %v2767
  %v2832 = vpack.c.b16 %v2770, %v2768
  %v2833 = vpack.c.b16 %v2773, %v2771
  %v2834 = vpack.c.b16 %v2774, %v2772
  %v2835 = vpack.c.b16 %v2777, %v2775
  %v2836 = vpack.c.b16 %v2778, %v2776
  %v2837 = vpack.c.b16 %v2781, %v2779
  %v2838 = vpack.c.b16 %v2782, %v2780
  %v2839 = vpack.c.b16 %v2785, %v2783
  %v2840 = vpack.c.b16 %v2786, %v2784
  %v2841 = vpack.c.b16 %v2789, %v2787
  %v2842 = vpack.c.b16 %v2790, %v2788
  %v2843 = vpack.c.b16 %v2793, %v2791
  %v2844 = vpack.c.b16 %v2794, %v2792
  %v2845 = vpack.c.b16 %v2797, %v2795
  %v2846 = vpack.c.b16 %v2798, %v2796
  %v2847 = vpack.c.b16 %v2801, %v2799
  %v2848 = vpack.c.b16 %v2802, %v2800
  %v2849 = vpack.c.b16 %v2805, %v2803
  %v2850 = vpack.c.b16 %v2806, %v2804
  %v2851 = vpack.c.b16 %v2809, %v2807
  %v2852 = vpack.c.b16 %v2810, %v2808
  %v2853 = vpack.c.b16 %v2813, %v2811
  %v2854 = vpack.c.b16 %v2814, %v2812
  %v2855 = vpack.c.b16 %v2817, %v2815
  %v2856 = vpack.c.b16 %v2818, %v2816
  %v2857 = vpack.c.b16 %v2821, %v2819
  %v2858 = vpack.c.b16 %v2822, %v2820
  %v2859 = vpack.c.b16 %v2825, %v2823
  %v2860 = vpack.c.b16 %v2826, %v2824
  %v2861 = vpack.c.b16 %v2829, %v2827
  %v2862 = vpack.c.b16 %v2830, %v2828
  %2895 = vmatprep.subr.bf16.mxu0 %v2832
  %2896 = vmatpush1.bf16.msra.mxu0 %v2831
  %2897 = vmatprep.subr.bf16.mxu0 %v2834
  %2898 = vmatpush1.bf16.msra.mxu0 %v2833
  %2899 = vmatprep.subr.bf16.mxu0 %v2836
  %2900 = vmatpush1.bf16.msra.mxu0 %v2835
  %2901 = vmatprep.subr.bf16.mxu0 %v2838
  %2902 = vmatpush1.bf16.msra.mxu0 %v2837
  %2903 = vmatprep.subr.bf16.mxu0 %v2840
  %2904 = vmatpush1.bf16.msra.mxu0 %v2839
  %2905 = vmatprep.subr.bf16.mxu0 %v2842
  %2906 = vmatpush1.bf16.msra.mxu0 %v2841
  %2907 = vmatprep.subr.bf16.mxu0 %v2844
  %2908 = vmatpush1.bf16.msra.mxu0 %v2843
  %2909 = vmatprep.subr.bf16.mxu0 %v2846
  %2910 = vmatpush1.bf16.msra.mxu0 %v2845
  %2911 = vmatprep.subr.bf16.mxu0 %v2848
  %2912 = vmatpush1.bf16.msra.mxu0 %v2847
  %2913 = vmatprep.subr.bf16.mxu0 %v2850
  %2914 = vmatpush1.bf16.msra.mxu0 %v2849
  %2915 = vmatprep.subr.bf16.mxu0 %v2852
  %2916 = vmatpush1.bf16.msra.mxu0 %v2851
  %2917 = vmatprep.subr.bf16.mxu0 %v2854
  %2918 = vmatpush1.bf16.msra.mxu0 %v2853
  %2919 = vmatprep.subr.bf16.mxu0 %v2856
  %2920 = vmatpush1.bf16.msra.mxu0 %v2855
  %2921 = vmatprep.subr.bf16.mxu0 %v2858
  %2922 = vmatpush1.bf16.msra.mxu0 %v2857
  %2923 = vmatprep.subr.bf16.mxu0 %v2860
  %2924 = vmatpush1.bf16.msra.mxu0 %v2859
  %2925 = vmatprep.subr.bf16.mxu0 %v2862
  %2926 = vmatpush1.bf16.msra.mxu0 %v2861
  %2927 = vmatprep.mubr.bf16.mxu0 %v2690
  %2928 = vmatmul.mubr.bf16.gmra.mrb[0].mxu0 %v2689
  %v2929 = vpop.f32.mrb[0].mxu0
  %v2930 = vadd.f32 %v2728, %v2929
  %v2931 = vpop.f32.mrb[0].mxu0
  %v2932 = vadd.f32 %v2732, %v2931
  %v2933 = vpop.f32.mrb[0].mxu0
  %v2934 = vpop.f32.mrb[0].mxu0
  %2935 = vdwg.mxu0
  %v2936 = vtanh.pop %v2930
  %v2937 = vtanh.pop %v2932
  %2938 = vst [vmem:[%s9] sm:$0xff] %v2936
  %2939 = vst [vmem:[%s9 + $0x8] sm:$0xff] %v2937
  // Predicated region
  $region38: #{cnn_norm_forward.13} parent=0 // pred_check
    _
  $region39: #{cnn_norm_forward.13} parent=0 // pred_check_branch
    %2941 = sbr.rel (0) target = $region41
  $region40: #{cnn_norm_forward.13} parent=0 // pred_region
    _
  $region41: #{cnn_norm_forward.13} parent=0 // pred_fallthru
    _
  // Predicated region
  $region42: #{cnn_norm_forward.13} parent=0 // pred_check
    _
  $region43: #{cnn_norm_forward.13} parent=0 // pred_check_branch
    %2943 = sbr.rel (0) target = $region45
  $region44: #{cnn_norm_forward.13} parent=0 // pred_region
    _
  $region45: #{cnn_norm_forward.13} parent=0 // pred_fallthru
    _

</llo_original>
